<compile_context>
chip_gen: v5e
topology: v5e:2x2
jax: 0.10.0
libtpu: 0.0.40
codegen_flags: <defaults>
</compile_context>

<pallas_src>
import numpy as np
import jax
import jax.numpy as jnp
from jax.experimental import pallas as pl
from jax.experimental.pallas import tpu as pltpu


_CONV_CHANNELS = [4, 8, 16, 16, 16]   # Cout of conv1..conv5
_FC_HIDDEN = 20


# ----------------------------------------------------------------------------
# In-kernel building block: conv3x3(pad=1) + bias + ReLU + maxpool2x2 on a
# (W, Cin*H) activation slab (lane dim = Cin*H, sublane dim = W).
# ----------------------------------------------------------------------------
def _conv_relu_pool(y, wbt_ref, brow_ref, pw_ref, qh_ref):
    """y[w, ci*H + h] = x(ci, h, w)  ->  (W//2, Cout*(H//2)) in the same layout.

    wbt_ref : (3, Cin*H, Cout*H)  block-banded weights, one slab per kw tap
              (encodes the kh +/- 1 row shift and the ci->co contraction)
    brow_ref: (1, Cout*H)         bias[co] repeated H times
    pw_ref  : (W//2, W)           0/1 selector of even w rows   (pool compaction)
    qh_ref  : (Cout*H, Cout*H//2) 0/1 selector of even h lanes  (pool compaction)
    """
    f32 = jnp.float32
    w_dim, k_dim = y.shape

    # w +/- 1 taps as zero-filled sublane shifts (this is the padding=1 halo).
    zrow = jnp.zeros((1, k_dim), f32)
    y_m1 = jnp.concatenate([zrow, y[:-1, :]], axis=0)     # value at w-1 (kw=0)
    y_p1 = jnp.concatenate([y[1:, :], zrow], axis=0)      # value at w+1 (kw=2)

    acc = (jnp.dot(y_m1, wbt_ref[0], preferred_element_type=f32)
           + jnp.dot(y, wbt_ref[1], preferred_element_type=f32)
           + jnp.dot(y_p1, wbt_ref[2], preferred_element_type=f32))
    a = jnp.maximum(acc + brow_ref[...], 0.0)             # (W, Cout*H)
    m_dim = a.shape[1]

    # 2x2 max-pool: h-pairs are adjacent lanes, w-pairs are adjacent sublanes.
    a_h = jnp.concatenate([a[:, 1:], jnp.zeros((w_dim, 1), f32)], axis=1)
    v = jnp.maximum(a, a_h)                               # valid at even h lanes
    v_w = jnp.concatenate([v[1:, :], jnp.zeros((1, m_dim), f32)], axis=0)
    u = jnp.maximum(v, v_w)                               # valid at even w rows

    out = jnp.dot(pw_ref[...], u, preferred_element_type=f32)    # keep even rows
    out = jnp.dot(out, qh_ref[...], preferred_element_type=f32)  # keep even lanes
    return out


def _qnet_fused_kernel(x_ref, *refs):
    """One image per grid step: 5 conv/pool stages + fused FC head."""
    o_ref = refs[-1]
    w_refs = refs[:-1]

    y = x_ref[0]                                          # (W, C*H)
    for layer in range(5):
        wbt, brow, pw, qh = w_refs[4 * layer: 4 * layer + 4]
        y = _conv_relu_pool(y, wbt, brow, pw, qh)

    # Fused FC head: y is (Wf, 16*Hf); fc1 weights are pre-split per w column
    # so no in-kernel reshape is needed.
    w1c_ref, b1_ref, w2_ref, b2_ref = w_refs[20:24]
    h = b1_ref[...]                                       # (1, 20)
    for w in range(y.shape[0]):
        h = h + jnp.dot(y[w:w + 1, :], w1c_ref[w],
                        preferred_element_type=jnp.float32)
    h = jnp.maximum(h, 0.0)
    q = jnp.dot(h, w2_ref[...], preferred_element_type=jnp.float32) + b2_ref[...]
    o_ref[0] = q


# ----------------------------------------------------------------------------
# Parameters (deterministic, synthetic) and kernel-operand packing (glue).
# ----------------------------------------------------------------------------
def init_params(key, channels, action_size):
    """Synthetic parameters: conv weights in HWIO, FC weights in torch (out, in)."""
    cins = [channels] + _CONV_CHANNELS[:-1]
    keys = jax.random.split(key, 2 * 5 + 4)
    convs = []
    for i, (cin, cout) in enumerate(zip(cins, _CONV_CHANNELS)):
        w = 0.1 * jax.random.normal(keys[2 * i], (3, 3, cin, cout), jnp.float32)
        b = 0.1 * jax.random.normal(keys[2 * i + 1], (cout,), jnp.float32)
        convs.append((w, b))
    flat = 16 * 3 * 4                    # matches the module's hard-coded flat_len
    fc1_w = 0.1 * jax.random.normal(keys[-4], (_FC_HIDDEN, flat), jnp.float32)
    fc1_b = 0.1 * jax.random.normal(keys[-3], (_FC_HIDDEN,), jnp.float32)
    fc2_w = 0.1 * jax.random.normal(keys[-2], (action_size, _FC_HIDDEN), jnp.float32)
    fc2_b = 0.1 * jax.random.normal(keys[-1], (action_size,), jnp.float32)
    return {"convs": convs, "fc1_w": fc1_w, "fc1_b": fc1_b,
            "fc2_w": fc2_w, "fc2_b": fc2_b}


def _pack_kernel_operands(params, channels, H, W):
    """Precompute the structured matrices consumed by the fused kernel."""
    ops = []
    h, w = H, W
    for k_hwio, b in params["convs"]:
        k = np.asarray(k_hwio)           # (3, 3, cin, cout)
        cin, cout = k.shape[2], k.shape[3]
        # wbt[kw][ci*h + hp, co*h + ho] = K[kh, kw, ci, co]  where hp = ho + kh - 1
        # (zero where hp would be out of range -> SAME padding along h).
        wbt = np.zeros((3, cin * h, cout * h), np.float32)
        for kw in range(3):
            for kh in range(3):
                t = np.eye(h, k=1 - kh, dtype=np.float32)
                wbt[kw] += np.kron(k[kh, kw], t)
        brow = np.repeat(np.asarray(b, np.float32), h)[None, :]          # (1, cout*h)
        pw = np.ascontiguousarray(np.eye(w, dtype=np.float32)[::2])      # (w//2, w)
        qh = np.kron(np.eye(cout, dtype=np.float32),
                     np.eye(h, dtype=np.float32)[:, ::2])                # (cout*h, cout*h//2)
        ops += [jnp.asarray(wbt), jnp.asarray(brow),
                jnp.asarray(pw), jnp.asarray(np.ascontiguousarray(qh))]
        h, w = h // 2, w // 2

    # FC head: the kernel's final activation is y5[w, c*hf + hh]; fc1 was
    # generated in PyTorch's (c, h, w) flatten order -> permute + split per w.
    hf, wf = h, w
    w1 = np.asarray(params["fc1_w"]).reshape(_FC_HIDDEN, 16, hf, wf)     # (o, c, h, w)
    w1c = np.ascontiguousarray(
        np.transpose(w1, (3, 1, 2, 0)).reshape(wf, 16 * hf, _FC_HIDDEN)).astype(np.float32)
    ops += [jnp.asarray(w1c),
            jnp.asarray(np.asarray(params["fc1_b"], np.float32)[None, :]),
            jnp.asarray(np.ascontiguousarray(np.asarray(params["fc2_w"], np.float32).T)),
            jnp.asarray(np.asarray(params["fc2_b"], np.float32)[None, :])]
    return ops


def _const_index_map(ndim):
    zeros = (0,) * ndim

    def imap(n):
        return zeros

    return imap


def qnetwork_cnn_forward(params, x_nchw):
    N, C, H, W = x_nchw.shape
    # TODO(synk): MaxPool2d(ceil_mode=True) ragged-edge padding (odd pooled dims)
    # is not implemented; the module's hard-coded flat_len forces five even
    # pools (e.g. 96x128 -> 3x4), which this assert guards.
    assert H % 32 == 0 and W % 32 == 0 and (H // 32) * (W // 32) == 12
    A = params["fc2_b"].shape[0]

    ops = _pack_kernel_operands(params, C, H, W)
    # Kernel activation layout per image: (W, C*H), i.e. y[w, c*H + h] = x[c, h, w].
    y0 = jnp.transpose(x_nchw.astype(jnp.float32), (0, 3, 1, 2)).reshape(N, W, C * H)

    in_specs = [pl.BlockSpec((1, W, C * H), lambda n: (n, 0, 0))]
    in_specs += [pl.BlockSpec(op.shape, _const_index_map(op.ndim)) for op in ops]

    q3 = pl.pallas_call(
        _qnet_fused_kernel,
        out_shape=jax.ShapeDtypeStruct((N, 1, A), jnp.float32),
        grid=(N,),
        in_specs=in_specs,
        out_specs=pl.BlockSpec((1, 1, A), lambda n: (n, 0, 0)),
        compiler_params=pltpu.CompilerParams(
            dimension_semantics=("parallel",),
            vmem_limit_bytes=32 * 1024 * 1024,
        ),
    )(y0, *ops)
    return q3[:, 0, :]


# ----------------------------------------------------------------------------
# Pure-JAX reference (numeric sanity check only).
# ----------------------------------------------------------------------------
def reference_forward(params, x_nchw):
    x = jnp.transpose(x_nchw, (0, 2, 3, 1)).astype(jnp.float32)
    for w, b in params["convs"]:
        x = jax.lax.conv_general_dilated(
            x, w, window_strides=(1, 1), padding="SAME",
            dimension_numbers=("NHWC", "HWIO", "NHWC"))
        x = jnp.maximum(x + b, 0.0)
        x = jax.lax.reduce_window(x, -jnp.inf, jax.lax.max,
                                  (1, 2, 2, 1), (1, 2, 2, 1), "VALID")
    f = jnp.transpose(x, (0, 3, 1, 2)).reshape(x.shape[0], -1)  # torch (c,h,w) flatten
    h = jnp.maximum(f @ params["fc1_w"].T + params["fc1_b"], 0.0)
    return h @ params["fc2_w"].T + params["fc2_b"]


if __name__ == "__main__":
    key = jax.random.PRNGKey(0)
    k_param, k_x = jax.random.split(key)

    channels, action_size = 4, 6
    N, H, W = 2, 96, 128   # 96x128 --5 pools--> 3x4, so flat = 16*3*4 = 192

    params = init_params(k_param, channels, action_size)
    x = jax.random.normal(k_x, (N, channels, H, W), jnp.float32)  # NCHW input

    q = qnetwork_cnn_forward(params, x)
    q = jax.block_until_ready(q)
    assert q.shape == (N, action_size)

    q_ref = reference_forward(params, x)
    assert bool(jnp.allclose(q, q_ref, rtol=1e-2, atol=1e-3))

    print("KERNEL_OK")
</pallas_src>

<mosaic_0001>
module attributes {stable_mosaic.version = 11 : i64} {
  func.func @_qnet_fused_kernel(%arg0: i32, %arg1: memref<1x128x384xf32, #tpu.memory_space<vmem>>, %arg2: memref<3x384x384xf32, #tpu.memory_space<vmem>>, %arg3: memref<1x384xf32, #tpu.memory_space<vmem>>, %arg4: memref<64x128xf32, #tpu.memory_space<vmem>>, %arg5: memref<384x192xf32, #tpu.memory_space<vmem>>, %arg6: memref<3x192x384xf32, #tpu.memory_space<vmem>>, %arg7: memref<1x384xf32, #tpu.memory_space<vmem>>, %arg8: memref<32x64xf32, #tpu.memory_space<vmem>>, %arg9: memref<384x192xf32, #tpu.memory_space<vmem>>, %arg10: memref<3x192x384xf32, #tpu.memory_space<vmem>>, %arg11: memref<1x384xf32, #tpu.memory_space<vmem>>, %arg12: memref<16x32xf32, #tpu.memory_space<vmem>>, %arg13: memref<384x192xf32, #tpu.memory_space<vmem>>, %arg14: memref<3x192x192xf32, #tpu.memory_space<vmem>>, %arg15: memref<1x192xf32, #tpu.memory_space<vmem>>, %arg16: memref<8x16xf32, #tpu.memory_space<vmem>>, %arg17: memref<192x96xf32, #tpu.memory_space<vmem>>, %arg18: memref<3x96x96xf32, #tpu.memory_space<vmem>>, %arg19: memref<1x96xf32, #tpu.memory_space<vmem>>, %arg20: memref<4x8xf32, #tpu.memory_space<vmem>>, %arg21: memref<96x48xf32, #tpu.memory_space<vmem>>, %arg22: memref<4x48x20xf32, #tpu.memory_space<vmem>>, %arg23: memref<1x20xf32, #tpu.memory_space<vmem>>, %arg24: memref<20x6xf32, #tpu.memory_space<vmem>>, %arg25: memref<1x6xf32, #tpu.memory_space<vmem>>, %arg26: memref<1x1x6xf32, #tpu.memory_space<vmem>>) attributes {dimension_semantics = [#tpu.dimension_semantics<parallel>], iteration_bounds = array<i64: 2>, scalar_prefetch = 0 : i64, scratch_operands = 0 : i64, tpu.core_type = #tpu.core_type<tc>, window_params = [{transform_indices = @transform_0, window_bounds = array<i64: 1, 128, 384>}, {pipeline_mode = #tpu.pipeline_mode<synchronous>, transform_indices = @transform_1, window_bounds = array<i64: 3, 384, 384>}, {pipeline_mode = #tpu.pipeline_mode<synchronous>, transform_indices = @transform_2, window_bounds = array<i64: 1, 384>}, {pipeline_mode = #tpu.pipeline_mode<synchronous>, transform_indices = @transform_3, window_bounds = array<i64: 64, 128>}, {pipeline_mode = #tpu.pipeline_mode<synchronous>, transform_indices = @transform_4, window_bounds = array<i64: 384, 192>}, {pipeline_mode = #tpu.pipeline_mode<synchronous>, transform_indices = @transform_5, window_bounds = array<i64: 3, 192, 384>}, {pipeline_mode = #tpu.pipeline_mode<synchronous>, transform_indices = @transform_6, window_bounds = array<i64: 1, 384>}, {pipeline_mode = #tpu.pipeline_mode<synchronous>, transform_indices = @transform_7, window_bounds = array<i64: 32, 64>}, {pipeline_mode = #tpu.pipeline_mode<synchronous>, transform_indices = @transform_8, window_bounds = array<i64: 384, 192>}, {pipeline_mode = #tpu.pipeline_mode<synchronous>, transform_indices = @transform_9, window_bounds = array<i64: 3, 192, 384>}, {pipeline_mode = #tpu.pipeline_mode<synchronous>, transform_indices = @transform_10, window_bounds = array<i64: 1, 384>}, {pipeline_mode = #tpu.pipeline_mode<synchronous>, transform_indices = @transform_11, window_bounds = array<i64: 16, 32>}, {pipeline_mode = #tpu.pipeline_mode<synchronous>, transform_indices = @transform_12, window_bounds = array<i64: 384, 192>}, {pipeline_mode = #tpu.pipeline_mode<synchronous>, transform_indices = @transform_13, window_bounds = array<i64: 3, 192, 192>}, {pipeline_mode = #tpu.pipeline_mode<synchronous>, transform_indices = @transform_14, window_bounds = array<i64: 1, 192>}, {pipeline_mode = #tpu.pipeline_mode<synchronous>, transform_indices = @transform_15, window_bounds = array<i64: 8, 16>}, {pipeline_mode = #tpu.pipeline_mode<synchronous>, transform_indices = @transform_16, window_bounds = array<i64: 192, 96>}, {pipeline_mode = #tpu.pipeline_mode<synchronous>, transform_indices = @transform_17, window_bounds = array<i64: 3, 96, 96>}, {pipeline_mode = #tpu.pipeline_mode<synchronous>, transform_indices = @transform_18, window_bounds = array<i64: 1, 96>}, {pipeline_mode = #tpu.pipeline_mode<synchronous>, transform_indices = @transform_19, window_bounds = array<i64: 4, 8>}, {pipeline_mode = #tpu.pipeline_mode<synchronous>, transform_indices = @transform_20, window_bounds = array<i64: 96, 48>}, {pipeline_mode = #tpu.pipeline_mode<synchronous>, transform_indices = @transform_21, window_bounds = array<i64: 4, 48, 20>}, {pipeline_mode = #tpu.pipeline_mode<synchronous>, transform_indices = @transform_22, window_bounds = array<i64: 1, 20>}, {pipeline_mode = #tpu.pipeline_mode<synchronous>, transform_indices = @transform_23, window_bounds = array<i64: 20, 6>}, {pipeline_mode = #tpu.pipeline_mode<synchronous>, transform_indices = @transform_24, window_bounds = array<i64: 1, 6>}, {transform_indices = @transform_25, window_bounds = array<i64: 1, 1, 6>}]} {
    %c0 = arith.constant 0 : index
    %c0_0 = arith.constant 0 : index
    %c0_1 = arith.constant 0 : index
    %0 = vector.load %arg1[%c0, %c0_0, %c0_1] : memref<1x128x384xf32, #tpu.memory_space<vmem>>, vector<1x128x384xf32>
    %1 = vector.shape_cast %0 : vector<1x128x384xf32> to vector<128x384xf32>
    %cst = arith.constant 0.000000e+00 : f32
    %2 = vector.broadcast %cst : f32 to vector<1x384xf32>
    %3 = vector.extract_strided_slice %1 {offsets = [0, 0], sizes = [127, 384], strides = [1, 1]} : vector<128x384xf32> to vector<127x384xf32>
    %4 = tpu.concatenate %2, %3 in 0 : vector<1x384xf32>, vector<127x384xf32> -> vector<128x384xf32>
    %5 = vector.extract_strided_slice %1 {offsets = [1, 0], sizes = [127, 384], strides = [1, 1]} : vector<128x384xf32> to vector<127x384xf32>
    %6 = tpu.concatenate %5, %2 in 0 : vector<127x384xf32>, vector<1x384xf32> -> vector<128x384xf32>
    %c0_2 = arith.constant 0 : index
    %c0_3 = arith.constant 0 : index
    %c0_4 = arith.constant 0 : index
    %7 = vector.load %arg2[%c0_2, %c0_3, %c0_4] : memref<3x384x384xf32, #tpu.memory_space<vmem>>, vector<1x384x384xf32>
    %8 = vector.shape_cast %7 : vector<1x384x384xf32> to vector<384x384xf32>
    %cst_5 = arith.constant dense<0.000000e+00> : vector<128x384xf32>
    %9 = tpu.matmul %4, %8, %cst_5 {dimension_numbers = #tpu.dot_dimension_numbers<[1], [0], [0], [1], [0, 0, 1, 1], [], []>} : vector<128x384xf32>, vector<384x384xf32>, vector<128x384xf32> -> vector<128x384xf32>
    %c1 = arith.constant 1 : index
    %c0_6 = arith.constant 0 : index
    %c0_7 = arith.constant 0 : index
    %10 = vector.load %arg2[%c1, %c0_6, %c0_7] : memref<3x384x384xf32, #tpu.memory_space<vmem>>, vector<1x384x384xf32>
    %11 = vector.shape_cast %10 : vector<1x384x384xf32> to vector<384x384xf32>
    %cst_8 = arith.constant dense<0.000000e+00> : vector<128x384xf32>
    %12 = tpu.matmul %1, %11, %cst_8 {dimension_numbers = #tpu.dot_dimension_numbers<[1], [0], [0], [1], [0, 0, 1, 1], [], []>} : vector<128x384xf32>, vector<384x384xf32>, vector<128x384xf32> -> vector<128x384xf32>
    %13 = arith.addf %9, %12 : vector<128x384xf32>
    %c2 = arith.constant 2 : index
    %c0_9 = arith.constant 0 : index
    %c0_10 = arith.constant 0 : index
    %14 = vector.load %arg2[%c2, %c0_9, %c0_10] : memref<3x384x384xf32, #tpu.memory_space<vmem>>, vector<1x384x384xf32>
    %15 = vector.shape_cast %14 : vector<1x384x384xf32> to vector<384x384xf32>
    %cst_11 = arith.constant dense<0.000000e+00> : vector<128x384xf32>
    %16 = tpu.matmul %6, %15, %cst_11 {dimension_numbers = #tpu.dot_dimension_numbers<[1], [0], [0], [1], [0, 0, 1, 1], [], []>} : vector<128x384xf32>, vector<384x384xf32>, vector<128x384xf32> -> vector<128x384xf32>
    %17 = arith.addf %13, %16 : vector<128x384xf32>
    %c0_12 = arith.constant 0 : index
    %c0_13 = arith.constant 0 : index
    %18 = vector.load %arg3[%c0_12, %c0_13] : memref<1x384xf32, #tpu.memory_space<vmem>>, vector<1x384xf32>
    %19 = vector.broadcast %18 : vector<1x384xf32> to vector<128x384xf32>
    %20 = arith.addf %17, %19 : vector<128x384xf32>
    %cst_14 = arith.constant 0.000000e+00 : f32
    %21 = vector.broadcast %cst_14 : f32 to vector<128x384xf32>
    %22 = arith.maximumf %20, %21 : vector<128x384xf32>
    %23 = vector.extract_strided_slice %22 {offsets = [0, 1], sizes = [128, 383], strides = [1, 1]} : vector<128x384xf32> to vector<128x383xf32>
    %cst_15 = arith.constant 0.000000e+00 : f32
    %24 = vector.broadcast %cst_15 : f32 to vector<128x1xf32>
    %25 = tpu.concatenate %23, %24 in 1 : vector<128x383xf32>, vector<128x1xf32> -> vector<128x384xf32>
    %26 = arith.maximumf %22, %25 : vector<128x384xf32>
    %27 = vector.extract_strided_slice %26 {offsets = [1, 0], sizes = [127, 384], strides = [1, 1]} : vector<128x384xf32> to vector<127x384xf32>
    %cst_16 = arith.constant 0.000000e+00 : f32
    %28 = vector.broadcast %cst_16 : f32 to vector<1x384xf32>
    %29 = tpu.concatenate %27, %28 in 0 : vector<127x384xf32>, vector<1x384xf32> -> vector<128x384xf32>
    %30 = arith.maximumf %26, %29 : vector<128x384xf32>
    %c0_17 = arith.constant 0 : index
    %c0_18 = arith.constant 0 : index
    %31 = vector.load %arg4[%c0_17, %c0_18] : memref<64x128xf32, #tpu.memory_space<vmem>>, vector<64x128xf32>
    %cst_19 = arith.constant dense<0.000000e+00> : vector<64x384xf32>
    %32 = tpu.matmul %31, %30, %cst_19 {dimension_numbers = #tpu.dot_dimension_numbers<[1], [0], [0], [1], [0, 0, 1, 1], [], []>} : vector<64x128xf32>, vector<128x384xf32>, vector<64x384xf32> -> vector<64x384xf32>
    %c0_20 = arith.constant 0 : index
    %c0_21 = arith.constant 0 : index
    %33 = vector.load %arg5[%c0_20, %c0_21] : memref<384x192xf32, #tpu.memory_space<vmem>>, vector<384x192xf32>
    %cst_22 = arith.constant dense<0.000000e+00> : vector<64x192xf32>
    %34 = tpu.matmul %32, %33, %cst_22 {dimension_numbers = #tpu.dot_dimension_numbers<[1], [0], [0], [1], [0, 0, 1, 1], [], []>} : vector<64x384xf32>, vector<384x192xf32>, vector<64x192xf32> -> vector<64x192xf32>
    %cst_23 = arith.constant 0.000000e+00 : f32
    %35 = vector.broadcast %cst_23 : f32 to vector<1x192xf32>
    %36 = vector.extract_strided_slice %34 {offsets = [0, 0], sizes = [63, 192], strides = [1, 1]} : vector<64x192xf32> to vector<63x192xf32>
    %37 = tpu.concatenate %35, %36 in 0 : vector<1x192xf32>, vector<63x192xf32> -> vector<64x192xf32>
    %38 = vector.extract_strided_slice %34 {offsets = [1, 0], sizes = [63, 192], strides = [1, 1]} : vector<64x192xf32> to vector<63x192xf32>
    %39 = tpu.concatenate %38, %35 in 0 : vector<63x192xf32>, vector<1x192xf32> -> vector<64x192xf32>
    %c0_24 = arith.constant 0 : index
    %c0_25 = arith.constant 0 : index
    %c0_26 = arith.constant 0 : index
    %40 = vector.load %arg6[%c0_24, %c0_25, %c0_26] : memref<3x192x384xf32, #tpu.memory_space<vmem>>, vector<1x192x384xf32>
    %41 = vector.shape_cast %40 : vector<1x192x384xf32> to vector<192x384xf32>
    %cst_27 = arith.constant dense<0.000000e+00> : vector<64x384xf32>
    %42 = tpu.matmul %37, %41, %cst_27 {dimension_numbers = #tpu.dot_dimension_numbers<[1], [0], [0], [1], [0, 0, 1, 1], [], []>} : vector<64x192xf32>, vector<192x384xf32>, vector<64x384xf32> -> vector<64x384xf32>
    %c1_28 = arith.constant 1 : index
    %c0_29 = arith.constant 0 : index
    %c0_30 = arith.constant 0 : index
    %43 = vector.load %arg6[%c1_28, %c0_29, %c0_30] : memref<3x192x384xf32, #tpu.memory_space<vmem>>, vector<1x192x384xf32>
    %44 = vector.shape_cast %43 : vector<1x192x384xf32> to vector<192x384xf32>
    %cst_31 = arith.constant dense<0.000000e+00> : vector<64x384xf32>
    %45 = tpu.matmul %34, %44, %cst_31 {dimension_numbers = #tpu.dot_dimension_numbers<[1], [0], [0], [1], [0, 0, 1, 1], [], []>} : vector<64x192xf32>, vector<192x384xf32>, vector<64x384xf32> -> vector<64x384xf32>
    %46 = arith.addf %42, %45 : vector<64x384xf32>
    %c2_32 = arith.constant 2 : index
    %c0_33 = arith.constant 0 : index
    %c0_34 = arith.constant 0 : index
    %47 = vector.load %arg6[%c2_32, %c0_33, %c0_34] : memref<3x192x384xf32, #tpu.memory_space<vmem>>, vector<1x192x384xf32>
    %48 = vector.shape_cast %47 : vector<1x192x384xf32> to vector<192x384xf32>
    %cst_35 = arith.constant dense<0.000000e+00> : vector<64x384xf32>
    %49 = tpu.matmul %39, %48, %cst_35 {dimension_numbers = #tpu.dot_dimension_numbers<[1], [0], [0], [1], [0, 0, 1, 1], [], []>} : vector<64x192xf32>, vector<192x384xf32>, vector<64x384xf32> -> vector<64x384xf32>
    %50 = arith.addf %46, %49 : vector<64x384xf32>
    %c0_36 = arith.constant 0 : index
    %c0_37 = arith.constant 0 : index
    %51 = vector.load %arg7[%c0_36, %c0_37] : memref<1x384xf32, #tpu.memory_space<vmem>>, vector<1x384xf32>
    %52 = vector.broadcast %51 : vector<1x384xf32> to vector<64x384xf32>
    %53 = arith.addf %50, %52 : vector<64x384xf32>
    %cst_38 = arith.constant 0.000000e+00 : f32
    %54 = vector.broadcast %cst_38 : f32 to vector<64x384xf32>
    %55 = arith.maximumf %53, %54 : vector<64x384xf32>
    %56 = vector.extract_strided_slice %55 {offsets = [0, 1], sizes = [64, 383], strides = [1, 1]} : vector<64x384xf32> to vector<64x383xf32>
    %cst_39 = arith.constant 0.000000e+00 : f32
    %57 = vector.broadcast %cst_39 : f32 to vector<64x1xf32>
    %58 = tpu.concatenate %56, %57 in 1 : vector<64x383xf32>, vector<64x1xf32> -> vector<64x384xf32>
    %59 = arith.maximumf %55, %58 : vector<64x384xf32>
    %60 = vector.extract_strided_slice %59 {offsets = [1, 0], sizes = [63, 384], strides = [1, 1]} : vector<64x384xf32> to vector<63x384xf32>
    %cst_40 = arith.constant 0.000000e+00 : f32
    %61 = vector.broadcast %cst_40 : f32 to vector<1x384xf32>
    %62 = tpu.concatenate %60, %61 in 0 : vector<63x384xf32>, vector<1x384xf32> -> vector<64x384xf32>
    %63 = arith.maximumf %59, %62 : vector<64x384xf32>
    %c0_41 = arith.constant 0 : index
    %c0_42 = arith.constant 0 : index
    %64 = vector.load %arg8[%c0_41, %c0_42] : memref<32x64xf32, #tpu.memory_space<vmem>>, vector<32x64xf32>
    %cst_43 = arith.constant dense<0.000000e+00> : vector<32x384xf32>
    %65 = tpu.matmul %64, %63, %cst_43 {dimension_numbers = #tpu.dot_dimension_numbers<[1], [0], [0], [1], [0, 0, 1, 1], [], []>} : vector<32x64xf32>, vector<64x384xf32>, vector<32x384xf32> -> vector<32x384xf32>
    %c0_44 = arith.constant 0 : index
    %c0_45 = arith.constant 0 : index
    %66 = vector.load %arg9[%c0_44, %c0_45] : memref<384x192xf32, #tpu.memory_space<vmem>>, vector<384x192xf32>
    %cst_46 = arith.constant dense<0.000000e+00> : vector<32x192xf32>
    %67 = tpu.matmul %65, %66, %cst_46 {dimension_numbers = #tpu.dot_dimension_numbers<[1], [0], [0], [1], [0, 0, 1, 1], [], []>} : vector<32x384xf32>, vector<384x192xf32>, vector<32x192xf32> -> vector<32x192xf32>
    %cst_47 = arith.constant 0.000000e+00 : f32
    %68 = vector.broadcast %cst_47 : f32 to vector<1x192xf32>
    %69 = vector.extract_strided_slice %67 {offsets = [0, 0], sizes = [31, 192], strides = [1, 1]} : vector<32x192xf32> to vector<31x192xf32>
    %70 = tpu.concatenate %68, %69 in 0 : vector<1x192xf32>, vector<31x192xf32> -> vector<32x192xf32>
    %71 = vector.extract_strided_slice %67 {offsets = [1, 0], sizes = [31, 192], strides = [1, 1]} : vector<32x192xf32> to vector<31x192xf32>
    %72 = tpu.concatenate %71, %68 in 0 : vector<31x192xf32>, vector<1x192xf32> -> vector<32x192xf32>
    %c0_48 = arith.constant 0 : index
    %c0_49 = arith.constant 0 : index
    %c0_50 = arith.constant 0 : index
    %73 = vector.load %arg10[%c0_48, %c0_49, %c0_50] : memref<3x192x384xf32, #tpu.memory_space<vmem>>, vector<1x192x384xf32>
    %74 = vector.shape_cast %73 : vector<1x192x384xf32> to vector<192x384xf32>
    %cst_51 = arith.constant dense<0.000000e+00> : vector<32x384xf32>
    %75 = tpu.matmul %70, %74, %cst_51 {dimension_numbers = #tpu.dot_dimension_numbers<[1], [0], [0], [1], [0, 0, 1, 1], [], []>} : vector<32x192xf32>, vector<192x384xf32>, vector<32x384xf32> -> vector<32x384xf32>
    %c1_52 = arith.constant 1 : index
    %c0_53 = arith.constant 0 : index
    %c0_54 = arith.constant 0 : index
    %76 = vector.load %arg10[%c1_52, %c0_53, %c0_54] : memref<3x192x384xf32, #tpu.memory_space<vmem>>, vector<1x192x384xf32>
    %77 = vector.shape_cast %76 : vector<1x192x384xf32> to vector<192x384xf32>
    %cst_55 = arith.constant dense<0.000000e+00> : vector<32x384xf32>
    %78 = tpu.matmul %67, %77, %cst_55 {dimension_numbers = #tpu.dot_dimension_numbers<[1], [0], [0], [1], [0, 0, 1, 1], [], []>} : vector<32x192xf32>, vector<192x384xf32>, vector<32x384xf32> -> vector<32x384xf32>
    %79 = arith.addf %75, %78 : vector<32x384xf32>
    %c2_56 = arith.constant 2 : index
    %c0_57 = arith.constant 0 : index
    %c0_58 = arith.constant 0 : index
    %80 = vector.load %arg10[%c2_56, %c0_57, %c0_58] : memref<3x192x384xf32, #tpu.memory_space<vmem>>, vector<1x192x384xf32>
    %81 = vector.shape_cast %80 : vector<1x192x384xf32> to vector<192x384xf32>
    %cst_59 = arith.constant dense<0.000000e+00> : vector<32x384xf32>
    %82 = tpu.matmul %72, %81, %cst_59 {dimension_numbers = #tpu.dot_dimension_numbers<[1], [0], [0], [1], [0, 0, 1, 1], [], []>} : vector<32x192xf32>, vector<192x384xf32>, vector<32x384xf32> -> vector<32x384xf32>
    %83 = arith.addf %79, %82 : vector<32x384xf32>
    %c0_60 = arith.constant 0 : index
    %c0_61 = arith.constant 0 : index
    %84 = vector.load %arg11[%c0_60, %c0_61] : memref<1x384xf32, #tpu.memory_space<vmem>>, vector<1x384xf32>
    %85 = vector.broadcast %84 : vector<1x384xf32> to vector<32x384xf32>
    %86 = arith.addf %83, %85 : vector<32x384xf32>
    %cst_62 = arith.constant 0.000000e+00 : f32
    %87 = vector.broadcast %cst_62 : f32 to vector<32x384xf32>
    %88 = arith.maximumf %86, %87 : vector<32x384xf32>
    %89 = vector.extract_strided_slice %88 {offsets = [0, 1], sizes = [32, 383], strides = [1, 1]} : vector<32x384xf32> to vector<32x383xf32>
    %cst_63 = arith.constant 0.000000e+00 : f32
    %90 = vector.broadcast %cst_63 : f32 to vector<32x1xf32>
    %91 = tpu.concatenate %89, %90 in 1 : vector<32x383xf32>, vector<32x1xf32> -> vector<32x384xf32>
    %92 = arith.maximumf %88, %91 : vector<32x384xf32>
    %93 = vector.extract_strided_slice %92 {offsets = [1, 0], sizes = [31, 384], strides = [1, 1]} : vector<32x384xf32> to vector<31x384xf32>
    %cst_64 = arith.constant 0.000000e+00 : f32
    %94 = vector.broadcast %cst_64 : f32 to vector<1x384xf32>
    %95 = tpu.concatenate %93, %94 in 0 : vector<31x384xf32>, vector<1x384xf32> -> vector<32x384xf32>
    %96 = arith.maximumf %92, %95 : vector<32x384xf32>
    %c0_65 = arith.constant 0 : index
    %c0_66 = arith.constant 0 : index
    %97 = vector.load %arg12[%c0_65, %c0_66] : memref<16x32xf32, #tpu.memory_space<vmem>>, vector<16x32xf32>
    %cst_67 = arith.constant dense<0.000000e+00> : vector<16x384xf32>
    %98 = tpu.matmul %97, %96, %cst_67 {dimension_numbers = #tpu.dot_dimension_numbers<[1], [0], [0], [1], [0, 0, 1, 1], [], []>} : vector<16x32xf32>, vector<32x384xf32>, vector<16x384xf32> -> vector<16x384xf32>
    %c0_68 = arith.constant 0 : index
    %c0_69 = arith.constant 0 : index
    %99 = vector.load %arg13[%c0_68, %c0_69] : memref<384x192xf32, #tpu.memory_space<vmem>>, vector<384x192xf32>
    %cst_70 = arith.constant dense<0.000000e+00> : vector<16x192xf32>
    %100 = tpu.matmul %98, %99, %cst_70 {dimension_numbers = #tpu.dot_dimension_numbers<[1], [0], [0], [1], [0, 0, 1, 1], [], []>} : vector<16x384xf32>, vector<384x192xf32>, vector<16x192xf32> -> vector<16x192xf32>
    %cst_71 = arith.constant 0.000000e+00 : f32
    %101 = vector.broadcast %cst_71 : f32 to vector<1x192xf32>
    %102 = vector.extract_strided_slice %100 {offsets = [0, 0], sizes = [15, 192], strides = [1, 1]} : vector<16x192xf32> to vector<15x192xf32>
    %103 = tpu.concatenate %101, %102 in 0 : vector<1x192xf32>, vector<15x192xf32> -> vector<16x192xf32>
    %104 = vector.extract_strided_slice %100 {offsets = [1, 0], sizes = [15, 192], strides = [1, 1]} : vector<16x192xf32> to vector<15x192xf32>
    %105 = tpu.concatenate %104, %101 in 0 : vector<15x192xf32>, vector<1x192xf32> -> vector<16x192xf32>
    %c0_72 = arith.constant 0 : index
    %c0_73 = arith.constant 0 : index
    %c0_74 = arith.constant 0 : index
    %106 = vector.load %arg14[%c0_72, %c0_73, %c0_74] : memref<3x192x192xf32, #tpu.memory_space<vmem>>, vector<1x192x192xf32>
    %107 = vector.shape_cast %106 : vector<1x192x192xf32> to vector<192x192xf32>
    %cst_75 = arith.constant dense<0.000000e+00> : vector<16x192xf32>
    %108 = tpu.matmul %103, %107, %cst_75 {dimension_numbers = #tpu.dot_dimension_numbers<[1], [0], [0], [1], [0, 0, 1, 1], [], []>} : vector<16x192xf32>, vector<192x192xf32>, vector<16x192xf32> -> vector<16x192xf32>
    %c1_76 = arith.constant 1 : index
    %c0_77 = arith.constant 0 : index
    %c0_78 = arith.constant 0 : index
    %109 = vector.load %arg14[%c1_76, %c0_77, %c0_78] : memref<3x192x192xf32, #tpu.memory_space<vmem>>, vector<1x192x192xf32>
    %110 = vector.shape_cast %109 : vector<1x192x192xf32> to vector<192x192xf32>
    %cst_79 = arith.constant dense<0.000000e+00> : vector<16x192xf32>
    %111 = tpu.matmul %100, %110, %cst_79 {dimension_numbers = #tpu.dot_dimension_numbers<[1], [0], [0], [1], [0, 0, 1, 1], [], []>} : vector<16x192xf32>, vector<192x192xf32>, vector<16x192xf32> -> vector<16x192xf32>
    %112 = arith.addf %108, %111 : vector<16x192xf32>
    %c2_80 = arith.constant 2 : index
    %c0_81 = arith.constant 0 : index
    %c0_82 = arith.constant 0 : index
    %113 = vector.load %arg14[%c2_80, %c0_81, %c0_82] : memref<3x192x192xf32, #tpu.memory_space<vmem>>, vector<1x192x192xf32>
    %114 = vector.shape_cast %113 : vector<1x192x192xf32> to vector<192x192xf32>
    %cst_83 = arith.constant dense<0.000000e+00> : vector<16x192xf32>
    %115 = tpu.matmul %105, %114, %cst_83 {dimension_numbers = #tpu.dot_dimension_numbers<[1], [0], [0], [1], [0, 0, 1, 1], [], []>} : vector<16x192xf32>, vector<192x192xf32>, vector<16x192xf32> -> vector<16x192xf32>
    %116 = arith.addf %112, %115 : vector<16x192xf32>
    %c0_84 = arith.constant 0 : index
    %c0_85 = arith.constant 0 : index
    %117 = vector.load %arg15[%c0_84, %c0_85] : memref<1x192xf32, #tpu.memory_space<vmem>>, vector<1x192xf32>
    %118 = vector.broadcast %117 : vector<1x192xf32> to vector<16x192xf32>
    %119 = arith.addf %116, %118 : vector<16x192xf32>
    %cst_86 = arith.constant 0.000000e+00 : f32
    %120 = vector.broadcast %cst_86 : f32 to vector<16x192xf32>
    %121 = arith.maximumf %119, %120 : vector<16x192xf32>
    %122 = vector.extract_strided_slice %121 {offsets = [0, 1], sizes = [16, 191], strides = [1, 1]} : vector<16x192xf32> to vector<16x191xf32>
    %cst_87 = arith.constant 0.000000e+00 : f32
    %123 = vector.broadcast %cst_87 : f32 to vector<16x1xf32>
    %124 = tpu.concatenate %122, %123 in 1 : vector<16x191xf32>, vector<16x1xf32> -> vector<16x192xf32>
    %125 = arith.maximumf %121, %124 : vector<16x192xf32>
    %126 = vector.extract_strided_slice %125 {offsets = [1, 0], sizes = [15, 192], strides = [1, 1]} : vector<16x192xf32> to vector<15x192xf32>
    %cst_88 = arith.constant 0.000000e+00 : f32
    %127 = vector.broadcast %cst_88 : f32 to vector<1x192xf32>
    %128 = tpu.concatenate %126, %127 in 0 : vector<15x192xf32>, vector<1x192xf32> -> vector<16x192xf32>
    %129 = arith.maximumf %125, %128 : vector<16x192xf32>
    %c0_89 = arith.constant 0 : index
    %c0_90 = arith.constant 0 : index
    %130 = vector.load %arg16[%c0_89, %c0_90] : memref<8x16xf32, #tpu.memory_space<vmem>>, vector<8x16xf32>
    %cst_91 = arith.constant dense<0.000000e+00> : vector<8x192xf32>
    %131 = tpu.matmul %130, %129, %cst_91 {dimension_numbers = #tpu.dot_dimension_numbers<[1], [0], [0], [1], [0, 0, 1, 1], [], []>} : vector<8x16xf32>, vector<16x192xf32>, vector<8x192xf32> -> vector<8x192xf32>
    %c0_92 = arith.constant 0 : index
    %c0_93 = arith.constant 0 : index
    %132 = vector.load %arg17[%c0_92, %c0_93] : memref<192x96xf32, #tpu.memory_space<vmem>>, vector<192x96xf32>
    %cst_94 = arith.constant dense<0.000000e+00> : vector<8x96xf32>
    %133 = tpu.matmul %131, %132, %cst_94 {dimension_numbers = #tpu.dot_dimension_numbers<[1], [0], [0], [1], [0, 0, 1, 1], [], []>} : vector<8x192xf32>, vector<192x96xf32>, vector<8x96xf32> -> vector<8x96xf32>
    %cst_95 = arith.constant 0.000000e+00 : f32
    %134 = vector.broadcast %cst_95 : f32 to vector<1x96xf32>
    %135 = vector.extract_strided_slice %133 {offsets = [0, 0], sizes = [7, 96], strides = [1, 1]} : vector<8x96xf32> to vector<7x96xf32>
    %136 = tpu.concatenate %134, %135 in 0 : vector<1x96xf32>, vector<7x96xf32> -> vector<8x96xf32>
    %137 = vector.extract_strided_slice %133 {offsets = [1, 0], sizes = [7, 96], strides = [1, 1]} : vector<8x96xf32> to vector<7x96xf32>
    %138 = tpu.concatenate %137, %134 in 0 : vector<7x96xf32>, vector<1x96xf32> -> vector<8x96xf32>
    %c0_96 = arith.constant 0 : index
    %c0_97 = arith.constant 0 : index
    %c0_98 = arith.constant 0 : index
    %139 = vector.load %arg18[%c0_96, %c0_97, %c0_98] : memref<3x96x96xf32, #tpu.memory_space<vmem>>, vector<1x96x96xf32>
    %140 = vector.shape_cast %139 : vector<1x96x96xf32> to vector<96x96xf32>
    %cst_99 = arith.constant dense<0.000000e+00> : vector<8x96xf32>
    %141 = tpu.matmul %136, %140, %cst_99 {dimension_numbers = #tpu.dot_dimension_numbers<[1], [0], [0], [1], [0, 0, 1, 1], [], []>} : vector<8x96xf32>, vector<96x96xf32>, vector<8x96xf32> -> vector<8x96xf32>
    %c1_100 = arith.constant 1 : index
    %c0_101 = arith.constant 0 : index
    %c0_102 = arith.constant 0 : index
    %142 = vector.load %arg18[%c1_100, %c0_101, %c0_102] : memref<3x96x96xf32, #tpu.memory_space<vmem>>, vector<1x96x96xf32>
    %143 = vector.shape_cast %142 : vector<1x96x96xf32> to vector<96x96xf32>
    %cst_103 = arith.constant dense<0.000000e+00> : vector<8x96xf32>
    %144 = tpu.matmul %133, %143, %cst_103 {dimension_numbers = #tpu.dot_dimension_numbers<[1], [0], [0], [1], [0, 0, 1, 1], [], []>} : vector<8x96xf32>, vector<96x96xf32>, vector<8x96xf32> -> vector<8x96xf32>
    %145 = arith.addf %141, %144 : vector<8x96xf32>
    %c2_104 = arith.constant 2 : index
    %c0_105 = arith.constant 0 : index
    %c0_106 = arith.constant 0 : index
    %146 = vector.load %arg18[%c2_104, %c0_105, %c0_106] : memref<3x96x96xf32, #tpu.memory_space<vmem>>, vector<1x96x96xf32>
    %147 = vector.shape_cast %146 : vector<1x96x96xf32> to vector<96x96xf32>
    %cst_107 = arith.constant dense<0.000000e+00> : vector<8x96xf32>
    %148 = tpu.matmul %138, %147, %cst_107 {dimension_numbers = #tpu.dot_dimension_numbers<[1], [0], [0], [1], [0, 0, 1, 1], [], []>} : vector<8x96xf32>, vector<96x96xf32>, vector<8x96xf32> -> vector<8x96xf32>
    %149 = arith.addf %145, %148 : vector<8x96xf32>
    %c0_108 = arith.constant 0 : index
    %c0_109 = arith.constant 0 : index
    %150 = vector.load %arg19[%c0_108, %c0_109] : memref<1x96xf32, #tpu.memory_space<vmem>>, vector<1x96xf32>
    %151 = vector.broadcast %150 : vector<1x96xf32> to vector<8x96xf32>
    %152 = arith.addf %149, %151 : vector<8x96xf32>
    %cst_110 = arith.constant 0.000000e+00 : f32
    %153 = vector.broadcast %cst_110 : f32 to vector<8x96xf32>
    %154 = arith.maximumf %152, %153 : vector<8x96xf32>
    %155 = vector.extract_strided_slice %154 {offsets = [0, 1], sizes = [8, 95], strides = [1, 1]} : vector<8x96xf32> to vector<8x95xf32>
    %cst_111 = arith.constant 0.000000e+00 : f32
    %156 = vector.broadcast %cst_111 : f32 to vector<8x1xf32>
    %157 = tpu.concatenate %155, %156 in 1 : vector<8x95xf32>, vector<8x1xf32> -> vector<8x96xf32>
    %158 = arith.maximumf %154, %157 : vector<8x96xf32>
    %159 = vector.extract_strided_slice %158 {offsets = [1, 0], sizes = [7, 96], strides = [1, 1]} : vector<8x96xf32> to vector<7x96xf32>
    %cst_112 = arith.constant 0.000000e+00 : f32
    %160 = vector.broadcast %cst_112 : f32 to vector<1x96xf32>
    %161 = tpu.concatenate %159, %160 in 0 : vector<7x96xf32>, vector<1x96xf32> -> vector<8x96xf32>
    %162 = arith.maximumf %158, %161 : vector<8x96xf32>
    %c0_113 = arith.constant 0 : index
    %c0_114 = arith.constant 0 : index
    %163 = vector.load %arg20[%c0_113, %c0_114] : memref<4x8xf32, #tpu.memory_space<vmem>>, vector<4x8xf32>
    %cst_115 = arith.constant dense<0.000000e+00> : vector<4x96xf32>
    %164 = tpu.matmul %163, %162, %cst_115 {dimension_numbers = #tpu.dot_dimension_numbers<[1], [0], [0], [1], [0, 0, 1, 1], [], []>} : vector<4x8xf32>, vector<8x96xf32>, vector<4x96xf32> -> vector<4x96xf32>
    %c0_116 = arith.constant 0 : index
    %c0_117 = arith.constant 0 : index
    %165 = vector.load %arg21[%c0_116, %c0_117] : memref<96x48xf32, #tpu.memory_space<vmem>>, vector<96x48xf32>
    %cst_118 = arith.constant dense<0.000000e+00> : vector<4x48xf32>
    %166 = tpu.matmul %164, %165, %cst_118 {dimension_numbers = #tpu.dot_dimension_numbers<[1], [0], [0], [1], [0, 0, 1, 1], [], []>} : vector<4x96xf32>, vector<96x48xf32>, vector<4x48xf32> -> vector<4x48xf32>
    %c0_119 = arith.constant 0 : index
    %c0_120 = arith.constant 0 : index
    %167 = vector.load %arg23[%c0_119, %c0_120] : memref<1x20xf32, #tpu.memory_space<vmem>>, vector<1x20xf32>
    %168 = vector.extract_strided_slice %166 {offsets = [0, 0], sizes = [1, 48], strides = [1, 1]} : vector<4x48xf32> to vector<1x48xf32>
    %c0_121 = arith.constant 0 : index
    %c0_122 = arith.constant 0 : index
    %c0_123 = arith.constant 0 : index
    %169 = vector.load %arg22[%c0_121, %c0_122, %c0_123] : memref<4x48x20xf32, #tpu.memory_space<vmem>>, vector<1x48x20xf32>
    %170 = vector.shape_cast %169 : vector<1x48x20xf32> to vector<48x20xf32>
    %cst_124 = arith.constant dense<0.000000e+00> : vector<1x20xf32>
    %171 = tpu.matmul %168, %170, %cst_124 {dimension_numbers = #tpu.dot_dimension_numbers<[1], [0], [0], [1], [0, 0, 1, 1], [], []>} : vector<1x48xf32>, vector<48x20xf32>, vector<1x20xf32> -> vector<1x20xf32>
    %172 = arith.addf %167, %171 : vector<1x20xf32>
    %173 = vector.extract_strided_slice %166 {offsets = [1, 0], sizes = [1, 48], strides = [1, 1]} : vector<4x48xf32> to vector<1x48xf32>
    %c1_125 = arith.constant 1 : index
    %c0_126 = arith.constant 0 : index
    %c0_127 = arith.constant 0 : index
    %174 = vector.load %arg22[%c1_125, %c0_126, %c0_127] : memref<4x48x20xf32, #tpu.memory_space<vmem>>, vector<1x48x20xf32>
    %175 = vector.shape_cast %174 : vector<1x48x20xf32> to vector<48x20xf32>
    %cst_128 = arith.constant dense<0.000000e+00> : vector<1x20xf32>
    %176 = tpu.matmul %173, %175, %cst_128 {dimension_numbers = #tpu.dot_dimension_numbers<[1], [0], [0], [1], [0, 0, 1, 1], [], []>} : vector<1x48xf32>, vector<48x20xf32>, vector<1x20xf32> -> vector<1x20xf32>
    %177 = arith.addf %172, %176 : vector<1x20xf32>
    %178 = vector.extract_strided_slice %166 {offsets = [2, 0], sizes = [1, 48], strides = [1, 1]} : vector<4x48xf32> to vector<1x48xf32>
    %c2_129 = arith.constant 2 : index
    %c0_130 = arith.constant 0 : index
    %c0_131 = arith.constant 0 : index
    %179 = vector.load %arg22[%c2_129, %c0_130, %c0_131] : memref<4x48x20xf32, #tpu.memory_space<vmem>>, vector<1x48x20xf32>
    %180 = vector.shape_cast %179 : vector<1x48x20xf32> to vector<48x20xf32>
    %cst_132 = arith.constant dense<0.000000e+00> : vector<1x20xf32>
    %181 = tpu.matmul %178, %180, %cst_132 {dimension_numbers = #tpu.dot_dimension_numbers<[1], [0], [0], [1], [0, 0, 1, 1], [], []>} : vector<1x48xf32>, vector<48x20xf32>, vector<1x20xf32> -> vector<1x20xf32>
    %182 = arith.addf %177, %181 : vector<1x20xf32>
    %183 = vector.extract_strided_slice %166 {offsets = [3, 0], sizes = [1, 48], strides = [1, 1]} : vector<4x48xf32> to vector<1x48xf32>
    %c3 = arith.constant 3 : index
    %c0_133 = arith.constant 0 : index
    %c0_134 = arith.constant 0 : index
    %184 = vector.load %arg22[%c3, %c0_133, %c0_134] : memref<4x48x20xf32, #tpu.memory_space<vmem>>, vector<1x48x20xf32>
    %185 = vector.shape_cast %184 : vector<1x48x20xf32> to vector<48x20xf32>
    %cst_135 = arith.constant dense<0.000000e+00> : vector<1x20xf32>
    %186 = tpu.matmul %183, %185, %cst_135 {dimension_numbers = #tpu.dot_dimension_numbers<[1], [0], [0], [1], [0, 0, 1, 1], [], []>} : vector<1x48xf32>, vector<48x20xf32>, vector<1x20xf32> -> vector<1x20xf32>
    %187 = arith.addf %182, %186 : vector<1x20xf32>
    %cst_136 = arith.constant 0.000000e+00 : f32
    %188 = vector.broadcast %cst_136 : f32 to vector<1x20xf32>
    %189 = arith.maximumf %187, %188 : vector<1x20xf32>
    %c0_137 = arith.constant 0 : index
    %c0_138 = arith.constant 0 : index
    %190 = vector.load %arg24[%c0_137, %c0_138] : memref<20x6xf32, #tpu.memory_space<vmem>>, vector<20x6xf32>
    %cst_139 = arith.constant dense<0.000000e+00> : vector<1x6xf32>
    %191 = tpu.matmul %189, %190, %cst_139 {dimension_numbers = #tpu.dot_dimension_numbers<[1], [0], [0], [1], [0, 0, 1, 1], [], []>} : vector<1x20xf32>, vector<20x6xf32>, vector<1x6xf32> -> vector<1x6xf32>
    %c0_140 = arith.constant 0 : index
    %c0_141 = arith.constant 0 : index
    %192 = vector.load %arg25[%c0_140, %c0_141] : memref<1x6xf32, #tpu.memory_space<vmem>>, vector<1x6xf32>
    %193 = arith.addf %191, %192 : vector<1x6xf32>
    %c0_142 = arith.constant 0 : index
    %c0_143 = arith.constant 0 : index
    %c0_144 = arith.constant 0 : index
    %194 = vector.load %arg26[%c0_142, %c0_143, %c0_144] : memref<1x1x6xf32, #tpu.memory_space<vmem>>, vector<1x1x6xf32>
    %195 = vector.shape_cast %194 : vector<1x1x6xf32> to vector<1x6xf32>
    %196 = vector.shape_cast %193 : vector<1x6xf32> to vector<1x1x6xf32>
    tpu.vector_store %arg26[%c0_142, %c0_143, %c0_144], %196 {strides = array<i32>} : memref<1x1x6xf32, #tpu.memory_space<vmem>>, vector<1x1x6xf32>,
    return
  }
  func.func @transform_0(%arg0: i32) -> (i32, i32, i32) {
    %c0_i32 = arith.constant 0 : i32
    %c0_i32_0 = arith.constant 0 : i32
    %c0_i32_1 = arith.constant 0 : i32
    return %arg0, %c0_i32, %c0_i32_0 : i32, i32, i32
  }
  func.func @transform_1(%arg0: i32) -> (i32, i32, i32) {
    %c0_i32 = arith.constant 0 : i32
    %c0_i32_0 = arith.constant 0 : i32
    %c0_i32_1 = arith.constant 0 : i32
    %c0_i32_2 = arith.constant 0 : i32
    return %c0_i32, %c0_i32_0, %c0_i32_1 : i32, i32, i32
  }
  func.func @transform_2(%arg0: i32) -> (i32, i32) {
    %c0_i32 = arith.constant 0 : i32
    %c0_i32_0 = arith.constant 0 : i32
    %c0_i32_1 = arith.constant 0 : i32
    return %c0_i32, %c0_i32_0 : i32, i32
  }
  func.func @transform_3(%arg0: i32) -> (i32, i32) {
    %c0_i32 = arith.constant 0 : i32
    %c0_i32_0 = arith.constant 0 : i32
    %c0_i32_1 = arith.constant 0 : i32
    return %c0_i32, %c0_i32_0 : i32, i32
  }
  func.func @transform_4(%arg0: i32) -> (i32, i32) {
    %c0_i32 = arith.constant 0 : i32
    %c0_i32_0 = arith.constant 0 : i32
    %c0_i32_1 = arith.constant 0 : i32
    return %c0_i32, %c0_i32_0 : i32, i32
  }
  func.func @transform_5(%arg0: i32) -> (i32, i32, i32) {
    %c0_i32 = arith.constant 0 : i32
    %c0_i32_0 = arith.constant 0 : i32
    %c0_i32_1 = arith.constant 0 : i32
    %c0_i32_2 = arith.constant 0 : i32
    return %c0_i32, %c0_i32_0, %c0_i32_1 : i32, i32, i32
  }
  func.func @transform_6(%arg0: i32) -> (i32, i32) {
    %c0_i32 = arith.constant 0 : i32
    %c0_i32_0 = arith.constant 0 : i32
    %c0_i32_1 = arith.constant 0 : i32
    return %c0_i32, %c0_i32_0 : i32, i32
  }
  func.func @transform_7(%arg0: i32) -> (i32, i32) {
    %c0_i32 = arith.constant 0 : i32
    %c0_i32_0 = arith.constant 0 : i32
    %c0_i32_1 = arith.constant 0 : i32
    return %c0_i32, %c0_i32_0 : i32, i32
  }
  func.func @transform_8(%arg0: i32) -> (i32, i32) {
    %c0_i32 = arith.constant 0 : i32
    %c0_i32_0 = arith.constant 0 : i32
    %c0_i32_1 = arith.constant 0 : i32
    return %c0_i32, %c0_i32_0 : i32, i32
  }
  func.func @transform_9(%arg0: i32) -> (i32, i32, i32) {
    %c0_i32 = arith.constant 0 : i32
    %c0_i32_0 = arith.constant 0 : i32
    %c0_i32_1 = arith.constant 0 : i32
    %c0_i32_2 = arith.constant 0 : i32
    return %c0_i32, %c0_i32_0, %c0_i32_1 : i32, i32, i32
  }
  func.func @transform_10(%arg0: i32) -> (i32, i32) {
    %c0_i32 = arith.constant 0 : i32
    %c0_i32_0 = arith.constant 0 : i32
    %c0_i32_1 = arith.constant 0 : i32
    return %c0_i32, %c0_i32_0 : i32, i32
  }
  func.func @transform_11(%arg0: i32) -> (i32, i32) {
    %c0_i32 = arith.constant 0 : i32
    %c0_i32_0 = arith.constant 0 : i32
    %c0_i32_1 = arith.constant 0 : i32
    return %c0_i32, %c0_i32_0 : i32, i32
  }
  func.func @transform_12(%arg0: i32) -> (i32, i32) {
    %c0_i32 = arith.constant 0 : i32
    %c0_i32_0 = arith.constant 0 : i32
    %c0_i32_1 = arith.constant 0 : i32
    return %c0_i32, %c0_i32_0 : i32, i32
  }
  func.func @transform_13(%arg0: i32) -> (i32, i32, i32) {
    %c0_i32 = arith.constant 0 : i32
    %c0_i32_0 = arith.constant 0 : i32
    %c0_i32_1 = arith.constant 0 : i32
    %c0_i32_2 = arith.constant 0 : i32
    return %c0_i32, %c0_i32_0, %c0_i32_1 : i32, i32, i32
  }
  func.func @transform_14(%arg0: i32) -> (i32, i32) {
    %c0_i32 = arith.constant 0 : i32
    %c0_i32_0 = arith.constant 0 : i32
    %c0_i32_1 = arith.constant 0 : i32
    return %c0_i32, %c0_i32_0 : i32, i32
  }
  func.func @transform_15(%arg0: i32) -> (i32, i32) {
    %c0_i32 = arith.constant 0 : i32
    %c0_i32_0 = arith.constant 0 : i32
    %c0_i32_1 = arith.constant 0 : i32
    return %c0_i32, %c0_i32_0 : i32, i32
  }
  func.func @transform_16(%arg0: i32) -> (i32, i32) {
    %c0_i32 = arith.constant 0 : i32
    %c0_i32_0 = arith.constant 0 : i32
    %c0_i32_1 = arith.constant 0 : i32
    return %c0_i32, %c0_i32_0 : i32, i32
  }
  func.func @transform_17(%arg0: i32) -> (i32, i32, i32) {
    %c0_i32 = arith.constant 0 : i32
    %c0_i32_0 = arith.constant 0 : i32
    %c0_i32_1 = arith.constant 0 : i32
    %c0_i32_2 = arith.constant 0 : i32
    return %c0_i32, %c0_i32_0, %c0_i32_1 : i32, i32, i32
  }
  func.func @transform_18(%arg0: i32) -> (i32, i32) {
    %c0_i32 = arith.constant 0 : i32
    %c0_i32_0 = arith.constant 0 : i32
    %c0_i32_1 = arith.constant 0 : i32
    return %c0_i32, %c0_i32_0 : i32, i32
  }
  func.func @transform_19(%arg0: i32) -> (i32, i32) {
    %c0_i32 = arith.constant 0 : i32
    %c0_i32_0 = arith.constant 0 : i32
    %c0_i32_1 = arith.constant 0 : i32
    return %c0_i32, %c0_i32_0 : i32, i32
  }
  func.func @transform_20(%arg0: i32) -> (i32, i32) {
    %c0_i32 = arith.constant 0 : i32
    %c0_i32_0 = arith.constant 0 : i32
    %c0_i32_1 = arith.constant 0 : i32
    return %c0_i32, %c0_i32_0 : i32, i32
  }
  func.func @transform_21(%arg0: i32) -> (i32, i32, i32) {
    %c0_i32 = arith.constant 0 : i32
    %c0_i32_0 = arith.constant 0 : i32
    %c0_i32_1 = arith.constant 0 : i32
    %c0_i32_2 = arith.constant 0 : i32
    return %c0_i32, %c0_i32_0, %c0_i32_1 : i32, i32, i32
  }
  func.func @transform_22(%arg0: i32) -> (i32, i32) {
    %c0_i32 = arith.constant 0 : i32
    %c0_i32_0 = arith.constant 0 : i32
    %c0_i32_1 = arith.constant 0 : i32
    return %c0_i32, %c0_i32_0 : i32, i32
  }
  func.func @transform_23(%arg0: i32) -> (i32, i32) {
    %c0_i32 = arith.constant 0 : i32
    %c0_i32_0 = arith.constant 0 : i32
    %c0_i32_1 = arith.constant 0 : i32
    return %c0_i32, %c0_i32_0 : i32, i32
  }
  func.func @transform_24(%arg0: i32) -> (i32, i32) {
    %c0_i32 = arith.constant 0 : i32
    %c0_i32_0 = arith.constant 0 : i32
    %c0_i32_1 = arith.constant 0 : i32
    return %c0_i32, %c0_i32_0 : i32, i32
  }
  func.func @transform_25(%arg0: i32) -> (i32, i32, i32) {
    %c0_i32 = arith.constant 0 : i32
    %c0_i32_0 = arith.constant 0 : i32
    %c0_i32_1 = arith.constant 0 : i32
    return %arg0, %c0_i32, %c0_i32_0 : i32, i32, i32
  }
}

</mosaic_0001>

<llo_original>
// kernel: tpu_custom_call.1
$region0: #{tpu_custom_call.1}
  #allocation0 [shape = 'u32[]', space=smem, size = 0x4, offset = 0x4, fixed_abs, tag = 'smem constant byte address 0x4 - core index']
  #allocation1 [shape = 'u32[72,128]{1,0:T(1,128)}', space=vmem, size = 0x9000, scoped, tag = 'internal scratch']
  %s0 = inlined_call_operand.hbm [shape: f32[2,128,384], index: 0, kind: input, shape index: {}]
  %s1 = inlined_call_operand.vmem [shape: f32[3,384,384], index: 1, kind: input, shape index: {}]
  %s2 = inlined_call_operand.vmem [shape: f32[1,384], index: 2, kind: input, shape index: {}]
  %s3 = inlined_call_operand.vmem [shape: f32[64,128], index: 3, kind: input, shape index: {}]
  %s4 = inlined_call_operand.vmem [shape: f32[384,192], index: 4, kind: input, shape index: {}]
  %s5 = inlined_call_operand.hbm [shape: f32[3,192,384], index: 5, kind: input, shape index: {}]
  %s6 = inlined_call_operand.vmem [shape: f32[1,384], index: 6, kind: input, shape index: {}]
  %s7 = inlined_call_operand.vmem [shape: f32[32,64], index: 7, kind: input, shape index: {}]
  %s8 = inlined_call_operand.vmem [shape: f32[384,192], index: 8, kind: input, shape index: {}]
  %s9 = inlined_call_operand.hbm [shape: f32[3,192,384], index: 9, kind: input, shape index: {}]
  %s10 = inlined_call_operand.vmem [shape: f32[1,384], index: 10, kind: input, shape index: {}]
  %s11 = inlined_call_operand.vmem [shape: f32[16,32], index: 11, kind: input, shape index: {}]
  %s12 = inlined_call_operand.vmem [shape: f32[384,192], index: 12, kind: input, shape index: {}]
  %s13 = inlined_call_operand.hbm [shape: f32[3,192,192], index: 13, kind: input, shape index: {}]
  %s14 = inlined_call_operand.vmem [shape: f32[1,192], index: 14, kind: input, shape index: {}]
  %s15 = inlined_call_operand.vmem [shape: f32[8,16], index: 15, kind: input, shape index: {}]
  %s16 = inlined_call_operand.hbm [shape: f32[192,96], index: 16, kind: input, shape index: {}]
  %s17 = inlined_call_operand.vmem [shape: f32[3,96,96], index: 17, kind: input, shape index: {}]
  %s18 = inlined_call_operand.vmem [shape: f32[1,96], index: 18, kind: input, shape index: {}]
  %s19 = inlined_call_operand.vmem [shape: f32[4,8], index: 19, kind: input, shape index: {}]
  %s20 = inlined_call_operand.vmem [shape: f32[96,48], index: 20, kind: input, shape index: {}]
  %s21 = inlined_call_operand.vmem [shape: f32[4,48,20], index: 21, kind: input, shape index: {}]
  %s22 = inlined_call_operand.vmem [shape: f32[1,20], index: 22, kind: input, shape index: {}]
  %s23 = inlined_call_operand.vmem [shape: f32[20,6], index: 23, kind: input, shape index: {}]
  %s24 = inlined_call_operand.vmem [shape: f32[1,6], index: 24, kind: input, shape index: {}]
  %s25 = inlined_call_operand.hbm [shape: f32[2,1,6], index: 25, kind: output, shape index: {}]
  %s26 = sld [smem:[#allocation0]]
  $region153: #{tpu_custom_call.1} parent=0
    _
  %s28 = ssub.s32 1, %s26
  %s29 = scalar_select 0, %s28, %s26
  $region1: #{tpu_custom_call.1} parent=0
    #allocation2 [shape = 'u8[393216]{0}', space=vmem, size = 0x60000, scoped, tag = 'input window, operand 0']
    #allocation3 [shape = 's32[2]{0}', space=sflag, size = 0x8, scoped, tag = 'scoped memory for tpu_custom_call.1']
    #allocation4 [shape = 's32[2]{0}', space=sflag, size = 0x8, scoped, tag = 'scoped memory for tpu_custom_call.1']
    #allocation5 [shape = 'u8[884736]{0}', space=vmem, size = 0xd8000, scoped, tag = 'input window, operand 5, single buffered']
    #allocation6 [shape = 's32[1]{0}', space=sflag, size = 0x4, scoped, tag = 'scoped memory for tpu_custom_call.1']
    #allocation7 [shape = 'u8[884736]{0}', space=vmem, size = 0xd8000, scoped, tag = 'input window, operand 9, single buffered']
    #allocation8 [shape = 'u8[589824]{0}', space=vmem, size = 0x90000, scoped, tag = 'input window, operand 13, single buffered']
    #allocation9 [shape = 's32[1]{0}', space=sflag, size = 0x4, scoped, tag = 'scoped memory for tpu_custom_call.1']
    #allocation10 [shape = 'u8[98304]{0}', space=vmem, size = 0x18000, scoped, tag = 'input window, operand 16, single buffered']
    #allocation11 [shape = 'u8[1024]{0}', space=vmem, size = 0x400, scoped, tag = 'output window, operand 0']
    %30 = vsyncpa [#allocation3], 0
    %s31 = scalar_lea.sflag [#allocation3], 1
    %32 = vsyncpa %s31, 0
    %33 = vsyncpa [#allocation6], 0
    %34 = vsyncpa [#allocation9], 0
    %35 = vsyncpa [#allocation4], 0
    %s36 = scalar_lea.sflag [#allocation4], 1
    %37 = vsyncpa %s36, 0
    loop: start=0, step=1, limit=4
    $region2: #{tpu_custom_call.1} parent=1 // loop_pre_header
      _
    $region3: #{tpu_custom_call.1} parent=1 // loop_header
      %s39 = sphi 0, %s43
      %p40 = scmp.ge.s32.totalorder %s39, 4
      %s49 = sphi 0, %s51
      %s52 = sphi 0, %s49
      %s53 = sphi 0, %s52
      %s69 = sphi 0, %s53
      %s73 = sphi 0, %s73
      %s75 = sphi 0, %s73
      %s76 = sphi 0, %s75
      %s90 = sphi 0, %s76
      %s94 = sphi 0, %s94
      %s96 = sphi 0, %s94
      %s97 = sphi 0, %s96
      %s111 = sphi 0, %s97
      %s115 = sphi 0, %s115
      %s117 = sphi 0, %s115
      %s118 = sphi 0, %s117
      %s132 = sphi 0, %s118
      %s136 = sphi 0, %s136
      %s138 = sphi 0, %s136
      %s139 = sphi 0, %s138
      %s153 = sphi 0, %s139
      %s157 = sphi 0, %s157
      %s159 = sphi 0, %s157
      %s160 = sphi 0, %s159
      %s174 = sphi 0, %s160
      %s178 = sphi 0, %s178
      %s180 = sphi 0, %s178
      %s181 = sphi 0, %s180
      %s195 = sphi 0, %s181
      %s199 = sphi 0, %s199
      %s201 = sphi 0, %s199
      %s202 = sphi 0, %s201
      %s216 = sphi 0, %s202
      %s220 = sphi 0, %s220
      %s222 = sphi 0, %s220
      %s223 = sphi 0, %s222
      %s237 = sphi 0, %s223
      %s241 = sphi 0, %s241
      %s243 = sphi 0, %s241
      %s244 = sphi 0, %s243
      %s258 = sphi 0, %s244
      %s262 = sphi 0, %s262
      %s264 = sphi 0, %s262
      %s265 = sphi 0, %s264
      %s279 = sphi 0, %s265
      %s283 = sphi 0, %s283
      %s285 = sphi 0, %s283
      %s286 = sphi 0, %s285
      %s300 = sphi 0, %s286
      %s304 = sphi 0, %s304
      %s306 = sphi 0, %s304
      %s307 = sphi 0, %s306
      %s321 = sphi 0, %s307
      %s325 = sphi 0, %s325
      %s327 = sphi 0, %s325
      %s328 = sphi 0, %s327
      %s342 = sphi 0, %s328
      %s346 = sphi 0, %s346
      %s348 = sphi 0, %s346
      %s349 = sphi 0, %s348
      %s363 = sphi 0, %s349
      %s367 = sphi 0, %s367
      %s369 = sphi 0, %s367
      %s370 = sphi 0, %s369
      %s384 = sphi 0, %s370
      %s388 = sphi 0, %s388
      %s390 = sphi 0, %s388
      %s391 = sphi 0, %s390
      %s405 = sphi 0, %s391
      %s409 = sphi 0, %s409
      %s411 = sphi 0, %s409
      %s412 = sphi 0, %s411
      %s426 = sphi 0, %s412
      %s430 = sphi 0, %s430
      %s432 = sphi 0, %s430
      %s433 = sphi 0, %s432
      %s447 = sphi 0, %s433
      %s451 = sphi 0, %s451
      %s453 = sphi 0, %s451
      %s454 = sphi 0, %s453
      %s468 = sphi 0, %s454
      %s472 = sphi 0, %s472
      %s474 = sphi 0, %s472
      %s475 = sphi 0, %s474
      %s489 = sphi 0, %s475
      %s493 = sphi 0, %s493
      %s495 = sphi 0, %s493
      %s496 = sphi 0, %s495
      %s510 = sphi 0, %s496
      %s514 = sphi 0, %s514
      %s516 = sphi 0, %s514
      %s517 = sphi 0, %s516
      %s531 = sphi 0, %s517
      %s535 = sphi 0, %s535
      %s537 = sphi 0, %s535
      %s538 = sphi 0, %s537
      %s552 = sphi 0, %s538
      %s556 = sphi 0, %s556
      %s558 = sphi 0, %s556
      %s559 = sphi 0, %s558
      %s573 = sphi 0, %s559
      %s579 = sphi 0, %s581
      %s582 = sphi 0, %s579
      %s583 = sphi 0, %s582
      %s599 = sphi 0, %s583
    $region4: #{tpu_custom_call.1} parent=1 // loop_header_branch
      %42 = sbr.rel (%p40) target = $region8
    $region5: #{tpu_custom_call.1} parent=1 // loop_body
      %s44 = ssub.s32 %s39, 1
      %s45 = ssub.s32 %s39, 2
      %s46 = sadd.s32 %s39, 1
      %s47 = ssub.s32 %s39, %s46
      %p48 = scmp.eq.s32.totalorder %s47, 0
      %s50 = sadd.s32 %s49, 1
      %s51 = scalar_select %p48, %s49, %s50
      %p54 = pneg %p48
      %p55 = scmp.eq.s32.totalorder %s39, 1
      %p56 = por %p54, %p55
      %p57 = scmp.ne.s32.totalorder %s49, %s52
      %p58 = scmp.eq.s32.totalorder %s39, 0
      %p59 = por %p57, %p58
      %p60 = scmp.ne.s32.totalorder %s49, %s52
      %p61 = scmp.eq.s32.totalorder %s44, 1
      %p62 = por %p60, %p61
      %p63 = scmp.ne.s32.totalorder %s52, %s53
      %p64 = scmp.eq.s32.totalorder %s44, 0
      %p65 = por %p63, %p64
      %p66 = scmp.ne.s32.totalorder %s52, %s53
      %p67 = scmp.eq.s32.totalorder %s45, 1
      %p68 = por %p66, %p67
      %p70 = scmp.ne.s32.totalorder %s53, %s69
      %p71 = scmp.eq.s32.totalorder %s45, 0
      %p72 = por %p70, %p71
      %s74 = sadd.s32 %s73, 1
      %p77 = scmp.eq.s32.totalorder %s39, 1
      %p78 = scmp.ne.s32.totalorder %s73, %s75
      %p79 = scmp.eq.s32.totalorder %s39, 0
      %p80 = por %p78, %p79
      %p81 = scmp.ne.s32.totalorder %s73, %s75
      %p82 = scmp.eq.s32.totalorder %s44, 1
      %p83 = por %p81, %p82
      %p84 = scmp.ne.s32.totalorder %s75, %s76
      %p85 = scmp.eq.s32.totalorder %s44, 0
      %p86 = por %p84, %p85
      %p87 = scmp.ne.s32.totalorder %s75, %s76
      %p88 = scmp.eq.s32.totalorder %s45, 1
      %p89 = por %p87, %p88
      %p91 = scmp.ne.s32.totalorder %s76, %s90
      %p92 = scmp.eq.s32.totalorder %s45, 0
      %p93 = por %p91, %p92
      %s95 = sadd.s32 %s94, 1
      %p98 = scmp.eq.s32.totalorder %s39, 1
      %p99 = scmp.ne.s32.totalorder %s94, %s96
      %p100 = scmp.eq.s32.totalorder %s39, 0
      %p101 = por %p99, %p100
      %p102 = scmp.ne.s32.totalorder %s94, %s96
      %p103 = scmp.eq.s32.totalorder %s44, 1
      %p104 = por %p102, %p103
      %p105 = scmp.ne.s32.totalorder %s96, %s97
      %p106 = scmp.eq.s32.totalorder %s44, 0
      %p107 = por %p105, %p106
      %p108 = scmp.ne.s32.totalorder %s96, %s97
      %p109 = scmp.eq.s32.totalorder %s45, 1
      %p110 = por %p108, %p109
      %p112 = scmp.ne.s32.totalorder %s97, %s111
      %p113 = scmp.eq.s32.totalorder %s45, 0
      %p114 = por %p112, %p113
      %s116 = sadd.s32 %s115, 1
      %p119 = scmp.eq.s32.totalorder %s39, 1
      %p120 = scmp.ne.s32.totalorder %s115, %s117
      %p121 = scmp.eq.s32.totalorder %s39, 0
      %p122 = por %p120, %p121
      %p123 = scmp.ne.s32.totalorder %s115, %s117
      %p124 = scmp.eq.s32.totalorder %s44, 1
      %p125 = por %p123, %p124
      %p126 = scmp.ne.s32.totalorder %s117, %s118
      %p127 = scmp.eq.s32.totalorder %s44, 0
      %p128 = por %p126, %p127
      %p129 = scmp.ne.s32.totalorder %s117, %s118
      %p130 = scmp.eq.s32.totalorder %s45, 1
      %p131 = por %p129, %p130
      %p133 = scmp.ne.s32.totalorder %s118, %s132
      %p134 = scmp.eq.s32.totalorder %s45, 0
      %p135 = por %p133, %p134
      %s137 = sadd.s32 %s136, 1
      %p140 = scmp.eq.s32.totalorder %s39, 1
      %p141 = scmp.ne.s32.totalorder %s136, %s138
      %p142 = scmp.eq.s32.totalorder %s39, 0
      %p143 = por %p141, %p142
      %p144 = scmp.ne.s32.totalorder %s136, %s138
      %p145 = scmp.eq.s32.totalorder %s44, 1
      %p146 = por %p144, %p145
      %p147 = scmp.ne.s32.totalorder %s138, %s139
      %p148 = scmp.eq.s32.totalorder %s44, 0
      %p149 = por %p147, %p148
      %p150 = scmp.ne.s32.totalorder %s138, %s139
      %p151 = scmp.eq.s32.totalorder %s45, 1
      %p152 = por %p150, %p151
      %p154 = scmp.ne.s32.totalorder %s139, %s153
      %p155 = scmp.eq.s32.totalorder %s45, 0
      %p156 = por %p154, %p155
      %s158 = sadd.s32 %s157, 1
      %p161 = scmp.eq.s32.totalorder %s39, 1
      %p162 = scmp.ne.s32.totalorder %s157, %s159
      %p163 = scmp.eq.s32.totalorder %s39, 0
      %p164 = por %p162, %p163
      %p165 = scmp.ne.s32.totalorder %s157, %s159
      %p166 = scmp.eq.s32.totalorder %s44, 1
      %p167 = por %p165, %p166
      %p168 = scmp.ne.s32.totalorder %s159, %s160
      %p169 = scmp.eq.s32.totalorder %s44, 0
      %p170 = por %p168, %p169
      %p171 = scmp.ne.s32.totalorder %s159, %s160
      %p172 = scmp.eq.s32.totalorder %s45, 1
      %p173 = por %p171, %p172
      %p175 = scmp.ne.s32.totalorder %s160, %s174
      %p176 = scmp.eq.s32.totalorder %s45, 0
      %p177 = por %p175, %p176
      %s179 = sadd.s32 %s178, 1
      %p182 = scmp.eq.s32.totalorder %s39, 1
      %p183 = scmp.ne.s32.totalorder %s178, %s180
      %p184 = scmp.eq.s32.totalorder %s39, 0
      %p185 = por %p183, %p184
      %p186 = scmp.ne.s32.totalorder %s178, %s180
      %p187 = scmp.eq.s32.totalorder %s44, 1
      %p188 = por %p186, %p187
      %p189 = scmp.ne.s32.totalorder %s180, %s181
      %p190 = scmp.eq.s32.totalorder %s44, 0
      %p191 = por %p189, %p190
      %p192 = scmp.ne.s32.totalorder %s180, %s181
      %p193 = scmp.eq.s32.totalorder %s45, 1
      %p194 = por %p192, %p193
      %p196 = scmp.ne.s32.totalorder %s181, %s195
      %p197 = scmp.eq.s32.totalorder %s45, 0
      %p198 = por %p196, %p197
      %s200 = sadd.s32 %s199, 1
      %p203 = scmp.eq.s32.totalorder %s39, 1
      %p204 = scmp.ne.s32.totalorder %s199, %s201
      %p205 = scmp.eq.s32.totalorder %s39, 0
      %p206 = por %p204, %p205
      %p207 = scmp.ne.s32.totalorder %s199, %s201
      %p208 = scmp.eq.s32.totalorder %s44, 1
      %p209 = por %p207, %p208
      %p210 = scmp.ne.s32.totalorder %s201, %s202
      %p211 = scmp.eq.s32.totalorder %s44, 0
      %p212 = por %p210, %p211
      %p213 = scmp.ne.s32.totalorder %s201, %s202
      %p214 = scmp.eq.s32.totalorder %s45, 1
      %p215 = por %p213, %p214
      %p217 = scmp.ne.s32.totalorder %s202, %s216
      %p218 = scmp.eq.s32.totalorder %s45, 0
      %p219 = por %p217, %p218
      %s221 = sadd.s32 %s220, 1
      %p224 = scmp.eq.s32.totalorder %s39, 1
      %p225 = scmp.ne.s32.totalorder %s220, %s222
      %p226 = scmp.eq.s32.totalorder %s39, 0
      %p227 = por %p225, %p226
      %p228 = scmp.ne.s32.totalorder %s220, %s222
      %p229 = scmp.eq.s32.totalorder %s44, 1
      %p230 = por %p228, %p229
      %p231 = scmp.ne.s32.totalorder %s222, %s223
      %p232 = scmp.eq.s32.totalorder %s44, 0
      %p233 = por %p231, %p232
      %p234 = scmp.ne.s32.totalorder %s222, %s223
      %p235 = scmp.eq.s32.totalorder %s45, 1
      %p236 = por %p234, %p235
      %p238 = scmp.ne.s32.totalorder %s223, %s237
      %p239 = scmp.eq.s32.totalorder %s45, 0
      %p240 = por %p238, %p239
      %s242 = sadd.s32 %s241, 1
      %p245 = scmp.eq.s32.totalorder %s39, 1
      %p246 = scmp.ne.s32.totalorder %s241, %s243
      %p247 = scmp.eq.s32.totalorder %s39, 0
      %p248 = por %p246, %p247
      %p249 = scmp.ne.s32.totalorder %s241, %s243
      %p250 = scmp.eq.s32.totalorder %s44, 1
      %p251 = por %p249, %p250
      %p252 = scmp.ne.s32.totalorder %s243, %s244
      %p253 = scmp.eq.s32.totalorder %s44, 0
      %p254 = por %p252, %p253
      %p255 = scmp.ne.s32.totalorder %s243, %s244
      %p256 = scmp.eq.s32.totalorder %s45, 1
      %p257 = por %p255, %p256
      %p259 = scmp.ne.s32.totalorder %s244, %s258
      %p260 = scmp.eq.s32.totalorder %s45, 0
      %p261 = por %p259, %p260
      %s263 = sadd.s32 %s262, 1
      %p266 = scmp.eq.s32.totalorder %s39, 1
      %p267 = scmp.ne.s32.totalorder %s262, %s264
      %p268 = scmp.eq.s32.totalorder %s39, 0
      %p269 = por %p267, %p268
      %p270 = scmp.ne.s32.totalorder %s262, %s264
      %p271 = scmp.eq.s32.totalorder %s44, 1
      %p272 = por %p270, %p271
      %p273 = scmp.ne.s32.totalorder %s264, %s265
      %p274 = scmp.eq.s32.totalorder %s44, 0
      %p275 = por %p273, %p274
      %p276 = scmp.ne.s32.totalorder %s264, %s265
      %p277 = scmp.eq.s32.totalorder %s45, 1
      %p278 = por %p276, %p277
      %p280 = scmp.ne.s32.totalorder %s265, %s279
      %p281 = scmp.eq.s32.totalorder %s45, 0
      %p282 = por %p280, %p281
      %s284 = sadd.s32 %s283, 1
      %p287 = scmp.eq.s32.totalorder %s39, 1
      %p288 = scmp.ne.s32.totalorder %s283, %s285
      %p289 = scmp.eq.s32.totalorder %s39, 0
      %p290 = por %p288, %p289
      %p291 = scmp.ne.s32.totalorder %s283, %s285
      %p292 = scmp.eq.s32.totalorder %s44, 1
      %p293 = por %p291, %p292
      %p294 = scmp.ne.s32.totalorder %s285, %s286
      %p295 = scmp.eq.s32.totalorder %s44, 0
      %p296 = por %p294, %p295
      %p297 = scmp.ne.s32.totalorder %s285, %s286
      %p298 = scmp.eq.s32.totalorder %s45, 1
      %p299 = por %p297, %p298
      %p301 = scmp.ne.s32.totalorder %s286, %s300
      %p302 = scmp.eq.s32.totalorder %s45, 0
      %p303 = por %p301, %p302
      %s305 = sadd.s32 %s304, 1
      %p308 = scmp.eq.s32.totalorder %s39, 1
      %p309 = scmp.ne.s32.totalorder %s304, %s306
      %p310 = scmp.eq.s32.totalorder %s39, 0
      %p311 = por %p309, %p310
      %p312 = scmp.ne.s32.totalorder %s304, %s306
      %p313 = scmp.eq.s32.totalorder %s44, 1
      %p314 = por %p312, %p313
      %p315 = scmp.ne.s32.totalorder %s306, %s307
      %p316 = scmp.eq.s32.totalorder %s44, 0
      %p317 = por %p315, %p316
      %p318 = scmp.ne.s32.totalorder %s306, %s307
      %p319 = scmp.eq.s32.totalorder %s45, 1
      %p320 = por %p318, %p319
      %p322 = scmp.ne.s32.totalorder %s307, %s321
      %p323 = scmp.eq.s32.totalorder %s45, 0
      %p324 = por %p322, %p323
      %s326 = sadd.s32 %s325, 1
      %p329 = scmp.eq.s32.totalorder %s39, 1
      %p330 = scmp.ne.s32.totalorder %s325, %s327
      %p331 = scmp.eq.s32.totalorder %s39, 0
      %p332 = por %p330, %p331
      %p333 = scmp.ne.s32.totalorder %s325, %s327
      %p334 = scmp.eq.s32.totalorder %s44, 1
      %p335 = por %p333, %p334
      %p336 = scmp.ne.s32.totalorder %s327, %s328
      %p337 = scmp.eq.s32.totalorder %s44, 0
      %p338 = por %p336, %p337
      %p339 = scmp.ne.s32.totalorder %s327, %s328
      %p340 = scmp.eq.s32.totalorder %s45, 1
      %p341 = por %p339, %p340
      %p343 = scmp.ne.s32.totalorder %s328, %s342
      %p344 = scmp.eq.s32.totalorder %s45, 0
      %p345 = por %p343, %p344
      %s347 = sadd.s32 %s346, 1
      %p350 = scmp.eq.s32.totalorder %s39, 1
      %p351 = scmp.ne.s32.totalorder %s346, %s348
      %p352 = scmp.eq.s32.totalorder %s39, 0
      %p353 = por %p351, %p352
      %p354 = scmp.ne.s32.totalorder %s346, %s348
      %p355 = scmp.eq.s32.totalorder %s44, 1
      %p356 = por %p354, %p355
      %p357 = scmp.ne.s32.totalorder %s348, %s349
      %p358 = scmp.eq.s32.totalorder %s44, 0
      %p359 = por %p357, %p358
      %p360 = scmp.ne.s32.totalorder %s348, %s349
      %p361 = scmp.eq.s32.totalorder %s45, 1
      %p362 = por %p360, %p361
      %p364 = scmp.ne.s32.totalorder %s349, %s363
      %p365 = scmp.eq.s32.totalorder %s45, 0
      %p366 = por %p364, %p365
      %s368 = sadd.s32 %s367, 1
      %p371 = scmp.eq.s32.totalorder %s39, 1
      %p372 = scmp.ne.s32.totalorder %s367, %s369
      %p373 = scmp.eq.s32.totalorder %s39, 0
      %p374 = por %p372, %p373
      %p375 = scmp.ne.s32.totalorder %s367, %s369
      %p376 = scmp.eq.s32.totalorder %s44, 1
      %p377 = por %p375, %p376
      %p378 = scmp.ne.s32.totalorder %s369, %s370
      %p379 = scmp.eq.s32.totalorder %s44, 0
      %p380 = por %p378, %p379
      %p381 = scmp.ne.s32.totalorder %s369, %s370
      %p382 = scmp.eq.s32.totalorder %s45, 1
      %p383 = por %p381, %p382
      %p385 = scmp.ne.s32.totalorder %s370, %s384
      %p386 = scmp.eq.s32.totalorder %s45, 0
      %p387 = por %p385, %p386
      %s389 = sadd.s32 %s388, 1
      %p392 = scmp.eq.s32.totalorder %s39, 1
      %p393 = scmp.ne.s32.totalorder %s388, %s390
      %p394 = scmp.eq.s32.totalorder %s39, 0
      %p395 = por %p393, %p394
      %p396 = scmp.ne.s32.totalorder %s388, %s390
      %p397 = scmp.eq.s32.totalorder %s44, 1
      %p398 = por %p396, %p397
      %p399 = scmp.ne.s32.totalorder %s390, %s391
      %p400 = scmp.eq.s32.totalorder %s44, 0
      %p401 = por %p399, %p400
      %p402 = scmp.ne.s32.totalorder %s390, %s391
      %p403 = scmp.eq.s32.totalorder %s45, 1
      %p404 = por %p402, %p403
      %p406 = scmp.ne.s32.totalorder %s391, %s405
      %p407 = scmp.eq.s32.totalorder %s45, 0
      %p408 = por %p406, %p407
      %s410 = sadd.s32 %s409, 1
      %p413 = scmp.eq.s32.totalorder %s39, 1
      %p414 = scmp.ne.s32.totalorder %s409, %s411
      %p415 = scmp.eq.s32.totalorder %s39, 0
      %p416 = por %p414, %p415
      %p417 = scmp.ne.s32.totalorder %s409, %s411
      %p418 = scmp.eq.s32.totalorder %s44, 1
      %p419 = por %p417, %p418
      %p420 = scmp.ne.s32.totalorder %s411, %s412
      %p421 = scmp.eq.s32.totalorder %s44, 0
      %p422 = por %p420, %p421
      %p423 = scmp.ne.s32.totalorder %s411, %s412
      %p424 = scmp.eq.s32.totalorder %s45, 1
      %p425 = por %p423, %p424
      %p427 = scmp.ne.s32.totalorder %s412, %s426
      %p428 = scmp.eq.s32.totalorder %s45, 0
      %p429 = por %p427, %p428
      %s431 = sadd.s32 %s430, 1
      %p434 = scmp.eq.s32.totalorder %s39, 1
      %p435 = scmp.ne.s32.totalorder %s430, %s432
      %p436 = scmp.eq.s32.totalorder %s39, 0
      %p437 = por %p435, %p436
      %p438 = scmp.ne.s32.totalorder %s430, %s432
      %p439 = scmp.eq.s32.totalorder %s44, 1
      %p440 = por %p438, %p439
      %p441 = scmp.ne.s32.totalorder %s432, %s433
      %p442 = scmp.eq.s32.totalorder %s44, 0
      %p443 = por %p441, %p442
      %p444 = scmp.ne.s32.totalorder %s432, %s433
      %p445 = scmp.eq.s32.totalorder %s45, 1
      %p446 = por %p444, %p445
      %p448 = scmp.ne.s32.totalorder %s433, %s447
      %p449 = scmp.eq.s32.totalorder %s45, 0
      %p450 = por %p448, %p449
      %s452 = sadd.s32 %s451, 1
      %p455 = scmp.eq.s32.totalorder %s39, 1
      %p456 = scmp.ne.s32.totalorder %s451, %s453
      %p457 = scmp.eq.s32.totalorder %s39, 0
      %p458 = por %p456, %p457
      %p459 = scmp.ne.s32.totalorder %s451, %s453
      %p460 = scmp.eq.s32.totalorder %s44, 1
      %p461 = por %p459, %p460
      %p462 = scmp.ne.s32.totalorder %s453, %s454
      %p463 = scmp.eq.s32.totalorder %s44, 0
      %p464 = por %p462, %p463
      %p465 = scmp.ne.s32.totalorder %s453, %s454
      %p466 = scmp.eq.s32.totalorder %s45, 1
      %p467 = por %p465, %p466
      %p469 = scmp.ne.s32.totalorder %s454, %s468
      %p470 = scmp.eq.s32.totalorder %s45, 0
      %p471 = por %p469, %p470
      %s473 = sadd.s32 %s472, 1
      %p476 = scmp.eq.s32.totalorder %s39, 1
      %p477 = scmp.ne.s32.totalorder %s472, %s474
      %p478 = scmp.eq.s32.totalorder %s39, 0
      %p479 = por %p477, %p478
      %p480 = scmp.ne.s32.totalorder %s472, %s474
      %p481 = scmp.eq.s32.totalorder %s44, 1
      %p482 = por %p480, %p481
      %p483 = scmp.ne.s32.totalorder %s474, %s475
      %p484 = scmp.eq.s32.totalorder %s44, 0
      %p485 = por %p483, %p484
      %p486 = scmp.ne.s32.totalorder %s474, %s475
      %p487 = scmp.eq.s32.totalorder %s45, 1
      %p488 = por %p486, %p487
      %p490 = scmp.ne.s32.totalorder %s475, %s489
      %p491 = scmp.eq.s32.totalorder %s45, 0
      %p492 = por %p490, %p491
      %s494 = sadd.s32 %s493, 1
      %p497 = scmp.eq.s32.totalorder %s39, 1
      %p498 = scmp.ne.s32.totalorder %s493, %s495
      %p499 = scmp.eq.s32.totalorder %s39, 0
      %p500 = por %p498, %p499
      %p501 = scmp.ne.s32.totalorder %s493, %s495
      %p502 = scmp.eq.s32.totalorder %s44, 1
      %p503 = por %p501, %p502
      %p504 = scmp.ne.s32.totalorder %s495, %s496
      %p505 = scmp.eq.s32.totalorder %s44, 0
      %p506 = por %p504, %p505
      %p507 = scmp.ne.s32.totalorder %s495, %s496
      %p508 = scmp.eq.s32.totalorder %s45, 1
      %p509 = por %p507, %p508
      %p511 = scmp.ne.s32.totalorder %s496, %s510
      %p512 = scmp.eq.s32.totalorder %s45, 0
      %p513 = por %p511, %p512
      %s515 = sadd.s32 %s514, 1
      %p518 = scmp.eq.s32.totalorder %s39, 1
      %p519 = scmp.ne.s32.totalorder %s514, %s516
      %p520 = scmp.eq.s32.totalorder %s39, 0
      %p521 = por %p519, %p520
      %p522 = scmp.ne.s32.totalorder %s514, %s516
      %p523 = scmp.eq.s32.totalorder %s44, 1
      %p524 = por %p522, %p523
      %p525 = scmp.ne.s32.totalorder %s516, %s517
      %p526 = scmp.eq.s32.totalorder %s44, 0
      %p527 = por %p525, %p526
      %p528 = scmp.ne.s32.totalorder %s516, %s517
      %p529 = scmp.eq.s32.totalorder %s45, 1
      %p530 = por %p528, %p529
      %p532 = scmp.ne.s32.totalorder %s517, %s531
      %p533 = scmp.eq.s32.totalorder %s45, 0
      %p534 = por %p532, %p533
      %s536 = sadd.s32 %s535, 1
      %p539 = scmp.eq.s32.totalorder %s39, 1
      %p540 = scmp.ne.s32.totalorder %s535, %s537
      %p541 = scmp.eq.s32.totalorder %s39, 0
      %p542 = por %p540, %p541
      %p543 = scmp.ne.s32.totalorder %s535, %s537
      %p544 = scmp.eq.s32.totalorder %s44, 1
      %p545 = por %p543, %p544
      %p546 = scmp.ne.s32.totalorder %s537, %s538
      %p547 = scmp.eq.s32.totalorder %s44, 0
      %p548 = por %p546, %p547
      %p549 = scmp.ne.s32.totalorder %s537, %s538
      %p550 = scmp.eq.s32.totalorder %s45, 1
      %p551 = por %p549, %p550
      %p553 = scmp.ne.s32.totalorder %s538, %s552
      %p554 = scmp.eq.s32.totalorder %s45, 0
      %p555 = por %p553, %p554
      %s557 = sadd.s32 %s556, 1
      %p560 = scmp.eq.s32.totalorder %s39, 1
      %p561 = scmp.ne.s32.totalorder %s556, %s558
      %p562 = scmp.eq.s32.totalorder %s39, 0
      %p563 = por %p561, %p562
      %p564 = scmp.ne.s32.totalorder %s556, %s558
      %p565 = scmp.eq.s32.totalorder %s44, 1
      %p566 = por %p564, %p565
      %p567 = scmp.ne.s32.totalorder %s558, %s559
      %p568 = scmp.eq.s32.totalorder %s44, 0
      %p569 = por %p567, %p568
      %p570 = scmp.ne.s32.totalorder %s558, %s559
      %p571 = scmp.eq.s32.totalorder %s45, 1
      %p572 = por %p570, %p571
      %p574 = scmp.ne.s32.totalorder %s559, %s573
      %p575 = scmp.eq.s32.totalorder %s45, 0
      %p576 = por %p574, %p575
      %s577 = ssub.s32 %s39, %s46
      %p578 = scmp.eq.s32.totalorder %s577, 0
      %s580 = sadd.s32 %s579, 1
      %s581 = scalar_select %p578, %s579, %s580
      %p584 = pneg %p578
      %p585 = scmp.eq.s32.totalorder %s39, 1
      %p586 = por %p584, %p585
      %p587 = scmp.ne.s32.totalorder %s579, %s582
      %p588 = scmp.eq.s32.totalorder %s39, 0
      %p589 = por %p587, %p588
      %p590 = scmp.ne.s32.totalorder %s579, %s582
      %p591 = scmp.eq.s32.totalorder %s44, 1
      %p592 = por %p590, %p591
      %p593 = scmp.ne.s32.totalorder %s582, %s583
      %p594 = scmp.eq.s32.totalorder %s44, 0
      %p595 = por %p593, %p594
      %p596 = scmp.ne.s32.totalorder %s582, %s583
      %p597 = scmp.eq.s32.totalorder %s45, 1
      %p598 = por %p596, %p597
      %p600 = scmp.ne.s32.totalorder %s583, %s599
      %p601 = scmp.eq.s32.totalorder %s45, 0
      %p602 = por %p600, %p601
      %p603 = scmp.le.s32.totalorder 1, %s39
      %p604 = scmp.lt.s32.totalorder %s39, 3
      %p605 = pnand %p603, %p604
      %p606 = pneg %p605
      // Predicated region
      $region9: #{tpu_custom_call.1} parent=5 // pred_check
        _
      $region10: #{tpu_custom_call.1} parent=5 // pred_check_branch
        %608 = sbr.rel (%p605) target = $region12
      $region11: #{tpu_custom_call.1} parent=5 // pred_region
        %s609 = ssub.s32 %s39, 1
        // Predicated region
        $region13: #{tpu_custom_call.1} parent=11 // pred_check
          %p610 = pneg %p86
        $region14: #{tpu_custom_call.1} parent=11 // pred_check_branch
          %612 = sbr.rel (%p610) target = $region16
        $region15: #{tpu_custom_call.1} parent=11 // pred_region
          _
        $region16: #{tpu_custom_call.1} parent=11 // pred_fallthru
          _
        // Predicated region
        $region17: #{tpu_custom_call.1} parent=11 // pred_check
          %p613 = pneg %p107
        $region18: #{tpu_custom_call.1} parent=11 // pred_check_branch
          %615 = sbr.rel (%p613) target = $region20
        $region19: #{tpu_custom_call.1} parent=11 // pred_region
          _
        $region20: #{tpu_custom_call.1} parent=11 // pred_fallthru
          _
        // Predicated region
        $region21: #{tpu_custom_call.1} parent=11 // pred_check
          %p616 = pneg %p128
        $region22: #{tpu_custom_call.1} parent=11 // pred_check_branch
          %618 = sbr.rel (%p616) target = $region24
        $region23: #{tpu_custom_call.1} parent=11 // pred_region
          _
        $region24: #{tpu_custom_call.1} parent=11 // pred_fallthru
          _
        // Predicated region
        $region25: #{tpu_custom_call.1} parent=11 // pred_check
          %p619 = pneg %p149
        $region26: #{tpu_custom_call.1} parent=11 // pred_check_branch
          %621 = sbr.rel (%p619) target = $region28
        $region27: #{tpu_custom_call.1} parent=11 // pred_region
          _
        $region28: #{tpu_custom_call.1} parent=11 // pred_fallthru
          _
        // Predicated region
        $region29: #{tpu_custom_call.1} parent=11 // pred_check
          %p622 = pneg %p170
        $region30: #{tpu_custom_call.1} parent=11 // pred_check_branch
          %624 = sbr.rel (%p622) target = $region32
        $region31: #{tpu_custom_call.1} parent=11 // pred_region
          %626 = vsyncadd [#allocation6], 0
          %s627 = sshll.u32 %s5, 4
          %s628 = int_to_ptr.hbm [resolvable:$true] %s627
          %s629 = sshll.u32 [#allocation5], 4
          %s630 = int_to_ptr.vmem [resolvable:$true] %s629
          %635 = dma.hbm_to_vmem [thread:$0]  %s628, 27648, %s630, [#allocation6], 384, 384, 24
        $region32: #{tpu_custom_call.1} parent=11 // pred_fallthru
          _
        // Predicated region
        $region33: #{tpu_custom_call.1} parent=11 // pred_check
          %p636 = pneg %p191
        $region34: #{tpu_custom_call.1} parent=11 // pred_check_branch
          %638 = sbr.rel (%p636) target = $region36
        $region35: #{tpu_custom_call.1} parent=11 // pred_region
          _
        $region36: #{tpu_custom_call.1} parent=11 // pred_fallthru
          _
        // Predicated region
        $region37: #{tpu_custom_call.1} parent=11 // pred_check
          %p639 = pneg %p212
        $region38: #{tpu_custom_call.1} parent=11 // pred_check_branch
          %641 = sbr.rel (%p639) target = $region40
        $region39: #{tpu_custom_call.1} parent=11 // pred_region
          _
        $region40: #{tpu_custom_call.1} parent=11 // pred_fallthru
          _
        // Predicated region
        $region41: #{tpu_custom_call.1} parent=11 // pred_check
          %p642 = pneg %p233
        $region42: #{tpu_custom_call.1} parent=11 // pred_check_branch
          %644 = sbr.rel (%p642) target = $region44
        $region43: #{tpu_custom_call.1} parent=11 // pred_region
          _
        $region44: #{tpu_custom_call.1} parent=11 // pred_fallthru
          _
        // Predicated region
        $region45: #{tpu_custom_call.1} parent=11 // pred_check
          %p645 = pneg %p254
        $region46: #{tpu_custom_call.1} parent=11 // pred_check_branch
          %647 = sbr.rel (%p645) target = $region48
        $region47: #{tpu_custom_call.1} parent=11 // pred_region
          %649 = vsyncadd [#allocation6], 0
          %s650 = sshll.u32 %s9, 4
          %s651 = int_to_ptr.hbm [resolvable:$true] %s650
          %s652 = sshll.u32 [#allocation7], 4
          %s653 = int_to_ptr.vmem [resolvable:$true] %s652
          %658 = dma.hbm_to_vmem [thread:$0]  %s651, 27648, %s653, [#allocation6], 384, 384, 24
        $region48: #{tpu_custom_call.1} parent=11 // pred_fallthru
          _
        // Predicated region
        $region49: #{tpu_custom_call.1} parent=11 // pred_check
          %p659 = pneg %p275
        $region50: #{tpu_custom_call.1} parent=11 // pred_check_branch
          %661 = sbr.rel (%p659) target = $region52
        $region51: #{tpu_custom_call.1} parent=11 // pred_region
          _
        $region52: #{tpu_custom_call.1} parent=11 // pred_fallthru
          _
        // Predicated region
        $region53: #{tpu_custom_call.1} parent=11 // pred_check
          %p662 = pneg %p296
        $region54: #{tpu_custom_call.1} parent=11 // pred_check_branch
          %664 = sbr.rel (%p662) target = $region56
        $region55: #{tpu_custom_call.1} parent=11 // pred_region
          _
        $region56: #{tpu_custom_call.1} parent=11 // pred_fallthru
          _
        // Predicated region
        $region57: #{tpu_custom_call.1} parent=11 // pred_check
          %p665 = pneg %p317
        $region58: #{tpu_custom_call.1} parent=11 // pred_check_branch
          %667 = sbr.rel (%p665) target = $region60
        $region59: #{tpu_custom_call.1} parent=11 // pred_region
          _
        $region60: #{tpu_custom_call.1} parent=11 // pred_fallthru
          _
        // Predicated region
        $region61: #{tpu_custom_call.1} parent=11 // pred_check
          %p668 = pneg %p338
        $region62: #{tpu_custom_call.1} parent=11 // pred_check_branch
          %670 = sbr.rel (%p668) target = $region64
        $region63: #{tpu_custom_call.1} parent=11 // pred_region
          %672 = vsyncadd [#allocation9], 0
          %s673 = sshll.u32 %s13, 4
          %s674 = int_to_ptr.hbm [resolvable:$true] %s673
          %s675 = sshll.u32 [#allocation8], 4
          %s676 = int_to_ptr.vmem [resolvable:$true] %s675
          %681 = dma.hbm_to_vmem [thread:$0]  %s674, 18432, %s676, [#allocation9], 256, 256, 16
        $region64: #{tpu_custom_call.1} parent=11 // pred_fallthru
          _
        // Predicated region
        $region65: #{tpu_custom_call.1} parent=11 // pred_check
          %p682 = pneg %p359
        $region66: #{tpu_custom_call.1} parent=11 // pred_check_branch
          %684 = sbr.rel (%p682) target = $region68
        $region67: #{tpu_custom_call.1} parent=11 // pred_region
          _
        $region68: #{tpu_custom_call.1} parent=11 // pred_fallthru
          _
        // Predicated region
        $region69: #{tpu_custom_call.1} parent=11 // pred_check
          %p685 = pneg %p380
        $region70: #{tpu_custom_call.1} parent=11 // pred_check_branch
          %687 = sbr.rel (%p685) target = $region72
        $region71: #{tpu_custom_call.1} parent=11 // pred_region
          _
        $region72: #{tpu_custom_call.1} parent=11 // pred_fallthru
          _
        // Predicated region
        $region73: #{tpu_custom_call.1} parent=11 // pred_check
          %p688 = pneg %p401
        $region74: #{tpu_custom_call.1} parent=11 // pred_check_branch
          %690 = sbr.rel (%p688) target = $region76
        $region75: #{tpu_custom_call.1} parent=11 // pred_region
          %692 = vsyncadd [#allocation9], 0
          %s693 = sshll.u32 %s16, 4
          %s694 = int_to_ptr.hbm [resolvable:$true] %s693
          %s695 = sshll.u32 [#allocation10], 4
          %s696 = int_to_ptr.vmem [resolvable:$true] %s695
          %701 = dma.hbm_to_vmem [thread:$0]  %s694, 3072, %s696, [#allocation9], 128, 128, 8
        $region76: #{tpu_custom_call.1} parent=11 // pred_fallthru
          _
        // Predicated region
        $region77: #{tpu_custom_call.1} parent=11 // pred_check
          %p702 = pneg %p422
        $region78: #{tpu_custom_call.1} parent=11 // pred_check_branch
          %704 = sbr.rel (%p702) target = $region80
        $region79: #{tpu_custom_call.1} parent=11 // pred_region
          _
        $region80: #{tpu_custom_call.1} parent=11 // pred_fallthru
          _
        // Predicated region
        $region81: #{tpu_custom_call.1} parent=11 // pred_check
          %p705 = pneg %p443
        $region82: #{tpu_custom_call.1} parent=11 // pred_check_branch
          %707 = sbr.rel (%p705) target = $region84
        $region83: #{tpu_custom_call.1} parent=11 // pred_region
          _
        $region84: #{tpu_custom_call.1} parent=11 // pred_fallthru
          _
        // Predicated region
        $region85: #{tpu_custom_call.1} parent=11 // pred_check
          %p708 = pneg %p464
        $region86: #{tpu_custom_call.1} parent=11 // pred_check_branch
          %710 = sbr.rel (%p708) target = $region88
        $region87: #{tpu_custom_call.1} parent=11 // pred_region
          _
        $region88: #{tpu_custom_call.1} parent=11 // pred_fallthru
          _
        // Predicated region
        $region89: #{tpu_custom_call.1} parent=11 // pred_check
          %p711 = pneg %p485
        $region90: #{tpu_custom_call.1} parent=11 // pred_check_branch
          %713 = sbr.rel (%p711) target = $region92
        $region91: #{tpu_custom_call.1} parent=11 // pred_region
          _
        $region92: #{tpu_custom_call.1} parent=11 // pred_fallthru
          _
        // Predicated region
        $region93: #{tpu_custom_call.1} parent=11 // pred_check
          %p714 = pneg %p506
        $region94: #{tpu_custom_call.1} parent=11 // pred_check_branch
          %716 = sbr.rel (%p714) target = $region96
        $region95: #{tpu_custom_call.1} parent=11 // pred_region
          _
        $region96: #{tpu_custom_call.1} parent=11 // pred_fallthru
          _
        // Predicated region
        $region97: #{tpu_custom_call.1} parent=11 // pred_check
          %p717 = pneg %p527
        $region98: #{tpu_custom_call.1} parent=11 // pred_check_branch
          %719 = sbr.rel (%p717) target = $region100
        $region99: #{tpu_custom_call.1} parent=11 // pred_region
          _
        $region100: #{tpu_custom_call.1} parent=11 // pred_fallthru
          _
        // Predicated region
        $region101: #{tpu_custom_call.1} parent=11 // pred_check
          %p720 = pneg %p548
        $region102: #{tpu_custom_call.1} parent=11 // pred_check_branch
          %722 = sbr.rel (%p720) target = $region104
        $region103: #{tpu_custom_call.1} parent=11 // pred_region
          _
        $region104: #{tpu_custom_call.1} parent=11 // pred_fallthru
          _
        // Predicated region
        $region105: #{tpu_custom_call.1} parent=11 // pred_check
          %p723 = pneg %p569
        $region106: #{tpu_custom_call.1} parent=11 // pred_check_branch
          %725 = sbr.rel (%p723) target = $region108
        $region107: #{tpu_custom_call.1} parent=11 // pred_region
          _
        $region108: #{tpu_custom_call.1} parent=11 // pred_fallthru
          _
      $region12: #{tpu_custom_call.1} parent=5 // pred_fallthru
        _
      %p726 = scmp.lt.s32.totalorder %s39, 2
      // Predicated region
      $region109: #{tpu_custom_call.1} parent=5 // pred_check
        %p727 = pneg %p726
      $region110: #{tpu_custom_call.1} parent=5 // pred_check_branch
        %729 = sbr.rel (%p727) target = $region112
      $region111: #{tpu_custom_call.1} parent=5 // pred_region
        // Predicated region
        $region113: #{tpu_custom_call.1} parent=111 // pred_check
          %p730 = pneg %p59
        $region114: #{tpu_custom_call.1} parent=111 // pred_check_branch
          %732 = sbr.rel (%p730) target = $region116
        $region115: #{tpu_custom_call.1} parent=111 // pred_region
          %s733 = sand.u32 %s49, 1
          %s734 = scalar_lea.sflag [#allocation3], %s733
          %s735 = sand.u32 %s49, 1
          %s736 = smul.addr %s735, 384
          %s737 = scalar_lea.vmem [#allocation2], %s736
          %739 = vsyncadd %s734, 0
          %s740 = smul.addr %s39, 48
          %s741 = smul.addr %s740, 8
          %s742 = scalar_lea.hbm %s0, %s741
          %s743 = sshll.u32 %s742, 4
          %s744 = int_to_ptr.hbm [resolvable:$true] %s743
          %s745 = sshll.u32 %s737, 4
          %s746 = int_to_ptr.vmem [resolvable:$true] %s745
          %751 = dma.hbm_to_vmem [thread:$0]  %s744, 6144, %s746, %s734, 384, 384, 24
        $region116: #{tpu_custom_call.1} parent=111 // pred_fallthru
          _
      $region112: #{tpu_custom_call.1} parent=5 // pred_fallthru
        _
      %p752 = scmp.le.s32.totalorder 1, %s39
      %p753 = scmp.lt.s32.totalorder %s39, 3
      %p754 = pnand %p752, %p753
      %p755 = pneg %p754
      // Predicated region
      $region117: #{tpu_custom_call.1} parent=5 // pred_check
        _
      $region118: #{tpu_custom_call.1} parent=5 // pred_check_branch
        %757 = sbr.rel (%p754) target = $region120
      $region119: #{tpu_custom_call.1} parent=5 // pred_region
        %s758 = ssub.s32 %s39, 1
        %s759 = sand.u32 %s52, 1
        %s760 = scalar_lea.sflag [#allocation3], %s759
        %s761 = sand.u32 %s52, 1
        %s762 = smul.addr %s761, 384
        %s763 = scalar_lea.vmem [#allocation2], %s762
        // Predicated region
        $region121: #{tpu_custom_call.1} parent=119 // pred_check
          %p764 = pneg %p65
        $region122: #{tpu_custom_call.1} parent=119 // pred_check_branch
          %766 = sbr.rel (%p764) target = $region124
        $region123: #{tpu_custom_call.1} parent=119 // pred_region
          %768 = dma.done %s760, 6144
        $region124: #{tpu_custom_call.1} parent=119 // pred_fallthru
          _
        // Predicated region
        $region125: #{tpu_custom_call.1} parent=119 // pred_check
          %p769 = pneg %p170
        $region126: #{tpu_custom_call.1} parent=119 // pred_check_branch
          %771 = sbr.rel (%p769) target = $region128
        $region127: #{tpu_custom_call.1} parent=119 // pred_region
          %773 = dma.done [#allocation6], 27648
        $region128: #{tpu_custom_call.1} parent=119 // pred_fallthru
          _
        // Predicated region
        $region129: #{tpu_custom_call.1} parent=119 // pred_check
          %p774 = pneg %p254
        $region130: #{tpu_custom_call.1} parent=119 // pred_check_branch
          %776 = sbr.rel (%p774) target = $region132
        $region131: #{tpu_custom_call.1} parent=119 // pred_region
          %778 = dma.done [#allocation6], 27648
        $region132: #{tpu_custom_call.1} parent=119 // pred_fallthru
          _
        // Predicated region
        $region133: #{tpu_custom_call.1} parent=119 // pred_check
          %p779 = pneg %p338
        $region134: #{tpu_custom_call.1} parent=119 // pred_check_branch
          %781 = sbr.rel (%p779) target = $region136
        $region135: #{tpu_custom_call.1} parent=119 // pred_region
          %783 = dma.done [#allocation9], 18432
        $region136: #{tpu_custom_call.1} parent=119 // pred_fallthru
          _
        // Predicated region
        $region137: #{tpu_custom_call.1} parent=119 // pred_check
          %p784 = pneg %p401
        $region138: #{tpu_custom_call.1} parent=119 // pred_check_branch
          %786 = sbr.rel (%p784) target = $region140
        $region139: #{tpu_custom_call.1} parent=119 // pred_region
          %788 = dma.done [#allocation9], 3072
        $region140: #{tpu_custom_call.1} parent=119 // pred_fallthru
          _
        %s789 = sand.u32 %s52, 1
        %s790 = scalar_lea.sflag [#allocation3], %s789
        %s791 = sand.u32 %s52, 1
        %s792 = smul.addr %s791, 384
        %s793 = scalar_lea.vmem [#allocation2], %s792
        %p794 = pneg %p65
        %p795 = pneg %p62
        %p796 = pneg %p86
        %p797 = pneg %p83
        %p798 = pneg %p107
        %p799 = pneg %p104
        %p800 = pneg %p128
        %p801 = pneg %p125
        %p802 = pneg %p149
        %p803 = pneg %p146
        %p804 = pneg %p170
        %p805 = pneg %p167
        %p806 = pneg %p191
        %p807 = pneg %p188
        %p808 = pneg %p212
        %p809 = pneg %p209
        %p810 = pneg %p233
        %p811 = pneg %p230
        %p812 = pneg %p254
        %p813 = pneg %p251
        %p814 = pneg %p275
        %p815 = pneg %p272
        %p816 = pneg %p296
        %p817 = pneg %p293
        %p818 = pneg %p317
        %p819 = pneg %p314
        %p820 = pneg %p338
        %p821 = pneg %p335
        %p822 = pneg %p359
        %p823 = pneg %p356
        %p824 = pneg %p380
        %p825 = pneg %p377
        %p826 = pneg %p401
        %p827 = pneg %p398
        %p828 = pneg %p422
        %p829 = pneg %p419
        %p830 = pneg %p443
        %p831 = pneg %p440
        %p832 = pneg %p464
        %p833 = pneg %p461
        %p834 = pneg %p485
        %p835 = pneg %p482
        %p836 = pneg %p506
        %p837 = pneg %p503
        %p838 = pneg %p527
        %p839 = pneg %p524
        %p840 = pneg %p548
        %p841 = pneg %p545
        %p842 = pneg %p569
        %p843 = pneg %p566
        %p844 = pneg %p595
        %p845 = pneg %p592
        %s846 = sand.u32 %s582, 1
        %s847 = scalar_lea.sflag [#allocation4], %s846
        %s848 = sand.u32 %s582, 1
        %s849 = scalar_lea.vmem [#allocation11], %s848
        %v850 = vld [vmem:[%s763] sm:$0xff]
        %v851 = vld [vmem:[%s763 + $0x8] sm:$0xff]
        %v852 = vld [vmem:[%s763 + $0x10] sm:$0xff]
        %v853 = vld [vmem:[%s763 + $0x18] sm:$0xff]
        %v854 = vld [vmem:[%s763 + $0x20] sm:$0xff]
        %v855 = vld [vmem:[%s763 + $0x28] sm:$0xff]
        %v856 = vld [vmem:[%s763 + $0x30] sm:$0xff]
        %v857 = vld [vmem:[%s763 + $0x38] sm:$0xff]
        %v858 = vld [vmem:[%s763 + $0x40] sm:$0xff]
        %v859 = vld [vmem:[%s763 + $0x48] sm:$0xff]
        %v860 = vld [vmem:[%s763 + $0x50] sm:$0xff]
        %v861 = vld [vmem:[%s763 + $0x58] sm:$0xff]
        %v862 = vld [vmem:[%s763 + $0x60] sm:$0xff]
        %v863 = vld [vmem:[%s763 + $0x68] sm:$0xff]
        %v864 = vld [vmem:[%s763 + $0x70] sm:$0xff]
        %v865 = vld [vmem:[%s763 + $0x78] sm:$0xff]
        %v866 = vld [vmem:[%s763 + $0x80] sm:$0xff]
        %v867 = vld [vmem:[%s763 + $0x88] sm:$0xff]
        %v868 = vld [vmem:[%s763 + $0x90] sm:$0xff]
        %v869 = vld [vmem:[%s763 + $0x98] sm:$0xff]
        %v870 = vld [vmem:[%s763 + $0xa0] sm:$0xff]
        %v871 = vld [vmem:[%s763 + $0xa8] sm:$0xff]
        %v872 = vld [vmem:[%s763 + $0xb0] sm:$0xff]
        %v873 = vld [vmem:[%s763 + $0xb8] sm:$0xff]
        %v874 = vld [vmem:[%s763 + $0xc0] sm:$0xff]
        %v875 = vld [vmem:[%s763 + $0xc8] sm:$0xff]
        %v876 = vld [vmem:[%s763 + $0xd0] sm:$0xff]
        %v877 = vld [vmem:[%s763 + $0xd8] sm:$0xff]
        %v878 = vld [vmem:[%s763 + $0xe0] sm:$0xff]
        %v879 = vld [vmem:[%s763 + $0xe8] sm:$0xff]
        %v880 = vld [vmem:[%s763 + $0xf0] sm:$0xff]
        %v881 = vld [vmem:[%s763 + $0xf8] sm:$0xff]
        %v882 = vld [vmem:[%s763 + $0x100] sm:$0xff]
        %v883 = vld [vmem:[%s763 + $0x108] sm:$0xff]
        %v884 = vld [vmem:[%s763 + $0x110] sm:$0xff]
        %v885 = vld [vmem:[%s763 + $0x118] sm:$0xff]
        %v886 = vld [vmem:[%s763 + $0x120] sm:$0xff]
        %v887 = vld [vmem:[%s763 + $0x128] sm:$0xff]
        %v888 = vld [vmem:[%s763 + $0x130] sm:$0xff]
        %v889 = vld [vmem:[%s763 + $0x138] sm:$0xff]
        %v890 = vld [vmem:[%s763 + $0x140] sm:$0xff]
        %v891 = vld [vmem:[%s763 + $0x148] sm:$0xff]
        %v892 = vld [vmem:[%s763 + $0x150] sm:$0xff]
        %v893 = vld [vmem:[%s763 + $0x158] sm:$0xff]
        %v894 = vld [vmem:[%s763 + $0x160] sm:$0xff]
        %v895 = vld [vmem:[%s763 + $0x168] sm:$0xff]
        %v896 = vld [vmem:[%s763 + $0x170] sm:$0xff]
        %v897 = vld [vmem:[%s763 + $0x178] sm:$0xff]
        %vm946 = vcmask 1040384
        %v947 = vrot.slane %v850, 7
        %v948 = vrot.slane %v851, 7
        %v949 = vrot.slane %v852, 7
        %v950 = vrot.slane %v853, 7
        %v951 = vsel %vm946, %v947, %v950
        %v952 = vrot.slane %v854, 7
        %v953 = vsel %vm946, %v948, %v952
        %v954 = vrot.slane %v855, 7
        %v955 = vsel %vm946, %v949, %v954
        %v956 = vrot.slane %v856, 7
        %v957 = vsel %vm946, %v950, %v956
        %v958 = vrot.slane %v857, 7
        %v959 = vsel %vm946, %v952, %v958
        %v960 = vrot.slane %v858, 7
        %v961 = vsel %vm946, %v954, %v960
        %v962 = vrot.slane %v859, 7
        %v963 = vsel %vm946, %v956, %v962
        %v964 = vrot.slane %v860, 7
        %v965 = vsel %vm946, %v958, %v964
        %v966 = vrot.slane %v861, 7
        %v967 = vsel %vm946, %v960, %v966
        %v968 = vrot.slane %v862, 7
        %v969 = vsel %vm946, %v962, %v968
        %v970 = vrot.slane %v863, 7
        %v971 = vsel %vm946, %v964, %v970
        %v972 = vrot.slane %v864, 7
        %v973 = vsel %vm946, %v966, %v972
        %v974 = vrot.slane %v865, 7
        %v975 = vsel %vm946, %v968, %v974
        %v976 = vrot.slane %v866, 7
        %v977 = vsel %vm946, %v970, %v976
        %v978 = vrot.slane %v867, 7
        %v979 = vsel %vm946, %v972, %v978
        %v980 = vrot.slane %v868, 7
        %v981 = vsel %vm946, %v974, %v980
        %v982 = vrot.slane %v869, 7
        %v983 = vsel %vm946, %v976, %v982
        %v984 = vrot.slane %v870, 7
        %v985 = vsel %vm946, %v978, %v984
        %v986 = vrot.slane %v871, 7
        %v987 = vsel %vm946, %v980, %v986
        %v988 = vrot.slane %v872, 7
        %v989 = vsel %vm946, %v982, %v988
        %v990 = vrot.slane %v873, 7
        %v991 = vsel %vm946, %v984, %v990
        %v992 = vrot.slane %v874, 7
        %v993 = vsel %vm946, %v986, %v992
        %v994 = vrot.slane %v875, 7
        %v995 = vsel %vm946, %v988, %v994
        %v996 = vrot.slane %v876, 7
        %v997 = vsel %vm946, %v990, %v996
        %v998 = vrot.slane %v877, 7
        %v999 = vsel %vm946, %v992, %v998
        %v1000 = vrot.slane %v878, 7
        %v1001 = vsel %vm946, %v994, %v1000
        %v1002 = vrot.slane %v879, 7
        %v1003 = vsel %vm946, %v996, %v1002
        %v1004 = vrot.slane %v880, 7
        %v1005 = vsel %vm946, %v998, %v1004
        %v1006 = vrot.slane %v881, 7
        %v1007 = vsel %vm946, %v1000, %v1006
        %v1008 = vrot.slane %v882, 7
        %v1009 = vsel %vm946, %v1002, %v1008
        %v1010 = vrot.slane %v883, 7
        %v1011 = vsel %vm946, %v1004, %v1010
        %v1012 = vrot.slane %v884, 7
        %v1013 = vsel %vm946, %v1006, %v1012
        %v1014 = vrot.slane %v885, 7
        %v1015 = vsel %vm946, %v1008, %v1014
        %v1016 = vrot.slane %v886, 7
        %v1017 = vsel %vm946, %v1010, %v1016
        %v1018 = vrot.slane %v887, 7
        %v1019 = vsel %vm946, %v1012, %v1018
        %v1020 = vrot.slane %v888, 7
        %v1021 = vsel %vm946, %v1014, %v1020
        %v1022 = vrot.slane %v889, 7
        %v1023 = vsel %vm946, %v1016, %v1022
        %v1024 = vrot.slane %v890, 7
        %v1025 = vsel %vm946, %v1018, %v1024
        %v1026 = vrot.slane %v891, 7
        %v1027 = vsel %vm946, %v1020, %v1026
        %v1028 = vrot.slane %v892, 7
        %v1029 = vsel %vm946, %v1022, %v1028
        %v1030 = vrot.slane %v893, 7
        %v1031 = vsel %vm946, %v1024, %v1030
        %v1032 = vrot.slane %v894, 7
        %v1033 = vsel %vm946, %v1026, %v1032
        %v1034 = vrot.slane %v895, 7
        %v1035 = vsel %vm946, %v1028, %v1034
        %v1036 = vrot.slane %v896, 7
        %v1037 = vsel %vm946, %v1030, %v1036
        %v1038 = vrot.slane %v897, 7
        %v1039 = vsel %vm946, %v1032, %v1038
        %v1088 = vsel %vm946, 0.0, %v947
        %v1089 = vsel %vm946, 0.0, %v948
        %v1090 = vsel %vm946, 0.0, %v949
        %vm1091 = vcmask 1046528
        %v1092 = vrot.slane %v850, 1
        %v1093 = vrot.slane %v853, 1
        %v1094 = vsel %vm1091, %v1092, %v1093
        %v1095 = vrot.slane %v851, 1
        %v1096 = vrot.slane %v854, 1
        %v1097 = vsel %vm1091, %v1095, %v1096
        %v1098 = vrot.slane %v852, 1
        %v1099 = vrot.slane %v855, 1
        %v1100 = vsel %vm1091, %v1098, %v1099
        %v1101 = vrot.slane %v856, 1
        %v1102 = vsel %vm1091, %v1093, %v1101
        %v1103 = vrot.slane %v857, 1
        %v1104 = vsel %vm1091, %v1096, %v1103
        %v1105 = vrot.slane %v858, 1
        %v1106 = vsel %vm1091, %v1099, %v1105
        %v1107 = vrot.slane %v859, 1
        %v1108 = vsel %vm1091, %v1101, %v1107
        %v1109 = vrot.slane %v860, 1
        %v1110 = vsel %vm1091, %v1103, %v1109
        %v1111 = vrot.slane %v861, 1
        %v1112 = vsel %vm1091, %v1105, %v1111
        %v1113 = vrot.slane %v862, 1
        %v1114 = vsel %vm1091, %v1107, %v1113
        %v1115 = vrot.slane %v863, 1
        %v1116 = vsel %vm1091, %v1109, %v1115
        %v1117 = vrot.slane %v864, 1
        %v1118 = vsel %vm1091, %v1111, %v1117
        %v1119 = vrot.slane %v865, 1
        %v1120 = vsel %vm1091, %v1113, %v1119
        %v1121 = vrot.slane %v866, 1
        %v1122 = vsel %vm1091, %v1115, %v1121
        %v1123 = vrot.slane %v867, 1
        %v1124 = vsel %vm1091, %v1117, %v1123
        %v1125 = vrot.slane %v868, 1
        %v1126 = vsel %vm1091, %v1119, %v1125
        %v1127 = vrot.slane %v869, 1
        %v1128 = vsel %vm1091, %v1121, %v1127
        %v1129 = vrot.slane %v870, 1
        %v1130 = vsel %vm1091, %v1123, %v1129
        %v1131 = vrot.slane %v871, 1
        %v1132 = vsel %vm1091, %v1125, %v1131
        %v1133 = vrot.slane %v872, 1
        %v1134 = vsel %vm1091, %v1127, %v1133
        %v1135 = vrot.slane %v873, 1
        %v1136 = vsel %vm1091, %v1129, %v1135
        %v1137 = vrot.slane %v874, 1
        %v1138 = vsel %vm1091, %v1131, %v1137
        %v1139 = vrot.slane %v875, 1
        %v1140 = vsel %vm1091, %v1133, %v1139
        %v1141 = vrot.slane %v876, 1
        %v1142 = vsel %vm1091, %v1135, %v1141
        %v1143 = vrot.slane %v877, 1
        %v1144 = vsel %vm1091, %v1137, %v1143
        %v1145 = vrot.slane %v878, 1
        %v1146 = vsel %vm1091, %v1139, %v1145
        %v1147 = vrot.slane %v879, 1
        %v1148 = vsel %vm1091, %v1141, %v1147
        %v1149 = vrot.slane %v880, 1
        %v1150 = vsel %vm1091, %v1143, %v1149
        %v1151 = vrot.slane %v881, 1
        %v1152 = vsel %vm1091, %v1145, %v1151
        %v1153 = vrot.slane %v882, 1
        %v1154 = vsel %vm1091, %v1147, %v1153
        %v1155 = vrot.slane %v883, 1
        %v1156 = vsel %vm1091, %v1149, %v1155
        %v1157 = vrot.slane %v884, 1
        %v1158 = vsel %vm1091, %v1151, %v1157
        %v1159 = vrot.slane %v885, 1
        %v1160 = vsel %vm1091, %v1153, %v1159
        %v1161 = vrot.slane %v886, 1
        %v1162 = vsel %vm1091, %v1155, %v1161
        %v1163 = vrot.slane %v887, 1
        %v1164 = vsel %vm1091, %v1157, %v1163
        %v1165 = vrot.slane %v888, 1
        %v1166 = vsel %vm1091, %v1159, %v1165
        %v1167 = vrot.slane %v889, 1
        %v1168 = vsel %vm1091, %v1161, %v1167
        %v1169 = vrot.slane %v890, 1
        %v1170 = vsel %vm1091, %v1163, %v1169
        %v1171 = vrot.slane %v891, 1
        %v1172 = vsel %vm1091, %v1165, %v1171
        %v1173 = vrot.slane %v892, 1
        %v1174 = vsel %vm1091, %v1167, %v1173
        %v1175 = vrot.slane %v893, 1
        %v1176 = vsel %vm1091, %v1169, %v1175
        %v1177 = vrot.slane %v894, 1
        %v1178 = vsel %vm1091, %v1171, %v1177
        %v1179 = vrot.slane %v895, 1
        %v1180 = vsel %vm1091, %v1173, %v1179
        %v1181 = vrot.slane %v896, 1
        %v1182 = vsel %vm1091, %v1175, %v1181
        %v1183 = vrot.slane %v897, 1
        %v1184 = vsel %vm1091, %v1177, %v1183
        %v1233 = vsel %vm1091, %v1179, 0.0
        %v1234 = vsel %vm1091, %v1181, 0.0
        %v1235 = vsel %vm1091, %v1183, 0.0
        %v1236 = vld [vmem:[%s1] sm:$0xff]
        %v1237 = vld [vmem:[%s1 + $0x8] sm:$0xff]
        %v1238 = vld [vmem:[%s1 + $0x10] sm:$0xff]
        %v1239 = vld [vmem:[%s1 + $0x18] sm:$0xff]
        %v1240 = vld [vmem:[%s1 + $0x20] sm:$0xff]
        %v1241 = vld [vmem:[%s1 + $0x28] sm:$0xff]
        %v1242 = vld [vmem:[%s1 + $0x30] sm:$0xff]
        %v1243 = vld [vmem:[%s1 + $0x38] sm:$0xff]
        %v1244 = vld [vmem:[%s1 + $0x40] sm:$0xff]
        %v1245 = vld [vmem:[%s1 + $0x48] sm:$0xff]
        %v1246 = vld [vmem:[%s1 + $0x50] sm:$0xff]
        %v1247 = vld [vmem:[%s1 + $0x58] sm:$0xff]
        %v1248 = vld [vmem:[%s1 + $0x60] sm:$0xff]
        %v1249 = vld [vmem:[%s1 + $0x68] sm:$0xff]
        %v1250 = vld [vmem:[%s1 + $0x70] sm:$0xff]
        %v1251 = vld [vmem:[%s1 + $0x78] sm:$0xff]
        %v1252 = vld [vmem:[%s1 + $0x80] sm:$0xff]
        %v1253 = vld [vmem:[%s1 + $0x88] sm:$0xff]
        %v1254 = vld [vmem:[%s1 + $0x90] sm:$0xff]
        %v1255 = vld [vmem:[%s1 + $0x98] sm:$0xff]
        %v1256 = vld [vmem:[%s1 + $0xa0] sm:$0xff]
        %v1257 = vld [vmem:[%s1 + $0xa8] sm:$0xff]
        %v1258 = vld [vmem:[%s1 + $0xb0] sm:$0xff]
        %v1259 = vld [vmem:[%s1 + $0xb8] sm:$0xff]
        %v1260 = vld [vmem:[%s1 + $0xc0] sm:$0xff]
        %v1261 = vld [vmem:[%s1 + $0xc8] sm:$0xff]
        %v1262 = vld [vmem:[%s1 + $0xd0] sm:$0xff]
        %v1263 = vld [vmem:[%s1 + $0xd8] sm:$0xff]
        %v1264 = vld [vmem:[%s1 + $0xe0] sm:$0xff]
        %v1265 = vld [vmem:[%s1 + $0xe8] sm:$0xff]
        %v1266 = vld [vmem:[%s1 + $0xf0] sm:$0xff]
        %v1267 = vld [vmem:[%s1 + $0xf8] sm:$0xff]
        %v1268 = vld [vmem:[%s1 + $0x100] sm:$0xff]
        %v1269 = vld [vmem:[%s1 + $0x108] sm:$0xff]
        %v1270 = vld [vmem:[%s1 + $0x110] sm:$0xff]
        %v1271 = vld [vmem:[%s1 + $0x118] sm:$0xff]
        %v1272 = vld [vmem:[%s1 + $0x120] sm:$0xff]
        %v1273 = vld [vmem:[%s1 + $0x128] sm:$0xff]
        %v1274 = vld [vmem:[%s1 + $0x130] sm:$0xff]
        %v1275 = vld [vmem:[%s1 + $0x138] sm:$0xff]
        %v1276 = vld [vmem:[%s1 + $0x140] sm:$0xff]
        %v1277 = vld [vmem:[%s1 + $0x148] sm:$0xff]
        %v1278 = vld [vmem:[%s1 + $0x150] sm:$0xff]
        %v1279 = vld [vmem:[%s1 + $0x158] sm:$0xff]
        %v1280 = vld [vmem:[%s1 + $0x160] sm:$0xff]
        %v1281 = vld [vmem:[%s1 + $0x168] sm:$0xff]
        %v1282 = vld [vmem:[%s1 + $0x170] sm:$0xff]
        %v1283 = vld [vmem:[%s1 + $0x178] sm:$0xff]
        %v1284 = vld [vmem:[%s1 + $0x180] sm:$0xff]
        %v1285 = vld [vmem:[%s1 + $0x188] sm:$0xff]
        %v1286 = vld [vmem:[%s1 + $0x190] sm:$0xff]
        %v1287 = vld [vmem:[%s1 + $0x198] sm:$0xff]
        %v1288 = vld [vmem:[%s1 + $0x1a0] sm:$0xff]
        %v1289 = vld [vmem:[%s1 + $0x1a8] sm:$0xff]
        %v1290 = vld [vmem:[%s1 + $0x1b0] sm:$0xff]
        %v1291 = vld [vmem:[%s1 + $0x1b8] sm:$0xff]
        %v1292 = vld [vmem:[%s1 + $0x1c0] sm:$0xff]
        %v1293 = vld [vmem:[%s1 + $0x1c8] sm:$0xff]
        %v1294 = vld [vmem:[%s1 + $0x1d0] sm:$0xff]
        %v1295 = vld [vmem:[%s1 + $0x1d8] sm:$0xff]
        %v1296 = vld [vmem:[%s1 + $0x1e0] sm:$0xff]
        %v1297 = vld [vmem:[%s1 + $0x1e8] sm:$0xff]
        %v1298 = vld [vmem:[%s1 + $0x1f0] sm:$0xff]
        %v1299 = vld [vmem:[%s1 + $0x1f8] sm:$0xff]
        %v1300 = vld [vmem:[%s1 + $0x200] sm:$0xff]
        %v1301 = vld [vmem:[%s1 + $0x208] sm:$0xff]
        %v1302 = vld [vmem:[%s1 + $0x210] sm:$0xff]
        %v1303 = vld [vmem:[%s1 + $0x218] sm:$0xff]
        %v1304 = vld [vmem:[%s1 + $0x220] sm:$0xff]
        %v1305 = vld [vmem:[%s1 + $0x228] sm:$0xff]
        %v1306 = vld [vmem:[%s1 + $0x230] sm:$0xff]
        %v1307 = vld [vmem:[%s1 + $0x238] sm:$0xff]
        %v1308 = vld [vmem:[%s1 + $0x240] sm:$0xff]
        %v1309 = vld [vmem:[%s1 + $0x248] sm:$0xff]
        %v1310 = vld [vmem:[%s1 + $0x250] sm:$0xff]
        %v1311 = vld [vmem:[%s1 + $0x258] sm:$0xff]
        %v1312 = vld [vmem:[%s1 + $0x260] sm:$0xff]
        %v1313 = vld [vmem:[%s1 + $0x268] sm:$0xff]
        %v1314 = vld [vmem:[%s1 + $0x270] sm:$0xff]
        %v1315 = vld [vmem:[%s1 + $0x278] sm:$0xff]
        %v1316 = vld [vmem:[%s1 + $0x280] sm:$0xff]
        %v1317 = vld [vmem:[%s1 + $0x288] sm:$0xff]
        %v1318 = vld [vmem:[%s1 + $0x290] sm:$0xff]
        %v1319 = vld [vmem:[%s1 + $0x298] sm:$0xff]
        %v1320 = vld [vmem:[%s1 + $0x2a0] sm:$0xff]
        %v1321 = vld [vmem:[%s1 + $0x2a8] sm:$0xff]
        %v1322 = vld [vmem:[%s1 + $0x2b0] sm:$0xff]
        %v1323 = vld [vmem:[%s1 + $0x2b8] sm:$0xff]
        %v1324 = vld [vmem:[%s1 + $0x2c0] sm:$0xff]
        %v1325 = vld [vmem:[%s1 + $0x2c8] sm:$0xff]
        %v1326 = vld [vmem:[%s1 + $0x2d0] sm:$0xff]
        %v1327 = vld [vmem:[%s1 + $0x2d8] sm:$0xff]
        %v1328 = vld [vmem:[%s1 + $0x2e0] sm:$0xff]
        %v1329 = vld [vmem:[%s1 + $0x2e8] sm:$0xff]
        %v1330 = vld [vmem:[%s1 + $0x2f0] sm:$0xff]
        %v1331 = vld [vmem:[%s1 + $0x2f8] sm:$0xff]
        %v1332 = vld [vmem:[%s1 + $0x300] sm:$0xff]
        %v1333 = vld [vmem:[%s1 + $0x308] sm:$0xff]
        %v1334 = vld [vmem:[%s1 + $0x310] sm:$0xff]
        %v1335 = vld [vmem:[%s1 + $0x318] sm:$0xff]
        %v1336 = vld [vmem:[%s1 + $0x320] sm:$0xff]
        %v1337 = vld [vmem:[%s1 + $0x328] sm:$0xff]
        %v1338 = vld [vmem:[%s1 + $0x330] sm:$0xff]
        %v1339 = vld [vmem:[%s1 + $0x338] sm:$0xff]
        %v1340 = vld [vmem:[%s1 + $0x340] sm:$0xff]
        %v1341 = vld [vmem:[%s1 + $0x348] sm:$0xff]
        %v1342 = vld [vmem:[%s1 + $0x350] sm:$0xff]
        %v1343 = vld [vmem:[%s1 + $0x358] sm:$0xff]
        %v1344 = vld [vmem:[%s1 + $0x360] sm:$0xff]
        %v1345 = vld [vmem:[%s1 + $0x368] sm:$0xff]
        %v1346 = vld [vmem:[%s1 + $0x370] sm:$0xff]
        %v1347 = vld [vmem:[%s1 + $0x378] sm:$0xff]
        %v1348 = vld [vmem:[%s1 + $0x380] sm:$0xff]
        %v1349 = vld [vmem:[%s1 + $0x388] sm:$0xff]
        %v1350 = vld [vmem:[%s1 + $0x390] sm:$0xff]
        %v1351 = vld [vmem:[%s1 + $0x398] sm:$0xff]
        %v1352 = vld [vmem:[%s1 + $0x3a0] sm:$0xff]
        %v1353 = vld [vmem:[%s1 + $0x3a8] sm:$0xff]
        %v1354 = vld [vmem:[%s1 + $0x3b0] sm:$0xff]
        %v1355 = vld [vmem:[%s1 + $0x3b8] sm:$0xff]
        %v1356 = vld [vmem:[%s1 + $0x3c0] sm:$0xff]
        %v1357 = vld [vmem:[%s1 + $0x3c8] sm:$0xff]
        %v1358 = vld [vmem:[%s1 + $0x3d0] sm:$0xff]
        %v1359 = vld [vmem:[%s1 + $0x3d8] sm:$0xff]
        %v1360 = vld [vmem:[%s1 + $0x3e0] sm:$0xff]
        %v1361 = vld [vmem:[%s1 + $0x3e8] sm:$0xff]
        %v1362 = vld [vmem:[%s1 + $0x3f0] sm:$0xff]
        %v1363 = vld [vmem:[%s1 + $0x3f8] sm:$0xff]
        %v1364 = vld [vmem:[%s1 + $0x400] sm:$0xff]
        %v1365 = vld [vmem:[%s1 + $0x408] sm:$0xff]
        %v1366 = vld [vmem:[%s1 + $0x410] sm:$0xff]
        %v1367 = vld [vmem:[%s1 + $0x418] sm:$0xff]
        %v1368 = vld [vmem:[%s1 + $0x420] sm:$0xff]
        %v1369 = vld [vmem:[%s1 + $0x428] sm:$0xff]
        %v1370 = vld [vmem:[%s1 + $0x430] sm:$0xff]
        %v1371 = vld [vmem:[%s1 + $0x438] sm:$0xff]
        %v1372 = vld [vmem:[%s1 + $0x440] sm:$0xff]
        %v1373 = vld [vmem:[%s1 + $0x448] sm:$0xff]
        %v1374 = vld [vmem:[%s1 + $0x450] sm:$0xff]
        %v1375 = vld [vmem:[%s1 + $0x458] sm:$0xff]
        %v1376 = vld [vmem:[%s1 + $0x460] sm:$0xff]
        %v1377 = vld [vmem:[%s1 + $0x468] sm:$0xff]
        %v1378 = vld [vmem:[%s1 + $0x470] sm:$0xff]
        %v1379 = vld [vmem:[%s1 + $0x478] sm:$0xff]
        %s1380 = scalar_lea.vmem %s1, 1152
        %v1381 = vld [vmem:[%s1380] sm:$0xff]
        %v1382 = vld [vmem:[%s1380 + $0x8] sm:$0xff]
        %v1383 = vld [vmem:[%s1380 + $0x10] sm:$0xff]
        %v1384 = vld [vmem:[%s1380 + $0x18] sm:$0xff]
        %v1385 = vld [vmem:[%s1380 + $0x20] sm:$0xff]
        %v1386 = vld [vmem:[%s1380 + $0x28] sm:$0xff]
        %v1387 = vld [vmem:[%s1380 + $0x30] sm:$0xff]
        %v1388 = vld [vmem:[%s1380 + $0x38] sm:$0xff]
        %v1389 = vld [vmem:[%s1380 + $0x40] sm:$0xff]
        %v1390 = vld [vmem:[%s1380 + $0x48] sm:$0xff]
        %v1391 = vld [vmem:[%s1380 + $0x50] sm:$0xff]
        %v1392 = vld [vmem:[%s1380 + $0x58] sm:$0xff]
        %v1393 = vld [vmem:[%s1380 + $0x60] sm:$0xff]
        %v1394 = vld [vmem:[%s1380 + $0x68] sm:$0xff]
        %v1395 = vld [vmem:[%s1380 + $0x70] sm:$0xff]
        %v1396 = vld [vmem:[%s1380 + $0x78] sm:$0xff]
        %v1397 = vld [vmem:[%s1380 + $0x80] sm:$0xff]
        %v1398 = vld [vmem:[%s1380 + $0x88] sm:$0xff]
        %v1399 = vld [vmem:[%s1380 + $0x90] sm:$0xff]
        %v1400 = vld [vmem:[%s1380 + $0x98] sm:$0xff]
        %v1401 = vld [vmem:[%s1380 + $0xa0] sm:$0xff]
        %v1402 = vld [vmem:[%s1380 + $0xa8] sm:$0xff]
        %v1403 = vld [vmem:[%s1380 + $0xb0] sm:$0xff]
        %v1404 = vld [vmem:[%s1380 + $0xb8] sm:$0xff]
        %v1405 = vld [vmem:[%s1380 + $0xc0] sm:$0xff]
        %v1406 = vld [vmem:[%s1380 + $0xc8] sm:$0xff]
        %v1407 = vld [vmem:[%s1380 + $0xd0] sm:$0xff]
        %v1408 = vld [vmem:[%s1380 + $0xd8] sm:$0xff]
        %v1409 = vld [vmem:[%s1380 + $0xe0] sm:$0xff]
        %v1410 = vld [vmem:[%s1380 + $0xe8] sm:$0xff]
        %v1411 = vld [vmem:[%s1380 + $0xf0] sm:$0xff]
        %v1412 = vld [vmem:[%s1380 + $0xf8] sm:$0xff]
        %v1413 = vld [vmem:[%s1380 + $0x100] sm:$0xff]
        %v1414 = vld [vmem:[%s1380 + $0x108] sm:$0xff]
        %v1415 = vld [vmem:[%s1380 + $0x110] sm:$0xff]
        %v1416 = vld [vmem:[%s1380 + $0x118] sm:$0xff]
        %v1417 = vld [vmem:[%s1380 + $0x120] sm:$0xff]
        %v1418 = vld [vmem:[%s1380 + $0x128] sm:$0xff]
        %v1419 = vld [vmem:[%s1380 + $0x130] sm:$0xff]
        %v1420 = vld [vmem:[%s1380 + $0x138] sm:$0xff]
        %v1421 = vld [vmem:[%s1380 + $0x140] sm:$0xff]
        %v1422 = vld [vmem:[%s1380 + $0x148] sm:$0xff]
        %v1423 = vld [vmem:[%s1380 + $0x150] sm:$0xff]
        %v1424 = vld [vmem:[%s1380 + $0x158] sm:$0xff]
        %v1425 = vld [vmem:[%s1380 + $0x160] sm:$0xff]
        %v1426 = vld [vmem:[%s1380 + $0x168] sm:$0xff]
        %v1427 = vld [vmem:[%s1380 + $0x170] sm:$0xff]
        %v1428 = vld [vmem:[%s1380 + $0x178] sm:$0xff]
        %v1429 = vld [vmem:[%s1380 + $0x180] sm:$0xff]
        %v1430 = vld [vmem:[%s1380 + $0x188] sm:$0xff]
        %v1431 = vld [vmem:[%s1380 + $0x190] sm:$0xff]
        %v1432 = vld [vmem:[%s1380 + $0x198] sm:$0xff]
        %v1433 = vld [vmem:[%s1380 + $0x1a0] sm:$0xff]
        %v1434 = vld [vmem:[%s1380 + $0x1a8] sm:$0xff]
        %v1435 = vld [vmem:[%s1380 + $0x1b0] sm:$0xff]
        %v1436 = vld [vmem:[%s1380 + $0x1b8] sm:$0xff]
        %v1437 = vld [vmem:[%s1380 + $0x1c0] sm:$0xff]
        %v1438 = vld [vmem:[%s1380 + $0x1c8] sm:$0xff]
        %v1439 = vld [vmem:[%s1380 + $0x1d0] sm:$0xff]
        %v1440 = vld [vmem:[%s1380 + $0x1d8] sm:$0xff]
        %v1441 = vld [vmem:[%s1380 + $0x1e0] sm:$0xff]
        %v1442 = vld [vmem:[%s1380 + $0x1e8] sm:$0xff]
        %v1443 = vld [vmem:[%s1380 + $0x1f0] sm:$0xff]
        %v1444 = vld [vmem:[%s1380 + $0x1f8] sm:$0xff]
        %v1445 = vld [vmem:[%s1380 + $0x200] sm:$0xff]
        %v1446 = vld [vmem:[%s1380 + $0x208] sm:$0xff]
        %v1447 = vld [vmem:[%s1380 + $0x210] sm:$0xff]
        %v1448 = vld [vmem:[%s1380 + $0x218] sm:$0xff]
        %v1449 = vld [vmem:[%s1380 + $0x220] sm:$0xff]
        %v1450 = vld [vmem:[%s1380 + $0x228] sm:$0xff]
        %v1451 = vld [vmem:[%s1380 + $0x230] sm:$0xff]
        %v1452 = vld [vmem:[%s1380 + $0x238] sm:$0xff]
        %v1453 = vld [vmem:[%s1380 + $0x240] sm:$0xff]
        %v1454 = vld [vmem:[%s1380 + $0x248] sm:$0xff]
        %v1455 = vld [vmem:[%s1380 + $0x250] sm:$0xff]
        %v1456 = vld [vmem:[%s1380 + $0x258] sm:$0xff]
        %v1457 = vld [vmem:[%s1380 + $0x260] sm:$0xff]
        %v1458 = vld [vmem:[%s1380 + $0x268] sm:$0xff]
        %v1459 = vld [vmem:[%s1380 + $0x270] sm:$0xff]
        %v1460 = vld [vmem:[%s1380 + $0x278] sm:$0xff]
        %v1461 = vld [vmem:[%s1380 + $0x280] sm:$0xff]
        %v1462 = vld [vmem:[%s1380 + $0x288] sm:$0xff]
        %v1463 = vld [vmem:[%s1380 + $0x290] sm:$0xff]
        %v1464 = vld [vmem:[%s1380 + $0x298] sm:$0xff]
        %v1465 = vld [vmem:[%s1380 + $0x2a0] sm:$0xff]
        %v1466 = vld [vmem:[%s1380 + $0x2a8] sm:$0xff]
        %v1467 = vld [vmem:[%s1380 + $0x2b0] sm:$0xff]
        %v1468 = vld [vmem:[%s1380 + $0x2b8] sm:$0xff]
        %v1469 = vld [vmem:[%s1380 + $0x2c0] sm:$0xff]
        %v1470 = vld [vmem:[%s1380 + $0x2c8] sm:$0xff]
        %v1471 = vld [vmem:[%s1380 + $0x2d0] sm:$0xff]
        %v1472 = vld [vmem:[%s1380 + $0x2d8] sm:$0xff]
        %v1473 = vld [vmem:[%s1380 + $0x2e0] sm:$0xff]
        %v1474 = vld [vmem:[%s1380 + $0x2e8] sm:$0xff]
        %v1475 = vld [vmem:[%s1380 + $0x2f0] sm:$0xff]
        %v1476 = vld [vmem:[%s1380 + $0x2f8] sm:$0xff]
        %v1477 = vld [vmem:[%s1380 + $0x300] sm:$0xff]
        %v1478 = vld [vmem:[%s1380 + $0x308] sm:$0xff]
        %v1479 = vld [vmem:[%s1380 + $0x310] sm:$0xff]
        %v1480 = vld [vmem:[%s1380 + $0x318] sm:$0xff]
        %v1481 = vld [vmem:[%s1380 + $0x320] sm:$0xff]
        %v1482 = vld [vmem:[%s1380 + $0x328] sm:$0xff]
        %v1483 = vld [vmem:[%s1380 + $0x330] sm:$0xff]
        %v1484 = vld [vmem:[%s1380 + $0x338] sm:$0xff]
        %v1485 = vld [vmem:[%s1380 + $0x340] sm:$0xff]
        %v1486 = vld [vmem:[%s1380 + $0x348] sm:$0xff]
        %v1487 = vld [vmem:[%s1380 + $0x350] sm:$0xff]
        %v1488 = vld [vmem:[%s1380 + $0x358] sm:$0xff]
        %v1489 = vld [vmem:[%s1380 + $0x360] sm:$0xff]
        %v1490 = vld [vmem:[%s1380 + $0x368] sm:$0xff]
        %v1491 = vld [vmem:[%s1380 + $0x370] sm:$0xff]
        %v1492 = vld [vmem:[%s1380 + $0x378] sm:$0xff]
        %v1493 = vld [vmem:[%s1380 + $0x380] sm:$0xff]
        %v1494 = vld [vmem:[%s1380 + $0x388] sm:$0xff]
        %v1495 = vld [vmem:[%s1380 + $0x390] sm:$0xff]
        %v1496 = vld [vmem:[%s1380 + $0x398] sm:$0xff]
        %v1497 = vld [vmem:[%s1380 + $0x3a0] sm:$0xff]
        %v1498 = vld [vmem:[%s1380 + $0x3a8] sm:$0xff]
        %v1499 = vld [vmem:[%s1380 + $0x3b0] sm:$0xff]
        %v1500 = vld [vmem:[%s1380 + $0x3b8] sm:$0xff]
        %v1501 = vld [vmem:[%s1380 + $0x3c0] sm:$0xff]
        %v1502 = vld [vmem:[%s1380 + $0x3c8] sm:$0xff]
        %v1503 = vld [vmem:[%s1380 + $0x3d0] sm:$0xff]
        %v1504 = vld [vmem:[%s1380 + $0x3d8] sm:$0xff]
        %v1505 = vld [vmem:[%s1380 + $0x3e0] sm:$0xff]
        %v1506 = vld [vmem:[%s1380 + $0x3e8] sm:$0xff]
        %v1507 = vld [vmem:[%s1380 + $0x3f0] sm:$0xff]
        %v1508 = vld [vmem:[%s1380 + $0x3f8] sm:$0xff]
        %v1509 = vld [vmem:[%s1380 + $0x400] sm:$0xff]
        %v1510 = vld [vmem:[%s1380 + $0x408] sm:$0xff]
        %v1511 = vld [vmem:[%s1380 + $0x410] sm:$0xff]
        %v1512 = vld [vmem:[%s1380 + $0x418] sm:$0xff]
        %v1513 = vld [vmem:[%s1380 + $0x420] sm:$0xff]
        %v1514 = vld [vmem:[%s1380 + $0x428] sm:$0xff]
        %v1515 = vld [vmem:[%s1380 + $0x430] sm:$0xff]
        %v1516 = vld [vmem:[%s1380 + $0x438] sm:$0xff]
        %v1517 = vld [vmem:[%s1380 + $0x440] sm:$0xff]
        %v1518 = vld [vmem:[%s1380 + $0x448] sm:$0xff]
        %v1519 = vld [vmem:[%s1380 + $0x450] sm:$0xff]
        %v1520 = vld [vmem:[%s1380 + $0x458] sm:$0xff]
        %v1521 = vld [vmem:[%s1380 + $0x460] sm:$0xff]
        %v1522 = vld [vmem:[%s1380 + $0x468] sm:$0xff]
        %v1523 = vld [vmem:[%s1380 + $0x470] sm:$0xff]
        %v1524 = vld [vmem:[%s1380 + $0x478] sm:$0xff]
        %1525 = vmatpush.msra.mxu0 %v1426
        %1526 = vmatpush.msra.mxu0 %v1423
        %1527 = vmatpush.msra.mxu0 %v1420
        %1528 = vmatpush.msra.mxu0 %v1417
        %1529 = vmatpush.msra.mxu0 %v1414
        %1530 = vmatpush.msra.mxu0 %v1411
        %1531 = vmatpush.msra.mxu0 %v1408
        %1532 = vmatpush.msra.mxu0 %v1405
        %1533 = vmatpush.msra.mxu0 %v1402
        %1534 = vmatpush.msra.mxu0 %v1399
        %1535 = vmatpush.msra.mxu0 %v1396
        %1536 = vmatpush.msra.mxu0 %v1393
        %1537 = vmatpush.msra.mxu0 %v1390
        %1538 = vmatpush.msra.mxu0 %v1387
        %1539 = vmatpush.msra.mxu0 %v1384
        %1540 = vmatpush.msra.mxu0 %v1381
        %1541 = vmatmul.f32.gmra.mxu0 %v850
        %v1542 = vpop.f32.mrf.mxu0
        %v1543 = vadd.f32 0.0, %v1542
        %1544 = vmatmul.f32.gmra.mxu0 %v853
        %v1545 = vpop.f32.mrf.mxu0
        %v1546 = vadd.f32 0.0, %v1545
        %1547 = vmatmul.f32.gmra.mxu0 %v856
        %v1548 = vpop.f32.mrf.mxu0
        %v1549 = vadd.f32 0.0, %v1548
        %1550 = vmatmul.f32.gmra.mxu0 %v859
        %v1551 = vpop.f32.mrf.mxu0
        %v1552 = vadd.f32 0.0, %v1551
        %1553 = vmatmul.f32.gmra.mxu0 %v862
        %v1554 = vpop.f32.mrf.mxu0
        %v1555 = vadd.f32 0.0, %v1554
        %1556 = vmatmul.f32.gmra.mxu0 %v865
        %v1557 = vpop.f32.mrf.mxu0
        %v1558 = vadd.f32 0.0, %v1557
        %1559 = vmatmul.f32.gmra.mxu0 %v868
        %v1560 = vpop.f32.mrf.mxu0
        %v1561 = vadd.f32 0.0, %v1560
        %1562 = vmatmul.f32.gmra.mxu0 %v871
        %v1563 = vpop.f32.mrf.mxu0
        %v1564 = vadd.f32 0.0, %v1563
        %1565 = vmatmul.f32.gmra.mxu0 %v874
        %v1566 = vpop.f32.mrf.mxu0
        %v1567 = vadd.f32 0.0, %v1566
        %1568 = vmatmul.f32.gmra.mxu0 %v877
        %v1569 = vpop.f32.mrf.mxu0
        %v1570 = vadd.f32 0.0, %v1569
        %1571 = vmatmul.f32.gmra.mxu0 %v880
        %v1572 = vpop.f32.mrf.mxu0
        %v1573 = vadd.f32 0.0, %v1572
        %1574 = vmatmul.f32.gmra.mxu0 %v883
        %v1575 = vpop.f32.mrf.mxu0
        %v1576 = vadd.f32 0.0, %v1575
        %1577 = vmatmul.f32.gmra.mxu0 %v886
        %v1578 = vpop.f32.mrf.mxu0
        %v1579 = vadd.f32 0.0, %v1578
        %1580 = vmatmul.f32.gmra.mxu0 %v889
        %v1581 = vpop.f32.mrf.mxu0
        %v1582 = vadd.f32 0.0, %v1581
        %1583 = vmatmul.f32.gmra.mxu0 %v892
        %v1584 = vpop.f32.mrf.mxu0
        %v1585 = vadd.f32 0.0, %v1584
        %1586 = vmatmul.f32.gmra.mxu0 %v895
        %v1587 = vpop.f32.mrf.mxu0
        %v1588 = vadd.f32 0.0, %v1587
        %1589 = vdwg.mxu0
        %1590 = vmatpush.msra.mxu0 %v1474
        %1591 = vmatpush.msra.mxu0 %v1471
        %1592 = vmatpush.msra.mxu0 %v1468
        %1593 = vmatpush.msra.mxu0 %v1465
        %1594 = vmatpush.msra.mxu0 %v1462
        %1595 = vmatpush.msra.mxu0 %v1459
        %1596 = vmatpush.msra.mxu0 %v1456
        %1597 = vmatpush.msra.mxu0 %v1453
        %1598 = vmatpush.msra.mxu0 %v1450
        %1599 = vmatpush.msra.mxu0 %v1447
        %1600 = vmatpush.msra.mxu0 %v1444
        %1601 = vmatpush.msra.mxu0 %v1441
        %1602 = vmatpush.msra.mxu0 %v1438
        %1603 = vmatpush.msra.mxu0 %v1435
        %1604 = vmatpush.msra.mxu0 %v1432
        %1605 = vmatpush.msra.mxu0 %v1429
        %1606 = vmatmul.f32.gmra.mxu0 %v851
        %v1607 = vpop.f32.mrf.mxu0
        %v1608 = vadd.f32 %v1543, %v1607
        %1609 = vmatmul.f32.gmra.mxu0 %v854
        %v1610 = vpop.f32.mrf.mxu0
        %v1611 = vadd.f32 %v1546, %v1610
        %1612 = vmatmul.f32.gmra.mxu0 %v857
        %v1613 = vpop.f32.mrf.mxu0
        %v1614 = vadd.f32 %v1549, %v1613
        %1615 = vmatmul.f32.gmra.mxu0 %v860
        %v1616 = vpop.f32.mrf.mxu0
        %v1617 = vadd.f32 %v1552, %v1616
        %1618 = vmatmul.f32.gmra.mxu0 %v863
        %v1619 = vpop.f32.mrf.mxu0
        %v1620 = vadd.f32 %v1555, %v1619
        %1621 = vmatmul.f32.gmra.mxu0 %v866
        %v1622 = vpop.f32.mrf.mxu0
        %v1623 = vadd.f32 %v1558, %v1622
        %1624 = vmatmul.f32.gmra.mxu0 %v869
        %v1625 = vpop.f32.mrf.mxu0
        %v1626 = vadd.f32 %v1561, %v1625
        %1627 = vmatmul.f32.gmra.mxu0 %v872
        %v1628 = vpop.f32.mrf.mxu0
        %v1629 = vadd.f32 %v1564, %v1628
        %1630 = vmatmul.f32.gmra.mxu0 %v875
        %v1631 = vpop.f32.mrf.mxu0
        %v1632 = vadd.f32 %v1567, %v1631
        %1633 = vmatmul.f32.gmra.mxu0 %v878
        %v1634 = vpop.f32.mrf.mxu0
        %v1635 = vadd.f32 %v1570, %v1634
        %1636 = vmatmul.f32.gmra.mxu0 %v881
        %v1637 = vpop.f32.mrf.mxu0
        %v1638 = vadd.f32 %v1573, %v1637
        %1639 = vmatmul.f32.gmra.mxu0 %v884
        %v1640 = vpop.f32.mrf.mxu0
        %v1641 = vadd.f32 %v1576, %v1640
        %1642 = vmatmul.f32.gmra.mxu0 %v887
        %v1643 = vpop.f32.mrf.mxu0
        %v1644 = vadd.f32 %v1579, %v1643
        %1645 = vmatmul.f32.gmra.mxu0 %v890
        %v1646 = vpop.f32.mrf.mxu0
        %v1647 = vadd.f32 %v1582, %v1646
        %1648 = vmatmul.f32.gmra.mxu0 %v893
        %v1649 = vpop.f32.mrf.mxu0
        %v1650 = vadd.f32 %v1585, %v1649
        %1651 = vmatmul.f32.gmra.mxu0 %v896
        %v1652 = vpop.f32.mrf.mxu0
        %v1653 = vadd.f32 %v1588, %v1652
        %1654 = vdwg.mxu0
        %1655 = vmatpush.msra.mxu0 %v1522
        %1656 = vmatpush.msra.mxu0 %v1519
        %1657 = vmatpush.msra.mxu0 %v1516
        %1658 = vmatpush.msra.mxu0 %v1513
        %1659 = vmatpush.msra.mxu0 %v1510
        %1660 = vmatpush.msra.mxu0 %v1507
        %1661 = vmatpush.msra.mxu0 %v1504
        %1662 = vmatpush.msra.mxu0 %v1501
        %1663 = vmatpush.msra.mxu0 %v1498
        %1664 = vmatpush.msra.mxu0 %v1495
        %1665 = vmatpush.msra.mxu0 %v1492
        %1666 = vmatpush.msra.mxu0 %v1489
        %1667 = vmatpush.msra.mxu0 %v1486
        %1668 = vmatpush.msra.mxu0 %v1483
        %1669 = vmatpush.msra.mxu0 %v1480
        %1670 = vmatpush.msra.mxu0 %v1477
        %1671 = vmatmul.f32.gmra.mxu0 %v852
        %v1672 = vpop.f32.mrf.mxu0
        %v1673 = vadd.f32 %v1608, %v1672
        %1674 = vmatmul.f32.gmra.mxu0 %v855
        %v1675 = vpop.f32.mrf.mxu0
        %v1676 = vadd.f32 %v1611, %v1675
        %1677 = vmatmul.f32.gmra.mxu0 %v858
        %v1678 = vpop.f32.mrf.mxu0
        %v1679 = vadd.f32 %v1614, %v1678
        %1680 = vmatmul.f32.gmra.mxu0 %v861
        %v1681 = vpop.f32.mrf.mxu0
        %v1682 = vadd.f32 %v1617, %v1681
        %1683 = vmatmul.f32.gmra.mxu0 %v864
        %v1684 = vpop.f32.mrf.mxu0
        %v1685 = vadd.f32 %v1620, %v1684
        %1686 = vmatmul.f32.gmra.mxu0 %v867
        %v1687 = vpop.f32.mrf.mxu0
        %v1688 = vadd.f32 %v1623, %v1687
        %1689 = vmatmul.f32.gmra.mxu0 %v870
        %v1690 = vpop.f32.mrf.mxu0
        %v1691 = vadd.f32 %v1626, %v1690
        %1692 = vmatmul.f32.gmra.mxu0 %v873
        %v1693 = vpop.f32.mrf.mxu0
        %v1694 = vadd.f32 %v1629, %v1693
        %1695 = vmatmul.f32.gmra.mxu0 %v876
        %v1696 = vpop.f32.mrf.mxu0
        %v1697 = vadd.f32 %v1632, %v1696
        %1698 = vmatmul.f32.gmra.mxu0 %v879
        %v1699 = vpop.f32.mrf.mxu0
        %v1700 = vadd.f32 %v1635, %v1699
        %1701 = vmatmul.f32.gmra.mxu0 %v882
        %v1702 = vpop.f32.mrf.mxu0
        %v1703 = vadd.f32 %v1638, %v1702
        %1704 = vmatmul.f32.gmra.mxu0 %v885
        %v1705 = vpop.f32.mrf.mxu0
        %v1706 = vadd.f32 %v1641, %v1705
        %1707 = vmatmul.f32.gmra.mxu0 %v888
        %v1708 = vpop.f32.mrf.mxu0
        %v1709 = vadd.f32 %v1644, %v1708
        %1710 = vmatmul.f32.gmra.mxu0 %v891
        %v1711 = vpop.f32.mrf.mxu0
        %v1712 = vadd.f32 %v1647, %v1711
        %1713 = vmatmul.f32.gmra.mxu0 %v894
        %v1714 = vpop.f32.mrf.mxu0
        %v1715 = vadd.f32 %v1650, %v1714
        %1716 = vmatmul.f32.gmra.mxu0 %v897
        %v1717 = vpop.f32.mrf.mxu0
        %v1718 = vadd.f32 %v1653, %v1717
        %1719 = vdwg.mxu0
        %1720 = vmatpush.msra.mxu0 %v1427
        %1721 = vmatpush.msra.mxu0 %v1424
        %1722 = vmatpush.msra.mxu0 %v1421
        %1723 = vmatpush.msra.mxu0 %v1418
        %1724 = vmatpush.msra.mxu0 %v1415
        %1725 = vmatpush.msra.mxu0 %v1412
        %1726 = vmatpush.msra.mxu0 %v1409
        %1727 = vmatpush.msra.mxu0 %v1406
        %1728 = vmatpush.msra.mxu0 %v1403
        %1729 = vmatpush.msra.mxu0 %v1400
        %1730 = vmatpush.msra.mxu0 %v1397
        %1731 = vmatpush.msra.mxu0 %v1394
        %1732 = vmatpush.msra.mxu0 %v1391
        %1733 = vmatpush.msra.mxu0 %v1388
        %1734 = vmatpush.msra.mxu0 %v1385
        %1735 = vmatpush.msra.mxu0 %v1382
        %1736 = vmatmul.f32.gmra.mxu0 %v850
        %v1737 = vpop.f32.mrf.mxu0
        %v1738 = vadd.f32 0.0, %v1737
        %1739 = vmatmul.f32.gmra.mxu0 %v853
        %v1740 = vpop.f32.mrf.mxu0
        %v1741 = vadd.f32 0.0, %v1740
        %1742 = vmatmul.f32.gmra.mxu0 %v856
        %v1743 = vpop.f32.mrf.mxu0
        %v1744 = vadd.f32 0.0, %v1743
        %1745 = vmatmul.f32.gmra.mxu0 %v859
        %v1746 = vpop.f32.mrf.mxu0
        %v1747 = vadd.f32 0.0, %v1746
        %1748 = vmatmul.f32.gmra.mxu0 %v862
        %v1749 = vpop.f32.mrf.mxu0
        %v1750 = vadd.f32 0.0, %v1749
        %1751 = vmatmul.f32.gmra.mxu0 %v865
        %v1752 = vpop.f32.mrf.mxu0
        %v1753 = vadd.f32 0.0, %v1752
        %1754 = vmatmul.f32.gmra.mxu0 %v868
        %v1755 = vpop.f32.mrf.mxu0
        %v1756 = vadd.f32 0.0, %v1755
        %1757 = vmatmul.f32.gmra.mxu0 %v871
        %v1758 = vpop.f32.mrf.mxu0
        %v1759 = vadd.f32 0.0, %v1758
        %1760 = vmatmul.f32.gmra.mxu0 %v874
        %v1761 = vpop.f32.mrf.mxu0
        %v1762 = vadd.f32 0.0, %v1761
        %1763 = vmatmul.f32.gmra.mxu0 %v877
        %v1764 = vpop.f32.mrf.mxu0
        %v1765 = vadd.f32 0.0, %v1764
        %1766 = vmatmul.f32.gmra.mxu0 %v880
        %v1767 = vpop.f32.mrf.mxu0
        %v1768 = vadd.f32 0.0, %v1767
        %1769 = vmatmul.f32.gmra.mxu0 %v883
        %v1770 = vpop.f32.mrf.mxu0
        %v1771 = vadd.f32 0.0, %v1770
        %1772 = vmatmul.f32.gmra.mxu0 %v886
        %v1773 = vpop.f32.mrf.mxu0
        %v1774 = vadd.f32 0.0, %v1773
        %1775 = vmatmul.f32.gmra.mxu0 %v889
        %v1776 = vpop.f32.mrf.mxu0
        %v1777 = vadd.f32 0.0, %v1776
        %1778 = vmatmul.f32.gmra.mxu0 %v892
        %v1779 = vpop.f32.mrf.mxu0
        %v1780 = vadd.f32 0.0, %v1779
        %1781 = vmatmul.f32.gmra.mxu0 %v895
        %v1782 = vpop.f32.mrf.mxu0
        %v1783 = vadd.f32 0.0, %v1782
        %1784 = vdwg.mxu0
        %1785 = vmatpush.msra.mxu0 %v1475
        %1786 = vmatpush.msra.mxu0 %v1472
        %1787 = vmatpush.msra.mxu0 %v1469
        %1788 = vmatpush.msra.mxu0 %v1466
        %1789 = vmatpush.msra.mxu0 %v1463
        %1790 = vmatpush.msra.mxu0 %v1460
        %1791 = vmatpush.msra.mxu0 %v1457
        %1792 = vmatpush.msra.mxu0 %v1454
        %1793 = vmatpush.msra.mxu0 %v1451
        %1794 = vmatpush.msra.mxu0 %v1448
        %1795 = vmatpush.msra.mxu0 %v1445
        %1796 = vmatpush.msra.mxu0 %v1442
        %1797 = vmatpush.msra.mxu0 %v1439
        %1798 = vmatpush.msra.mxu0 %v1436
        %1799 = vmatpush.msra.mxu0 %v1433
        %1800 = vmatpush.msra.mxu0 %v1430
        %1801 = vmatmul.f32.gmra.mxu0 %v851
        %v1802 = vpop.f32.mrf.mxu0
        %v1803 = vadd.f32 %v1738, %v1802
        %1804 = vmatmul.f32.gmra.mxu0 %v854
        %v1805 = vpop.f32.mrf.mxu0
        %v1806 = vadd.f32 %v1741, %v1805
        %1807 = vmatmul.f32.gmra.mxu0 %v857
        %v1808 = vpop.f32.mrf.mxu0
        %v1809 = vadd.f32 %v1744, %v1808
        %1810 = vmatmul.f32.gmra.mxu0 %v860
        %v1811 = vpop.f32.mrf.mxu0
        %v1812 = vadd.f32 %v1747, %v1811
        %1813 = vmatmul.f32.gmra.mxu0 %v863
        %v1814 = vpop.f32.mrf.mxu0
        %v1815 = vadd.f32 %v1750, %v1814
        %1816 = vmatmul.f32.gmra.mxu0 %v866
        %v1817 = vpop.f32.mrf.mxu0
        %v1818 = vadd.f32 %v1753, %v1817
        %1819 = vmatmul.f32.gmra.mxu0 %v869
        %v1820 = vpop.f32.mrf.mxu0
        %v1821 = vadd.f32 %v1756, %v1820
        %1822 = vmatmul.f32.gmra.mxu0 %v872
        %v1823 = vpop.f32.mrf.mxu0
        %v1824 = vadd.f32 %v1759, %v1823
        %1825 = vmatmul.f32.gmra.mxu0 %v875
        %v1826 = vpop.f32.mrf.mxu0
        %v1827 = vadd.f32 %v1762, %v1826
        %1828 = vmatmul.f32.gmra.mxu0 %v878
        %v1829 = vpop.f32.mrf.mxu0
        %v1830 = vadd.f32 %v1765, %v1829
        %1831 = vmatmul.f32.gmra.mxu0 %v881
        %v1832 = vpop.f32.mrf.mxu0
        %v1833 = vadd.f32 %v1768, %v1832
        %1834 = vmatmul.f32.gmra.mxu0 %v884
        %v1835 = vpop.f32.mrf.mxu0
        %v1836 = vadd.f32 %v1771, %v1835
        %1837 = vmatmul.f32.gmra.mxu0 %v887
        %v1838 = vpop.f32.mrf.mxu0
        %v1839 = vadd.f32 %v1774, %v1838
        %1840 = vmatmul.f32.gmra.mxu0 %v890
        %v1841 = vpop.f32.mrf.mxu0
        %v1842 = vadd.f32 %v1777, %v1841
        %1843 = vmatmul.f32.gmra.mxu0 %v893
        %v1844 = vpop.f32.mrf.mxu0
        %v1845 = vadd.f32 %v1780, %v1844
        %1846 = vmatmul.f32.gmra.mxu0 %v896
        %v1847 = vpop.f32.mrf.mxu0
        %v1848 = vadd.f32 %v1783, %v1847
        %1849 = vdwg.mxu0
        %1850 = vmatpush.msra.mxu0 %v1523
        %1851 = vmatpush.msra.mxu0 %v1520
        %1852 = vmatpush.msra.mxu0 %v1517
        %1853 = vmatpush.msra.mxu0 %v1514
        %1854 = vmatpush.msra.mxu0 %v1511
        %1855 = vmatpush.msra.mxu0 %v1508
        %1856 = vmatpush.msra.mxu0 %v1505
        %1857 = vmatpush.msra.mxu0 %v1502
        %1858 = vmatpush.msra.mxu0 %v1499
        %1859 = vmatpush.msra.mxu0 %v1496
        %1860 = vmatpush.msra.mxu0 %v1493
        %1861 = vmatpush.msra.mxu0 %v1490
        %1862 = vmatpush.msra.mxu0 %v1487
        %1863 = vmatpush.msra.mxu0 %v1484
        %1864 = vmatpush.msra.mxu0 %v1481
        %1865 = vmatpush.msra.mxu0 %v1478
        %1866 = vmatmul.f32.gmra.mxu0 %v852
        %v1867 = vpop.f32.mrf.mxu0
        %v1868 = vadd.f32 %v1803, %v1867
        %1869 = vmatmul.f32.gmra.mxu0 %v855
        %v1870 = vpop.f32.mrf.mxu0
        %v1871 = vadd.f32 %v1806, %v1870
        %1872 = vmatmul.f32.gmra.mxu0 %v858
        %v1873 = vpop.f32.mrf.mxu0
        %v1874 = vadd.f32 %v1809, %v1873
        %1875 = vmatmul.f32.gmra.mxu0 %v861
        %v1876 = vpop.f32.mrf.mxu0
        %v1877 = vadd.f32 %v1812, %v1876
        %1878 = vmatmul.f32.gmra.mxu0 %v864
        %v1879 = vpop.f32.mrf.mxu0
        %v1880 = vadd.f32 %v1815, %v1879
        %1881 = vmatmul.f32.gmra.mxu0 %v867
        %v1882 = vpop.f32.mrf.mxu0
        %v1883 = vadd.f32 %v1818, %v1882
        %1884 = vmatmul.f32.gmra.mxu0 %v870
        %v1885 = vpop.f32.mrf.mxu0
        %v1886 = vadd.f32 %v1821, %v1885
        %1887 = vmatmul.f32.gmra.mxu0 %v873
        %v1888 = vpop.f32.mrf.mxu0
        %v1889 = vadd.f32 %v1824, %v1888
        %1890 = vmatmul.f32.gmra.mxu0 %v876
        %v1891 = vpop.f32.mrf.mxu0
        %v1892 = vadd.f32 %v1827, %v1891
        %1893 = vmatmul.f32.gmra.mxu0 %v879
        %v1894 = vpop.f32.mrf.mxu0
        %v1895 = vadd.f32 %v1830, %v1894
        %1896 = vmatmul.f32.gmra.mxu0 %v882
        %v1897 = vpop.f32.mrf.mxu0
        %v1898 = vadd.f32 %v1833, %v1897
        %1899 = vmatmul.f32.gmra.mxu0 %v885
        %v1900 = vpop.f32.mrf.mxu0
        %v1901 = vadd.f32 %v1836, %v1900
        %1902 = vmatmul.f32.gmra.mxu0 %v888
        %v1903 = vpop.f32.mrf.mxu0
        %v1904 = vadd.f32 %v1839, %v1903
        %1905 = vmatmul.f32.gmra.mxu0 %v891
        %v1906 = vpop.f32.mrf.mxu0
        %v1907 = vadd.f32 %v1842, %v1906
        %1908 = vmatmul.f32.gmra.mxu0 %v894
        %v1909 = vpop.f32.mrf.mxu0
        %v1910 = vadd.f32 %v1845, %v1909
        %1911 = vmatmul.f32.gmra.mxu0 %v897
        %v1912 = vpop.f32.mrf.mxu0
        %v1913 = vadd.f32 %v1848, %v1912
        %1914 = vdwg.mxu0
        %1915 = vmatpush.msra.mxu0 %v1428
        %1916 = vmatpush.msra.mxu0 %v1425
        %1917 = vmatpush.msra.mxu0 %v1422
        %1918 = vmatpush.msra.mxu0 %v1419
        %1919 = vmatpush.msra.mxu0 %v1416
        %1920 = vmatpush.msra.mxu0 %v1413
        %1921 = vmatpush.msra.mxu0 %v1410
        %1922 = vmatpush.msra.mxu0 %v1407
        %1923 = vmatpush.msra.mxu0 %v1404
        %1924 = vmatpush.msra.mxu0 %v1401
        %1925 = vmatpush.msra.mxu0 %v1398
        %1926 = vmatpush.msra.mxu0 %v1395
        %1927 = vmatpush.msra.mxu0 %v1392
        %1928 = vmatpush.msra.mxu0 %v1389
        %1929 = vmatpush.msra.mxu0 %v1386
        %1930 = vmatpush.msra.mxu0 %v1383
        %1931 = vmatmul.f32.gmra.mxu0 %v850
        %v1932 = vpop.f32.mrf.mxu0
        %v1933 = vadd.f32 0.0, %v1932
        %1934 = vmatmul.f32.gmra.mxu0 %v853
        %v1935 = vpop.f32.mrf.mxu0
        %v1936 = vadd.f32 0.0, %v1935
        %1937 = vmatmul.f32.gmra.mxu0 %v856
        %v1938 = vpop.f32.mrf.mxu0
        %v1939 = vadd.f32 0.0, %v1938
        %1940 = vmatmul.f32.gmra.mxu0 %v859
        %v1941 = vpop.f32.mrf.mxu0
        %v1942 = vadd.f32 0.0, %v1941
        %1943 = vmatmul.f32.gmra.mxu0 %v862
        %v1944 = vpop.f32.mrf.mxu0
        %v1945 = vadd.f32 0.0, %v1944
        %1946 = vmatmul.f32.gmra.mxu0 %v865
        %v1947 = vpop.f32.mrf.mxu0
        %v1948 = vadd.f32 0.0, %v1947
        %1949 = vmatmul.f32.gmra.mxu0 %v868
        %v1950 = vpop.f32.mrf.mxu0
        %v1951 = vadd.f32 0.0, %v1950
        %1952 = vmatmul.f32.gmra.mxu0 %v871
        %v1953 = vpop.f32.mrf.mxu0
        %v1954 = vadd.f32 0.0, %v1953
        %1955 = vmatmul.f32.gmra.mxu0 %v874
        %v1956 = vpop.f32.mrf.mxu0
        %v1957 = vadd.f32 0.0, %v1956
        %1958 = vmatmul.f32.gmra.mxu0 %v877
        %v1959 = vpop.f32.mrf.mxu0
        %v1960 = vadd.f32 0.0, %v1959
        %1961 = vmatmul.f32.gmra.mxu0 %v880
        %v1962 = vpop.f32.mrf.mxu0
        %v1963 = vadd.f32 0.0, %v1962
        %1964 = vmatmul.f32.gmra.mxu0 %v883
        %v1965 = vpop.f32.mrf.mxu0
        %v1966 = vadd.f32 0.0, %v1965
        %1967 = vmatmul.f32.gmra.mxu0 %v886
        %v1968 = vpop.f32.mrf.mxu0
        %v1969 = vadd.f32 0.0, %v1968
        %1970 = vmatmul.f32.gmra.mxu0 %v889
        %v1971 = vpop.f32.mrf.mxu0
        %v1972 = vadd.f32 0.0, %v1971
        %1973 = vmatmul.f32.gmra.mxu0 %v892
        %v1974 = vpop.f32.mrf.mxu0
        %v1975 = vadd.f32 0.0, %v1974
        %1976 = vmatmul.f32.gmra.mxu0 %v895
        %v1977 = vpop.f32.mrf.mxu0
        %v1978 = vadd.f32 0.0, %v1977
        %1979 = vdwg.mxu0
        %1980 = vmatpush.msra.mxu0 %v1476
        %1981 = vmatpush.msra.mxu0 %v1473
        %1982 = vmatpush.msra.mxu0 %v1470
        %1983 = vmatpush.msra.mxu0 %v1467
        %1984 = vmatpush.msra.mxu0 %v1464
        %1985 = vmatpush.msra.mxu0 %v1461
        %1986 = vmatpush.msra.mxu0 %v1458
        %1987 = vmatpush.msra.mxu0 %v1455
        %1988 = vmatpush.msra.mxu0 %v1452
        %1989 = vmatpush.msra.mxu0 %v1449
        %1990 = vmatpush.msra.mxu0 %v1446
        %1991 = vmatpush.msra.mxu0 %v1443
        %1992 = vmatpush.msra.mxu0 %v1440
        %1993 = vmatpush.msra.mxu0 %v1437
        %1994 = vmatpush.msra.mxu0 %v1434
        %1995 = vmatpush.msra.mxu0 %v1431
        %1996 = vmatmul.f32.gmra.mxu0 %v851
        %v1997 = vpop.f32.mrf.mxu0
        %v1998 = vadd.f32 %v1933, %v1997
        %1999 = vmatmul.f32.gmra.mxu0 %v854
        %v2000 = vpop.f32.mrf.mxu0
        %v2001 = vadd.f32 %v1936, %v2000
        %2002 = vmatmul.f32.gmra.mxu0 %v857
        %v2003 = vpop.f32.mrf.mxu0
        %v2004 = vadd.f32 %v1939, %v2003
        %2005 = vmatmul.f32.gmra.mxu0 %v860
        %v2006 = vpop.f32.mrf.mxu0
        %v2007 = vadd.f32 %v1942, %v2006
        %2008 = vmatmul.f32.gmra.mxu0 %v863
        %v2009 = vpop.f32.mrf.mxu0
        %v2010 = vadd.f32 %v1945, %v2009
        %2011 = vmatmul.f32.gmra.mxu0 %v866
        %v2012 = vpop.f32.mrf.mxu0
        %v2013 = vadd.f32 %v1948, %v2012
        %2014 = vmatmul.f32.gmra.mxu0 %v869
        %v2015 = vpop.f32.mrf.mxu0
        %v2016 = vadd.f32 %v1951, %v2015
        %2017 = vmatmul.f32.gmra.mxu0 %v872
        %v2018 = vpop.f32.mrf.mxu0
        %v2019 = vadd.f32 %v1954, %v2018
        %2020 = vmatmul.f32.gmra.mxu0 %v875
        %v2021 = vpop.f32.mrf.mxu0
        %v2022 = vadd.f32 %v1957, %v2021
        %2023 = vmatmul.f32.gmra.mxu0 %v878
        %v2024 = vpop.f32.mrf.mxu0
        %v2025 = vadd.f32 %v1960, %v2024
        %2026 = vmatmul.f32.gmra.mxu0 %v881
        %v2027 = vpop.f32.mrf.mxu0
        %v2028 = vadd.f32 %v1963, %v2027
        %2029 = vmatmul.f32.gmra.mxu0 %v884
        %v2030 = vpop.f32.mrf.mxu0
        %v2031 = vadd.f32 %v1966, %v2030
        %2032 = vmatmul.f32.gmra.mxu0 %v887
        %v2033 = vpop.f32.mrf.mxu0
        %v2034 = vadd.f32 %v1969, %v2033
        %2035 = vmatmul.f32.gmra.mxu0 %v890
        %v2036 = vpop.f32.mrf.mxu0
        %v2037 = vadd.f32 %v1972, %v2036
        %2038 = vmatmul.f32.gmra.mxu0 %v893
        %v2039 = vpop.f32.mrf.mxu0
        %v2040 = vadd.f32 %v1975, %v2039
        %2041 = vmatmul.f32.gmra.mxu0 %v896
        %v2042 = vpop.f32.mrf.mxu0
        %v2043 = vadd.f32 %v1978, %v2042
        %2044 = vdwg.mxu0
        %2045 = vmatpush.msra.mxu0 %v1524
        %2046 = vmatpush.msra.mxu0 %v1521
        %2047 = vmatpush.msra.mxu0 %v1518
        %2048 = vmatpush.msra.mxu0 %v1515
        %2049 = vmatpush.msra.mxu0 %v1512
        %2050 = vmatpush.msra.mxu0 %v1509
        %2051 = vmatpush.msra.mxu0 %v1506
        %2052 = vmatpush.msra.mxu0 %v1503
        %2053 = vmatpush.msra.mxu0 %v1500
        %2054 = vmatpush.msra.mxu0 %v1497
        %2055 = vmatpush.msra.mxu0 %v1494
        %2056 = vmatpush.msra.mxu0 %v1491
        %2057 = vmatpush.msra.mxu0 %v1488
        %2058 = vmatpush.msra.mxu0 %v1485
        %2059 = vmatpush.msra.mxu0 %v1482
        %2060 = vmatpush.msra.mxu0 %v1479
        %2061 = vmatmul.f32.gmra.mxu0 %v852
        %v2062 = vpop.f32.mrf.mxu0
        %v2063 = vadd.f32 %v1998, %v2062
        %2064 = vmatmul.f32.gmra.mxu0 %v855
        %v2065 = vpop.f32.mrf.mxu0
        %v2066 = vadd.f32 %v2001, %v2065
        %2067 = vmatmul.f32.gmra.mxu0 %v858
        %v2068 = vpop.f32.mrf.mxu0
        %v2069 = vadd.f32 %v2004, %v2068
        %2070 = vmatmul.f32.gmra.mxu0 %v861
        %v2071 = vpop.f32.mrf.mxu0
        %v2072 = vadd.f32 %v2007, %v2071
        %2073 = vmatmul.f32.gmra.mxu0 %v864
        %v2074 = vpop.f32.mrf.mxu0
        %v2075 = vadd.f32 %v2010, %v2074
        %2076 = vmatmul.f32.gmra.mxu0 %v867
        %v2077 = vpop.f32.mrf.mxu0
        %v2078 = vadd.f32 %v2013, %v2077
        %2079 = vmatmul.f32.gmra.mxu0 %v870
        %v2080 = vpop.f32.mrf.mxu0
        %v2081 = vadd.f32 %v2016, %v2080
        %2082 = vmatmul.f32.gmra.mxu0 %v873
        %v2083 = vpop.f32.mrf.mxu0
        %v2084 = vadd.f32 %v2019, %v2083
        %2085 = vmatmul.f32.gmra.mxu0 %v876
        %v2086 = vpop.f32.mrf.mxu0
        %v2087 = vadd.f32 %v2022, %v2086
        %2088 = vmatmul.f32.gmra.mxu0 %v879
        %v2089 = vpop.f32.mrf.mxu0
        %v2090 = vadd.f32 %v2025, %v2089
        %2091 = vmatmul.f32.gmra.mxu0 %v882
        %v2092 = vpop.f32.mrf.mxu0
        %v2093 = vadd.f32 %v2028, %v2092
        %2094 = vmatmul.f32.gmra.mxu0 %v885
        %v2095 = vpop.f32.mrf.mxu0
        %v2096 = vadd.f32 %v2031, %v2095
        %2097 = vmatmul.f32.gmra.mxu0 %v888
        %v2098 = vpop.f32.mrf.mxu0
        %v2099 = vadd.f32 %v2034, %v2098
        %2100 = vmatmul.f32.gmra.mxu0 %v891
        %v2101 = vpop.f32.mrf.mxu0
        %v2102 = vadd.f32 %v2037, %v2101
        %2103 = vmatmul.f32.gmra.mxu0 %v894
        %v2104 = vpop.f32.mrf.mxu0
        %v2105 = vadd.f32 %v2040, %v2104
        %2106 = vmatmul.f32.gmra.mxu0 %v897
        %v2107 = vpop.f32.mrf.mxu0
        %v2108 = vadd.f32 %v2043, %v2107
        %2109 = vdwg.mxu0
        %2110 = vmatpush.msra.mxu0 %v1281
        %2111 = vmatpush.msra.mxu0 %v1278
        %2112 = vmatpush.msra.mxu0 %v1275
        %2113 = vmatpush.msra.mxu0 %v1272
        %2114 = vmatpush.msra.mxu0 %v1269
        %2115 = vmatpush.msra.mxu0 %v1266
        %2116 = vmatpush.msra.mxu0 %v1263
        %2117 = vmatpush.msra.mxu0 %v1260
        %2118 = vmatpush.msra.mxu0 %v1257
        %2119 = vmatpush.msra.mxu0 %v1254
        %2120 = vmatpush.msra.mxu0 %v1251
        %2121 = vmatpush.msra.mxu0 %v1248
        %2122 = vmatpush.msra.mxu0 %v1245
        %2123 = vmatpush.msra.mxu0 %v1242
        %2124 = vmatpush.msra.mxu0 %v1239
        %2125 = vmatpush.msra.mxu0 %v1236
        %2126 = vmatmul.f32.gmra.mxu0 %v1088
        %v2127 = vpop.f32.mrf.mxu0
        %v2128 = vadd.f32 %v1673, %v2127
        %2129 = vmatmul.f32.gmra.mxu0 %v951
        %v2130 = vpop.f32.mrf.mxu0
        %v2131 = vadd.f32 %v1676, %v2130
        %2132 = vmatmul.f32.gmra.mxu0 %v957
        %v2133 = vpop.f32.mrf.mxu0
        %v2134 = vadd.f32 %v1679, %v2133
        %2135 = vmatmul.f32.gmra.mxu0 %v963
        %v2136 = vpop.f32.mrf.mxu0
        %v2137 = vadd.f32 %v1682, %v2136
        %2138 = vmatmul.f32.gmra.mxu0 %v969
        %v2139 = vpop.f32.mrf.mxu0
        %v2140 = vadd.f32 %v1685, %v2139
        %2141 = vmatmul.f32.gmra.mxu0 %v975
        %v2142 = vpop.f32.mrf.mxu0
        %v2143 = vadd.f32 %v1688, %v2142
        %2144 = vmatmul.f32.gmra.mxu0 %v981
        %v2145 = vpop.f32.mrf.mxu0
        %v2146 = vadd.f32 %v1691, %v2145
        %2147 = vmatmul.f32.gmra.mxu0 %v987
        %v2148 = vpop.f32.mrf.mxu0
        %v2149 = vadd.f32 %v1694, %v2148
        %2150 = vmatmul.f32.gmra.mxu0 %v993
        %v2151 = vpop.f32.mrf.mxu0
        %v2152 = vadd.f32 %v1697, %v2151
        %2153 = vmatmul.f32.gmra.mxu0 %v999
        %v2154 = vpop.f32.mrf.mxu0
        %v2155 = vadd.f32 %v1700, %v2154
        %2156 = vmatmul.f32.gmra.mxu0 %v1005
        %v2157 = vpop.f32.mrf.mxu0
        %v2158 = vadd.f32 %v1703, %v2157
        %2159 = vmatmul.f32.gmra.mxu0 %v1011
        %v2160 = vpop.f32.mrf.mxu0
        %v2161 = vadd.f32 %v1706, %v2160
        %2162 = vmatmul.f32.gmra.mxu0 %v1017
        %v2163 = vpop.f32.mrf.mxu0
        %v2164 = vadd.f32 %v1709, %v2163
        %2165 = vmatmul.f32.gmra.mxu0 %v1023
        %v2166 = vpop.f32.mrf.mxu0
        %v2167 = vadd.f32 %v1712, %v2166
        %2168 = vmatmul.f32.gmra.mxu0 %v1029
        %v2169 = vpop.f32.mrf.mxu0
        %v2170 = vadd.f32 %v1715, %v2169
        %2171 = vmatmul.f32.gmra.mxu0 %v1035
        %v2172 = vpop.f32.mrf.mxu0
        %v2173 = vadd.f32 %v1718, %v2172
        %2174 = vdwg.mxu0
        %2175 = vmatpush.msra.mxu0 %v1329
        %2176 = vmatpush.msra.mxu0 %v1326
        %2177 = vmatpush.msra.mxu0 %v1323
        %2178 = vmatpush.msra.mxu0 %v1320
        %2179 = vmatpush.msra.mxu0 %v1317
        %2180 = vmatpush.msra.mxu0 %v1314
        %2181 = vmatpush.msra.mxu0 %v1311
        %2182 = vmatpush.msra.mxu0 %v1308
        %2183 = vmatpush.msra.mxu0 %v1305
        %2184 = vmatpush.msra.mxu0 %v1302
        %2185 = vmatpush.msra.mxu0 %v1299
        %2186 = vmatpush.msra.mxu0 %v1296
        %2187 = vmatpush.msra.mxu0 %v1293
        %2188 = vmatpush.msra.mxu0 %v1290
        %2189 = vmatpush.msra.mxu0 %v1287
        %2190 = vmatpush.msra.mxu0 %v1284
        %2191 = vmatmul.f32.gmra.mxu0 %v1089
        %v2192 = vpop.f32.mrf.mxu0
        %v2193 = vadd.f32 %v2128, %v2192
        %2194 = vmatmul.f32.gmra.mxu0 %v953
        %v2195 = vpop.f32.mrf.mxu0
        %v2196 = vadd.f32 %v2131, %v2195
        %2197 = vmatmul.f32.gmra.mxu0 %v959
        %v2198 = vpop.f32.mrf.mxu0
        %v2199 = vadd.f32 %v2134, %v2198
        %2200 = vmatmul.f32.gmra.mxu0 %v965
        %v2201 = vpop.f32.mrf.mxu0
        %v2202 = vadd.f32 %v2137, %v2201
        %2203 = vmatmul.f32.gmra.mxu0 %v971
        %v2204 = vpop.f32.mrf.mxu0
        %v2205 = vadd.f32 %v2140, %v2204
        %2206 = vmatmul.f32.gmra.mxu0 %v977
        %v2207 = vpop.f32.mrf.mxu0
        %v2208 = vadd.f32 %v2143, %v2207
        %2209 = vmatmul.f32.gmra.mxu0 %v983
        %v2210 = vpop.f32.mrf.mxu0
        %v2211 = vadd.f32 %v2146, %v2210
        %2212 = vmatmul.f32.gmra.mxu0 %v989
        %v2213 = vpop.f32.mrf.mxu0
        %v2214 = vadd.f32 %v2149, %v2213
        %2215 = vmatmul.f32.gmra.mxu0 %v995
        %v2216 = vpop.f32.mrf.mxu0
        %v2217 = vadd.f32 %v2152, %v2216
        %2218 = vmatmul.f32.gmra.mxu0 %v1001
        %v2219 = vpop.f32.mrf.mxu0
        %v2220 = vadd.f32 %v2155, %v2219
        %2221 = vmatmul.f32.gmra.mxu0 %v1007
        %v2222 = vpop.f32.mrf.mxu0
        %v2223 = vadd.f32 %v2158, %v2222
        %2224 = vmatmul.f32.gmra.mxu0 %v1013
        %v2225 = vpop.f32.mrf.mxu0
        %v2226 = vadd.f32 %v2161, %v2225
        %2227 = vmatmul.f32.gmra.mxu0 %v1019
        %v2228 = vpop.f32.mrf.mxu0
        %v2229 = vadd.f32 %v2164, %v2228
        %2230 = vmatmul.f32.gmra.mxu0 %v1025
        %v2231 = vpop.f32.mrf.mxu0
        %v2232 = vadd.f32 %v2167, %v2231
        %2233 = vmatmul.f32.gmra.mxu0 %v1031
        %v2234 = vpop.f32.mrf.mxu0
        %v2235 = vadd.f32 %v2170, %v2234
        %2236 = vmatmul.f32.gmra.mxu0 %v1037
        %v2237 = vpop.f32.mrf.mxu0
        %v2238 = vadd.f32 %v2173, %v2237
        %2239 = vdwg.mxu0
        %2240 = vmatpush.msra.mxu0 %v1377
        %2241 = vmatpush.msra.mxu0 %v1374
        %2242 = vmatpush.msra.mxu0 %v1371
        %2243 = vmatpush.msra.mxu0 %v1368
        %2244 = vmatpush.msra.mxu0 %v1365
        %2245 = vmatpush.msra.mxu0 %v1362
        %2246 = vmatpush.msra.mxu0 %v1359
        %2247 = vmatpush.msra.mxu0 %v1356
        %2248 = vmatpush.msra.mxu0 %v1353
        %2249 = vmatpush.msra.mxu0 %v1350
        %2250 = vmatpush.msra.mxu0 %v1347
        %2251 = vmatpush.msra.mxu0 %v1344
        %2252 = vmatpush.msra.mxu0 %v1341
        %2253 = vmatpush.msra.mxu0 %v1338
        %2254 = vmatpush.msra.mxu0 %v1335
        %2255 = vmatpush.msra.mxu0 %v1332
        %2256 = vmatmul.f32.gmra.mxu0 %v1090
        %v2257 = vpop.f32.mrf.mxu0
        %v2258 = vadd.f32 %v2193, %v2257
        %2259 = vmatmul.f32.gmra.mxu0 %v955
        %v2260 = vpop.f32.mrf.mxu0
        %v2261 = vadd.f32 %v2196, %v2260
        %2262 = vmatmul.f32.gmra.mxu0 %v961
        %v2263 = vpop.f32.mrf.mxu0
        %v2264 = vadd.f32 %v2199, %v2263
        %2265 = vmatmul.f32.gmra.mxu0 %v967
        %v2266 = vpop.f32.mrf.mxu0
        %v2267 = vadd.f32 %v2202, %v2266
        %2268 = vmatmul.f32.gmra.mxu0 %v973
        %v2269 = vpop.f32.mrf.mxu0
        %v2270 = vadd.f32 %v2205, %v2269
        %2271 = vmatmul.f32.gmra.mxu0 %v979
        %v2272 = vpop.f32.mrf.mxu0
        %v2273 = vadd.f32 %v2208, %v2272
        %2274 = vmatmul.f32.gmra.mxu0 %v985
        %v2275 = vpop.f32.mrf.mxu0
        %v2276 = vadd.f32 %v2211, %v2275
        %2277 = vmatmul.f32.gmra.mxu0 %v991
        %v2278 = vpop.f32.mrf.mxu0
        %v2279 = vadd.f32 %v2214, %v2278
        %2280 = vmatmul.f32.gmra.mxu0 %v997
        %v2281 = vpop.f32.mrf.mxu0
        %v2282 = vadd.f32 %v2217, %v2281
        %2283 = vmatmul.f32.gmra.mxu0 %v1003
        %v2284 = vpop.f32.mrf.mxu0
        %v2285 = vadd.f32 %v2220, %v2284
        %2286 = vmatmul.f32.gmra.mxu0 %v1009
        %v2287 = vpop.f32.mrf.mxu0
        %v2288 = vadd.f32 %v2223, %v2287
        %2289 = vmatmul.f32.gmra.mxu0 %v1015
        %v2290 = vpop.f32.mrf.mxu0
        %v2291 = vadd.f32 %v2226, %v2290
        %2292 = vmatmul.f32.gmra.mxu0 %v1021
        %v2293 = vpop.f32.mrf.mxu0
        %v2294 = vadd.f32 %v2229, %v2293
        %2295 = vmatmul.f32.gmra.mxu0 %v1027
        %v2296 = vpop.f32.mrf.mxu0
        %v2297 = vadd.f32 %v2232, %v2296
        %2298 = vmatmul.f32.gmra.mxu0 %v1033
        %v2299 = vpop.f32.mrf.mxu0
        %v2300 = vadd.f32 %v2235, %v2299
        %2301 = vmatmul.f32.gmra.mxu0 %v1039
        %v2302 = vpop.f32.mrf.mxu0
        %v2303 = vadd.f32 %v2238, %v2302
        %2304 = vdwg.mxu0
        %2305 = vmatpush.msra.mxu0 %v1282
        %2306 = vmatpush.msra.mxu0 %v1279
        %2307 = vmatpush.msra.mxu0 %v1276
        %2308 = vmatpush.msra.mxu0 %v1273
        %2309 = vmatpush.msra.mxu0 %v1270
        %2310 = vmatpush.msra.mxu0 %v1267
        %2311 = vmatpush.msra.mxu0 %v1264
        %2312 = vmatpush.msra.mxu0 %v1261
        %2313 = vmatpush.msra.mxu0 %v1258
        %2314 = vmatpush.msra.mxu0 %v1255
        %2315 = vmatpush.msra.mxu0 %v1252
        %2316 = vmatpush.msra.mxu0 %v1249
        %2317 = vmatpush.msra.mxu0 %v1246
        %2318 = vmatpush.msra.mxu0 %v1243
        %2319 = vmatpush.msra.mxu0 %v1240
        %2320 = vmatpush.msra.mxu0 %v1237
        %2321 = vmatmul.f32.gmra.mxu0 %v1088
        %v2322 = vpop.f32.mrf.mxu0
        %v2323 = vadd.f32 %v1868, %v2322
        %2324 = vmatmul.f32.gmra.mxu0 %v951
        %v2325 = vpop.f32.mrf.mxu0
        %v2326 = vadd.f32 %v1871, %v2325
        %2327 = vmatmul.f32.gmra.mxu0 %v957
        %v2328 = vpop.f32.mrf.mxu0
        %v2329 = vadd.f32 %v1874, %v2328
        %2330 = vmatmul.f32.gmra.mxu0 %v963
        %v2331 = vpop.f32.mrf.mxu0
        %v2332 = vadd.f32 %v1877, %v2331
        %2333 = vmatmul.f32.gmra.mxu0 %v969
        %v2334 = vpop.f32.mrf.mxu0
        %v2335 = vadd.f32 %v1880, %v2334
        %2336 = vmatmul.f32.gmra.mxu0 %v975
        %v2337 = vpop.f32.mrf.mxu0
        %v2338 = vadd.f32 %v1883, %v2337
        %2339 = vmatmul.f32.gmra.mxu0 %v981
        %v2340 = vpop.f32.mrf.mxu0
        %v2341 = vadd.f32 %v1886, %v2340
        %2342 = vmatmul.f32.gmra.mxu0 %v987
        %v2343 = vpop.f32.mrf.mxu0
        %v2344 = vadd.f32 %v1889, %v2343
        %2345 = vmatmul.f32.gmra.mxu0 %v993
        %v2346 = vpop.f32.mrf.mxu0
        %v2347 = vadd.f32 %v1892, %v2346
        %2348 = vmatmul.f32.gmra.mxu0 %v999
        %v2349 = vpop.f32.mrf.mxu0
        %v2350 = vadd.f32 %v1895, %v2349
        %2351 = vmatmul.f32.gmra.mxu0 %v1005
        %v2352 = vpop.f32.mrf.mxu0
        %v2353 = vadd.f32 %v1898, %v2352
        %2354 = vmatmul.f32.gmra.mxu0 %v1011
        %v2355 = vpop.f32.mrf.mxu0
        %v2356 = vadd.f32 %v1901, %v2355
        %2357 = vmatmul.f32.gmra.mxu0 %v1017
        %v2358 = vpop.f32.mrf.mxu0
        %v2359 = vadd.f32 %v1904, %v2358
        %2360 = vmatmul.f32.gmra.mxu0 %v1023
        %v2361 = vpop.f32.mrf.mxu0
        %v2362 = vadd.f32 %v1907, %v2361
        %2363 = vmatmul.f32.gmra.mxu0 %v1029
        %v2364 = vpop.f32.mrf.mxu0
        %v2365 = vadd.f32 %v1910, %v2364
        %2366 = vmatmul.f32.gmra.mxu0 %v1035
        %v2367 = vpop.f32.mrf.mxu0
        %v2368 = vadd.f32 %v1913, %v2367
        %2369 = vdwg.mxu0
        %2370 = vmatpush.msra.mxu0 %v1330
        %2371 = vmatpush.msra.mxu0 %v1327
        %2372 = vmatpush.msra.mxu0 %v1324
        %2373 = vmatpush.msra.mxu0 %v1321
        %2374 = vmatpush.msra.mxu0 %v1318
        %2375 = vmatpush.msra.mxu0 %v1315
        %2376 = vmatpush.msra.mxu0 %v1312
        %2377 = vmatpush.msra.mxu0 %v1309
        %2378 = vmatpush.msra.mxu0 %v1306
        %2379 = vmatpush.msra.mxu0 %v1303
        %2380 = vmatpush.msra.mxu0 %v1300
        %2381 = vmatpush.msra.mxu0 %v1297
        %2382 = vmatpush.msra.mxu0 %v1294
        %2383 = vmatpush.msra.mxu0 %v1291
        %2384 = vmatpush.msra.mxu0 %v1288
        %2385 = vmatpush.msra.mxu0 %v1285
        %2386 = vmatmul.f32.gmra.mxu0 %v1089
        %v2387 = vpop.f32.mrf.mxu0
        %v2388 = vadd.f32 %v2323, %v2387
        %2389 = vmatmul.f32.gmra.mxu0 %v953
        %v2390 = vpop.f32.mrf.mxu0
        %v2391 = vadd.f32 %v2326, %v2390
        %2392 = vmatmul.f32.gmra.mxu0 %v959
        %v2393 = vpop.f32.mrf.mxu0
        %v2394 = vadd.f32 %v2329, %v2393
        %2395 = vmatmul.f32.gmra.mxu0 %v965
        %v2396 = vpop.f32.mrf.mxu0
        %v2397 = vadd.f32 %v2332, %v2396
        %2398 = vmatmul.f32.gmra.mxu0 %v971
        %v2399 = vpop.f32.mrf.mxu0
        %v2400 = vadd.f32 %v2335, %v2399
        %2401 = vmatmul.f32.gmra.mxu0 %v977
        %v2402 = vpop.f32.mrf.mxu0
        %v2403 = vadd.f32 %v2338, %v2402
        %2404 = vmatmul.f32.gmra.mxu0 %v983
        %v2405 = vpop.f32.mrf.mxu0
        %v2406 = vadd.f32 %v2341, %v2405
        %2407 = vmatmul.f32.gmra.mxu0 %v989
        %v2408 = vpop.f32.mrf.mxu0
        %v2409 = vadd.f32 %v2344, %v2408
        %2410 = vmatmul.f32.gmra.mxu0 %v995
        %v2411 = vpop.f32.mrf.mxu0
        %v2412 = vadd.f32 %v2347, %v2411
        %2413 = vmatmul.f32.gmra.mxu0 %v1001
        %v2414 = vpop.f32.mrf.mxu0
        %v2415 = vadd.f32 %v2350, %v2414
        %2416 = vmatmul.f32.gmra.mxu0 %v1007
        %v2417 = vpop.f32.mrf.mxu0
        %v2418 = vadd.f32 %v2353, %v2417
        %2419 = vmatmul.f32.gmra.mxu0 %v1013
        %v2420 = vpop.f32.mrf.mxu0
        %v2421 = vadd.f32 %v2356, %v2420
        %2422 = vmatmul.f32.gmra.mxu0 %v1019
        %v2423 = vpop.f32.mrf.mxu0
        %v2424 = vadd.f32 %v2359, %v2423
        %2425 = vmatmul.f32.gmra.mxu0 %v1025
        %v2426 = vpop.f32.mrf.mxu0
        %v2427 = vadd.f32 %v2362, %v2426
        %2428 = vmatmul.f32.gmra.mxu0 %v1031
        %v2429 = vpop.f32.mrf.mxu0
        %v2430 = vadd.f32 %v2365, %v2429
        %2431 = vmatmul.f32.gmra.mxu0 %v1037
        %v2432 = vpop.f32.mrf.mxu0
        %v2433 = vadd.f32 %v2368, %v2432
        %2434 = vdwg.mxu0
        %2435 = vmatpush.msra.mxu0 %v1378
        %2436 = vmatpush.msra.mxu0 %v1375
        %2437 = vmatpush.msra.mxu0 %v1372
        %2438 = vmatpush.msra.mxu0 %v1369
        %2439 = vmatpush.msra.mxu0 %v1366
        %2440 = vmatpush.msra.mxu0 %v1363
        %2441 = vmatpush.msra.mxu0 %v1360
        %2442 = vmatpush.msra.mxu0 %v1357
        %2443 = vmatpush.msra.mxu0 %v1354
        %2444 = vmatpush.msra.mxu0 %v1351
        %2445 = vmatpush.msra.mxu0 %v1348
        %2446 = vmatpush.msra.mxu0 %v1345
        %2447 = vmatpush.msra.mxu0 %v1342
        %2448 = vmatpush.msra.mxu0 %v1339
        %2449 = vmatpush.msra.mxu0 %v1336
        %2450 = vmatpush.msra.mxu0 %v1333
        %2451 = vmatmul.f32.gmra.mxu0 %v1090
        %v2452 = vpop.f32.mrf.mxu0
        %v2453 = vadd.f32 %v2388, %v2452
        %2454 = vmatmul.f32.gmra.mxu0 %v955
        %v2455 = vpop.f32.mrf.mxu0
        %v2456 = vadd.f32 %v2391, %v2455
        %2457 = vmatmul.f32.gmra.mxu0 %v961
        %v2458 = vpop.f32.mrf.mxu0
        %v2459 = vadd.f32 %v2394, %v2458
        %2460 = vmatmul.f32.gmra.mxu0 %v967
        %v2461 = vpop.f32.mrf.mxu0
        %v2462 = vadd.f32 %v2397, %v2461
        %2463 = vmatmul.f32.gmra.mxu0 %v973
        %v2464 = vpop.f32.mrf.mxu0
        %v2465 = vadd.f32 %v2400, %v2464
        %2466 = vmatmul.f32.gmra.mxu0 %v979
        %v2467 = vpop.f32.mrf.mxu0
        %v2468 = vadd.f32 %v2403, %v2467
        %2469 = vmatmul.f32.gmra.mxu0 %v985
        %v2470 = vpop.f32.mrf.mxu0
        %v2471 = vadd.f32 %v2406, %v2470
        %2472 = vmatmul.f32.gmra.mxu0 %v991
        %v2473 = vpop.f32.mrf.mxu0
        %v2474 = vadd.f32 %v2409, %v2473
        %2475 = vmatmul.f32.gmra.mxu0 %v997
        %v2476 = vpop.f32.mrf.mxu0
        %v2477 = vadd.f32 %v2412, %v2476
        %2478 = vmatmul.f32.gmra.mxu0 %v1003
        %v2479 = vpop.f32.mrf.mxu0
        %v2480 = vadd.f32 %v2415, %v2479
        %2481 = vmatmul.f32.gmra.mxu0 %v1009
        %v2482 = vpop.f32.mrf.mxu0
        %v2483 = vadd.f32 %v2418, %v2482
        %2484 = vmatmul.f32.gmra.mxu0 %v1015
        %v2485 = vpop.f32.mrf.mxu0
        %v2486 = vadd.f32 %v2421, %v2485
        %2487 = vmatmul.f32.gmra.mxu0 %v1021
        %v2488 = vpop.f32.mrf.mxu0
        %v2489 = vadd.f32 %v2424, %v2488
        %2490 = vmatmul.f32.gmra.mxu0 %v1027
        %v2491 = vpop.f32.mrf.mxu0
        %v2492 = vadd.f32 %v2427, %v2491
        %2493 = vmatmul.f32.gmra.mxu0 %v1033
        %v2494 = vpop.f32.mrf.mxu0
        %v2495 = vadd.f32 %v2430, %v2494
        %2496 = vmatmul.f32.gmra.mxu0 %v1039
        %v2497 = vpop.f32.mrf.mxu0
        %v2498 = vadd.f32 %v2433, %v2497
        %2499 = vdwg.mxu0
        %2500 = vmatpush.msra.mxu0 %v1283
        %2501 = vmatpush.msra.mxu0 %v1280
        %2502 = vmatpush.msra.mxu0 %v1277
        %2503 = vmatpush.msra.mxu0 %v1274
        %2504 = vmatpush.msra.mxu0 %v1271
        %2505 = vmatpush.msra.mxu0 %v1268
        %2506 = vmatpush.msra.mxu0 %v1265
        %2507 = vmatpush.msra.mxu0 %v1262
        %2508 = vmatpush.msra.mxu0 %v1259
        %2509 = vmatpush.msra.mxu0 %v1256
        %2510 = vmatpush.msra.mxu0 %v1253
        %2511 = vmatpush.msra.mxu0 %v1250
        %2512 = vmatpush.msra.mxu0 %v1247
        %2513 = vmatpush.msra.mxu0 %v1244
        %2514 = vmatpush.msra.mxu0 %v1241
        %2515 = vmatpush.msra.mxu0 %v1238
        %2516 = vmatmul.f32.gmra.mxu0 %v1088
        %v2517 = vpop.f32.mrf.mxu0
        %v2518 = vadd.f32 %v2063, %v2517
        %2519 = vmatmul.f32.gmra.mxu0 %v951
        %v2520 = vpop.f32.mrf.mxu0
        %v2521 = vadd.f32 %v2066, %v2520
        %2522 = vmatmul.f32.gmra.mxu0 %v957
        %v2523 = vpop.f32.mrf.mxu0
        %v2524 = vadd.f32 %v2069, %v2523
        %2525 = vmatmul.f32.gmra.mxu0 %v963
        %v2526 = vpop.f32.mrf.mxu0
        %v2527 = vadd.f32 %v2072, %v2526
        %2528 = vmatmul.f32.gmra.mxu0 %v969
        %v2529 = vpop.f32.mrf.mxu0
        %v2530 = vadd.f32 %v2075, %v2529
        %2531 = vmatmul.f32.gmra.mxu0 %v975
        %v2532 = vpop.f32.mrf.mxu0
        %v2533 = vadd.f32 %v2078, %v2532
        %2534 = vmatmul.f32.gmra.mxu0 %v981
        %v2535 = vpop.f32.mrf.mxu0
        %v2536 = vadd.f32 %v2081, %v2535
        %2537 = vmatmul.f32.gmra.mxu0 %v987
        %v2538 = vpop.f32.mrf.mxu0
        %v2539 = vadd.f32 %v2084, %v2538
        %2540 = vmatmul.f32.gmra.mxu0 %v993
        %v2541 = vpop.f32.mrf.mxu0
        %v2542 = vadd.f32 %v2087, %v2541
        %2543 = vmatmul.f32.gmra.mxu0 %v999
        %v2544 = vpop.f32.mrf.mxu0
        %v2545 = vadd.f32 %v2090, %v2544
        %2546 = vmatmul.f32.gmra.mxu0 %v1005
        %v2547 = vpop.f32.mrf.mxu0
        %v2548 = vadd.f32 %v2093, %v2547
        %2549 = vmatmul.f32.gmra.mxu0 %v1011
        %v2550 = vpop.f32.mrf.mxu0
        %v2551 = vadd.f32 %v2096, %v2550
        %2552 = vmatmul.f32.gmra.mxu0 %v1017
        %v2553 = vpop.f32.mrf.mxu0
        %v2554 = vadd.f32 %v2099, %v2553
        %2555 = vmatmul.f32.gmra.mxu0 %v1023
        %v2556 = vpop.f32.mrf.mxu0
        %v2557 = vadd.f32 %v2102, %v2556
        %2558 = vmatmul.f32.gmra.mxu0 %v1029
        %v2559 = vpop.f32.mrf.mxu0
        %v2560 = vadd.f32 %v2105, %v2559
        %2561 = vmatmul.f32.gmra.mxu0 %v1035
        %v2562 = vpop.f32.mrf.mxu0
        %v2563 = vadd.f32 %v2108, %v2562
        %2564 = vdwg.mxu0
        %2565 = vmatpush.msra.mxu0 %v1331
        %2566 = vmatpush.msra.mxu0 %v1328
        %2567 = vmatpush.msra.mxu0 %v1325
        %2568 = vmatpush.msra.mxu0 %v1322
        %2569 = vmatpush.msra.mxu0 %v1319
        %2570 = vmatpush.msra.mxu0 %v1316
        %2571 = vmatpush.msra.mxu0 %v1313
        %2572 = vmatpush.msra.mxu0 %v1310
        %2573 = vmatpush.msra.mxu0 %v1307
        %2574 = vmatpush.msra.mxu0 %v1304
        %2575 = vmatpush.msra.mxu0 %v1301
        %2576 = vmatpush.msra.mxu0 %v1298
        %2577 = vmatpush.msra.mxu0 %v1295
        %2578 = vmatpush.msra.mxu0 %v1292
        %2579 = vmatpush.msra.mxu0 %v1289
        %2580 = vmatpush.msra.mxu0 %v1286
        %2581 = vmatmul.f32.gmra.mxu0 %v1089
        %v2582 = vpop.f32.mrf.mxu0
        %v2583 = vadd.f32 %v2518, %v2582
        %2584 = vmatmul.f32.gmra.mxu0 %v953
        %v2585 = vpop.f32.mrf.mxu0
        %v2586 = vadd.f32 %v2521, %v2585
        %2587 = vmatmul.f32.gmra.mxu0 %v959
        %v2588 = vpop.f32.mrf.mxu0
        %v2589 = vadd.f32 %v2524, %v2588
        %2590 = vmatmul.f32.gmra.mxu0 %v965
        %v2591 = vpop.f32.mrf.mxu0
        %v2592 = vadd.f32 %v2527, %v2591
        %2593 = vmatmul.f32.gmra.mxu0 %v971
        %v2594 = vpop.f32.mrf.mxu0
        %v2595 = vadd.f32 %v2530, %v2594
        %2596 = vmatmul.f32.gmra.mxu0 %v977
        %v2597 = vpop.f32.mrf.mxu0
        %v2598 = vadd.f32 %v2533, %v2597
        %2599 = vmatmul.f32.gmra.mxu0 %v983
        %v2600 = vpop.f32.mrf.mxu0
        %v2601 = vadd.f32 %v2536, %v2600
        %2602 = vmatmul.f32.gmra.mxu0 %v989
        %v2603 = vpop.f32.mrf.mxu0
        %v2604 = vadd.f32 %v2539, %v2603
        %2605 = vmatmul.f32.gmra.mxu0 %v995
        %v2606 = vpop.f32.mrf.mxu0
        %v2607 = vadd.f32 %v2542, %v2606
        %2608 = vmatmul.f32.gmra.mxu0 %v1001
        %v2609 = vpop.f32.mrf.mxu0
        %v2610 = vadd.f32 %v2545, %v2609
        %2611 = vmatmul.f32.gmra.mxu0 %v1007
        %v2612 = vpop.f32.mrf.mxu0
        %v2613 = vadd.f32 %v2548, %v2612
        %2614 = vmatmul.f32.gmra.mxu0 %v1013
        %v2615 = vpop.f32.mrf.mxu0
        %v2616 = vadd.f32 %v2551, %v2615
        %2617 = vmatmul.f32.gmra.mxu0 %v1019
        %v2618 = vpop.f32.mrf.mxu0
        %v2619 = vadd.f32 %v2554, %v2618
        %2620 = vmatmul.f32.gmra.mxu0 %v1025
        %v2621 = vpop.f32.mrf.mxu0
        %v2622 = vadd.f32 %v2557, %v2621
        %2623 = vmatmul.f32.gmra.mxu0 %v1031
        %v2624 = vpop.f32.mrf.mxu0
        %v2625 = vadd.f32 %v2560, %v2624
        %2626 = vmatmul.f32.gmra.mxu0 %v1037
        %v2627 = vpop.f32.mrf.mxu0
        %v2628 = vadd.f32 %v2563, %v2627
        %2629 = vdwg.mxu0
        %2630 = vmatpush.msra.mxu0 %v1379
        %2631 = vmatpush.msra.mxu0 %v1376
        %2632 = vmatpush.msra.mxu0 %v1373
        %2633 = vmatpush.msra.mxu0 %v1370
        %2634 = vmatpush.msra.mxu0 %v1367
        %2635 = vmatpush.msra.mxu0 %v1364
        %2636 = vmatpush.msra.mxu0 %v1361
        %2637 = vmatpush.msra.mxu0 %v1358
        %2638 = vmatpush.msra.mxu0 %v1355
        %2639 = vmatpush.msra.mxu0 %v1352
        %2640 = vmatpush.msra.mxu0 %v1349
        %2641 = vmatpush.msra.mxu0 %v1346
        %2642 = vmatpush.msra.mxu0 %v1343
        %2643 = vmatpush.msra.mxu0 %v1340
        %2644 = vmatpush.msra.mxu0 %v1337
        %2645 = vmatpush.msra.mxu0 %v1334
        %2646 = vmatmul.f32.gmra.mxu0 %v1090
        %v2647 = vpop.f32.mrf.mxu0
        %v2648 = vadd.f32 %v2583, %v2647
        %2649 = vmatmul.f32.gmra.mxu0 %v955
        %v2650 = vpop.f32.mrf.mxu0
        %v2651 = vadd.f32 %v2586, %v2650
        %2652 = vmatmul.f32.gmra.mxu0 %v961
        %v2653 = vpop.f32.mrf.mxu0
        %v2654 = vadd.f32 %v2589, %v2653
        %2655 = vmatmul.f32.gmra.mxu0 %v967
        %v2656 = vpop.f32.mrf.mxu0
        %v2657 = vadd.f32 %v2592, %v2656
        %2658 = vmatmul.f32.gmra.mxu0 %v973
        %v2659 = vpop.f32.mrf.mxu0
        %v2660 = vadd.f32 %v2595, %v2659
        %2661 = vmatmul.f32.gmra.mxu0 %v979
        %v2662 = vpop.f32.mrf.mxu0
        %v2663 = vadd.f32 %v2598, %v2662
        %2664 = vmatmul.f32.gmra.mxu0 %v985
        %v2665 = vpop.f32.mrf.mxu0
        %v2666 = vadd.f32 %v2601, %v2665
        %2667 = vmatmul.f32.gmra.mxu0 %v991
        %v2668 = vpop.f32.mrf.mxu0
        %v2669 = vadd.f32 %v2604, %v2668
        %2670 = vmatmul.f32.gmra.mxu0 %v997
        %v2671 = vpop.f32.mrf.mxu0
        %v2672 = vadd.f32 %v2607, %v2671
        %2673 = vmatmul.f32.gmra.mxu0 %v1003
        %v2674 = vpop.f32.mrf.mxu0
        %v2675 = vadd.f32 %v2610, %v2674
        %2676 = vmatmul.f32.gmra.mxu0 %v1009
        %v2677 = vpop.f32.mrf.mxu0
        %v2678 = vadd.f32 %v2613, %v2677
        %2679 = vmatmul.f32.gmra.mxu0 %v1015
        %v2680 = vpop.f32.mrf.mxu0
        %v2681 = vadd.f32 %v2616, %v2680
        %2682 = vmatmul.f32.gmra.mxu0 %v1021
        %v2683 = vpop.f32.mrf.mxu0
        %v2684 = vadd.f32 %v2619, %v2683
        %2685 = vmatmul.f32.gmra.mxu0 %v1027
        %v2686 = vpop.f32.mrf.mxu0
        %v2687 = vadd.f32 %v2622, %v2686
        %2688 = vmatmul.f32.gmra.mxu0 %v1033
        %v2689 = vpop.f32.mrf.mxu0
        %v2690 = vadd.f32 %v2625, %v2689
        %2691 = vmatmul.f32.gmra.mxu0 %v1039
        %v2692 = vpop.f32.mrf.mxu0
        %v2693 = vadd.f32 %v2628, %v2692
        %2694 = vdwg.mxu0
        %s2695 = scalar_lea.vmem %s1, 2304
        %v2696 = vld [vmem:[%s2695] sm:$0xff]
        %v2697 = vld [vmem:[%s2695 + $0x8] sm:$0xff]
        %v2698 = vld [vmem:[%s2695 + $0x10] sm:$0xff]
        %v2699 = vld [vmem:[%s2695 + $0x18] sm:$0xff]
        %v2700 = vld [vmem:[%s2695 + $0x20] sm:$0xff]
        %v2701 = vld [vmem:[%s2695 + $0x28] sm:$0xff]
        %v2702 = vld [vmem:[%s2695 + $0x30] sm:$0xff]
        %v2703 = vld [vmem:[%s2695 + $0x38] sm:$0xff]
        %v2704 = vld [vmem:[%s2695 + $0x40] sm:$0xff]
        %v2705 = vld [vmem:[%s2695 + $0x48] sm:$0xff]
        %v2706 = vld [vmem:[%s2695 + $0x50] sm:$0xff]
        %v2707 = vld [vmem:[%s2695 + $0x58] sm:$0xff]
        %v2708 = vld [vmem:[%s2695 + $0x60] sm:$0xff]
        %v2709 = vld [vmem:[%s2695 + $0x68] sm:$0xff]
        %v2710 = vld [vmem:[%s2695 + $0x70] sm:$0xff]
        %v2711 = vld [vmem:[%s2695 + $0x78] sm:$0xff]
        %v2712 = vld [vmem:[%s2695 + $0x80] sm:$0xff]
        %v2713 = vld [vmem:[%s2695 + $0x88] sm:$0xff]
        %v2714 = vld [vmem:[%s2695 + $0x90] sm:$0xff]
        %v2715 = vld [vmem:[%s2695 + $0x98] sm:$0xff]
        %v2716 = vld [vmem:[%s2695 + $0xa0] sm:$0xff]
        %v2717 = vld [vmem:[%s2695 + $0xa8] sm:$0xff]
        %v2718 = vld [vmem:[%s2695 + $0xb0] sm:$0xff]
        %v2719 = vld [vmem:[%s2695 + $0xb8] sm:$0xff]
        %v2720 = vld [vmem:[%s2695 + $0xc0] sm:$0xff]
        %v2721 = vld [vmem:[%s2695 + $0xc8] sm:$0xff]
        %v2722 = vld [vmem:[%s2695 + $0xd0] sm:$0xff]
        %v2723 = vld [vmem:[%s2695 + $0xd8] sm:$0xff]
        %v2724 = vld [vmem:[%s2695 + $0xe0] sm:$0xff]
        %v2725 = vld [vmem:[%s2695 + $0xe8] sm:$0xff]
        %v2726 = vld [vmem:[%s2695 + $0xf0] sm:$0xff]
        %v2727 = vld [vmem:[%s2695 + $0xf8] sm:$0xff]
        %v2728 = vld [vmem:[%s2695 + $0x100] sm:$0xff]
        %v2729 = vld [vmem:[%s2695 + $0x108] sm:$0xff]
        %v2730 = vld [vmem:[%s2695 + $0x110] sm:$0xff]
        %v2731 = vld [vmem:[%s2695 + $0x118] sm:$0xff]
        %v2732 = vld [vmem:[%s2695 + $0x120] sm:$0xff]
        %v2733 = vld [vmem:[%s2695 + $0x128] sm:$0xff]
        %v2734 = vld [vmem:[%s2695 + $0x130] sm:$0xff]
        %v2735 = vld [vmem:[%s2695 + $0x138] sm:$0xff]
        %v2736 = vld [vmem:[%s2695 + $0x140] sm:$0xff]
        %v2737 = vld [vmem:[%s2695 + $0x148] sm:$0xff]
        %v2738 = vld [vmem:[%s2695 + $0x150] sm:$0xff]
        %v2739 = vld [vmem:[%s2695 + $0x158] sm:$0xff]
        %v2740 = vld [vmem:[%s2695 + $0x160] sm:$0xff]
        %v2741 = vld [vmem:[%s2695 + $0x168] sm:$0xff]
        %v2742 = vld [vmem:[%s2695 + $0x170] sm:$0xff]
        %v2743 = vld [vmem:[%s2695 + $0x178] sm:$0xff]
        %v2744 = vld [vmem:[%s2695 + $0x180] sm:$0xff]
        %v2745 = vld [vmem:[%s2695 + $0x188] sm:$0xff]
        %v2746 = vld [vmem:[%s2695 + $0x190] sm:$0xff]
        %v2747 = vld [vmem:[%s2695 + $0x198] sm:$0xff]
        %v2748 = vld [vmem:[%s2695 + $0x1a0] sm:$0xff]
        %v2749 = vld [vmem:[%s2695 + $0x1a8] sm:$0xff]
        %v2750 = vld [vmem:[%s2695 + $0x1b0] sm:$0xff]
        %v2751 = vld [vmem:[%s2695 + $0x1b8] sm:$0xff]
        %v2752 = vld [vmem:[%s2695 + $0x1c0] sm:$0xff]
        %v2753 = vld [vmem:[%s2695 + $0x1c8] sm:$0xff]
        %v2754 = vld [vmem:[%s2695 + $0x1d0] sm:$0xff]
        %v2755 = vld [vmem:[%s2695 + $0x1d8] sm:$0xff]
        %v2756 = vld [vmem:[%s2695 + $0x1e0] sm:$0xff]
        %v2757 = vld [vmem:[%s2695 + $0x1e8] sm:$0xff]
        %v2758 = vld [vmem:[%s2695 + $0x1f0] sm:$0xff]
        %v2759 = vld [vmem:[%s2695 + $0x1f8] sm:$0xff]
        %v2760 = vld [vmem:[%s2695 + $0x200] sm:$0xff]
        %v2761 = vld [vmem:[%s2695 + $0x208] sm:$0xff]
        %v2762 = vld [vmem:[%s2695 + $0x210] sm:$0xff]
        %v2763 = vld [vmem:[%s2695 + $0x218] sm:$0xff]
        %v2764 = vld [vmem:[%s2695 + $0x220] sm:$0xff]
        %v2765 = vld [vmem:[%s2695 + $0x228] sm:$0xff]
        %v2766 = vld [vmem:[%s2695 + $0x230] sm:$0xff]
        %v2767 = vld [vmem:[%s2695 + $0x238] sm:$0xff]
        %v2768 = vld [vmem:[%s2695 + $0x240] sm:$0xff]
        %v2769 = vld [vmem:[%s2695 + $0x248] sm:$0xff]
        %v2770 = vld [vmem:[%s2695 + $0x250] sm:$0xff]
        %v2771 = vld [vmem:[%s2695 + $0x258] sm:$0xff]
        %v2772 = vld [vmem:[%s2695 + $0x260] sm:$0xff]
        %v2773 = vld [vmem:[%s2695 + $0x268] sm:$0xff]
        %v2774 = vld [vmem:[%s2695 + $0x270] sm:$0xff]
        %v2775 = vld [vmem:[%s2695 + $0x278] sm:$0xff]
        %v2776 = vld [vmem:[%s2695 + $0x280] sm:$0xff]
        %v2777 = vld [vmem:[%s2695 + $0x288] sm:$0xff]
        %v2778 = vld [vmem:[%s2695 + $0x290] sm:$0xff]
        %v2779 = vld [vmem:[%s2695 + $0x298] sm:$0xff]
        %v2780 = vld [vmem:[%s2695 + $0x2a0] sm:$0xff]
        %v2781 = vld [vmem:[%s2695 + $0x2a8] sm:$0xff]
        %v2782 = vld [vmem:[%s2695 + $0x2b0] sm:$0xff]
        %v2783 = vld [vmem:[%s2695 + $0x2b8] sm:$0xff]
        %v2784 = vld [vmem:[%s2695 + $0x2c0] sm:$0xff]
        %v2785 = vld [vmem:[%s2695 + $0x2c8] sm:$0xff]
        %v2786 = vld [vmem:[%s2695 + $0x2d0] sm:$0xff]
        %v2787 = vld [vmem:[%s2695 + $0x2d8] sm:$0xff]
        %v2788 = vld [vmem:[%s2695 + $0x2e0] sm:$0xff]
        %v2789 = vld [vmem:[%s2695 + $0x2e8] sm:$0xff]
        %v2790 = vld [vmem:[%s2695 + $0x2f0] sm:$0xff]
        %v2791 = vld [vmem:[%s2695 + $0x2f8] sm:$0xff]
        %v2792 = vld [vmem:[%s2695 + $0x300] sm:$0xff]
        %v2793 = vld [vmem:[%s2695 + $0x308] sm:$0xff]
        %v2794 = vld [vmem:[%s2695 + $0x310] sm:$0xff]
        %v2795 = vld [vmem:[%s2695 + $0x318] sm:$0xff]
        %v2796 = vld [vmem:[%s2695 + $0x320] sm:$0xff]
        %v2797 = vld [vmem:[%s2695 + $0x328] sm:$0xff]
        %v2798 = vld [vmem:[%s2695 + $0x330] sm:$0xff]
        %v2799 = vld [vmem:[%s2695 + $0x338] sm:$0xff]
        %v2800 = vld [vmem:[%s2695 + $0x340] sm:$0xff]
        %v2801 = vld [vmem:[%s2695 + $0x348] sm:$0xff]
        %v2802 = vld [vmem:[%s2695 + $0x350] sm:$0xff]
        %v2803 = vld [vmem:[%s2695 + $0x358] sm:$0xff]
        %v2804 = vld [vmem:[%s2695 + $0x360] sm:$0xff]
        %v2805 = vld [vmem:[%s2695 + $0x368] sm:$0xff]
        %v2806 = vld [vmem:[%s2695 + $0x370] sm:$0xff]
        %v2807 = vld [vmem:[%s2695 + $0x378] sm:$0xff]
        %v2808 = vld [vmem:[%s2695 + $0x380] sm:$0xff]
        %v2809 = vld [vmem:[%s2695 + $0x388] sm:$0xff]
        %v2810 = vld [vmem:[%s2695 + $0x390] sm:$0xff]
        %v2811 = vld [vmem:[%s2695 + $0x398] sm:$0xff]
        %v2812 = vld [vmem:[%s2695 + $0x3a0] sm:$0xff]
        %v2813 = vld [vmem:[%s2695 + $0x3a8] sm:$0xff]
        %v2814 = vld [vmem:[%s2695 + $0x3b0] sm:$0xff]
        %v2815 = vld [vmem:[%s2695 + $0x3b8] sm:$0xff]
        %v2816 = vld [vmem:[%s2695 + $0x3c0] sm:$0xff]
        %v2817 = vld [vmem:[%s2695 + $0x3c8] sm:$0xff]
        %v2818 = vld [vmem:[%s2695 + $0x3d0] sm:$0xff]
        %v2819 = vld [vmem:[%s2695 + $0x3d8] sm:$0xff]
        %v2820 = vld [vmem:[%s2695 + $0x3e0] sm:$0xff]
        %v2821 = vld [vmem:[%s2695 + $0x3e8] sm:$0xff]
        %v2822 = vld [vmem:[%s2695 + $0x3f0] sm:$0xff]
        %v2823 = vld [vmem:[%s2695 + $0x3f8] sm:$0xff]
        %v2824 = vld [vmem:[%s2695 + $0x400] sm:$0xff]
        %v2825 = vld [vmem:[%s2695 + $0x408] sm:$0xff]
        %v2826 = vld [vmem:[%s2695 + $0x410] sm:$0xff]
        %v2827 = vld [vmem:[%s2695 + $0x418] sm:$0xff]
        %v2828 = vld [vmem:[%s2695 + $0x420] sm:$0xff]
        %v2829 = vld [vmem:[%s2695 + $0x428] sm:$0xff]
        %v2830 = vld [vmem:[%s2695 + $0x430] sm:$0xff]
        %v2831 = vld [vmem:[%s2695 + $0x438] sm:$0xff]
        %v2832 = vld [vmem:[%s2695 + $0x440] sm:$0xff]
        %v2833 = vld [vmem:[%s2695 + $0x448] sm:$0xff]
        %v2834 = vld [vmem:[%s2695 + $0x450] sm:$0xff]
        %v2835 = vld [vmem:[%s2695 + $0x458] sm:$0xff]
        %v2836 = vld [vmem:[%s2695 + $0x460] sm:$0xff]
        %v2837 = vld [vmem:[%s2695 + $0x468] sm:$0xff]
        %v2838 = vld [vmem:[%s2695 + $0x470] sm:$0xff]
        %v2839 = vld [vmem:[%s2695 + $0x478] sm:$0xff]
        %2840 = vmatpush.msra.mxu0 %v2741
        %2841 = vmatpush.msra.mxu0 %v2738
        %2842 = vmatpush.msra.mxu0 %v2735
        %2843 = vmatpush.msra.mxu0 %v2732
        %2844 = vmatpush.msra.mxu0 %v2729
        %2845 = vmatpush.msra.mxu0 %v2726
        %2846 = vmatpush.msra.mxu0 %v2723
        %2847 = vmatpush.msra.mxu0 %v2720
        %2848 = vmatpush.msra.mxu0 %v2717
        %2849 = vmatpush.msra.mxu0 %v2714
        %2850 = vmatpush.msra.mxu0 %v2711
        %2851 = vmatpush.msra.mxu0 %v2708
        %2852 = vmatpush.msra.mxu0 %v2705
        %2853 = vmatpush.msra.mxu0 %v2702
        %2854 = vmatpush.msra.mxu0 %v2699
        %2855 = vmatpush.msra.mxu0 %v2696
        %2856 = vmatmul.f32.gmra.mxu0 %v1094
        %v2857 = vpop.f32.mrf.mxu0
        %v2858 = vadd.f32 0.0, %v2857
        %2859 = vmatmul.f32.gmra.mxu0 %v1102
        %v2860 = vpop.f32.mrf.mxu0
        %v2861 = vadd.f32 0.0, %v2860
        %2862 = vmatmul.f32.gmra.mxu0 %v1108
        %v2863 = vpop.f32.mrf.mxu0
        %v2864 = vadd.f32 0.0, %v2863
        %2865 = vmatmul.f32.gmra.mxu0 %v1114
        %v2866 = vpop.f32.mrf.mxu0
        %v2867 = vadd.f32 0.0, %v2866
        %2868 = vmatmul.f32.gmra.mxu0 %v1120
        %v2869 = vpop.f32.mrf.mxu0
        %v2870 = vadd.f32 0.0, %v2869
        %2871 = vmatmul.f32.gmra.mxu0 %v1126
        %v2872 = vpop.f32.mrf.mxu0
        %v2873 = vadd.f32 0.0, %v2872
        %2874 = vmatmul.f32.gmra.mxu0 %v1132
        %v2875 = vpop.f32.mrf.mxu0
        %v2876 = vadd.f32 0.0, %v2875
        %2877 = vmatmul.f32.gmra.mxu0 %v1138
        %v2878 = vpop.f32.mrf.mxu0
        %v2879 = vadd.f32 0.0, %v2878
        %2880 = vmatmul.f32.gmra.mxu0 %v1144
        %v2881 = vpop.f32.mrf.mxu0
        %v2882 = vadd.f32 0.0, %v2881
        %2883 = vmatmul.f32.gmra.mxu0 %v1150
        %v2884 = vpop.f32.mrf.mxu0
        %v2885 = vadd.f32 0.0, %v2884
        %2886 = vmatmul.f32.gmra.mxu0 %v1156
        %v2887 = vpop.f32.mrf.mxu0
        %v2888 = vadd.f32 0.0, %v2887
        %2889 = vmatmul.f32.gmra.mxu0 %v1162
        %v2890 = vpop.f32.mrf.mxu0
        %v2891 = vadd.f32 0.0, %v2890
        %2892 = vmatmul.f32.gmra.mxu0 %v1168
        %v2893 = vpop.f32.mrf.mxu0
        %v2894 = vadd.f32 0.0, %v2893
        %2895 = vmatmul.f32.gmra.mxu0 %v1174
        %v2896 = vpop.f32.mrf.mxu0
        %v2897 = vadd.f32 0.0, %v2896
        %2898 = vmatmul.f32.gmra.mxu0 %v1180
        %v2899 = vpop.f32.mrf.mxu0
        %v2900 = vadd.f32 0.0, %v2899
        %2901 = vmatmul.f32.gmra.mxu0 %v1233
        %v2902 = vpop.f32.mrf.mxu0
        %v2903 = vadd.f32 0.0, %v2902
        %2904 = vdwg.mxu0
        %2905 = vmatpush.msra.mxu0 %v2789
        %2906 = vmatpush.msra.mxu0 %v2786
        %2907 = vmatpush.msra.mxu0 %v2783
        %2908 = vmatpush.msra.mxu0 %v2780
        %2909 = vmatpush.msra.mxu0 %v2777
        %2910 = vmatpush.msra.mxu0 %v2774
        %2911 = vmatpush.msra.mxu0 %v2771
        %2912 = vmatpush.msra.mxu0 %v2768
        %2913 = vmatpush.msra.mxu0 %v2765
        %2914 = vmatpush.msra.mxu0 %v2762
        %2915 = vmatpush.msra.mxu0 %v2759
        %2916 = vmatpush.msra.mxu0 %v2756
        %2917 = vmatpush.msra.mxu0 %v2753
        %2918 = vmatpush.msra.mxu0 %v2750
        %2919 = vmatpush.msra.mxu0 %v2747
        %2920 = vmatpush.msra.mxu0 %v2744
        %2921 = vmatmul.f32.gmra.mxu0 %v1097
        %v2922 = vpop.f32.mrf.mxu0
        %v2923 = vadd.f32 %v2858, %v2922
        %2924 = vmatmul.f32.gmra.mxu0 %v1104
        %v2925 = vpop.f32.mrf.mxu0
        %v2926 = vadd.f32 %v2861, %v2925
        %2927 = vmatmul.f32.gmra.mxu0 %v1110
        %v2928 = vpop.f32.mrf.mxu0
        %v2929 = vadd.f32 %v2864, %v2928
        %2930 = vmatmul.f32.gmra.mxu0 %v1116
        %v2931 = vpop.f32.mrf.mxu0
        %v2932 = vadd.f32 %v2867, %v2931
        %2933 = vmatmul.f32.gmra.mxu0 %v1122
        %v2934 = vpop.f32.mrf.mxu0
        %v2935 = vadd.f32 %v2870, %v2934
        %2936 = vmatmul.f32.gmra.mxu0 %v1128
        %v2937 = vpop.f32.mrf.mxu0
        %v2938 = vadd.f32 %v2873, %v2937
        %2939 = vmatmul.f32.gmra.mxu0 %v1134
        %v2940 = vpop.f32.mrf.mxu0
        %v2941 = vadd.f32 %v2876, %v2940
        %2942 = vmatmul.f32.gmra.mxu0 %v1140
        %v2943 = vpop.f32.mrf.mxu0
        %v2944 = vadd.f32 %v2879, %v2943
        %2945 = vmatmul.f32.gmra.mxu0 %v1146
        %v2946 = vpop.f32.mrf.mxu0
        %v2947 = vadd.f32 %v2882, %v2946
        %2948 = vmatmul.f32.gmra.mxu0 %v1152
        %v2949 = vpop.f32.mrf.mxu0
        %v2950 = vadd.f32 %v2885, %v2949
        %2951 = vmatmul.f32.gmra.mxu0 %v1158
        %v2952 = vpop.f32.mrf.mxu0
        %v2953 = vadd.f32 %v2888, %v2952
        %2954 = vmatmul.f32.gmra.mxu0 %v1164
        %v2955 = vpop.f32.mrf.mxu0
        %v2956 = vadd.f32 %v2891, %v2955
        %2957 = vmatmul.f32.gmra.mxu0 %v1170
        %v2958 = vpop.f32.mrf.mxu0
        %v2959 = vadd.f32 %v2894, %v2958
        %2960 = vmatmul.f32.gmra.mxu0 %v1176
        %v2961 = vpop.f32.mrf.mxu0
        %v2962 = vadd.f32 %v2897, %v2961
        %2963 = vmatmul.f32.gmra.mxu0 %v1182
        %v2964 = vpop.f32.mrf.mxu0
        %v2965 = vadd.f32 %v2900, %v2964
        %2966 = vmatmul.f32.gmra.mxu0 %v1234
        %v2967 = vpop.f32.mrf.mxu0
        %v2968 = vadd.f32 %v2903, %v2967
        %2969 = vdwg.mxu0
        %2970 = vmatpush.msra.mxu0 %v2837
        %2971 = vmatpush.msra.mxu0 %v2834
        %2972 = vmatpush.msra.mxu0 %v2831
        %2973 = vmatpush.msra.mxu0 %v2828
        %2974 = vmatpush.msra.mxu0 %v2825
        %2975 = vmatpush.msra.mxu0 %v2822
        %2976 = vmatpush.msra.mxu0 %v2819
        %2977 = vmatpush.msra.mxu0 %v2816
        %2978 = vmatpush.msra.mxu0 %v2813
        %2979 = vmatpush.msra.mxu0 %v2810
        %2980 = vmatpush.msra.mxu0 %v2807
        %2981 = vmatpush.msra.mxu0 %v2804
        %2982 = vmatpush.msra.mxu0 %v2801
        %2983 = vmatpush.msra.mxu0 %v2798
        %2984 = vmatpush.msra.mxu0 %v2795
        %2985 = vmatpush.msra.mxu0 %v2792
        %2986 = vmatmul.f32.gmra.mxu0 %v1100
        %v2987 = vpop.f32.mrf.mxu0
        %v2988 = vadd.f32 %v2923, %v2987
        %2989 = vmatmul.f32.gmra.mxu0 %v1106
        %v2990 = vpop.f32.mrf.mxu0
        %v2991 = vadd.f32 %v2926, %v2990
        %2992 = vmatmul.f32.gmra.mxu0 %v1112
        %v2993 = vpop.f32.mrf.mxu0
        %v2994 = vadd.f32 %v2929, %v2993
        %2995 = vmatmul.f32.gmra.mxu0 %v1118
        %v2996 = vpop.f32.mrf.mxu0
        %v2997 = vadd.f32 %v2932, %v2996
        %2998 = vmatmul.f32.gmra.mxu0 %v1124
        %v2999 = vpop.f32.mrf.mxu0
        %v3000 = vadd.f32 %v2935, %v2999
        %3001 = vmatmul.f32.gmra.mxu0 %v1130
        %v3002 = vpop.f32.mrf.mxu0
        %v3003 = vadd.f32 %v2938, %v3002
        %3004 = vmatmul.f32.gmra.mxu0 %v1136
        %v3005 = vpop.f32.mrf.mxu0
        %v3006 = vadd.f32 %v2941, %v3005
        %3007 = vmatmul.f32.gmra.mxu0 %v1142
        %v3008 = vpop.f32.mrf.mxu0
        %v3009 = vadd.f32 %v2944, %v3008
        %3010 = vmatmul.f32.gmra.mxu0 %v1148
        %v3011 = vpop.f32.mrf.mxu0
        %v3012 = vadd.f32 %v2947, %v3011
        %3013 = vmatmul.f32.gmra.mxu0 %v1154
        %v3014 = vpop.f32.mrf.mxu0
        %v3015 = vadd.f32 %v2950, %v3014
        %3016 = vmatmul.f32.gmra.mxu0 %v1160
        %v3017 = vpop.f32.mrf.mxu0
        %v3018 = vadd.f32 %v2953, %v3017
        %3019 = vmatmul.f32.gmra.mxu0 %v1166
        %v3020 = vpop.f32.mrf.mxu0
        %v3021 = vadd.f32 %v2956, %v3020
        %3022 = vmatmul.f32.gmra.mxu0 %v1172
        %v3023 = vpop.f32.mrf.mxu0
        %v3024 = vadd.f32 %v2959, %v3023
        %3025 = vmatmul.f32.gmra.mxu0 %v1178
        %v3026 = vpop.f32.mrf.mxu0
        %v3027 = vadd.f32 %v2962, %v3026
        %3028 = vmatmul.f32.gmra.mxu0 %v1184
        %v3029 = vpop.f32.mrf.mxu0
        %v3030 = vadd.f32 %v2965, %v3029
        %3031 = vmatmul.f32.gmra.mxu0 %v1235
        %v3032 = vpop.f32.mrf.mxu0
        %v3033 = vadd.f32 %v2968, %v3032
        %3034 = vdwg.mxu0
        %3035 = vmatpush.msra.mxu0 %v2742
        %3036 = vmatpush.msra.mxu0 %v2739
        %3037 = vmatpush.msra.mxu0 %v2736
        %3038 = vmatpush.msra.mxu0 %v2733
        %3039 = vmatpush.msra.mxu0 %v2730
        %3040 = vmatpush.msra.mxu0 %v2727
        %3041 = vmatpush.msra.mxu0 %v2724
        %3042 = vmatpush.msra.mxu0 %v2721
        %3043 = vmatpush.msra.mxu0 %v2718
        %3044 = vmatpush.msra.mxu0 %v2715
        %3045 = vmatpush.msra.mxu0 %v2712
        %3046 = vmatpush.msra.mxu0 %v2709
        %3047 = vmatpush.msra.mxu0 %v2706
        %3048 = vmatpush.msra.mxu0 %v2703
        %3049 = vmatpush.msra.mxu0 %v2700
        %3050 = vmatpush.msra.mxu0 %v2697
        %3051 = vmatmul.f32.gmra.mxu0 %v1094
        %v3052 = vpop.f32.mrf.mxu0
        %v3053 = vadd.f32 0.0, %v3052
        %3054 = vmatmul.f32.gmra.mxu0 %v1102
        %v3055 = vpop.f32.mrf.mxu0
        %v3056 = vadd.f32 0.0, %v3055
        %3057 = vmatmul.f32.gmra.mxu0 %v1108
        %v3058 = vpop.f32.mrf.mxu0
        %v3059 = vadd.f32 0.0, %v3058
        %3060 = vmatmul.f32.gmra.mxu0 %v1114
        %v3061 = vpop.f32.mrf.mxu0
        %v3062 = vadd.f32 0.0, %v3061
        %3063 = vmatmul.f32.gmra.mxu0 %v1120
        %v3064 = vpop.f32.mrf.mxu0
        %v3065 = vadd.f32 0.0, %v3064
        %3066 = vmatmul.f32.gmra.mxu0 %v1126
        %v3067 = vpop.f32.mrf.mxu0
        %v3068 = vadd.f32 0.0, %v3067
        %3069 = vmatmul.f32.gmra.mxu0 %v1132
        %v3070 = vpop.f32.mrf.mxu0
        %v3071 = vadd.f32 0.0, %v3070
        %3072 = vmatmul.f32.gmra.mxu0 %v1138
        %v3073 = vpop.f32.mrf.mxu0
        %v3074 = vadd.f32 0.0, %v3073
        %3075 = vmatmul.f32.gmra.mxu0 %v1144
        %v3076 = vpop.f32.mrf.mxu0
        %v3077 = vadd.f32 0.0, %v3076
        %3078 = vmatmul.f32.gmra.mxu0 %v1150
        %v3079 = vpop.f32.mrf.mxu0
        %v3080 = vadd.f32 0.0, %v3079
        %3081 = vmatmul.f32.gmra.mxu0 %v1156
        %v3082 = vpop.f32.mrf.mxu0
        %v3083 = vadd.f32 0.0, %v3082
        %3084 = vmatmul.f32.gmra.mxu0 %v1162
        %v3085 = vpop.f32.mrf.mxu0
        %v3086 = vadd.f32 0.0, %v3085
        %3087 = vmatmul.f32.gmra.mxu0 %v1168
        %v3088 = vpop.f32.mrf.mxu0
        %v3089 = vadd.f32 0.0, %v3088
        %3090 = vmatmul.f32.gmra.mxu0 %v1174
        %v3091 = vpop.f32.mrf.mxu0
        %v3092 = vadd.f32 0.0, %v3091
        %3093 = vmatmul.f32.gmra.mxu0 %v1180
        %v3094 = vpop.f32.mrf.mxu0
        %v3095 = vadd.f32 0.0, %v3094
        %3096 = vmatmul.f32.gmra.mxu0 %v1233
        %v3097 = vpop.f32.mrf.mxu0
        %v3098 = vadd.f32 0.0, %v3097
        %3099 = vdwg.mxu0
        %3100 = vmatpush.msra.mxu0 %v2790
        %3101 = vmatpush.msra.mxu0 %v2787
        %3102 = vmatpush.msra.mxu0 %v2784
        %3103 = vmatpush.msra.mxu0 %v2781
        %3104 = vmatpush.msra.mxu0 %v2778
        %3105 = vmatpush.msra.mxu0 %v2775
        %3106 = vmatpush.msra.mxu0 %v2772
        %3107 = vmatpush.msra.mxu0 %v2769
        %3108 = vmatpush.msra.mxu0 %v2766
        %3109 = vmatpush.msra.mxu0 %v2763
        %3110 = vmatpush.msra.mxu0 %v2760
        %3111 = vmatpush.msra.mxu0 %v2757
        %3112 = vmatpush.msra.mxu0 %v2754
        %3113 = vmatpush.msra.mxu0 %v2751
        %3114 = vmatpush.msra.mxu0 %v2748
        %3115 = vmatpush.msra.mxu0 %v2745
        %3116 = vmatmul.f32.gmra.mxu0 %v1097
        %v3117 = vpop.f32.mrf.mxu0
        %v3118 = vadd.f32 %v3053, %v3117
        %3119 = vmatmul.f32.gmra.mxu0 %v1104
        %v3120 = vpop.f32.mrf.mxu0
        %v3121 = vadd.f32 %v3056, %v3120
        %3122 = vmatmul.f32.gmra.mxu0 %v1110
        %v3123 = vpop.f32.mrf.mxu0
        %v3124 = vadd.f32 %v3059, %v3123
        %3125 = vmatmul.f32.gmra.mxu0 %v1116
        %v3126 = vpop.f32.mrf.mxu0
        %v3127 = vadd.f32 %v3062, %v3126
        %3128 = vmatmul.f32.gmra.mxu0 %v1122
        %v3129 = vpop.f32.mrf.mxu0
        %v3130 = vadd.f32 %v3065, %v3129
        %3131 = vmatmul.f32.gmra.mxu0 %v1128
        %v3132 = vpop.f32.mrf.mxu0
        %v3133 = vadd.f32 %v3068, %v3132
        %3134 = vmatmul.f32.gmra.mxu0 %v1134
        %v3135 = vpop.f32.mrf.mxu0
        %v3136 = vadd.f32 %v3071, %v3135
        %3137 = vmatmul.f32.gmra.mxu0 %v1140
        %v3138 = vpop.f32.mrf.mxu0
        %v3139 = vadd.f32 %v3074, %v3138
        %3140 = vmatmul.f32.gmra.mxu0 %v1146
        %v3141 = vpop.f32.mrf.mxu0
        %v3142 = vadd.f32 %v3077, %v3141
        %3143 = vmatmul.f32.gmra.mxu0 %v1152
        %v3144 = vpop.f32.mrf.mxu0
        %v3145 = vadd.f32 %v3080, %v3144
        %3146 = vmatmul.f32.gmra.mxu0 %v1158
        %v3147 = vpop.f32.mrf.mxu0
        %v3148 = vadd.f32 %v3083, %v3147
        %3149 = vmatmul.f32.gmra.mxu0 %v1164
        %v3150 = vpop.f32.mrf.mxu0
        %v3151 = vadd.f32 %v3086, %v3150
        %3152 = vmatmul.f32.gmra.mxu0 %v1170
        %v3153 = vpop.f32.mrf.mxu0
        %v3154 = vadd.f32 %v3089, %v3153
        %3155 = vmatmul.f32.gmra.mxu0 %v1176
        %v3156 = vpop.f32.mrf.mxu0
        %v3157 = vadd.f32 %v3092, %v3156
        %3158 = vmatmul.f32.gmra.mxu0 %v1182
        %v3159 = vpop.f32.mrf.mxu0
        %v3160 = vadd.f32 %v3095, %v3159
        %3161 = vmatmul.f32.gmra.mxu0 %v1234
        %v3162 = vpop.f32.mrf.mxu0
        %v3163 = vadd.f32 %v3098, %v3162
        %3164 = vdwg.mxu0
        %3165 = vmatpush.msra.mxu0 %v2838
        %3166 = vmatpush.msra.mxu0 %v2835
        %3167 = vmatpush.msra.mxu0 %v2832
        %3168 = vmatpush.msra.mxu0 %v2829
        %3169 = vmatpush.msra.mxu0 %v2826
        %3170 = vmatpush.msra.mxu0 %v2823
        %3171 = vmatpush.msra.mxu0 %v2820
        %3172 = vmatpush.msra.mxu0 %v2817
        %3173 = vmatpush.msra.mxu0 %v2814
        %3174 = vmatpush.msra.mxu0 %v2811
        %3175 = vmatpush.msra.mxu0 %v2808
        %3176 = vmatpush.msra.mxu0 %v2805
        %3177 = vmatpush.msra.mxu0 %v2802
        %3178 = vmatpush.msra.mxu0 %v2799
        %3179 = vmatpush.msra.mxu0 %v2796
        %3180 = vmatpush.msra.mxu0 %v2793
        %3181 = vmatmul.f32.gmra.mxu0 %v1100
        %v3182 = vpop.f32.mrf.mxu0
        %v3183 = vadd.f32 %v3118, %v3182
        %3184 = vmatmul.f32.gmra.mxu0 %v1106
        %v3185 = vpop.f32.mrf.mxu0
        %v3186 = vadd.f32 %v3121, %v3185
        %3187 = vmatmul.f32.gmra.mxu0 %v1112
        %v3188 = vpop.f32.mrf.mxu0
        %v3189 = vadd.f32 %v3124, %v3188
        %3190 = vmatmul.f32.gmra.mxu0 %v1118
        %v3191 = vpop.f32.mrf.mxu0
        %v3192 = vadd.f32 %v3127, %v3191
        %3193 = vmatmul.f32.gmra.mxu0 %v1124
        %v3194 = vpop.f32.mrf.mxu0
        %v3195 = vadd.f32 %v3130, %v3194
        %3196 = vmatmul.f32.gmra.mxu0 %v1130
        %v3197 = vpop.f32.mrf.mxu0
        %v3198 = vadd.f32 %v3133, %v3197
        %3199 = vmatmul.f32.gmra.mxu0 %v1136
        %v3200 = vpop.f32.mrf.mxu0
        %v3201 = vadd.f32 %v3136, %v3200
        %3202 = vmatmul.f32.gmra.mxu0 %v1142
        %v3203 = vpop.f32.mrf.mxu0
        %v3204 = vadd.f32 %v3139, %v3203
        %3205 = vmatmul.f32.gmra.mxu0 %v1148
        %v3206 = vpop.f32.mrf.mxu0
        %v3207 = vadd.f32 %v3142, %v3206
        %3208 = vmatmul.f32.gmra.mxu0 %v1154
        %v3209 = vpop.f32.mrf.mxu0
        %v3210 = vadd.f32 %v3145, %v3209
        %3211 = vmatmul.f32.gmra.mxu0 %v1160
        %v3212 = vpop.f32.mrf.mxu0
        %v3213 = vadd.f32 %v3148, %v3212
        %3214 = vmatmul.f32.gmra.mxu0 %v1166
        %v3215 = vpop.f32.mrf.mxu0
        %v3216 = vadd.f32 %v3151, %v3215
        %3217 = vmatmul.f32.gmra.mxu0 %v1172
        %v3218 = vpop.f32.mrf.mxu0
        %v3219 = vadd.f32 %v3154, %v3218
        %3220 = vmatmul.f32.gmra.mxu0 %v1178
        %v3221 = vpop.f32.mrf.mxu0
        %v3222 = vadd.f32 %v3157, %v3221
        %3223 = vmatmul.f32.gmra.mxu0 %v1184
        %v3224 = vpop.f32.mrf.mxu0
        %v3225 = vadd.f32 %v3160, %v3224
        %3226 = vmatmul.f32.gmra.mxu0 %v1235
        %v3227 = vpop.f32.mrf.mxu0
        %v3228 = vadd.f32 %v3163, %v3227
        %3229 = vdwg.mxu0
        %3230 = vmatpush.msra.mxu0 %v2743
        %3231 = vmatpush.msra.mxu0 %v2740
        %3232 = vmatpush.msra.mxu0 %v2737
        %3233 = vmatpush.msra.mxu0 %v2734
        %3234 = vmatpush.msra.mxu0 %v2731
        %3235 = vmatpush.msra.mxu0 %v2728
        %3236 = vmatpush.msra.mxu0 %v2725
        %3237 = vmatpush.msra.mxu0 %v2722
        %3238 = vmatpush.msra.mxu0 %v2719
        %3239 = vmatpush.msra.mxu0 %v2716
        %3240 = vmatpush.msra.mxu0 %v2713
        %3241 = vmatpush.msra.mxu0 %v2710
        %3242 = vmatpush.msra.mxu0 %v2707
        %3243 = vmatpush.msra.mxu0 %v2704
        %3244 = vmatpush.msra.mxu0 %v2701
        %3245 = vmatpush.msra.mxu0 %v2698
        %3246 = vmatmul.f32.gmra.mxu0 %v1094
        %v3247 = vpop.f32.mrf.mxu0
        %v3248 = vadd.f32 0.0, %v3247
        %3249 = vmatmul.f32.gmra.mxu0 %v1102
        %v3250 = vpop.f32.mrf.mxu0
        %v3251 = vadd.f32 0.0, %v3250
        %3252 = vmatmul.f32.gmra.mxu0 %v1108
        %v3253 = vpop.f32.mrf.mxu0
        %v3254 = vadd.f32 0.0, %v3253
        %3255 = vmatmul.f32.gmra.mxu0 %v1114
        %v3256 = vpop.f32.mrf.mxu0
        %v3257 = vadd.f32 0.0, %v3256
        %3258 = vmatmul.f32.gmra.mxu0 %v1120
        %v3259 = vpop.f32.mrf.mxu0
        %v3260 = vadd.f32 0.0, %v3259
        %3261 = vmatmul.f32.gmra.mxu0 %v1126
        %v3262 = vpop.f32.mrf.mxu0
        %v3263 = vadd.f32 0.0, %v3262
        %3264 = vmatmul.f32.gmra.mxu0 %v1132
        %v3265 = vpop.f32.mrf.mxu0
        %v3266 = vadd.f32 0.0, %v3265
        %3267 = vmatmul.f32.gmra.mxu0 %v1138
        %v3268 = vpop.f32.mrf.mxu0
        %v3269 = vadd.f32 0.0, %v3268
        %3270 = vmatmul.f32.gmra.mxu0 %v1144
        %v3271 = vpop.f32.mrf.mxu0
        %v3272 = vadd.f32 0.0, %v3271
        %3273 = vmatmul.f32.gmra.mxu0 %v1150
        %v3274 = vpop.f32.mrf.mxu0
        %v3275 = vadd.f32 0.0, %v3274
        %3276 = vmatmul.f32.gmra.mxu0 %v1156
        %v3277 = vpop.f32.mrf.mxu0
        %v3278 = vadd.f32 0.0, %v3277
        %3279 = vmatmul.f32.gmra.mxu0 %v1162
        %v3280 = vpop.f32.mrf.mxu0
        %v3281 = vadd.f32 0.0, %v3280
        %3282 = vmatmul.f32.gmra.mxu0 %v1168
        %v3283 = vpop.f32.mrf.mxu0
        %v3284 = vadd.f32 0.0, %v3283
        %3285 = vmatmul.f32.gmra.mxu0 %v1174
        %v3286 = vpop.f32.mrf.mxu0
        %v3287 = vadd.f32 0.0, %v3286
        %3288 = vmatmul.f32.gmra.mxu0 %v1180
        %v3289 = vpop.f32.mrf.mxu0
        %v3290 = vadd.f32 0.0, %v3289
        %3291 = vmatmul.f32.gmra.mxu0 %v1233
        %v3292 = vpop.f32.mrf.mxu0
        %v3293 = vadd.f32 0.0, %v3292
        %3294 = vdwg.mxu0
        %3295 = vmatpush.msra.mxu0 %v2791
        %3296 = vmatpush.msra.mxu0 %v2788
        %3297 = vmatpush.msra.mxu0 %v2785
        %3298 = vmatpush.msra.mxu0 %v2782
        %3299 = vmatpush.msra.mxu0 %v2779
        %3300 = vmatpush.msra.mxu0 %v2776
        %3301 = vmatpush.msra.mxu0 %v2773
        %3302 = vmatpush.msra.mxu0 %v2770
        %3303 = vmatpush.msra.mxu0 %v2767
        %3304 = vmatpush.msra.mxu0 %v2764
        %3305 = vmatpush.msra.mxu0 %v2761
        %3306 = vmatpush.msra.mxu0 %v2758
        %3307 = vmatpush.msra.mxu0 %v2755
        %3308 = vmatpush.msra.mxu0 %v2752
        %3309 = vmatpush.msra.mxu0 %v2749
        %3310 = vmatpush.msra.mxu0 %v2746
        %3311 = vmatmul.f32.gmra.mxu0 %v1097
        %v3312 = vpop.f32.mrf.mxu0
        %v3313 = vadd.f32 %v3248, %v3312
        %3314 = vmatmul.f32.gmra.mxu0 %v1104
        %v3315 = vpop.f32.mrf.mxu0
        %v3316 = vadd.f32 %v3251, %v3315
        %3317 = vmatmul.f32.gmra.mxu0 %v1110
        %v3318 = vpop.f32.mrf.mxu0
        %v3319 = vadd.f32 %v3254, %v3318
        %3320 = vmatmul.f32.gmra.mxu0 %v1116
        %v3321 = vpop.f32.mrf.mxu0
        %v3322 = vadd.f32 %v3257, %v3321
        %3323 = vmatmul.f32.gmra.mxu0 %v1122
        %v3324 = vpop.f32.mrf.mxu0
        %v3325 = vadd.f32 %v3260, %v3324
        %3326 = vmatmul.f32.gmra.mxu0 %v1128
        %v3327 = vpop.f32.mrf.mxu0
        %v3328 = vadd.f32 %v3263, %v3327
        %3329 = vmatmul.f32.gmra.mxu0 %v1134
        %v3330 = vpop.f32.mrf.mxu0
        %v3331 = vadd.f32 %v3266, %v3330
        %3332 = vmatmul.f32.gmra.mxu0 %v1140
        %v3333 = vpop.f32.mrf.mxu0
        %v3334 = vadd.f32 %v3269, %v3333
        %3335 = vmatmul.f32.gmra.mxu0 %v1146
        %v3336 = vpop.f32.mrf.mxu0
        %v3337 = vadd.f32 %v3272, %v3336
        %3338 = vmatmul.f32.gmra.mxu0 %v1152
        %v3339 = vpop.f32.mrf.mxu0
        %v3340 = vadd.f32 %v3275, %v3339
        %3341 = vmatmul.f32.gmra.mxu0 %v1158
        %v3342 = vpop.f32.mrf.mxu0
        %v3343 = vadd.f32 %v3278, %v3342
        %3344 = vmatmul.f32.gmra.mxu0 %v1164
        %v3345 = vpop.f32.mrf.mxu0
        %v3346 = vadd.f32 %v3281, %v3345
        %3347 = vmatmul.f32.gmra.mxu0 %v1170
        %v3348 = vpop.f32.mrf.mxu0
        %v3349 = vadd.f32 %v3284, %v3348
        %3350 = vmatmul.f32.gmra.mxu0 %v1176
        %v3351 = vpop.f32.mrf.mxu0
        %v3352 = vadd.f32 %v3287, %v3351
        %3353 = vmatmul.f32.gmra.mxu0 %v1182
        %v3354 = vpop.f32.mrf.mxu0
        %v3355 = vadd.f32 %v3290, %v3354
        %3356 = vmatmul.f32.gmra.mxu0 %v1234
        %v3357 = vpop.f32.mrf.mxu0
        %v3358 = vadd.f32 %v3293, %v3357
        %3359 = vdwg.mxu0
        %3360 = vmatpush.msra.mxu0 %v2839
        %3361 = vmatpush.msra.mxu0 %v2836
        %3362 = vmatpush.msra.mxu0 %v2833
        %3363 = vmatpush.msra.mxu0 %v2830
        %3364 = vmatpush.msra.mxu0 %v2827
        %3365 = vmatpush.msra.mxu0 %v2824
        %3366 = vmatpush.msra.mxu0 %v2821
        %3367 = vmatpush.msra.mxu0 %v2818
        %3368 = vmatpush.msra.mxu0 %v2815
        %3369 = vmatpush.msra.mxu0 %v2812
        %3370 = vmatpush.msra.mxu0 %v2809
        %3371 = vmatpush.msra.mxu0 %v2806
        %3372 = vmatpush.msra.mxu0 %v2803
        %3373 = vmatpush.msra.mxu0 %v2800
        %3374 = vmatpush.msra.mxu0 %v2797
        %3375 = vmatpush.msra.mxu0 %v2794
        %3376 = vmatmul.f32.gmra.mxu0 %v1100
        %v3377 = vpop.f32.mrf.mxu0
        %v3378 = vadd.f32 %v3313, %v3377
        %3379 = vmatmul.f32.gmra.mxu0 %v1106
        %v3380 = vpop.f32.mrf.mxu0
        %v3381 = vadd.f32 %v3316, %v3380
        %3382 = vmatmul.f32.gmra.mxu0 %v1112
        %v3383 = vpop.f32.mrf.mxu0
        %v3384 = vadd.f32 %v3319, %v3383
        %3385 = vmatmul.f32.gmra.mxu0 %v1118
        %v3386 = vpop.f32.mrf.mxu0
        %v3387 = vadd.f32 %v3322, %v3386
        %3388 = vmatmul.f32.gmra.mxu0 %v1124
        %v3389 = vpop.f32.mrf.mxu0
        %v3390 = vadd.f32 %v3325, %v3389
        %3391 = vmatmul.f32.gmra.mxu0 %v1130
        %v3392 = vpop.f32.mrf.mxu0
        %v3393 = vadd.f32 %v3328, %v3392
        %3394 = vmatmul.f32.gmra.mxu0 %v1136
        %v3395 = vpop.f32.mrf.mxu0
        %v3396 = vadd.f32 %v3331, %v3395
        %3397 = vmatmul.f32.gmra.mxu0 %v1142
        %v3398 = vpop.f32.mrf.mxu0
        %v3399 = vadd.f32 %v3334, %v3398
        %3400 = vmatmul.f32.gmra.mxu0 %v1148
        %v3401 = vpop.f32.mrf.mxu0
        %v3402 = vadd.f32 %v3337, %v3401
        %3403 = vmatmul.f32.gmra.mxu0 %v1154
        %v3404 = vpop.f32.mrf.mxu0
        %v3405 = vadd.f32 %v3340, %v3404
        %3406 = vmatmul.f32.gmra.mxu0 %v1160
        %v3407 = vpop.f32.mrf.mxu0
        %v3408 = vadd.f32 %v3343, %v3407
        %3409 = vmatmul.f32.gmra.mxu0 %v1166
        %v3410 = vpop.f32.mrf.mxu0
        %v3411 = vadd.f32 %v3346, %v3410
        %3412 = vmatmul.f32.gmra.mxu0 %v1172
        %v3413 = vpop.f32.mrf.mxu0
        %v3414 = vadd.f32 %v3349, %v3413
        %3415 = vmatmul.f32.gmra.mxu0 %v1178
        %v3416 = vpop.f32.mrf.mxu0
        %v3417 = vadd.f32 %v3352, %v3416
        %3418 = vmatmul.f32.gmra.mxu0 %v1184
        %v3419 = vpop.f32.mrf.mxu0
        %v3420 = vadd.f32 %v3355, %v3419
        %3421 = vmatmul.f32.gmra.mxu0 %v1235
        %v3422 = vpop.f32.mrf.mxu0
        %v3423 = vadd.f32 %v3358, %v3422
        %3424 = vdwg.mxu0
        %v3425 = vadd.f32 %v2258, %v2988
        %v3426 = vadd.f32 %v2453, %v3183
        %v3427 = vadd.f32 %v2648, %v3378
        %v3428 = vadd.f32 %v2261, %v2991
        %v3429 = vadd.f32 %v2456, %v3186
        %v3430 = vadd.f32 %v2651, %v3381
        %v3431 = vadd.f32 %v2264, %v2994
        %v3432 = vadd.f32 %v2459, %v3189
        %v3433 = vadd.f32 %v2654, %v3384
        %v3434 = vadd.f32 %v2267, %v2997
        %v3435 = vadd.f32 %v2462, %v3192
        %v3436 = vadd.f32 %v2657, %v3387
        %v3437 = vadd.f32 %v2270, %v3000
        %v3438 = vadd.f32 %v2465, %v3195
        %v3439 = vadd.f32 %v2660, %v3390
        %v3440 = vadd.f32 %v2273, %v3003
        %v3441 = vadd.f32 %v2468, %v3198
        %v3442 = vadd.f32 %v2663, %v3393
        %v3443 = vadd.f32 %v2276, %v3006
        %v3444 = vadd.f32 %v2471, %v3201
        %v3445 = vadd.f32 %v2666, %v3396
        %v3446 = vadd.f32 %v2279, %v3009
        %v3447 = vadd.f32 %v2474, %v3204
        %v3448 = vadd.f32 %v2669, %v3399
        %v3449 = vadd.f32 %v2282, %v3012
        %v3450 = vadd.f32 %v2477, %v3207
        %v3451 = vadd.f32 %v2672, %v3402
        %v3452 = vadd.f32 %v2285, %v3015
        %v3453 = vadd.f32 %v2480, %v3210
        %v3454 = vadd.f32 %v2675, %v3405
        %v3455 = vadd.f32 %v2288, %v3018
        %v3456 = vadd.f32 %v2483, %v3213
        %v3457 = vadd.f32 %v2678, %v3408
        %v3458 = vadd.f32 %v2291, %v3021
        %v3459 = vadd.f32 %v2486, %v3216
        %v3460 = vadd.f32 %v2681, %v3411
        %v3461 = vadd.f32 %v2294, %v3024
        %v3462 = vadd.f32 %v2489, %v3219
        %v3463 = vadd.f32 %v2684, %v3414
        %v3464 = vadd.f32 %v2297, %v3027
        %v3465 = vadd.f32 %v2492, %v3222
        %v3466 = vadd.f32 %v2687, %v3417
        %v3467 = vadd.f32 %v2300, %v3030
        %v3468 = vadd.f32 %v2495, %v3225
        %v3469 = vadd.f32 %v2690, %v3420
        %v3470 = vadd.f32 %v2303, %v3033
        %v3471 = vadd.f32 %v2498, %v3228
        %v3472 = vadd.f32 %v2693, %v3423
        %v3473 = vld [vmem:[%s2] sm:$0x7]
        %v3475 = vperm.slane %v3473, 0
        %v3476 = vperm.slane %v3473, 1
        %v3477 = vperm.slane %v3473, 2
        %v3481 = vadd.f32 %v3425, %v3475
        %v3482 = vadd.f32 %v3426, %v3476
        %v3483 = vadd.f32 %v3427, %v3477
        %v3484 = vadd.f32 %v3428, %v3475
        %v3485 = vadd.f32 %v3429, %v3476
        %v3486 = vadd.f32 %v3430, %v3477
        %v3487 = vadd.f32 %v3431, %v3475
        %v3488 = vadd.f32 %v3432, %v3476
        %v3489 = vadd.f32 %v3433, %v3477
        %v3490 = vadd.f32 %v3434, %v3475
        %v3491 = vadd.f32 %v3435, %v3476
        %v3492 = vadd.f32 %v3436, %v3477
        %v3493 = vadd.f32 %v3437, %v3475
        %v3494 = vadd.f32 %v3438, %v3476
        %v3495 = vadd.f32 %v3439, %v3477
        %v3496 = vadd.f32 %v3440, %v3475
        %v3497 = vadd.f32 %v3441, %v3476
        %v3498 = vadd.f32 %v3442, %v3477
        %v3499 = vadd.f32 %v3443, %v3475
        %v3500 = vadd.f32 %v3444, %v3476
        %v3501 = vadd.f32 %v3445, %v3477
        %v3502 = vadd.f32 %v3446, %v3475
        %v3503 = vadd.f32 %v3447, %v3476
        %v3504 = vadd.f32 %v3448, %v3477
        %v3505 = vadd.f32 %v3449, %v3475
        %v3506 = vadd.f32 %v3450, %v3476
        %v3507 = vadd.f32 %v3451, %v3477
        %v3508 = vadd.f32 %v3452, %v3475
        %v3509 = vadd.f32 %v3453, %v3476
        %v3510 = vadd.f32 %v3454, %v3477
        %v3511 = vadd.f32 %v3455, %v3475
        %v3512 = vadd.f32 %v3456, %v3476
        %v3513 = vadd.f32 %v3457, %v3477
        %v3514 = vadd.f32 %v3458, %v3475
        %v3515 = vadd.f32 %v3459, %v3476
        %v3516 = vadd.f32 %v3460, %v3477
        %v3517 = vadd.f32 %v3461, %v3475
        %v3518 = vadd.f32 %v3462, %v3476
        %v3519 = vadd.f32 %v3463, %v3477
        %v3520 = vadd.f32 %v3464, %v3475
        %v3521 = vadd.f32 %v3465, %v3476
        %v3522 = vadd.f32 %v3466, %v3477
        %v3523 = vadd.f32 %v3467, %v3475
        %v3524 = vadd.f32 %v3468, %v3476
        %v3525 = vadd.f32 %v3469, %v3477
        %v3526 = vadd.f32 %v3470, %v3475
        %v3527 = vadd.f32 %v3471, %v3476
        %v3528 = vadd.f32 %v3472, %v3477
        %v3529 = vmax.f32 %v3481, 0.0
        %v3530 = vmax.f32 %v3482, 0.0
        %v3531 = vmax.f32 %v3483, 0.0
        %v3532 = vmax.f32 %v3484, 0.0
        %v3533 = vmax.f32 %v3485, 0.0
        %v3534 = vmax.f32 %v3486, 0.0
        %v3535 = vmax.f32 %v3487, 0.0
        %v3536 = vmax.f32 %v3488, 0.0
        %v3537 = vmax.f32 %v3489, 0.0
        %v3538 = vmax.f32 %v3490, 0.0
        %v3539 = vmax.f32 %v3491, 0.0
        %v3540 = vmax.f32 %v3492, 0.0
        %v3541 = vmax.f32 %v3493, 0.0
        %v3542 = vmax.f32 %v3494, 0.0
        %v3543 = vmax.f32 %v3495, 0.0
        %v3544 = vmax.f32 %v3496, 0.0
        %v3545 = vmax.f32 %v3497, 0.0
        %v3546 = vmax.f32 %v3498, 0.0
        %v3547 = vmax.f32 %v3499, 0.0
        %v3548 = vmax.f32 %v3500, 0.0
        %v3549 = vmax.f32 %v3501, 0.0
        %v3550 = vmax.f32 %v3502, 0.0
        %v3551 = vmax.f32 %v3503, 0.0
        %v3552 = vmax.f32 %v3504, 0.0
        %v3553 = vmax.f32 %v3505, 0.0
        %v3554 = vmax.f32 %v3506, 0.0
        %v3555 = vmax.f32 %v3507, 0.0
        %v3556 = vmax.f32 %v3508, 0.0
        %v3557 = vmax.f32 %v3509, 0.0
        %v3558 = vmax.f32 %v3510, 0.0
        %v3559 = vmax.f32 %v3511, 0.0
        %v3560 = vmax.f32 %v3512, 0.0
        %v3561 = vmax.f32 %v3513, 0.0
        %v3562 = vmax.f32 %v3514, 0.0
        %v3563 = vmax.f32 %v3515, 0.0
        %v3564 = vmax.f32 %v3516, 0.0
        %v3565 = vmax.f32 %v3517, 0.0
        %v3566 = vmax.f32 %v3518, 0.0
        %v3567 = vmax.f32 %v3519, 0.0
        %v3568 = vmax.f32 %v3520, 0.0
        %v3569 = vmax.f32 %v3521, 0.0
        %v3570 = vmax.f32 %v3522, 0.0
        %v3571 = vmax.f32 %v3523, 0.0
        %v3572 = vmax.f32 %v3524, 0.0
        %v3573 = vmax.f32 %v3525, 0.0
        %v3574 = vmax.f32 %v3526, 0.0
        %v3575 = vmax.f32 %v3527, 0.0
        %v3576 = vmax.f32 %v3528, 0.0
        %3625 = vrot.lane.b32.xlu0 %v3529, 127
        %v3626 = vpop.permute.xlu0 %3625
        %3627 = vrot.lane.b32.xlu0 %v3530, 127
        %v3628 = vpop.permute.xlu0 %3627
        %3629 = vrot.lane.b32.xlu0 %v3531, 127
        %v3630 = vpop.permute.xlu0 %3629
        %3631 = vrot.lane.b32.xlu0 %v3532, 127
        %v3632 = vpop.permute.xlu0 %3631
        %3633 = vrot.lane.b32.xlu0 %v3533, 127
        %v3634 = vpop.permute.xlu0 %3633
        %3635 = vrot.lane.b32.xlu0 %v3534, 127
        %v3636 = vpop.permute.xlu0 %3635
        %3637 = vrot.lane.b32.xlu0 %v3535, 127
        %v3638 = vpop.permute.xlu0 %3637
        %3639 = vrot.lane.b32.xlu0 %v3536, 127
        %v3640 = vpop.permute.xlu0 %3639
        %3641 = vrot.lane.b32.xlu0 %v3537, 127
        %v3642 = vpop.permute.xlu0 %3641
        %3643 = vrot.lane.b32.xlu0 %v3538, 127
        %v3644 = vpop.permute.xlu0 %3643
        %3645 = vrot.lane.b32.xlu0 %v3539, 127
        %v3646 = vpop.permute.xlu0 %3645
        %3647 = vrot.lane.b32.xlu0 %v3540, 127
        %v3648 = vpop.permute.xlu0 %3647
        %3649 = vrot.lane.b32.xlu0 %v3541, 127
        %v3650 = vpop.permute.xlu0 %3649
        %3651 = vrot.lane.b32.xlu0 %v3542, 127
        %v3652 = vpop.permute.xlu0 %3651
        %3653 = vrot.lane.b32.xlu0 %v3543, 127
        %v3654 = vpop.permute.xlu0 %3653
        %3655 = vrot.lane.b32.xlu0 %v3544, 127
        %v3656 = vpop.permute.xlu0 %3655
        %3657 = vrot.lane.b32.xlu0 %v3545, 127
        %v3658 = vpop.permute.xlu0 %3657
        %3659 = vrot.lane.b32.xlu0 %v3546, 127
        %v3660 = vpop.permute.xlu0 %3659
        %3661 = vrot.lane.b32.xlu0 %v3547, 127
        %v3662 = vpop.permute.xlu0 %3661
        %3663 = vrot.lane.b32.xlu0 %v3548, 127
        %v3664 = vpop.permute.xlu0 %3663
        %3665 = vrot.lane.b32.xlu0 %v3549, 127
        %v3666 = vpop.permute.xlu0 %3665
        %3667 = vrot.lane.b32.xlu0 %v3550, 127
        %v3668 = vpop.permute.xlu0 %3667
        %3669 = vrot.lane.b32.xlu0 %v3551, 127
        %v3670 = vpop.permute.xlu0 %3669
        %3671 = vrot.lane.b32.xlu0 %v3552, 127
        %v3672 = vpop.permute.xlu0 %3671
        %3673 = vrot.lane.b32.xlu0 %v3553, 127
        %v3674 = vpop.permute.xlu0 %3673
        %3675 = vrot.lane.b32.xlu0 %v3554, 127
        %v3676 = vpop.permute.xlu0 %3675
        %3677 = vrot.lane.b32.xlu0 %v3555, 127
        %v3678 = vpop.permute.xlu0 %3677
        %3679 = vrot.lane.b32.xlu0 %v3556, 127
        %v3680 = vpop.permute.xlu0 %3679
        %3681 = vrot.lane.b32.xlu0 %v3557, 127
        %v3682 = vpop.permute.xlu0 %3681
        %3683 = vrot.lane.b32.xlu0 %v3558, 127
        %v3684 = vpop.permute.xlu0 %3683
        %3685 = vrot.lane.b32.xlu0 %v3559, 127
        %v3686 = vpop.permute.xlu0 %3685
        %3687 = vrot.lane.b32.xlu0 %v3560, 127
        %v3688 = vpop.permute.xlu0 %3687
        %3689 = vrot.lane.b32.xlu0 %v3561, 127
        %v3690 = vpop.permute.xlu0 %3689
        %3691 = vrot.lane.b32.xlu0 %v3562, 127
        %v3692 = vpop.permute.xlu0 %3691
        %3693 = vrot.lane.b32.xlu0 %v3563, 127
        %v3694 = vpop.permute.xlu0 %3693
        %3695 = vrot.lane.b32.xlu0 %v3564, 127
        %v3696 = vpop.permute.xlu0 %3695
        %3697 = vrot.lane.b32.xlu0 %v3565, 127
        %v3698 = vpop.permute.xlu0 %3697
        %3699 = vrot.lane.b32.xlu0 %v3566, 127
        %v3700 = vpop.permute.xlu0 %3699
        %3701 = vrot.lane.b32.xlu0 %v3567, 127
        %v3702 = vpop.permute.xlu0 %3701
        %3703 = vrot.lane.b32.xlu0 %v3568, 127
        %v3704 = vpop.permute.xlu0 %3703
        %3705 = vrot.lane.b32.xlu0 %v3569, 127
        %v3706 = vpop.permute.xlu0 %3705
        %3707 = vrot.lane.b32.xlu0 %v3570, 127
        %v3708 = vpop.permute.xlu0 %3707
        %3709 = vrot.lane.b32.xlu0 %v3571, 127
        %v3710 = vpop.permute.xlu0 %3709
        %3711 = vrot.lane.b32.xlu0 %v3572, 127
        %v3712 = vpop.permute.xlu0 %3711
        %3713 = vrot.lane.b32.xlu0 %v3573, 127
        %v3714 = vpop.permute.xlu0 %3713
        %3715 = vrot.lane.b32.xlu0 %v3574, 127
        %v3716 = vpop.permute.xlu0 %3715
        %3717 = vrot.lane.b32.xlu0 %v3575, 127
        %v3718 = vpop.permute.xlu0 %3717
        %3719 = vrot.lane.b32.xlu0 %v3576, 127
        %v3720 = vpop.permute.xlu0 %3719
        %vm3721 = vcmask 1039360
        %v3722 = vsel %vm3721, %v3626, %v3628
        %v3723 = vsel %vm3721, %v3628, %v3630
        %v3724 = vsel %vm3721, %v3632, %v3634
        %v3725 = vsel %vm3721, %v3634, %v3636
        %v3726 = vsel %vm3721, %v3638, %v3640
        %v3727 = vsel %vm3721, %v3640, %v3642
        %v3728 = vsel %vm3721, %v3644, %v3646
        %v3729 = vsel %vm3721, %v3646, %v3648
        %v3730 = vsel %vm3721, %v3650, %v3652
        %v3731 = vsel %vm3721, %v3652, %v3654
        %v3732 = vsel %vm3721, %v3656, %v3658
        %v3733 = vsel %vm3721, %v3658, %v3660
        %v3734 = vsel %vm3721, %v3662, %v3664
        %v3735 = vsel %vm3721, %v3664, %v3666
        %v3736 = vsel %vm3721, %v3668, %v3670
        %v3737 = vsel %vm3721, %v3670, %v3672
        %v3738 = vsel %vm3721, %v3674, %v3676
        %v3739 = vsel %vm3721, %v3676, %v3678
        %v3740 = vsel %vm3721, %v3680, %v3682
        %v3741 = vsel %vm3721, %v3682, %v3684
        %v3742 = vsel %vm3721, %v3686, %v3688
        %v3743 = vsel %vm3721, %v3688, %v3690
        %v3744 = vsel %vm3721, %v3692, %v3694
        %v3745 = vsel %vm3721, %v3694, %v3696
        %v3746 = vsel %vm3721, %v3698, %v3700
        %v3747 = vsel %vm3721, %v3700, %v3702
        %v3748 = vsel %vm3721, %v3704, %v3706
        %v3749 = vsel %vm3721, %v3706, %v3708
        %v3750 = vsel %vm3721, %v3710, %v3712
        %v3751 = vsel %vm3721, %v3712, %v3714
        %v3752 = vsel %vm3721, %v3716, %v3718
        %v3753 = vsel %vm3721, %v3718, %v3720
        %v3802 = vsel %vm3721, %v3630, 0.0
        %v3803 = vsel %vm3721, %v3636, 0.0
        %v3804 = vsel %vm3721, %v3642, 0.0
        %v3805 = vsel %vm3721, %v3648, 0.0
        %v3806 = vsel %vm3721, %v3654, 0.0
        %v3807 = vsel %vm3721, %v3660, 0.0
        %v3808 = vsel %vm3721, %v3666, 0.0
        %v3809 = vsel %vm3721, %v3672, 0.0
        %v3810 = vsel %vm3721, %v3678, 0.0
        %v3811 = vsel %vm3721, %v3684, 0.0
        %v3812 = vsel %vm3721, %v3690, 0.0
        %v3813 = vsel %vm3721, %v3696, 0.0
        %v3814 = vsel %vm3721, %v3702, 0.0
        %v3815 = vsel %vm3721, %v3708, 0.0
        %v3816 = vsel %vm3721, %v3714, 0.0
        %v3817 = vsel %vm3721, %v3720, 0.0
        %v3818 = vmax.f32 %v3529, %v3722
        %v3819 = vmax.f32 %v3530, %v3723
        %v3820 = vmax.f32 %v3531, %v3802
        %v3821 = vmax.f32 %v3532, %v3724
        %v3822 = vmax.f32 %v3533, %v3725
        %v3823 = vmax.f32 %v3534, %v3803
        %v3824 = vmax.f32 %v3535, %v3726
        %v3825 = vmax.f32 %v3536, %v3727
        %v3826 = vmax.f32 %v3537, %v3804
        %v3827 = vmax.f32 %v3538, %v3728
        %v3828 = vmax.f32 %v3539, %v3729
        %v3829 = vmax.f32 %v3540, %v3805
        %v3830 = vmax.f32 %v3541, %v3730
        %v3831 = vmax.f32 %v3542, %v3731
        %v3832 = vmax.f32 %v3543, %v3806
        %v3833 = vmax.f32 %v3544, %v3732
        %v3834 = vmax.f32 %v3545, %v3733
        %v3835 = vmax.f32 %v3546, %v3807
        %v3836 = vmax.f32 %v3547, %v3734
        %v3837 = vmax.f32 %v3548, %v3735
        %v3838 = vmax.f32 %v3549, %v3808
        %v3839 = vmax.f32 %v3550, %v3736
        %v3840 = vmax.f32 %v3551, %v3737
        %v3841 = vmax.f32 %v3552, %v3809
        %v3842 = vmax.f32 %v3553, %v3738
        %v3843 = vmax.f32 %v3554, %v3739
        %v3844 = vmax.f32 %v3555, %v3810
        %v3845 = vmax.f32 %v3556, %v3740
        %v3846 = vmax.f32 %v3557, %v3741
        %v3847 = vmax.f32 %v3558, %v3811
        %v3848 = vmax.f32 %v3559, %v3742
        %v3849 = vmax.f32 %v3560, %v3743
        %v3850 = vmax.f32 %v3561, %v3812
        %v3851 = vmax.f32 %v3562, %v3744
        %v3852 = vmax.f32 %v3563, %v3745
        %v3853 = vmax.f32 %v3564, %v3813
        %v3854 = vmax.f32 %v3565, %v3746
        %v3855 = vmax.f32 %v3566, %v3747
        %v3856 = vmax.f32 %v3567, %v3814
        %v3857 = vmax.f32 %v3568, %v3748
        %v3858 = vmax.f32 %v3569, %v3749
        %v3859 = vmax.f32 %v3570, %v3815
        %v3860 = vmax.f32 %v3571, %v3750
        %v3861 = vmax.f32 %v3572, %v3751
        %v3862 = vmax.f32 %v3573, %v3816
        %v3863 = vmax.f32 %v3574, %v3752
        %v3864 = vmax.f32 %v3575, %v3753
        %v3865 = vmax.f32 %v3576, %v3817
        %v3914 = vrot.slane %v3818, 1
        %v3915 = vrot.slane %v3821, 1
        %v3916 = vsel %vm1091, %v3914, %v3915
        %v3917 = vrot.slane %v3819, 1
        %v3918 = vrot.slane %v3822, 1
        %v3919 = vsel %vm1091, %v3917, %v3918
        %v3920 = vrot.slane %v3820, 1
        %v3921 = vrot.slane %v3823, 1
        %v3922 = vsel %vm1091, %v3920, %v3921
        %v3923 = vrot.slane %v3824, 1
        %v3924 = vsel %vm1091, %v3915, %v3923
        %v3925 = vrot.slane %v3825, 1
        %v3926 = vsel %vm1091, %v3918, %v3925
        %v3927 = vrot.slane %v3826, 1
        %v3928 = vsel %vm1091, %v3921, %v3927
        %v3929 = vrot.slane %v3827, 1
        %v3930 = vsel %vm1091, %v3923, %v3929
        %v3931 = vrot.slane %v3828, 1
        %v3932 = vsel %vm1091, %v3925, %v3931
        %v3933 = vrot.slane %v3829, 1
        %v3934 = vsel %vm1091, %v3927, %v3933
        %v3935 = vrot.slane %v3830, 1
        %v3936 = vsel %vm1091, %v3929, %v3935
        %v3937 = vrot.slane %v3831, 1
        %v3938 = vsel %vm1091, %v3931, %v3937
        %v3939 = vrot.slane %v3832, 1
        %v3940 = vsel %vm1091, %v3933, %v3939
        %v3941 = vrot.slane %v3833, 1
        %v3942 = vsel %vm1091, %v3935, %v3941
        %v3943 = vrot.slane %v3834, 1
        %v3944 = vsel %vm1091, %v3937, %v3943
        %v3945 = vrot.slane %v3835, 1
        %v3946 = vsel %vm1091, %v3939, %v3945
        %v3947 = vrot.slane %v3836, 1
        %v3948 = vsel %vm1091, %v3941, %v3947
        %v3949 = vrot.slane %v3837, 1
        %v3950 = vsel %vm1091, %v3943, %v3949
        %v3951 = vrot.slane %v3838, 1
        %v3952 = vsel %vm1091, %v3945, %v3951
        %v3953 = vrot.slane %v3839, 1
        %v3954 = vsel %vm1091, %v3947, %v3953
        %v3955 = vrot.slane %v3840, 1
        %v3956 = vsel %vm1091, %v3949, %v3955
        %v3957 = vrot.slane %v3841, 1
        %v3958 = vsel %vm1091, %v3951, %v3957
        %v3959 = vrot.slane %v3842, 1
        %v3960 = vsel %vm1091, %v3953, %v3959
        %v3961 = vrot.slane %v3843, 1
        %v3962 = vsel %vm1091, %v3955, %v3961
        %v3963 = vrot.slane %v3844, 1
        %v3964 = vsel %vm1091, %v3957, %v3963
        %v3965 = vrot.slane %v3845, 1
        %v3966 = vsel %vm1091, %v3959, %v3965
        %v3967 = vrot.slane %v3846, 1
        %v3968 = vsel %vm1091, %v3961, %v3967
        %v3969 = vrot.slane %v3847, 1
        %v3970 = vsel %vm1091, %v3963, %v3969
        %v3971 = vrot.slane %v3848, 1
        %v3972 = vsel %vm1091, %v3965, %v3971
        %v3973 = vrot.slane %v3849, 1
        %v3974 = vsel %vm1091, %v3967, %v3973
        %v3975 = vrot.slane %v3850, 1
        %v3976 = vsel %vm1091, %v3969, %v3975
        %v3977 = vrot.slane %v3851, 1
        %v3978 = vsel %vm1091, %v3971, %v3977
        %v3979 = vrot.slane %v3852, 1
        %v3980 = vsel %vm1091, %v3973, %v3979
        %v3981 = vrot.slane %v3853, 1
        %v3982 = vsel %vm1091, %v3975, %v3981
        %v3983 = vrot.slane %v3854, 1
        %v3984 = vsel %vm1091, %v3977, %v3983
        %v3985 = vrot.slane %v3855, 1
        %v3986 = vsel %vm1091, %v3979, %v3985
        %v3987 = vrot.slane %v3856, 1
        %v3988 = vsel %vm1091, %v3981, %v3987
        %v3989 = vrot.slane %v3857, 1
        %v3990 = vsel %vm1091, %v3983, %v3989
        %v3991 = vrot.slane %v3858, 1
        %v3992 = vsel %vm1091, %v3985, %v3991
        %v3993 = vrot.slane %v3859, 1
        %v3994 = vsel %vm1091, %v3987, %v3993
        %v3995 = vrot.slane %v3860, 1
        %v3996 = vsel %vm1091, %v3989, %v3995
        %v3997 = vrot.slane %v3861, 1
        %v3998 = vsel %vm1091, %v3991, %v3997
        %v3999 = vrot.slane %v3862, 1
        %v4000 = vsel %vm1091, %v3993, %v3999
        %v4001 = vrot.slane %v3863, 1
        %v4002 = vsel %vm1091, %v3995, %v4001
        %v4003 = vrot.slane %v3864, 1
        %v4004 = vsel %vm1091, %v3997, %v4003
        %v4005 = vrot.slane %v3865, 1
        %v4006 = vsel %vm1091, %v3999, %v4005
        %v4055 = vsel %vm1091, %v4001, 0.0
        %v4056 = vsel %vm1091, %v4003, 0.0
        %v4057 = vsel %vm1091, %v4005, 0.0
        %v4058 = vmax.f32 %v3818, %v3916
        %v4059 = vmax.f32 %v3819, %v3919
        %v4060 = vmax.f32 %v3820, %v3922
        %v4061 = vmax.f32 %v3821, %v3924
        %v4062 = vmax.f32 %v3822, %v3926
        %v4063 = vmax.f32 %v3823, %v3928
        %v4064 = vmax.f32 %v3824, %v3930
        %v4065 = vmax.f32 %v3825, %v3932
        %v4066 = vmax.f32 %v3826, %v3934
        %v4067 = vmax.f32 %v3827, %v3936
        %v4068 = vmax.f32 %v3828, %v3938
        %v4069 = vmax.f32 %v3829, %v3940
        %v4070 = vmax.f32 %v3830, %v3942
        %v4071 = vmax.f32 %v3831, %v3944
        %v4072 = vmax.f32 %v3832, %v3946
        %v4073 = vmax.f32 %v3833, %v3948
        %v4074 = vmax.f32 %v3834, %v3950
        %v4075 = vmax.f32 %v3835, %v3952
        %v4076 = vmax.f32 %v3836, %v3954
        %v4077 = vmax.f32 %v3837, %v3956
        %v4078 = vmax.f32 %v3838, %v3958
        %v4079 = vmax.f32 %v3839, %v3960
        %v4080 = vmax.f32 %v3840, %v3962
        %v4081 = vmax.f32 %v3841, %v3964
        %v4082 = vmax.f32 %v3842, %v3966
        %v4083 = vmax.f32 %v3843, %v3968
        %v4084 = vmax.f32 %v3844, %v3970
        %v4085 = vmax.f32 %v3845, %v3972
        %v4086 = vmax.f32 %v3846, %v3974
        %v4087 = vmax.f32 %v3847, %v3976
        %v4088 = vmax.f32 %v3848, %v3978
        %v4089 = vmax.f32 %v3849, %v3980
        %v4090 = vmax.f32 %v3850, %v3982
        %v4091 = vmax.f32 %v3851, %v3984
        %v4092 = vmax.f32 %v3852, %v3986
        %v4093 = vmax.f32 %v3853, %v3988
        %v4094 = vmax.f32 %v3854, %v3990
        %v4095 = vmax.f32 %v3855, %v3992
        %v4096 = vmax.f32 %v3856, %v3994
        %v4097 = vmax.f32 %v3857, %v3996
        %v4098 = vmax.f32 %v3858, %v3998
        %v4099 = vmax.f32 %v3859, %v4000
        %v4100 = vmax.f32 %v3860, %v4002
        %v4101 = vmax.f32 %v3861, %v4004
        %v4102 = vmax.f32 %v3862, %v4006
        %v4103 = vmax.f32 %v3863, %v4055
        %v4104 = vmax.f32 %v3864, %v4056
        %v4105 = vmax.f32 %v3865, %v4057
        %v4106 = vld [vmem:[%s3] sm:$0xff]
        %v4107 = vld [vmem:[%s3 + $0x8] sm:$0xff]
        %v4108 = vld [vmem:[%s3 + $0x10] sm:$0xff]
        %v4109 = vld [vmem:[%s3 + $0x18] sm:$0xff]
        %v4110 = vld [vmem:[%s3 + $0x20] sm:$0xff]
        %v4111 = vld [vmem:[%s3 + $0x28] sm:$0xff]
        %v4112 = vld [vmem:[%s3 + $0x30] sm:$0xff]
        %v4113 = vld [vmem:[%s3 + $0x38] sm:$0xff]
        %4114 = vmatpush.msra.mxu0 %v4103
        %4115 = vmatpush.msra.mxu0 %v4100
        %4116 = vmatpush.msra.mxu0 %v4097
        %4117 = vmatpush.msra.mxu0 %v4094
        %4118 = vmatpush.msra.mxu0 %v4091
        %4119 = vmatpush.msra.mxu0 %v4088
        %4120 = vmatpush.msra.mxu0 %v4085
        %4121 = vmatpush.msra.mxu0 %v4082
        %4122 = vmatpush.msra.mxu0 %v4079
        %4123 = vmatpush.msra.mxu0 %v4076
        %4124 = vmatpush.msra.mxu0 %v4073
        %4125 = vmatpush.msra.mxu0 %v4070
        %4126 = vmatpush.msra.mxu0 %v4067
        %4127 = vmatpush.msra.mxu0 %v4064
        %4128 = vmatpush.msra.mxu0 %v4061
        %4129 = vmatpush.msra.mxu0 %v4058
        %4130 = vmatmul.f32.gmra.mxu0 %v4106
        %v4131 = vpop.f32.mrf.mxu0
        %v4132 = vadd.f32 0.0, %v4131
        %4133 = vmatmul.f32.gmra.mxu0 %v4107
        %v4134 = vpop.f32.mrf.mxu0
        %v4135 = vadd.f32 0.0, %v4134
        %4136 = vmatmul.f32.gmra.mxu0 %v4108
        %v4137 = vpop.f32.mrf.mxu0
        %v4138 = vadd.f32 0.0, %v4137
        %4139 = vmatmul.f32.gmra.mxu0 %v4109
        %v4140 = vpop.f32.mrf.mxu0
        %v4141 = vadd.f32 0.0, %v4140
        %4142 = vmatmul.f32.gmra.mxu0 %v4110
        %v4143 = vpop.f32.mrf.mxu0
        %v4144 = vadd.f32 0.0, %v4143
        %4145 = vmatmul.f32.gmra.mxu0 %v4111
        %v4146 = vpop.f32.mrf.mxu0
        %v4147 = vadd.f32 0.0, %v4146
        %4148 = vmatmul.f32.gmra.mxu0 %v4112
        %v4149 = vpop.f32.mrf.mxu0
        %v4150 = vadd.f32 0.0, %v4149
        %4151 = vmatmul.f32.gmra.mxu0 %v4113
        %v4152 = vpop.f32.mrf.mxu0
        %v4153 = vadd.f32 0.0, %v4152
        %4154 = vdwg.mxu0
        %4155 = vmatpush.msra.mxu0 %v4104
        %4156 = vmatpush.msra.mxu0 %v4101
        %4157 = vmatpush.msra.mxu0 %v4098
        %4158 = vmatpush.msra.mxu0 %v4095
        %4159 = vmatpush.msra.mxu0 %v4092
        %4160 = vmatpush.msra.mxu0 %v4089
        %4161 = vmatpush.msra.mxu0 %v4086
        %4162 = vmatpush.msra.mxu0 %v4083
        %4163 = vmatpush.msra.mxu0 %v4080
        %4164 = vmatpush.msra.mxu0 %v4077
        %4165 = vmatpush.msra.mxu0 %v4074
        %4166 = vmatpush.msra.mxu0 %v4071
        %4167 = vmatpush.msra.mxu0 %v4068
        %4168 = vmatpush.msra.mxu0 %v4065
        %4169 = vmatpush.msra.mxu0 %v4062
        %4170 = vmatpush.msra.mxu0 %v4059
        %4171 = vmatmul.f32.gmra.mxu0 %v4106
        %v4172 = vpop.f32.mrf.mxu0
        %v4173 = vadd.f32 0.0, %v4172
        %4174 = vmatmul.f32.gmra.mxu0 %v4107
        %v4175 = vpop.f32.mrf.mxu0
        %v4176 = vadd.f32 0.0, %v4175
        %4177 = vmatmul.f32.gmra.mxu0 %v4108
        %v4178 = vpop.f32.mrf.mxu0
        %v4179 = vadd.f32 0.0, %v4178
        %4180 = vmatmul.f32.gmra.mxu0 %v4109
        %v4181 = vpop.f32.mrf.mxu0
        %v4182 = vadd.f32 0.0, %v4181
        %4183 = vmatmul.f32.gmra.mxu0 %v4110
        %v4184 = vpop.f32.mrf.mxu0
        %v4185 = vadd.f32 0.0, %v4184
        %4186 = vmatmul.f32.gmra.mxu0 %v4111
        %v4187 = vpop.f32.mrf.mxu0
        %v4188 = vadd.f32 0.0, %v4187
        %4189 = vmatmul.f32.gmra.mxu0 %v4112
        %v4190 = vpop.f32.mrf.mxu0
        %v4191 = vadd.f32 0.0, %v4190
        %4192 = vmatmul.f32.gmra.mxu0 %v4113
        %v4193 = vpop.f32.mrf.mxu0
        %v4194 = vadd.f32 0.0, %v4193
        %4195 = vdwg.mxu0
        %4196 = vmatpush.msra.mxu0 %v4105
        %4197 = vmatpush.msra.mxu0 %v4102
        %4198 = vmatpush.msra.mxu0 %v4099
        %4199 = vmatpush.msra.mxu0 %v4096
        %4200 = vmatpush.msra.mxu0 %v4093
        %4201 = vmatpush.msra.mxu0 %v4090
        %4202 = vmatpush.msra.mxu0 %v4087
        %4203 = vmatpush.msra.mxu0 %v4084
        %4204 = vmatpush.msra.mxu0 %v4081
        %4205 = vmatpush.msra.mxu0 %v4078
        %4206 = vmatpush.msra.mxu0 %v4075
        %4207 = vmatpush.msra.mxu0 %v4072
        %4208 = vmatpush.msra.mxu0 %v4069
        %4209 = vmatpush.msra.mxu0 %v4066
        %4210 = vmatpush.msra.mxu0 %v4063
        %4211 = vmatpush.msra.mxu0 %v4060
        %4212 = vmatmul.f32.gmra.mxu0 %v4106
        %v4213 = vpop.f32.mrf.mxu0
        %v4214 = vadd.f32 0.0, %v4213
        %4215 = vmatmul.f32.gmra.mxu0 %v4107
        %v4216 = vpop.f32.mrf.mxu0
        %v4217 = vadd.f32 0.0, %v4216
        %4218 = vmatmul.f32.gmra.mxu0 %v4108
        %v4219 = vpop.f32.mrf.mxu0
        %v4220 = vadd.f32 0.0, %v4219
        %4221 = vmatmul.f32.gmra.mxu0 %v4109
        %v4222 = vpop.f32.mrf.mxu0
        %v4223 = vadd.f32 0.0, %v4222
        %4224 = vmatmul.f32.gmra.mxu0 %v4110
        %v4225 = vpop.f32.mrf.mxu0
        %v4226 = vadd.f32 0.0, %v4225
        %4227 = vmatmul.f32.gmra.mxu0 %v4111
        %v4228 = vpop.f32.mrf.mxu0
        %v4229 = vadd.f32 0.0, %v4228
        %4230 = vmatmul.f32.gmra.mxu0 %v4112
        %v4231 = vpop.f32.mrf.mxu0
        %v4232 = vadd.f32 0.0, %v4231
        %4233 = vmatmul.f32.gmra.mxu0 %v4113
        %v4234 = vpop.f32.mrf.mxu0
        %v4235 = vadd.f32 0.0, %v4234
        %4236 = vdwg.mxu0
        %v4237 = vld [vmem:[%s4] sm:$0xff]
        %v4238 = vld [vmem:[%s4 + $0x8] sm:$0xff]
        %v4239 = vld [vmem:[%s4 + $0x10] sm:$0xff]
        %v4240 = vld [vmem:[%s4 + $0x18] sm:$0xff]
        %v4241 = vld [vmem:[%s4 + $0x20] sm:$0xff]
        %v4242 = vld [vmem:[%s4 + $0x28] sm:$0xff]
        %v4243 = vld [vmem:[%s4 + $0x30] sm:$0xff]
        %v4244 = vld [vmem:[%s4 + $0x38] sm:$0xff]
        %v4245 = vld [vmem:[%s4 + $0x40] sm:$0xff]
        %v4246 = vld [vmem:[%s4 + $0x48] sm:$0xff]
        %v4247 = vld [vmem:[%s4 + $0x50] sm:$0xff]
        %v4248 = vld [vmem:[%s4 + $0x58] sm:$0xff]
        %v4249 = vld [vmem:[%s4 + $0x60] sm:$0xff]
        %v4250 = vld [vmem:[%s4 + $0x68] sm:$0xff]
        %v4251 = vld [vmem:[%s4 + $0x70] sm:$0xff]
        %v4252 = vld [vmem:[%s4 + $0x78] sm:$0xff]
        %v4253 = vld [vmem:[%s4 + $0x80] sm:$0xff]
        %v4254 = vld [vmem:[%s4 + $0x88] sm:$0xff]
        %v4255 = vld [vmem:[%s4 + $0x90] sm:$0xff]
        %v4256 = vld [vmem:[%s4 + $0x98] sm:$0xff]
        %v4257 = vld [vmem:[%s4 + $0xa0] sm:$0xff]
        %v4258 = vld [vmem:[%s4 + $0xa8] sm:$0xff]
        %v4259 = vld [vmem:[%s4 + $0xb0] sm:$0xff]
        %v4260 = vld [vmem:[%s4 + $0xb8] sm:$0xff]
        %v4261 = vld [vmem:[%s4 + $0xc0] sm:$0xff]
        %v4262 = vld [vmem:[%s4 + $0xc8] sm:$0xff]
        %v4263 = vld [vmem:[%s4 + $0xd0] sm:$0xff]
        %v4264 = vld [vmem:[%s4 + $0xd8] sm:$0xff]
        %v4265 = vld [vmem:[%s4 + $0xe0] sm:$0xff]
        %v4266 = vld [vmem:[%s4 + $0xe8] sm:$0xff]
        %v4267 = vld [vmem:[%s4 + $0xf0] sm:$0xff]
        %v4268 = vld [vmem:[%s4 + $0xf8] sm:$0xff]
        %v4269 = vld [vmem:[%s4 + $0x100] sm:$0xff]
        %v4270 = vld [vmem:[%s4 + $0x108] sm:$0xff]
        %v4271 = vld [vmem:[%s4 + $0x110] sm:$0xff]
        %v4272 = vld [vmem:[%s4 + $0x118] sm:$0xff]
        %v4273 = vld [vmem:[%s4 + $0x120] sm:$0xff]
        %v4274 = vld [vmem:[%s4 + $0x128] sm:$0xff]
        %v4275 = vld [vmem:[%s4 + $0x130] sm:$0xff]
        %v4276 = vld [vmem:[%s4 + $0x138] sm:$0xff]
        %v4277 = vld [vmem:[%s4 + $0x140] sm:$0xff]
        %v4278 = vld [vmem:[%s4 + $0x148] sm:$0xff]
        %v4279 = vld [vmem:[%s4 + $0x150] sm:$0xff]
        %v4280 = vld [vmem:[%s4 + $0x158] sm:$0xff]
        %v4281 = vld [vmem:[%s4 + $0x160] sm:$0xff]
        %v4282 = vld [vmem:[%s4 + $0x168] sm:$0xff]
        %v4283 = vld [vmem:[%s4 + $0x170] sm:$0xff]
        %v4284 = vld [vmem:[%s4 + $0x178] sm:$0xff]
        %v4285 = vld [vmem:[%s4 + $0x180] sm:$0xff]
        %v4286 = vld [vmem:[%s4 + $0x188] sm:$0xff]
        %v4287 = vld [vmem:[%s4 + $0x190] sm:$0xff]
        %v4288 = vld [vmem:[%s4 + $0x198] sm:$0xff]
        %v4289 = vld [vmem:[%s4 + $0x1a0] sm:$0xff]
        %v4290 = vld [vmem:[%s4 + $0x1a8] sm:$0xff]
        %v4291 = vld [vmem:[%s4 + $0x1b0] sm:$0xff]
        %v4292 = vld [vmem:[%s4 + $0x1b8] sm:$0xff]
        %v4293 = vld [vmem:[%s4 + $0x1c0] sm:$0xff]
        %v4294 = vld [vmem:[%s4 + $0x1c8] sm:$0xff]
        %v4295 = vld [vmem:[%s4 + $0x1d0] sm:$0xff]
        %v4296 = vld [vmem:[%s4 + $0x1d8] sm:$0xff]
        %v4297 = vld [vmem:[%s4 + $0x1e0] sm:$0xff]
        %v4298 = vld [vmem:[%s4 + $0x1e8] sm:$0xff]
        %v4299 = vld [vmem:[%s4 + $0x1f0] sm:$0xff]
        %v4300 = vld [vmem:[%s4 + $0x1f8] sm:$0xff]
        %v4301 = vld [vmem:[%s4 + $0x200] sm:$0xff]
        %v4302 = vld [vmem:[%s4 + $0x208] sm:$0xff]
        %v4303 = vld [vmem:[%s4 + $0x210] sm:$0xff]
        %v4304 = vld [vmem:[%s4 + $0x218] sm:$0xff]
        %v4305 = vld [vmem:[%s4 + $0x220] sm:$0xff]
        %v4306 = vld [vmem:[%s4 + $0x228] sm:$0xff]
        %v4307 = vld [vmem:[%s4 + $0x230] sm:$0xff]
        %v4308 = vld [vmem:[%s4 + $0x238] sm:$0xff]
        %v4309 = vld [vmem:[%s4 + $0x240] sm:$0xff]
        %v4310 = vld [vmem:[%s4 + $0x248] sm:$0xff]
        %v4311 = vld [vmem:[%s4 + $0x250] sm:$0xff]
        %v4312 = vld [vmem:[%s4 + $0x258] sm:$0xff]
        %v4313 = vld [vmem:[%s4 + $0x260] sm:$0xff]
        %v4314 = vld [vmem:[%s4 + $0x268] sm:$0xff]
        %v4315 = vld [vmem:[%s4 + $0x270] sm:$0xff]
        %v4316 = vld [vmem:[%s4 + $0x278] sm:$0xff]
        %v4317 = vld [vmem:[%s4 + $0x280] sm:$0xff]
        %v4318 = vld [vmem:[%s4 + $0x288] sm:$0xff]
        %v4319 = vld [vmem:[%s4 + $0x290] sm:$0xff]
        %v4320 = vld [vmem:[%s4 + $0x298] sm:$0xff]
        %v4321 = vld [vmem:[%s4 + $0x2a0] sm:$0xff]
        %v4322 = vld [vmem:[%s4 + $0x2a8] sm:$0xff]
        %v4323 = vld [vmem:[%s4 + $0x2b0] sm:$0xff]
        %v4324 = vld [vmem:[%s4 + $0x2b8] sm:$0xff]
        %v4325 = vld [vmem:[%s4 + $0x2c0] sm:$0xff]
        %v4326 = vld [vmem:[%s4 + $0x2c8] sm:$0xff]
        %v4327 = vld [vmem:[%s4 + $0x2d0] sm:$0xff]
        %v4328 = vld [vmem:[%s4 + $0x2d8] sm:$0xff]
        %v4329 = vld [vmem:[%s4 + $0x2e0] sm:$0xff]
        %v4330 = vld [vmem:[%s4 + $0x2e8] sm:$0xff]
        %v4331 = vld [vmem:[%s4 + $0x2f0] sm:$0xff]
        %v4332 = vld [vmem:[%s4 + $0x2f8] sm:$0xff]
        %4333 = vmatpush.msra.mxu0 %v4267
        %4334 = vmatpush.msra.mxu0 %v4265
        %4335 = vmatpush.msra.mxu0 %v4263
        %4336 = vmatpush.msra.mxu0 %v4261
        %4337 = vmatpush.msra.mxu0 %v4259
        %4338 = vmatpush.msra.mxu0 %v4257
        %4339 = vmatpush.msra.mxu0 %v4255
        %4340 = vmatpush.msra.mxu0 %v4253
        %4341 = vmatpush.msra.mxu0 %v4251
        %4342 = vmatpush.msra.mxu0 %v4249
        %4343 = vmatpush.msra.mxu0 %v4247
        %4344 = vmatpush.msra.mxu0 %v4245
        %4345 = vmatpush.msra.mxu0 %v4243
        %4346 = vmatpush.msra.mxu0 %v4241
        %4347 = vmatpush.msra.mxu0 %v4239
        %4348 = vmatpush.msra.mxu0 %v4237
        %4349 = vmatmul.f32.gmra.mxu0 %v4132
        %v4350 = vpop.f32.mrf.mxu0
        %v4351 = vadd.f32 0.0, %v4350
        %4352 = vmatmul.f32.gmra.mxu0 %v4135
        %v4353 = vpop.f32.mrf.mxu0
        %v4354 = vadd.f32 0.0, %v4353
        %4355 = vmatmul.f32.gmra.mxu0 %v4138
        %v4356 = vpop.f32.mrf.mxu0
        %v4357 = vadd.f32 0.0, %v4356
        %4358 = vmatmul.f32.gmra.mxu0 %v4141
        %v4359 = vpop.f32.mrf.mxu0
        %v4360 = vadd.f32 0.0, %v4359
        %4361 = vmatmul.f32.gmra.mxu0 %v4144
        %v4362 = vpop.f32.mrf.mxu0
        %v4363 = vadd.f32 0.0, %v4362
        %4364 = vmatmul.f32.gmra.mxu0 %v4147
        %v4365 = vpop.f32.mrf.mxu0
        %v4366 = vadd.f32 0.0, %v4365
        %4367 = vmatmul.f32.gmra.mxu0 %v4150
        %v4368 = vpop.f32.mrf.mxu0
        %v4369 = vadd.f32 0.0, %v4368
        %4370 = vmatmul.f32.gmra.mxu0 %v4153
        %v4371 = vpop.f32.mrf.mxu0
        %v4372 = vadd.f32 0.0, %v4371
        %4373 = vdwg.mxu0
        %4374 = vmatpush.msra.mxu0 %v4299
        %4375 = vmatpush.msra.mxu0 %v4297
        %4376 = vmatpush.msra.mxu0 %v4295
        %4377 = vmatpush.msra.mxu0 %v4293
        %4378 = vmatpush.msra.mxu0 %v4291
        %4379 = vmatpush.msra.mxu0 %v4289
        %4380 = vmatpush.msra.mxu0 %v4287
        %4381 = vmatpush.msra.mxu0 %v4285
        %4382 = vmatpush.msra.mxu0 %v4283
        %4383 = vmatpush.msra.mxu0 %v4281
        %4384 = vmatpush.msra.mxu0 %v4279
        %4385 = vmatpush.msra.mxu0 %v4277
        %4386 = vmatpush.msra.mxu0 %v4275
        %4387 = vmatpush.msra.mxu0 %v4273
        %4388 = vmatpush.msra.mxu0 %v4271
        %4389 = vmatpush.msra.mxu0 %v4269
        %4390 = vmatmul.f32.gmra.mxu0 %v4173
        %v4391 = vpop.f32.mrf.mxu0
        %v4392 = vadd.f32 %v4351, %v4391
        %4393 = vmatmul.f32.gmra.mxu0 %v4176
        %v4394 = vpop.f32.mrf.mxu0
        %v4395 = vadd.f32 %v4354, %v4394
        %4396 = vmatmul.f32.gmra.mxu0 %v4179
        %v4397 = vpop.f32.mrf.mxu0
        %v4398 = vadd.f32 %v4357, %v4397
        %4399 = vmatmul.f32.gmra.mxu0 %v4182
        %v4400 = vpop.f32.mrf.mxu0
        %v4401 = vadd.f32 %v4360, %v4400
        %4402 = vmatmul.f32.gmra.mxu0 %v4185
        %v4403 = vpop.f32.mrf.mxu0
        %v4404 = vadd.f32 %v4363, %v4403
        %4405 = vmatmul.f32.gmra.mxu0 %v4188
        %v4406 = vpop.f32.mrf.mxu0
        %v4407 = vadd.f32 %v4366, %v4406
        %4408 = vmatmul.f32.gmra.mxu0 %v4191
        %v4409 = vpop.f32.mrf.mxu0
        %v4410 = vadd.f32 %v4369, %v4409
        %4411 = vmatmul.f32.gmra.mxu0 %v4194
        %v4412 = vpop.f32.mrf.mxu0
        %v4413 = vadd.f32 %v4372, %v4412
        %4414 = vdwg.mxu0
        %4415 = vmatpush.msra.mxu0 %v4331
        %4416 = vmatpush.msra.mxu0 %v4329
        %4417 = vmatpush.msra.mxu0 %v4327
        %4418 = vmatpush.msra.mxu0 %v4325
        %4419 = vmatpush.msra.mxu0 %v4323
        %4420 = vmatpush.msra.mxu0 %v4321
        %4421 = vmatpush.msra.mxu0 %v4319
        %4422 = vmatpush.msra.mxu0 %v4317
        %4423 = vmatpush.msra.mxu0 %v4315
        %4424 = vmatpush.msra.mxu0 %v4313
        %4425 = vmatpush.msra.mxu0 %v4311
        %4426 = vmatpush.msra.mxu0 %v4309
        %4427 = vmatpush.msra.mxu0 %v4307
        %4428 = vmatpush.msra.mxu0 %v4305
        %4429 = vmatpush.msra.mxu0 %v4303
        %4430 = vmatpush.msra.mxu0 %v4301
        %4431 = vmatmul.f32.gmra.mxu0 %v4214
        %v4432 = vpop.f32.mrf.mxu0
        %v4433 = vadd.f32 %v4392, %v4432
        %4434 = vmatmul.f32.gmra.mxu0 %v4217
        %v4435 = vpop.f32.mrf.mxu0
        %v4436 = vadd.f32 %v4395, %v4435
        %4437 = vmatmul.f32.gmra.mxu0 %v4220
        %v4438 = vpop.f32.mrf.mxu0
        %v4439 = vadd.f32 %v4398, %v4438
        %4440 = vmatmul.f32.gmra.mxu0 %v4223
        %v4441 = vpop.f32.mrf.mxu0
        %v4442 = vadd.f32 %v4401, %v4441
        %4443 = vmatmul.f32.gmra.mxu0 %v4226
        %v4444 = vpop.f32.mrf.mxu0
        %v4445 = vadd.f32 %v4404, %v4444
        %4446 = vmatmul.f32.gmra.mxu0 %v4229
        %v4447 = vpop.f32.mrf.mxu0
        %v4448 = vadd.f32 %v4407, %v4447
        %4449 = vmatmul.f32.gmra.mxu0 %v4232
        %v4450 = vpop.f32.mrf.mxu0
        %v4451 = vadd.f32 %v4410, %v4450
        %4452 = vmatmul.f32.gmra.mxu0 %v4235
        %v4453 = vpop.f32.mrf.mxu0
        %v4454 = vadd.f32 %v4413, %v4453
        %4455 = vdwg.mxu0
        %4456 = vmatpush.msra.mxu0 %v4268
        %4457 = vmatpush.msra.mxu0 %v4266
        %4458 = vmatpush.msra.mxu0 %v4264
        %4459 = vmatpush.msra.mxu0 %v4262
        %4460 = vmatpush.msra.mxu0 %v4260
        %4461 = vmatpush.msra.mxu0 %v4258
        %4462 = vmatpush.msra.mxu0 %v4256
        %4463 = vmatpush.msra.mxu0 %v4254
        %4464 = vmatpush.msra.mxu0 %v4252
        %4465 = vmatpush.msra.mxu0 %v4250
        %4466 = vmatpush.msra.mxu0 %v4248
        %4467 = vmatpush.msra.mxu0 %v4246
        %4468 = vmatpush.msra.mxu0 %v4244
        %4469 = vmatpush.msra.mxu0 %v4242
        %4470 = vmatpush.msra.mxu0 %v4240
        %4471 = vmatpush.msra.mxu0 %v4238
        %4472 = vmatmul.f32.gmra.mxu0 %v4132
        %v4473 = vpop.f32.mrf.mxu0
        %v4474 = vadd.f32 0.0, %v4473
        %4475 = vmatmul.f32.gmra.mxu0 %v4135
        %v4476 = vpop.f32.mrf.mxu0
        %v4477 = vadd.f32 0.0, %v4476
        %4478 = vmatmul.f32.gmra.mxu0 %v4138
        %v4479 = vpop.f32.mrf.mxu0
        %v4480 = vadd.f32 0.0, %v4479
        %4481 = vmatmul.f32.gmra.mxu0 %v4141
        %v4482 = vpop.f32.mrf.mxu0
        %v4483 = vadd.f32 0.0, %v4482
        %4484 = vmatmul.f32.gmra.mxu0 %v4144
        %v4485 = vpop.f32.mrf.mxu0
        %v4486 = vadd.f32 0.0, %v4485
        %4487 = vmatmul.f32.gmra.mxu0 %v4147
        %v4488 = vpop.f32.mrf.mxu0
        %v4489 = vadd.f32 0.0, %v4488
        %4490 = vmatmul.f32.gmra.mxu0 %v4150
        %v4491 = vpop.f32.mrf.mxu0
        %v4492 = vadd.f32 0.0, %v4491
        %4493 = vmatmul.f32.gmra.mxu0 %v4153
        %v4494 = vpop.f32.mrf.mxu0
        %v4495 = vadd.f32 0.0, %v4494
        %4496 = vdwg.mxu0
        %4497 = vmatpush.msra.mxu0 %v4300
        %4498 = vmatpush.msra.mxu0 %v4298
        %4499 = vmatpush.msra.mxu0 %v4296
        %4500 = vmatpush.msra.mxu0 %v4294
        %4501 = vmatpush.msra.mxu0 %v4292
        %4502 = vmatpush.msra.mxu0 %v4290
        %4503 = vmatpush.msra.mxu0 %v4288
        %4504 = vmatpush.msra.mxu0 %v4286
        %4505 = vmatpush.msra.mxu0 %v4284
        %4506 = vmatpush.msra.mxu0 %v4282
        %4507 = vmatpush.msra.mxu0 %v4280
        %4508 = vmatpush.msra.mxu0 %v4278
        %4509 = vmatpush.msra.mxu0 %v4276
        %4510 = vmatpush.msra.mxu0 %v4274
        %4511 = vmatpush.msra.mxu0 %v4272
        %4512 = vmatpush.msra.mxu0 %v4270
        %4513 = vmatmul.f32.gmra.mxu0 %v4173
        %v4514 = vpop.f32.mrf.mxu0
        %v4515 = vadd.f32 %v4474, %v4514
        %4516 = vmatmul.f32.gmra.mxu0 %v4176
        %v4517 = vpop.f32.mrf.mxu0
        %v4518 = vadd.f32 %v4477, %v4517
        %4519 = vmatmul.f32.gmra.mxu0 %v4179
        %v4520 = vpop.f32.mrf.mxu0
        %v4521 = vadd.f32 %v4480, %v4520
        %4522 = vmatmul.f32.gmra.mxu0 %v4182
        %v4523 = vpop.f32.mrf.mxu0
        %v4524 = vadd.f32 %v4483, %v4523
        %4525 = vmatmul.f32.gmra.mxu0 %v4185
        %v4526 = vpop.f32.mrf.mxu0
        %v4527 = vadd.f32 %v4486, %v4526
        %4528 = vmatmul.f32.gmra.mxu0 %v4188
        %v4529 = vpop.f32.mrf.mxu0
        %v4530 = vadd.f32 %v4489, %v4529
        %4531 = vmatmul.f32.gmra.mxu0 %v4191
        %v4532 = vpop.f32.mrf.mxu0
        %v4533 = vadd.f32 %v4492, %v4532
        %4534 = vmatmul.f32.gmra.mxu0 %v4194
        %v4535 = vpop.f32.mrf.mxu0
        %v4536 = vadd.f32 %v4495, %v4535
        %4537 = vdwg.mxu0
        %4538 = vmatpush.msra.mxu0 %v4332
        %4539 = vmatpush.msra.mxu0 %v4330
        %4540 = vmatpush.msra.mxu0 %v4328
        %4541 = vmatpush.msra.mxu0 %v4326
        %4542 = vmatpush.msra.mxu0 %v4324
        %4543 = vmatpush.msra.mxu0 %v4322
        %4544 = vmatpush.msra.mxu0 %v4320
        %4545 = vmatpush.msra.mxu0 %v4318
        %4546 = vmatpush.msra.mxu0 %v4316
        %4547 = vmatpush.msra.mxu0 %v4314
        %4548 = vmatpush.msra.mxu0 %v4312
        %4549 = vmatpush.msra.mxu0 %v4310
        %4550 = vmatpush.msra.mxu0 %v4308
        %4551 = vmatpush.msra.mxu0 %v4306
        %4552 = vmatpush.msra.mxu0 %v4304
        %4553 = vmatpush.msra.mxu0 %v4302
        %4554 = vmatmul.f32.gmra.mxu0 %v4214
        %v4555 = vpop.f32.mrf.mxu0
        %v4556 = vadd.f32 %v4515, %v4555
        %4557 = vmatmul.f32.gmra.mxu0 %v4217
        %v4558 = vpop.f32.mrf.mxu0
        %v4559 = vadd.f32 %v4518, %v4558
        %4560 = vmatmul.f32.gmra.mxu0 %v4220
        %v4561 = vpop.f32.mrf.mxu0
        %v4562 = vadd.f32 %v4521, %v4561
        %4563 = vmatmul.f32.gmra.mxu0 %v4223
        %v4564 = vpop.f32.mrf.mxu0
        %v4565 = vadd.f32 %v4524, %v4564
        %4566 = vmatmul.f32.gmra.mxu0 %v4226
        %v4567 = vpop.f32.mrf.mxu0
        %v4568 = vadd.f32 %v4527, %v4567
        %4569 = vmatmul.f32.gmra.mxu0 %v4229
        %v4570 = vpop.f32.mrf.mxu0
        %v4571 = vadd.f32 %v4530, %v4570
        %4572 = vmatmul.f32.gmra.mxu0 %v4232
        %v4573 = vpop.f32.mrf.mxu0
        %v4574 = vadd.f32 %v4533, %v4573
        %4575 = vmatmul.f32.gmra.mxu0 %v4235
        %v4576 = vpop.f32.mrf.mxu0
        %v4577 = vadd.f32 %v4536, %v4576
        %4578 = vdwg.mxu0
        %v4595 = vrot.slane %v4433, 7
        %v4596 = vrot.slane %v4556, 7
        %v4597 = vrot.slane %v4436, 7
        %v4598 = vsel %vm946, %v4595, %v4597
        %v4599 = vrot.slane %v4559, 7
        %v4600 = vsel %vm946, %v4596, %v4599
        %v4601 = vrot.slane %v4439, 7
        %v4602 = vsel %vm946, %v4597, %v4601
        %v4603 = vrot.slane %v4562, 7
        %v4604 = vsel %vm946, %v4599, %v4603
        %v4605 = vrot.slane %v4442, 7
        %v4606 = vsel %vm946, %v4601, %v4605
        %v4607 = vrot.slane %v4565, 7
        %v4608 = vsel %vm946, %v4603, %v4607
        %v4609 = vrot.slane %v4445, 7
        %v4610 = vsel %vm946, %v4605, %v4609
        %v4611 = vrot.slane %v4568, 7
        %v4612 = vsel %vm946, %v4607, %v4611
        %v4613 = vrot.slane %v4448, 7
        %v4614 = vsel %vm946, %v4609, %v4613
        %v4615 = vrot.slane %v4571, 7
        %v4616 = vsel %vm946, %v4611, %v4615
        %v4617 = vrot.slane %v4451, 7
        %v4618 = vsel %vm946, %v4613, %v4617
        %v4619 = vrot.slane %v4574, 7
        %v4620 = vsel %vm946, %v4615, %v4619
        %v4621 = vrot.slane %v4454, 7
        %v4622 = vsel %vm946, %v4617, %v4621
        %v4623 = vrot.slane %v4577, 7
        %v4624 = vsel %vm946, %v4619, %v4623
        %v4634 = vsel %vm946, 0.0, %v4595
        %v4635 = vsel %vm946, 0.0, %v4596
        %v4636 = vrot.slane %v4433, 1
        %v4637 = vrot.slane %v4436, 1
        %v4638 = vsel %vm1091, %v4636, %v4637
        %v4639 = vrot.slane %v4556, 1
        %v4640 = vrot.slane %v4559, 1
        %v4641 = vsel %vm1091, %v4639, %v4640
        %v4642 = vrot.slane %v4439, 1
        %v4643 = vsel %vm1091, %v4637, %v4642
        %v4644 = vrot.slane %v4562, 1
        %v4645 = vsel %vm1091, %v4640, %v4644
        %v4646 = vrot.slane %v4442, 1
        %v4647 = vsel %vm1091, %v4642, %v4646
        %v4648 = vrot.slane %v4565, 1
        %v4649 = vsel %vm1091, %v4644, %v4648
        %v4650 = vrot.slane %v4445, 1
        %v4651 = vsel %vm1091, %v4646, %v4650
        %v4652 = vrot.slane %v4568, 1
        %v4653 = vsel %vm1091, %v4648, %v4652
        %v4654 = vrot.slane %v4448, 1
        %v4655 = vsel %vm1091, %v4650, %v4654
        %v4656 = vrot.slane %v4571, 1
        %v4657 = vsel %vm1091, %v4652, %v4656
        %v4658 = vrot.slane %v4451, 1
        %v4659 = vsel %vm1091, %v4654, %v4658
        %v4660 = vrot.slane %v4574, 1
        %v4661 = vsel %vm1091, %v4656, %v4660
        %v4662 = vrot.slane %v4454, 1
        %v4663 = vsel %vm1091, %v4658, %v4662
        %v4664 = vrot.slane %v4577, 1
        %v4665 = vsel %vm1091, %v4660, %v4664
        %v4675 = vsel %vm1091, %v4662, 0.0
        %v4676 = vsel %vm1091, %v4664, 0.0
        %v4677 = vld [vmem:[#allocation5] sm:$0xff]
        %v4678 = vld [vmem:[#allocation5 + $0x8] sm:$0xff]
        %v4679 = vld [vmem:[#allocation5 + $0x10] sm:$0xff]
        %v4680 = vld [vmem:[#allocation5 + $0x18] sm:$0xff]
        %v4681 = vld [vmem:[#allocation5 + $0x20] sm:$0xff]
        %v4682 = vld [vmem:[#allocation5 + $0x28] sm:$0xff]
        %v4683 = vld [vmem:[#allocation5 + $0x30] sm:$0xff]
        %v4684 = vld [vmem:[#allocation5 + $0x38] sm:$0xff]
        %v4685 = vld [vmem:[#allocation5 + $0x40] sm:$0xff]
        %v4686 = vld [vmem:[#allocation5 + $0x48] sm:$0xff]
        %v4687 = vld [vmem:[#allocation5 + $0x50] sm:$0xff]
        %v4688 = vld [vmem:[#allocation5 + $0x58] sm:$0xff]
        %v4689 = vld [vmem:[#allocation5 + $0x60] sm:$0xff]
        %v4690 = vld [vmem:[#allocation5 + $0x68] sm:$0xff]
        %v4691 = vld [vmem:[#allocation5 + $0x70] sm:$0xff]
        %v4692 = vld [vmem:[#allocation5 + $0x78] sm:$0xff]
        %v4693 = vld [vmem:[#allocation5 + $0x80] sm:$0xff]
        %v4694 = vld [vmem:[#allocation5 + $0x88] sm:$0xff]
        %v4695 = vld [vmem:[#allocation5 + $0x90] sm:$0xff]
        %v4696 = vld [vmem:[#allocation5 + $0x98] sm:$0xff]
        %v4697 = vld [vmem:[#allocation5 + $0xa0] sm:$0xff]
        %v4698 = vld [vmem:[#allocation5 + $0xa8] sm:$0xff]
        %v4699 = vld [vmem:[#allocation5 + $0xb0] sm:$0xff]
        %v4700 = vld [vmem:[#allocation5 + $0xb8] sm:$0xff]
        %v4701 = vld [vmem:[#allocation5 + $0xc0] sm:$0xff]
        %v4702 = vld [vmem:[#allocation5 + $0xc8] sm:$0xff]
        %v4703 = vld [vmem:[#allocation5 + $0xd0] sm:$0xff]
        %v4704 = vld [vmem:[#allocation5 + $0xd8] sm:$0xff]
        %v4705 = vld [vmem:[#allocation5 + $0xe0] sm:$0xff]
        %v4706 = vld [vmem:[#allocation5 + $0xe8] sm:$0xff]
        %v4707 = vld [vmem:[#allocation5 + $0xf0] sm:$0xff]
        %v4708 = vld [vmem:[#allocation5 + $0xf8] sm:$0xff]
        %v4709 = vld [vmem:[#allocation5 + $0x100] sm:$0xff]
        %v4710 = vld [vmem:[#allocation5 + $0x108] sm:$0xff]
        %v4711 = vld [vmem:[#allocation5 + $0x110] sm:$0xff]
        %v4712 = vld [vmem:[#allocation5 + $0x118] sm:$0xff]
        %v4713 = vld [vmem:[#allocation5 + $0x120] sm:$0xff]
        %v4714 = vld [vmem:[#allocation5 + $0x128] sm:$0xff]
        %v4715 = vld [vmem:[#allocation5 + $0x130] sm:$0xff]
        %v4716 = vld [vmem:[#allocation5 + $0x138] sm:$0xff]
        %v4717 = vld [vmem:[#allocation5 + $0x140] sm:$0xff]
        %v4718 = vld [vmem:[#allocation5 + $0x148] sm:$0xff]
        %v4719 = vld [vmem:[#allocation5 + $0x150] sm:$0xff]
        %v4720 = vld [vmem:[#allocation5 + $0x158] sm:$0xff]
        %v4721 = vld [vmem:[#allocation5 + $0x160] sm:$0xff]
        %v4722 = vld [vmem:[#allocation5 + $0x168] sm:$0xff]
        %v4723 = vld [vmem:[#allocation5 + $0x170] sm:$0xff]
        %v4724 = vld [vmem:[#allocation5 + $0x178] sm:$0xff]
        %v4725 = vld [vmem:[#allocation5 + $0x180] sm:$0xff]
        %v4726 = vld [vmem:[#allocation5 + $0x188] sm:$0xff]
        %v4727 = vld [vmem:[#allocation5 + $0x190] sm:$0xff]
        %v4728 = vld [vmem:[#allocation5 + $0x198] sm:$0xff]
        %v4729 = vld [vmem:[#allocation5 + $0x1a0] sm:$0xff]
        %v4730 = vld [vmem:[#allocation5 + $0x1a8] sm:$0xff]
        %v4731 = vld [vmem:[#allocation5 + $0x1b0] sm:$0xff]
        %v4732 = vld [vmem:[#allocation5 + $0x1b8] sm:$0xff]
        %v4733 = vld [vmem:[#allocation5 + $0x1c0] sm:$0xff]
        %v4734 = vld [vmem:[#allocation5 + $0x1c8] sm:$0xff]
        %v4735 = vld [vmem:[#allocation5 + $0x1d0] sm:$0xff]
        %v4736 = vld [vmem:[#allocation5 + $0x1d8] sm:$0xff]
        %v4737 = vld [vmem:[#allocation5 + $0x1e0] sm:$0xff]
        %v4738 = vld [vmem:[#allocation5 + $0x1e8] sm:$0xff]
        %v4739 = vld [vmem:[#allocation5 + $0x1f0] sm:$0xff]
        %v4740 = vld [vmem:[#allocation5 + $0x1f8] sm:$0xff]
        %v4741 = vld [vmem:[#allocation5 + $0x200] sm:$0xff]
        %v4742 = vld [vmem:[#allocation5 + $0x208] sm:$0xff]
        %v4743 = vld [vmem:[#allocation5 + $0x210] sm:$0xff]
        %v4744 = vld [vmem:[#allocation5 + $0x218] sm:$0xff]
        %v4745 = vld [vmem:[#allocation5 + $0x220] sm:$0xff]
        %v4746 = vld [vmem:[#allocation5 + $0x228] sm:$0xff]
        %v4747 = vld [vmem:[#allocation5 + $0x230] sm:$0xff]
        %v4748 = vld [vmem:[#allocation5 + $0x238] sm:$0xff]
        %s4749 = scalar_lea.vmem [#allocation5], 576
        %v4750 = vld [vmem:[%s4749] sm:$0xff]
        %v4751 = vld [vmem:[%s4749 + $0x8] sm:$0xff]
        %v4752 = vld [vmem:[%s4749 + $0x10] sm:$0xff]
        %v4753 = vld [vmem:[%s4749 + $0x18] sm:$0xff]
        %v4754 = vld [vmem:[%s4749 + $0x20] sm:$0xff]
        %v4755 = vld [vmem:[%s4749 + $0x28] sm:$0xff]
        %v4756 = vld [vmem:[%s4749 + $0x30] sm:$0xff]
        %v4757 = vld [vmem:[%s4749 + $0x38] sm:$0xff]
        %v4758 = vld [vmem:[%s4749 + $0x40] sm:$0xff]
        %v4759 = vld [vmem:[%s4749 + $0x48] sm:$0xff]
        %v4760 = vld [vmem:[%s4749 + $0x50] sm:$0xff]
        %v4761 = vld [vmem:[%s4749 + $0x58] sm:$0xff]
        %v4762 = vld [vmem:[%s4749 + $0x60] sm:$0xff]
        %v4763 = vld [vmem:[%s4749 + $0x68] sm:$0xff]
        %v4764 = vld [vmem:[%s4749 + $0x70] sm:$0xff]
        %v4765 = vld [vmem:[%s4749 + $0x78] sm:$0xff]
        %v4766 = vld [vmem:[%s4749 + $0x80] sm:$0xff]
        %v4767 = vld [vmem:[%s4749 + $0x88] sm:$0xff]
        %v4768 = vld [vmem:[%s4749 + $0x90] sm:$0xff]
        %v4769 = vld [vmem:[%s4749 + $0x98] sm:$0xff]
        %v4770 = vld [vmem:[%s4749 + $0xa0] sm:$0xff]
        %v4771 = vld [vmem:[%s4749 + $0xa8] sm:$0xff]
        %v4772 = vld [vmem:[%s4749 + $0xb0] sm:$0xff]
        %v4773 = vld [vmem:[%s4749 + $0xb8] sm:$0xff]
        %v4774 = vld [vmem:[%s4749 + $0xc0] sm:$0xff]
        %v4775 = vld [vmem:[%s4749 + $0xc8] sm:$0xff]
        %v4776 = vld [vmem:[%s4749 + $0xd0] sm:$0xff]
        %v4777 = vld [vmem:[%s4749 + $0xd8] sm:$0xff]
        %v4778 = vld [vmem:[%s4749 + $0xe0] sm:$0xff]
        %v4779 = vld [vmem:[%s4749 + $0xe8] sm:$0xff]
        %v4780 = vld [vmem:[%s4749 + $0xf0] sm:$0xff]
        %v4781 = vld [vmem:[%s4749 + $0xf8] sm:$0xff]
        %v4782 = vld [vmem:[%s4749 + $0x100] sm:$0xff]
        %v4783 = vld [vmem:[%s4749 + $0x108] sm:$0xff]
        %v4784 = vld [vmem:[%s4749 + $0x110] sm:$0xff]
        %v4785 = vld [vmem:[%s4749 + $0x118] sm:$0xff]
        %v4786 = vld [vmem:[%s4749 + $0x120] sm:$0xff]
        %v4787 = vld [vmem:[%s4749 + $0x128] sm:$0xff]
        %v4788 = vld [vmem:[%s4749 + $0x130] sm:$0xff]
        %v4789 = vld [vmem:[%s4749 + $0x138] sm:$0xff]
        %v4790 = vld [vmem:[%s4749 + $0x140] sm:$0xff]
        %v4791 = vld [vmem:[%s4749 + $0x148] sm:$0xff]
        %v4792 = vld [vmem:[%s4749 + $0x150] sm:$0xff]
        %v4793 = vld [vmem:[%s4749 + $0x158] sm:$0xff]
        %v4794 = vld [vmem:[%s4749 + $0x160] sm:$0xff]
        %v4795 = vld [vmem:[%s4749 + $0x168] sm:$0xff]
        %v4796 = vld [vmem:[%s4749 + $0x170] sm:$0xff]
        %v4797 = vld [vmem:[%s4749 + $0x178] sm:$0xff]
        %v4798 = vld [vmem:[%s4749 + $0x180] sm:$0xff]
        %v4799 = vld [vmem:[%s4749 + $0x188] sm:$0xff]
        %v4800 = vld [vmem:[%s4749 + $0x190] sm:$0xff]
        %v4801 = vld [vmem:[%s4749 + $0x198] sm:$0xff]
        %v4802 = vld [vmem:[%s4749 + $0x1a0] sm:$0xff]
        %v4803 = vld [vmem:[%s4749 + $0x1a8] sm:$0xff]
        %v4804 = vld [vmem:[%s4749 + $0x1b0] sm:$0xff]
        %v4805 = vld [vmem:[%s4749 + $0x1b8] sm:$0xff]
        %v4806 = vld [vmem:[%s4749 + $0x1c0] sm:$0xff]
        %v4807 = vld [vmem:[%s4749 + $0x1c8] sm:$0xff]
        %v4808 = vld [vmem:[%s4749 + $0x1d0] sm:$0xff]
        %v4809 = vld [vmem:[%s4749 + $0x1d8] sm:$0xff]
        %v4810 = vld [vmem:[%s4749 + $0x1e0] sm:$0xff]
        %v4811 = vld [vmem:[%s4749 + $0x1e8] sm:$0xff]
        %v4812 = vld [vmem:[%s4749 + $0x1f0] sm:$0xff]
        %v4813 = vld [vmem:[%s4749 + $0x1f8] sm:$0xff]
        %v4814 = vld [vmem:[%s4749 + $0x200] sm:$0xff]
        %v4815 = vld [vmem:[%s4749 + $0x208] sm:$0xff]
        %v4816 = vld [vmem:[%s4749 + $0x210] sm:$0xff]
        %v4817 = vld [vmem:[%s4749 + $0x218] sm:$0xff]
        %v4818 = vld [vmem:[%s4749 + $0x220] sm:$0xff]
        %v4819 = vld [vmem:[%s4749 + $0x228] sm:$0xff]
        %v4820 = vld [vmem:[%s4749 + $0x230] sm:$0xff]
        %v4821 = vld [vmem:[%s4749 + $0x238] sm:$0xff]
        %vm4822 = vcmask 523264
        %v4823 = vsel %vm4822, %v4556, 0
        %v4825 = vsel %vm4822, %v4559, 0
        %v4827 = vsel %vm4822, %v4562, 0
        %v4829 = vsel %vm4822, %v4565, 0
        %v4831 = vsel %vm4822, %v4568, 0
        %v4833 = vsel %vm4822, %v4571, 0
        %v4835 = vsel %vm4822, %v4574, 0
        %v4837 = vsel %vm4822, %v4577, 0
        %4839 = vmatpush.msra.mxu0 %v4795
        %4840 = vmatpush.msra.mxu0 %v4792
        %4841 = vmatpush.msra.mxu0 %v4789
        %4842 = vmatpush.msra.mxu0 %v4786
        %4843 = vmatpush.msra.mxu0 %v4783
        %4844 = vmatpush.msra.mxu0 %v4780
        %4845 = vmatpush.msra.mxu0 %v4777
        %4846 = vmatpush.msra.mxu0 %v4774
        %4847 = vmatpush.msra.mxu0 %v4771
        %4848 = vmatpush.msra.mxu0 %v4768
        %4849 = vmatpush.msra.mxu0 %v4765
        %4850 = vmatpush.msra.mxu0 %v4762
        %4851 = vmatpush.msra.mxu0 %v4759
        %4852 = vmatpush.msra.mxu0 %v4756
        %4853 = vmatpush.msra.mxu0 %v4753
        %4854 = vmatpush.msra.mxu0 %v4750
        %4855 = vmatmul.f32.gmra.mxu0 %v4433
        %v4856 = vpop.f32.mrf.mxu0
        %v4857 = vadd.f32 0.0, %v4856
        %4858 = vmatmul.f32.gmra.mxu0 %v4436
        %v4859 = vpop.f32.mrf.mxu0
        %v4860 = vadd.f32 0.0, %v4859
        %4861 = vmatmul.f32.gmra.mxu0 %v4439
        %v4862 = vpop.f32.mrf.mxu0
        %v4863 = vadd.f32 0.0, %v4862
        %4864 = vmatmul.f32.gmra.mxu0 %v4442
        %v4865 = vpop.f32.mrf.mxu0
        %v4866 = vadd.f32 0.0, %v4865
        %4867 = vmatmul.f32.gmra.mxu0 %v4445
        %v4868 = vpop.f32.mrf.mxu0
        %v4869 = vadd.f32 0.0, %v4868
        %4870 = vmatmul.f32.gmra.mxu0 %v4448
        %v4871 = vpop.f32.mrf.mxu0
        %v4872 = vadd.f32 0.0, %v4871
        %4873 = vmatmul.f32.gmra.mxu0 %v4451
        %v4874 = vpop.f32.mrf.mxu0
        %v4875 = vadd.f32 0.0, %v4874
        %4876 = vmatmul.f32.gmra.mxu0 %v4454
        %v4877 = vpop.f32.mrf.mxu0
        %v4878 = vadd.f32 0.0, %v4877
        %4879 = vdwg.mxu0
        %4880 = vmatpush.msra.mxu0 0.0
        %4881 = vmatpush.msra.mxu0 0.0
        %4882 = vmatpush.msra.mxu0 0.0
        %4883 = vmatpush.msra.mxu0 0.0
        %4884 = vmatpush.msra.mxu0 0.0
        %4885 = vmatpush.msra.mxu0 0.0
        %4886 = vmatpush.msra.mxu0 0.0
        %4887 = vmatpush.msra.mxu0 0.0
        %4888 = vmatpush.msra.mxu0 %v4819
        %4889 = vmatpush.msra.mxu0 %v4816
        %4890 = vmatpush.msra.mxu0 %v4813
        %4891 = vmatpush.msra.mxu0 %v4810
        %4892 = vmatpush.msra.mxu0 %v4807
        %4893 = vmatpush.msra.mxu0 %v4804
        %4894 = vmatpush.msra.mxu0 %v4801
        %4895 = vmatpush.msra.mxu0 %v4798
        %4896 = vmatmul.f32.gmra.mxu0 %v4823
        %v4897 = vpop.f32.mrf.mxu0
        %v4898 = vadd.f32 %v4857, %v4897
        %4899 = vmatmul.f32.gmra.mxu0 %v4825
        %v4900 = vpop.f32.mrf.mxu0
        %v4901 = vadd.f32 %v4860, %v4900
        %4902 = vmatmul.f32.gmra.mxu0 %v4827
        %v4903 = vpop.f32.mrf.mxu0
        %v4904 = vadd.f32 %v4863, %v4903
        %4905 = vmatmul.f32.gmra.mxu0 %v4829
        %v4906 = vpop.f32.mrf.mxu0
        %v4907 = vadd.f32 %v4866, %v4906
        %4908 = vmatmul.f32.gmra.mxu0 %v4831
        %v4909 = vpop.f32.mrf.mxu0
        %v4910 = vadd.f32 %v4869, %v4909
        %4911 = vmatmul.f32.gmra.mxu0 %v4833
        %v4912 = vpop.f32.mrf.mxu0
        %v4913 = vadd.f32 %v4872, %v4912
        %4914 = vmatmul.f32.gmra.mxu0 %v4835
        %v4915 = vpop.f32.mrf.mxu0
        %v4916 = vadd.f32 %v4875, %v4915
        %4917 = vmatmul.f32.gmra.mxu0 %v4837
        %v4918 = vpop.f32.mrf.mxu0
        %v4919 = vadd.f32 %v4878, %v4918
        %4920 = vdwg.mxu0
        %4921 = vmatpush.msra.mxu0 %v4796
        %4922 = vmatpush.msra.mxu0 %v4793
        %4923 = vmatpush.msra.mxu0 %v4790
        %4924 = vmatpush.msra.mxu0 %v4787
        %4925 = vmatpush.msra.mxu0 %v4784
        %4926 = vmatpush.msra.mxu0 %v4781
        %4927 = vmatpush.msra.mxu0 %v4778
        %4928 = vmatpush.msra.mxu0 %v4775
        %4929 = vmatpush.msra.mxu0 %v4772
        %4930 = vmatpush.msra.mxu0 %v4769
        %4931 = vmatpush.msra.mxu0 %v4766
        %4932 = vmatpush.msra.mxu0 %v4763
        %4933 = vmatpush.msra.mxu0 %v4760
        %4934 = vmatpush.msra.mxu0 %v4757
        %4935 = vmatpush.msra.mxu0 %v4754
        %4936 = vmatpush.msra.mxu0 %v4751
        %4937 = vmatmul.f32.gmra.mxu0 %v4433
        %v4938 = vpop.f32.mrf.mxu0
        %v4939 = vadd.f32 0.0, %v4938
        %4940 = vmatmul.f32.gmra.mxu0 %v4436
        %v4941 = vpop.f32.mrf.mxu0
        %v4942 = vadd.f32 0.0, %v4941
        %4943 = vmatmul.f32.gmra.mxu0 %v4439
        %v4944 = vpop.f32.mrf.mxu0
        %v4945 = vadd.f32 0.0, %v4944
        %4946 = vmatmul.f32.gmra.mxu0 %v4442
        %v4947 = vpop.f32.mrf.mxu0
        %v4948 = vadd.f32 0.0, %v4947
        %4949 = vmatmul.f32.gmra.mxu0 %v4445
        %v4950 = vpop.f32.mrf.mxu0
        %v4951 = vadd.f32 0.0, %v4950
        %4952 = vmatmul.f32.gmra.mxu0 %v4448
        %v4953 = vpop.f32.mrf.mxu0
        %v4954 = vadd.f32 0.0, %v4953
        %4955 = vmatmul.f32.gmra.mxu0 %v4451
        %v4956 = vpop.f32.mrf.mxu0
        %v4957 = vadd.f32 0.0, %v4956
        %4958 = vmatmul.f32.gmra.mxu0 %v4454
        %v4959 = vpop.f32.mrf.mxu0
        %v4960 = vadd.f32 0.0, %v4959
        %4961 = vdwg.mxu0
        %4962 = vmatpush.msra.mxu0 0.0
        %4963 = vmatpush.msra.mxu0 0.0
        %4964 = vmatpush.msra.mxu0 0.0
        %4965 = vmatpush.msra.mxu0 0.0
        %4966 = vmatpush.msra.mxu0 0.0
        %4967 = vmatpush.msra.mxu0 0.0
        %4968 = vmatpush.msra.mxu0 0.0
        %4969 = vmatpush.msra.mxu0 0.0
        %4970 = vmatpush.msra.mxu0 %v4820
        %4971 = vmatpush.msra.mxu0 %v4817
        %4972 = vmatpush.msra.mxu0 %v4814
        %4973 = vmatpush.msra.mxu0 %v4811
        %4974 = vmatpush.msra.mxu0 %v4808
        %4975 = vmatpush.msra.mxu0 %v4805
        %4976 = vmatpush.msra.mxu0 %v4802
        %4977 = vmatpush.msra.mxu0 %v4799
        %4978 = vmatmul.f32.gmra.mxu0 %v4823
        %v4979 = vpop.f32.mrf.mxu0
        %v4980 = vadd.f32 %v4939, %v4979
        %4981 = vmatmul.f32.gmra.mxu0 %v4825
        %v4982 = vpop.f32.mrf.mxu0
        %v4983 = vadd.f32 %v4942, %v4982
        %4984 = vmatmul.f32.gmra.mxu0 %v4827
        %v4985 = vpop.f32.mrf.mxu0
        %v4986 = vadd.f32 %v4945, %v4985
        %4987 = vmatmul.f32.gmra.mxu0 %v4829
        %v4988 = vpop.f32.mrf.mxu0
        %v4989 = vadd.f32 %v4948, %v4988
        %4990 = vmatmul.f32.gmra.mxu0 %v4831
        %v4991 = vpop.f32.mrf.mxu0
        %v4992 = vadd.f32 %v4951, %v4991
        %4993 = vmatmul.f32.gmra.mxu0 %v4833
        %v4994 = vpop.f32.mrf.mxu0
        %v4995 = vadd.f32 %v4954, %v4994
        %4996 = vmatmul.f32.gmra.mxu0 %v4835
        %v4997 = vpop.f32.mrf.mxu0
        %v4998 = vadd.f32 %v4957, %v4997
        %4999 = vmatmul.f32.gmra.mxu0 %v4837
        %v5000 = vpop.f32.mrf.mxu0
        %v5001 = vadd.f32 %v4960, %v5000
        %5002 = vdwg.mxu0
        %5003 = vmatpush.msra.mxu0 %v4797
        %5004 = vmatpush.msra.mxu0 %v4794
        %5005 = vmatpush.msra.mxu0 %v4791
        %5006 = vmatpush.msra.mxu0 %v4788
        %5007 = vmatpush.msra.mxu0 %v4785
        %5008 = vmatpush.msra.mxu0 %v4782
        %5009 = vmatpush.msra.mxu0 %v4779
        %5010 = vmatpush.msra.mxu0 %v4776
        %5011 = vmatpush.msra.mxu0 %v4773
        %5012 = vmatpush.msra.mxu0 %v4770
        %5013 = vmatpush.msra.mxu0 %v4767
        %5014 = vmatpush.msra.mxu0 %v4764
        %5015 = vmatpush.msra.mxu0 %v4761
        %5016 = vmatpush.msra.mxu0 %v4758
        %5017 = vmatpush.msra.mxu0 %v4755
        %5018 = vmatpush.msra.mxu0 %v4752
        %5019 = vmatmul.f32.gmra.mxu0 %v4433
        %v5020 = vpop.f32.mrf.mxu0
        %v5021 = vadd.f32 0.0, %v5020
        %5022 = vmatmul.f32.gmra.mxu0 %v4436
        %v5023 = vpop.f32.mrf.mxu0
        %v5024 = vadd.f32 0.0, %v5023
        %5025 = vmatmul.f32.gmra.mxu0 %v4439
        %v5026 = vpop.f32.mrf.mxu0
        %v5027 = vadd.f32 0.0, %v5026
        %5028 = vmatmul.f32.gmra.mxu0 %v4442
        %v5029 = vpop.f32.mrf.mxu0
        %v5030 = vadd.f32 0.0, %v5029
        %5031 = vmatmul.f32.gmra.mxu0 %v4445
        %v5032 = vpop.f32.mrf.mxu0
        %v5033 = vadd.f32 0.0, %v5032
        %5034 = vmatmul.f32.gmra.mxu0 %v4448
        %v5035 = vpop.f32.mrf.mxu0
        %v5036 = vadd.f32 0.0, %v5035
        %5037 = vmatmul.f32.gmra.mxu0 %v4451
        %v5038 = vpop.f32.mrf.mxu0
        %v5039 = vadd.f32 0.0, %v5038
        %5040 = vmatmul.f32.gmra.mxu0 %v4454
        %v5041 = vpop.f32.mrf.mxu0
        %v5042 = vadd.f32 0.0, %v5041
        %5043 = vdwg.mxu0
        %5044 = vmatpush.msra.mxu0 0.0
        %5045 = vmatpush.msra.mxu0 0.0
        %5046 = vmatpush.msra.mxu0 0.0
        %5047 = vmatpush.msra.mxu0 0.0
        %5048 = vmatpush.msra.mxu0 0.0
        %5049 = vmatpush.msra.mxu0 0.0
        %5050 = vmatpush.msra.mxu0 0.0
        %5051 = vmatpush.msra.mxu0 0.0
        %5052 = vmatpush.msra.mxu0 %v4821
        %5053 = vmatpush.msra.mxu0 %v4818
        %5054 = vmatpush.msra.mxu0 %v4815
        %5055 = vmatpush.msra.mxu0 %v4812
        %5056 = vmatpush.msra.mxu0 %v4809
        %5057 = vmatpush.msra.mxu0 %v4806
        %5058 = vmatpush.msra.mxu0 %v4803
        %5059 = vmatpush.msra.mxu0 %v4800
        %5060 = vmatmul.f32.gmra.mxu0 %v4823
        %v5061 = vpop.f32.mrf.mxu0
        %v5062 = vadd.f32 %v5021, %v5061
        %5063 = vmatmul.f32.gmra.mxu0 %v4825
        %v5064 = vpop.f32.mrf.mxu0
        %v5065 = vadd.f32 %v5024, %v5064
        %5066 = vmatmul.f32.gmra.mxu0 %v4827
        %v5067 = vpop.f32.mrf.mxu0
        %v5068 = vadd.f32 %v5027, %v5067
        %5069 = vmatmul.f32.gmra.mxu0 %v4829
        %v5070 = vpop.f32.mrf.mxu0
        %v5071 = vadd.f32 %v5030, %v5070
        %5072 = vmatmul.f32.gmra.mxu0 %v4831
        %v5073 = vpop.f32.mrf.mxu0
        %v5074 = vadd.f32 %v5033, %v5073
        %5075 = vmatmul.f32.gmra.mxu0 %v4833
        %v5076 = vpop.f32.mrf.mxu0
        %v5077 = vadd.f32 %v5036, %v5076
        %5078 = vmatmul.f32.gmra.mxu0 %v4835
        %v5079 = vpop.f32.mrf.mxu0
        %v5080 = vadd.f32 %v5039, %v5079
        %5081 = vmatmul.f32.gmra.mxu0 %v4837
        %v5082 = vpop.f32.mrf.mxu0
        %v5083 = vadd.f32 %v5042, %v5082
        %5084 = vdwg.mxu0
        %v5086 = vsel %vm4822, %v4635, 0
        %v5088 = vsel %vm4822, %v4600, 0
        %v5090 = vsel %vm4822, %v4604, 0
        %v5092 = vsel %vm4822, %v4608, 0
        %v5094 = vsel %vm4822, %v4612, 0
        %v5096 = vsel %vm4822, %v4616, 0
        %v5098 = vsel %vm4822, %v4620, 0
        %v5100 = vsel %vm4822, %v4624, 0
        %5102 = vmatpush.msra.mxu0 %v4722
        %5103 = vmatpush.msra.mxu0 %v4719
        %5104 = vmatpush.msra.mxu0 %v4716
        %5105 = vmatpush.msra.mxu0 %v4713
        %5106 = vmatpush.msra.mxu0 %v4710
        %5107 = vmatpush.msra.mxu0 %v4707
        %5108 = vmatpush.msra.mxu0 %v4704
        %5109 = vmatpush.msra.mxu0 %v4701
        %5110 = vmatpush.msra.mxu0 %v4698
        %5111 = vmatpush.msra.mxu0 %v4695
        %5112 = vmatpush.msra.mxu0 %v4692
        %5113 = vmatpush.msra.mxu0 %v4689
        %5114 = vmatpush.msra.mxu0 %v4686
        %5115 = vmatpush.msra.mxu0 %v4683
        %5116 = vmatpush.msra.mxu0 %v4680
        %5117 = vmatpush.msra.mxu0 %v4677
        %5118 = vmatmul.f32.gmra.mxu0 %v4634
        %v5119 = vpop.f32.mrf.mxu0
        %v5120 = vadd.f32 %v4898, %v5119
        %5121 = vmatmul.f32.gmra.mxu0 %v4598
        %v5122 = vpop.f32.mrf.mxu0
        %v5123 = vadd.f32 %v4901, %v5122
        %5124 = vmatmul.f32.gmra.mxu0 %v4602
        %v5125 = vpop.f32.mrf.mxu0
        %v5126 = vadd.f32 %v4904, %v5125
        %5127 = vmatmul.f32.gmra.mxu0 %v4606
        %v5128 = vpop.f32.mrf.mxu0
        %v5129 = vadd.f32 %v4907, %v5128
        %5130 = vmatmul.f32.gmra.mxu0 %v4610
        %v5131 = vpop.f32.mrf.mxu0
        %v5132 = vadd.f32 %v4910, %v5131
        %5133 = vmatmul.f32.gmra.mxu0 %v4614
        %v5134 = vpop.f32.mrf.mxu0
        %v5135 = vadd.f32 %v4913, %v5134
        %5136 = vmatmul.f32.gmra.mxu0 %v4618
        %v5137 = vpop.f32.mrf.mxu0
        %v5138 = vadd.f32 %v4916, %v5137
        %5139 = vmatmul.f32.gmra.mxu0 %v4622
        %v5140 = vpop.f32.mrf.mxu0
        %v5141 = vadd.f32 %v4919, %v5140
        %5142 = vdwg.mxu0
        %5143 = vmatpush.msra.mxu0 0.0
        %5144 = vmatpush.msra.mxu0 0.0
        %5145 = vmatpush.msra.mxu0 0.0
        %5146 = vmatpush.msra.mxu0 0.0
        %5147 = vmatpush.msra.mxu0 0.0
        %5148 = vmatpush.msra.mxu0 0.0
        %5149 = vmatpush.msra.mxu0 0.0
        %5150 = vmatpush.msra.mxu0 0.0
        %5151 = vmatpush.msra.mxu0 %v4746
        %5152 = vmatpush.msra.mxu0 %v4743
        %5153 = vmatpush.msra.mxu0 %v4740
        %5154 = vmatpush.msra.mxu0 %v4737
        %5155 = vmatpush.msra.mxu0 %v4734
        %5156 = vmatpush.msra.mxu0 %v4731
        %5157 = vmatpush.msra.mxu0 %v4728
        %5158 = vmatpush.msra.mxu0 %v4725
        %5159 = vmatmul.f32.gmra.mxu0 %v5086
        %v5160 = vpop.f32.mrf.mxu0
        %v5161 = vadd.f32 %v5120, %v5160
        %5162 = vmatmul.f32.gmra.mxu0 %v5088
        %v5163 = vpop.f32.mrf.mxu0
        %v5164 = vadd.f32 %v5123, %v5163
        %5165 = vmatmul.f32.gmra.mxu0 %v5090
        %v5166 = vpop.f32.mrf.mxu0
        %v5167 = vadd.f32 %v5126, %v5166
        %5168 = vmatmul.f32.gmra.mxu0 %v5092
        %v5169 = vpop.f32.mrf.mxu0
        %v5170 = vadd.f32 %v5129, %v5169
        %5171 = vmatmul.f32.gmra.mxu0 %v5094
        %v5172 = vpop.f32.mrf.mxu0
        %v5173 = vadd.f32 %v5132, %v5172
        %5174 = vmatmul.f32.gmra.mxu0 %v5096
        %v5175 = vpop.f32.mrf.mxu0
        %v5176 = vadd.f32 %v5135, %v5175
        %5177 = vmatmul.f32.gmra.mxu0 %v5098
        %v5178 = vpop.f32.mrf.mxu0
        %v5179 = vadd.f32 %v5138, %v5178
        %5180 = vmatmul.f32.gmra.mxu0 %v5100
        %v5181 = vpop.f32.mrf.mxu0
        %v5182 = vadd.f32 %v5141, %v5181
        %5183 = vdwg.mxu0
        %5184 = vmatpush.msra.mxu0 %v4723
        %5185 = vmatpush.msra.mxu0 %v4720
        %5186 = vmatpush.msra.mxu0 %v4717
        %5187 = vmatpush.msra.mxu0 %v4714
        %5188 = vmatpush.msra.mxu0 %v4711
        %5189 = vmatpush.msra.mxu0 %v4708
        %5190 = vmatpush.msra.mxu0 %v4705
        %5191 = vmatpush.msra.mxu0 %v4702
        %5192 = vmatpush.msra.mxu0 %v4699
        %5193 = vmatpush.msra.mxu0 %v4696
        %5194 = vmatpush.msra.mxu0 %v4693
        %5195 = vmatpush.msra.mxu0 %v4690
        %5196 = vmatpush.msra.mxu0 %v4687
        %5197 = vmatpush.msra.mxu0 %v4684
        %5198 = vmatpush.msra.mxu0 %v4681
        %5199 = vmatpush.msra.mxu0 %v4678
        %5200 = vmatmul.f32.gmra.mxu0 %v4634
        %v5201 = vpop.f32.mrf.mxu0
        %v5202 = vadd.f32 %v4980, %v5201
        %5203 = vmatmul.f32.gmra.mxu0 %v4598
        %v5204 = vpop.f32.mrf.mxu0
        %v5205 = vadd.f32 %v4983, %v5204
        %5206 = vmatmul.f32.gmra.mxu0 %v4602
        %v5207 = vpop.f32.mrf.mxu0
        %v5208 = vadd.f32 %v4986, %v5207
        %5209 = vmatmul.f32.gmra.mxu0 %v4606
        %v5210 = vpop.f32.mrf.mxu0
        %v5211 = vadd.f32 %v4989, %v5210
        %5212 = vmatmul.f32.gmra.mxu0 %v4610
        %v5213 = vpop.f32.mrf.mxu0
        %v5214 = vadd.f32 %v4992, %v5213
        %5215 = vmatmul.f32.gmra.mxu0 %v4614
        %v5216 = vpop.f32.mrf.mxu0
        %v5217 = vadd.f32 %v4995, %v5216
        %5218 = vmatmul.f32.gmra.mxu0 %v4618
        %v5219 = vpop.f32.mrf.mxu0
        %v5220 = vadd.f32 %v4998, %v5219
        %5221 = vmatmul.f32.gmra.mxu0 %v4622
        %v5222 = vpop.f32.mrf.mxu0
        %v5223 = vadd.f32 %v5001, %v5222
        %5224 = vdwg.mxu0
        %5225 = vmatpush.msra.mxu0 0.0
        %5226 = vmatpush.msra.mxu0 0.0
        %5227 = vmatpush.msra.mxu0 0.0
        %5228 = vmatpush.msra.mxu0 0.0
        %5229 = vmatpush.msra.mxu0 0.0
        %5230 = vmatpush.msra.mxu0 0.0
        %5231 = vmatpush.msra.mxu0 0.0
        %5232 = vmatpush.msra.mxu0 0.0
        %5233 = vmatpush.msra.mxu0 %v4747
        %5234 = vmatpush.msra.mxu0 %v4744
        %5235 = vmatpush.msra.mxu0 %v4741
        %5236 = vmatpush.msra.mxu0 %v4738
        %5237 = vmatpush.msra.mxu0 %v4735
        %5238 = vmatpush.msra.mxu0 %v4732
        %5239 = vmatpush.msra.mxu0 %v4729
        %5240 = vmatpush.msra.mxu0 %v4726
        %5241 = vmatmul.f32.gmra.mxu0 %v5086
        %v5242 = vpop.f32.mrf.mxu0
        %v5243 = vadd.f32 %v5202, %v5242
        %5244 = vmatmul.f32.gmra.mxu0 %v5088
        %v5245 = vpop.f32.mrf.mxu0
        %v5246 = vadd.f32 %v5205, %v5245
        %5247 = vmatmul.f32.gmra.mxu0 %v5090
        %v5248 = vpop.f32.mrf.mxu0
        %v5249 = vadd.f32 %v5208, %v5248
        %5250 = vmatmul.f32.gmra.mxu0 %v5092
        %v5251 = vpop.f32.mrf.mxu0
        %v5252 = vadd.f32 %v5211, %v5251
        %5253 = vmatmul.f32.gmra.mxu0 %v5094
        %v5254 = vpop.f32.mrf.mxu0
        %v5255 = vadd.f32 %v5214, %v5254
        %5256 = vmatmul.f32.gmra.mxu0 %v5096
        %v5257 = vpop.f32.mrf.mxu0
        %v5258 = vadd.f32 %v5217, %v5257
        %5259 = vmatmul.f32.gmra.mxu0 %v5098
        %v5260 = vpop.f32.mrf.mxu0
        %v5261 = vadd.f32 %v5220, %v5260
        %5262 = vmatmul.f32.gmra.mxu0 %v5100
        %v5263 = vpop.f32.mrf.mxu0
        %v5264 = vadd.f32 %v5223, %v5263
        %5265 = vdwg.mxu0
        %5266 = vmatpush.msra.mxu0 %v4724
        %5267 = vmatpush.msra.mxu0 %v4721
        %5268 = vmatpush.msra.mxu0 %v4718
        %5269 = vmatpush.msra.mxu0 %v4715
        %5270 = vmatpush.msra.mxu0 %v4712
        %5271 = vmatpush.msra.mxu0 %v4709
        %5272 = vmatpush.msra.mxu0 %v4706
        %5273 = vmatpush.msra.mxu0 %v4703
        %5274 = vmatpush.msra.mxu0 %v4700
        %5275 = vmatpush.msra.mxu0 %v4697
        %5276 = vmatpush.msra.mxu0 %v4694
        %5277 = vmatpush.msra.mxu0 %v4691
        %5278 = vmatpush.msra.mxu0 %v4688
        %5279 = vmatpush.msra.mxu0 %v4685
        %5280 = vmatpush.msra.mxu0 %v4682
        %5281 = vmatpush.msra.mxu0 %v4679
        %5282 = vmatmul.f32.gmra.mxu0 %v4634
        %v5283 = vpop.f32.mrf.mxu0
        %v5284 = vadd.f32 %v5062, %v5283
        %5285 = vmatmul.f32.gmra.mxu0 %v4598
        %v5286 = vpop.f32.mrf.mxu0
        %v5287 = vadd.f32 %v5065, %v5286
        %5288 = vmatmul.f32.gmra.mxu0 %v4602
        %v5289 = vpop.f32.mrf.mxu0
        %v5290 = vadd.f32 %v5068, %v5289
        %5291 = vmatmul.f32.gmra.mxu0 %v4606
        %v5292 = vpop.f32.mrf.mxu0
        %v5293 = vadd.f32 %v5071, %v5292
        %5294 = vmatmul.f32.gmra.mxu0 %v4610
        %v5295 = vpop.f32.mrf.mxu0
        %v5296 = vadd.f32 %v5074, %v5295
        %5297 = vmatmul.f32.gmra.mxu0 %v4614
        %v5298 = vpop.f32.mrf.mxu0
        %v5299 = vadd.f32 %v5077, %v5298
        %5300 = vmatmul.f32.gmra.mxu0 %v4618
        %v5301 = vpop.f32.mrf.mxu0
        %v5302 = vadd.f32 %v5080, %v5301
        %5303 = vmatmul.f32.gmra.mxu0 %v4622
        %v5304 = vpop.f32.mrf.mxu0
        %v5305 = vadd.f32 %v5083, %v5304
        %5306 = vdwg.mxu0
        %5307 = vmatpush.msra.mxu0 0.0
        %5308 = vmatpush.msra.mxu0 0.0
        %5309 = vmatpush.msra.mxu0 0.0
        %5310 = vmatpush.msra.mxu0 0.0
        %5311 = vmatpush.msra.mxu0 0.0
        %5312 = vmatpush.msra.mxu0 0.0
        %5313 = vmatpush.msra.mxu0 0.0
        %5314 = vmatpush.msra.mxu0 0.0
        %5315 = vmatpush.msra.mxu0 %v4748
        %5316 = vmatpush.msra.mxu0 %v4745
        %5317 = vmatpush.msra.mxu0 %v4742
        %5318 = vmatpush.msra.mxu0 %v4739
        %5319 = vmatpush.msra.mxu0 %v4736
        %5320 = vmatpush.msra.mxu0 %v4733
        %5321 = vmatpush.msra.mxu0 %v4730
        %5322 = vmatpush.msra.mxu0 %v4727
        %5323 = vmatmul.f32.gmra.mxu0 %v5086
        %v5324 = vpop.f32.mrf.mxu0
        %v5325 = vadd.f32 %v5284, %v5324
        %5326 = vmatmul.f32.gmra.mxu0 %v5088
        %v5327 = vpop.f32.mrf.mxu0
        %v5328 = vadd.f32 %v5287, %v5327
        %5329 = vmatmul.f32.gmra.mxu0 %v5090
        %v5330 = vpop.f32.mrf.mxu0
        %v5331 = vadd.f32 %v5290, %v5330
        %5332 = vmatmul.f32.gmra.mxu0 %v5092
        %v5333 = vpop.f32.mrf.mxu0
        %v5334 = vadd.f32 %v5293, %v5333
        %5335 = vmatmul.f32.gmra.mxu0 %v5094
        %v5336 = vpop.f32.mrf.mxu0
        %v5337 = vadd.f32 %v5296, %v5336
        %5338 = vmatmul.f32.gmra.mxu0 %v5096
        %v5339 = vpop.f32.mrf.mxu0
        %v5340 = vadd.f32 %v5299, %v5339
        %5341 = vmatmul.f32.gmra.mxu0 %v5098
        %v5342 = vpop.f32.mrf.mxu0
        %v5343 = vadd.f32 %v5302, %v5342
        %5344 = vmatmul.f32.gmra.mxu0 %v5100
        %v5345 = vpop.f32.mrf.mxu0
        %v5346 = vadd.f32 %v5305, %v5345
        %5347 = vdwg.mxu0
        %s5348 = scalar_lea.vmem [#allocation5], 1152
        %v5349 = vld [vmem:[%s5348] sm:$0xff]
        %v5350 = vld [vmem:[%s5348 + $0x8] sm:$0xff]
        %v5351 = vld [vmem:[%s5348 + $0x10] sm:$0xff]
        %v5352 = vld [vmem:[%s5348 + $0x18] sm:$0xff]
        %v5353 = vld [vmem:[%s5348 + $0x20] sm:$0xff]
        %v5354 = vld [vmem:[%s5348 + $0x28] sm:$0xff]
        %v5355 = vld [vmem:[%s5348 + $0x30] sm:$0xff]
        %v5356 = vld [vmem:[%s5348 + $0x38] sm:$0xff]
        %v5357 = vld [vmem:[%s5348 + $0x40] sm:$0xff]
        %v5358 = vld [vmem:[%s5348 + $0x48] sm:$0xff]
        %v5359 = vld [vmem:[%s5348 + $0x50] sm:$0xff]
        %v5360 = vld [vmem:[%s5348 + $0x58] sm:$0xff]
        %v5361 = vld [vmem:[%s5348 + $0x60] sm:$0xff]
        %v5362 = vld [vmem:[%s5348 + $0x68] sm:$0xff]
        %v5363 = vld [vmem:[%s5348 + $0x70] sm:$0xff]
        %v5364 = vld [vmem:[%s5348 + $0x78] sm:$0xff]
        %v5365 = vld [vmem:[%s5348 + $0x80] sm:$0xff]
        %v5366 = vld [vmem:[%s5348 + $0x88] sm:$0xff]
        %v5367 = vld [vmem:[%s5348 + $0x90] sm:$0xff]
        %v5368 = vld [vmem:[%s5348 + $0x98] sm:$0xff]
        %v5369 = vld [vmem:[%s5348 + $0xa0] sm:$0xff]
        %v5370 = vld [vmem:[%s5348 + $0xa8] sm:$0xff]
        %v5371 = vld [vmem:[%s5348 + $0xb0] sm:$0xff]
        %v5372 = vld [vmem:[%s5348 + $0xb8] sm:$0xff]
        %v5373 = vld [vmem:[%s5348 + $0xc0] sm:$0xff]
        %v5374 = vld [vmem:[%s5348 + $0xc8] sm:$0xff]
        %v5375 = vld [vmem:[%s5348 + $0xd0] sm:$0xff]
        %v5376 = vld [vmem:[%s5348 + $0xd8] sm:$0xff]
        %v5377 = vld [vmem:[%s5348 + $0xe0] sm:$0xff]
        %v5378 = vld [vmem:[%s5348 + $0xe8] sm:$0xff]
        %v5379 = vld [vmem:[%s5348 + $0xf0] sm:$0xff]
        %v5380 = vld [vmem:[%s5348 + $0xf8] sm:$0xff]
        %v5381 = vld [vmem:[%s5348 + $0x100] sm:$0xff]
        %v5382 = vld [vmem:[%s5348 + $0x108] sm:$0xff]
        %v5383 = vld [vmem:[%s5348 + $0x110] sm:$0xff]
        %v5384 = vld [vmem:[%s5348 + $0x118] sm:$0xff]
        %v5385 = vld [vmem:[%s5348 + $0x120] sm:$0xff]
        %v5386 = vld [vmem:[%s5348 + $0x128] sm:$0xff]
        %v5387 = vld [vmem:[%s5348 + $0x130] sm:$0xff]
        %v5388 = vld [vmem:[%s5348 + $0x138] sm:$0xff]
        %v5389 = vld [vmem:[%s5348 + $0x140] sm:$0xff]
        %v5390 = vld [vmem:[%s5348 + $0x148] sm:$0xff]
        %v5391 = vld [vmem:[%s5348 + $0x150] sm:$0xff]
        %v5392 = vld [vmem:[%s5348 + $0x158] sm:$0xff]
        %v5393 = vld [vmem:[%s5348 + $0x160] sm:$0xff]
        %v5394 = vld [vmem:[%s5348 + $0x168] sm:$0xff]
        %v5395 = vld [vmem:[%s5348 + $0x170] sm:$0xff]
        %v5396 = vld [vmem:[%s5348 + $0x178] sm:$0xff]
        %v5397 = vld [vmem:[%s5348 + $0x180] sm:$0xff]
        %v5398 = vld [vmem:[%s5348 + $0x188] sm:$0xff]
        %v5399 = vld [vmem:[%s5348 + $0x190] sm:$0xff]
        %v5400 = vld [vmem:[%s5348 + $0x198] sm:$0xff]
        %v5401 = vld [vmem:[%s5348 + $0x1a0] sm:$0xff]
        %v5402 = vld [vmem:[%s5348 + $0x1a8] sm:$0xff]
        %v5403 = vld [vmem:[%s5348 + $0x1b0] sm:$0xff]
        %v5404 = vld [vmem:[%s5348 + $0x1b8] sm:$0xff]
        %v5405 = vld [vmem:[%s5348 + $0x1c0] sm:$0xff]
        %v5406 = vld [vmem:[%s5348 + $0x1c8] sm:$0xff]
        %v5407 = vld [vmem:[%s5348 + $0x1d0] sm:$0xff]
        %v5408 = vld [vmem:[%s5348 + $0x1d8] sm:$0xff]
        %v5409 = vld [vmem:[%s5348 + $0x1e0] sm:$0xff]
        %v5410 = vld [vmem:[%s5348 + $0x1e8] sm:$0xff]
        %v5411 = vld [vmem:[%s5348 + $0x1f0] sm:$0xff]
        %v5412 = vld [vmem:[%s5348 + $0x1f8] sm:$0xff]
        %v5413 = vld [vmem:[%s5348 + $0x200] sm:$0xff]
        %v5414 = vld [vmem:[%s5348 + $0x208] sm:$0xff]
        %v5415 = vld [vmem:[%s5348 + $0x210] sm:$0xff]
        %v5416 = vld [vmem:[%s5348 + $0x218] sm:$0xff]
        %v5417 = vld [vmem:[%s5348 + $0x220] sm:$0xff]
        %v5418 = vld [vmem:[%s5348 + $0x228] sm:$0xff]
        %v5419 = vld [vmem:[%s5348 + $0x230] sm:$0xff]
        %v5420 = vld [vmem:[%s5348 + $0x238] sm:$0xff]
        %v5421 = vsel %vm4822, %v4641, 0
        %v5423 = vsel %vm4822, %v4645, 0
        %v5425 = vsel %vm4822, %v4649, 0
        %v5427 = vsel %vm4822, %v4653, 0
        %v5429 = vsel %vm4822, %v4657, 0
        %v5431 = vsel %vm4822, %v4661, 0
        %v5433 = vsel %vm4822, %v4665, 0
        %v5436 = vsel %vm4822, %v4676, 0
        %5438 = vmatpush.msra.mxu0 %v5394
        %5439 = vmatpush.msra.mxu0 %v5391
        %5440 = vmatpush.msra.mxu0 %v5388
        %5441 = vmatpush.msra.mxu0 %v5385
        %5442 = vmatpush.msra.mxu0 %v5382
        %5443 = vmatpush.msra.mxu0 %v5379
        %5444 = vmatpush.msra.mxu0 %v5376
        %5445 = vmatpush.msra.mxu0 %v5373
        %5446 = vmatpush.msra.mxu0 %v5370
        %5447 = vmatpush.msra.mxu0 %v5367
        %5448 = vmatpush.msra.mxu0 %v5364
        %5449 = vmatpush.msra.mxu0 %v5361
        %5450 = vmatpush.msra.mxu0 %v5358
        %5451 = vmatpush.msra.mxu0 %v5355
        %5452 = vmatpush.msra.mxu0 %v5352
        %5453 = vmatpush.msra.mxu0 %v5349
        %5454 = vmatmul.f32.gmra.mxu0 %v4638
        %v5455 = vpop.f32.mrf.mxu0
        %v5456 = vadd.f32 0.0, %v5455
        %5457 = vmatmul.f32.gmra.mxu0 %v4643
        %v5458 = vpop.f32.mrf.mxu0
        %v5459 = vadd.f32 0.0, %v5458
        %5460 = vmatmul.f32.gmra.mxu0 %v4647
        %v5461 = vpop.f32.mrf.mxu0
        %v5462 = vadd.f32 0.0, %v5461
        %5463 = vmatmul.f32.gmra.mxu0 %v4651
        %v5464 = vpop.f32.mrf.mxu0
        %v5465 = vadd.f32 0.0, %v5464
        %5466 = vmatmul.f32.gmra.mxu0 %v4655
        %v5467 = vpop.f32.mrf.mxu0
        %v5468 = vadd.f32 0.0, %v5467
        %5469 = vmatmul.f32.gmra.mxu0 %v4659
        %v5470 = vpop.f32.mrf.mxu0
        %v5471 = vadd.f32 0.0, %v5470
        %5472 = vmatmul.f32.gmra.mxu0 %v4663
        %v5473 = vpop.f32.mrf.mxu0
        %v5474 = vadd.f32 0.0, %v5473
        %5475 = vmatmul.f32.gmra.mxu0 %v4675
        %v5476 = vpop.f32.mrf.mxu0
        %v5477 = vadd.f32 0.0, %v5476
        %5478 = vdwg.mxu0
        %5479 = vmatpush.msra.mxu0 0.0
        %5480 = vmatpush.msra.mxu0 0.0
        %5481 = vmatpush.msra.mxu0 0.0
        %5482 = vmatpush.msra.mxu0 0.0
        %5483 = vmatpush.msra.mxu0 0.0
        %5484 = vmatpush.msra.mxu0 0.0
        %5485 = vmatpush.msra.mxu0 0.0
        %5486 = vmatpush.msra.mxu0 0.0
        %5487 = vmatpush.msra.mxu0 %v5418
        %5488 = vmatpush.msra.mxu0 %v5415
        %5489 = vmatpush.msra.mxu0 %v5412
        %5490 = vmatpush.msra.mxu0 %v5409
        %5491 = vmatpush.msra.mxu0 %v5406
        %5492 = vmatpush.msra.mxu0 %v5403
        %5493 = vmatpush.msra.mxu0 %v5400
        %5494 = vmatpush.msra.mxu0 %v5397
        %5495 = vmatmul.f32.gmra.mxu0 %v5421
        %v5496 = vpop.f32.mrf.mxu0
        %v5497 = vadd.f32 %v5456, %v5496
        %5498 = vmatmul.f32.gmra.mxu0 %v5423
        %v5499 = vpop.f32.mrf.mxu0
        %v5500 = vadd.f32 %v5459, %v5499
        %5501 = vmatmul.f32.gmra.mxu0 %v5425
        %v5502 = vpop.f32.mrf.mxu0
        %v5503 = vadd.f32 %v5462, %v5502
        %5504 = vmatmul.f32.gmra.mxu0 %v5427
        %v5505 = vpop.f32.mrf.mxu0
        %v5506 = vadd.f32 %v5465, %v5505
        %5507 = vmatmul.f32.gmra.mxu0 %v5429
        %v5508 = vpop.f32.mrf.mxu0
        %v5509 = vadd.f32 %v5468, %v5508
        %5510 = vmatmul.f32.gmra.mxu0 %v5431
        %v5511 = vpop.f32.mrf.mxu0
        %v5512 = vadd.f32 %v5471, %v5511
        %5513 = vmatmul.f32.gmra.mxu0 %v5433
        %v5514 = vpop.f32.mrf.mxu0
        %v5515 = vadd.f32 %v5474, %v5514
        %5516 = vmatmul.f32.gmra.mxu0 %v5436
        %v5517 = vpop.f32.mrf.mxu0
        %v5518 = vadd.f32 %v5477, %v5517
        %5519 = vdwg.mxu0
        %5520 = vmatpush.msra.mxu0 %v5395
        %5521 = vmatpush.msra.mxu0 %v5392
        %5522 = vmatpush.msra.mxu0 %v5389
        %5523 = vmatpush.msra.mxu0 %v5386
        %5524 = vmatpush.msra.mxu0 %v5383
        %5525 = vmatpush.msra.mxu0 %v5380
        %5526 = vmatpush.msra.mxu0 %v5377
        %5527 = vmatpush.msra.mxu0 %v5374
        %5528 = vmatpush.msra.mxu0 %v5371
        %5529 = vmatpush.msra.mxu0 %v5368
        %5530 = vmatpush.msra.mxu0 %v5365
        %5531 = vmatpush.msra.mxu0 %v5362
        %5532 = vmatpush.msra.mxu0 %v5359
        %5533 = vmatpush.msra.mxu0 %v5356
        %5534 = vmatpush.msra.mxu0 %v5353
        %5535 = vmatpush.msra.mxu0 %v5350
        %5536 = vmatmul.f32.gmra.mxu0 %v4638
        %v5537 = vpop.f32.mrf.mxu0
        %v5538 = vadd.f32 0.0, %v5537
        %5539 = vmatmul.f32.gmra.mxu0 %v4643
        %v5540 = vpop.f32.mrf.mxu0
        %v5541 = vadd.f32 0.0, %v5540
        %5542 = vmatmul.f32.gmra.mxu0 %v4647
        %v5543 = vpop.f32.mrf.mxu0
        %v5544 = vadd.f32 0.0, %v5543
        %5545 = vmatmul.f32.gmra.mxu0 %v4651
        %v5546 = vpop.f32.mrf.mxu0
        %v5547 = vadd.f32 0.0, %v5546
        %5548 = vmatmul.f32.gmra.mxu0 %v4655
        %v5549 = vpop.f32.mrf.mxu0
        %v5550 = vadd.f32 0.0, %v5549
        %5551 = vmatmul.f32.gmra.mxu0 %v4659
        %v5552 = vpop.f32.mrf.mxu0
        %v5553 = vadd.f32 0.0, %v5552
        %5554 = vmatmul.f32.gmra.mxu0 %v4663
        %v5555 = vpop.f32.mrf.mxu0
        %v5556 = vadd.f32 0.0, %v5555
        %5557 = vmatmul.f32.gmra.mxu0 %v4675
        %v5558 = vpop.f32.mrf.mxu0
        %v5559 = vadd.f32 0.0, %v5558
        %5560 = vdwg.mxu0
        %5561 = vmatpush.msra.mxu0 0.0
        %5562 = vmatpush.msra.mxu0 0.0
        %5563 = vmatpush.msra.mxu0 0.0
        %5564 = vmatpush.msra.mxu0 0.0
        %5565 = vmatpush.msra.mxu0 0.0
        %5566 = vmatpush.msra.mxu0 0.0
        %5567 = vmatpush.msra.mxu0 0.0
        %5568 = vmatpush.msra.mxu0 0.0
        %5569 = vmatpush.msra.mxu0 %v5419
        %5570 = vmatpush.msra.mxu0 %v5416
        %5571 = vmatpush.msra.mxu0 %v5413
        %5572 = vmatpush.msra.mxu0 %v5410
        %5573 = vmatpush.msra.mxu0 %v5407
        %5574 = vmatpush.msra.mxu0 %v5404
        %5575 = vmatpush.msra.mxu0 %v5401
        %5576 = vmatpush.msra.mxu0 %v5398
        %5577 = vmatmul.f32.gmra.mxu0 %v5421
        %v5578 = vpop.f32.mrf.mxu0
        %v5579 = vadd.f32 %v5538, %v5578
        %5580 = vmatmul.f32.gmra.mxu0 %v5423
        %v5581 = vpop.f32.mrf.mxu0
        %v5582 = vadd.f32 %v5541, %v5581
        %5583 = vmatmul.f32.gmra.mxu0 %v5425
        %v5584 = vpop.f32.mrf.mxu0
        %v5585 = vadd.f32 %v5544, %v5584
        %5586 = vmatmul.f32.gmra.mxu0 %v5427
        %v5587 = vpop.f32.mrf.mxu0
        %v5588 = vadd.f32 %v5547, %v5587
        %5589 = vmatmul.f32.gmra.mxu0 %v5429
        %v5590 = vpop.f32.mrf.mxu0
        %v5591 = vadd.f32 %v5550, %v5590
        %5592 = vmatmul.f32.gmra.mxu0 %v5431
        %v5593 = vpop.f32.mrf.mxu0
        %v5594 = vadd.f32 %v5553, %v5593
        %5595 = vmatmul.f32.gmra.mxu0 %v5433
        %v5596 = vpop.f32.mrf.mxu0
        %v5597 = vadd.f32 %v5556, %v5596
        %5598 = vmatmul.f32.gmra.mxu0 %v5436
        %v5599 = vpop.f32.mrf.mxu0
        %v5600 = vadd.f32 %v5559, %v5599
        %5601 = vdwg.mxu0
        %5602 = vmatpush.msra.mxu0 %v5396
        %5603 = vmatpush.msra.mxu0 %v5393
        %5604 = vmatpush.msra.mxu0 %v5390
        %5605 = vmatpush.msra.mxu0 %v5387
        %5606 = vmatpush.msra.mxu0 %v5384
        %5607 = vmatpush.msra.mxu0 %v5381
        %5608 = vmatpush.msra.mxu0 %v5378
        %5609 = vmatpush.msra.mxu0 %v5375
        %5610 = vmatpush.msra.mxu0 %v5372
        %5611 = vmatpush.msra.mxu0 %v5369
        %5612 = vmatpush.msra.mxu0 %v5366
        %5613 = vmatpush.msra.mxu0 %v5363
        %5614 = vmatpush.msra.mxu0 %v5360
        %5615 = vmatpush.msra.mxu0 %v5357
        %5616 = vmatpush.msra.mxu0 %v5354
        %5617 = vmatpush.msra.mxu0 %v5351
        %5618 = vmatmul.f32.gmra.mxu0 %v4638
        %v5619 = vpop.f32.mrf.mxu0
        %v5620 = vadd.f32 0.0, %v5619
        %5621 = vmatmul.f32.gmra.mxu0 %v4643
        %v5622 = vpop.f32.mrf.mxu0
        %v5623 = vadd.f32 0.0, %v5622
        %5624 = vmatmul.f32.gmra.mxu0 %v4647
        %v5625 = vpop.f32.mrf.mxu0
        %v5626 = vadd.f32 0.0, %v5625
        %5627 = vmatmul.f32.gmra.mxu0 %v4651
        %v5628 = vpop.f32.mrf.mxu0
        %v5629 = vadd.f32 0.0, %v5628
        %5630 = vmatmul.f32.gmra.mxu0 %v4655
        %v5631 = vpop.f32.mrf.mxu0
        %v5632 = vadd.f32 0.0, %v5631
        %5633 = vmatmul.f32.gmra.mxu0 %v4659
        %v5634 = vpop.f32.mrf.mxu0
        %v5635 = vadd.f32 0.0, %v5634
        %5636 = vmatmul.f32.gmra.mxu0 %v4663
        %v5637 = vpop.f32.mrf.mxu0
        %v5638 = vadd.f32 0.0, %v5637
        %5639 = vmatmul.f32.gmra.mxu0 %v4675
        %v5640 = vpop.f32.mrf.mxu0
        %v5641 = vadd.f32 0.0, %v5640
        %5642 = vdwg.mxu0
        %5643 = vmatpush.msra.mxu0 0.0
        %5644 = vmatpush.msra.mxu0 0.0
        %5645 = vmatpush.msra.mxu0 0.0
        %5646 = vmatpush.msra.mxu0 0.0
        %5647 = vmatpush.msra.mxu0 0.0
        %5648 = vmatpush.msra.mxu0 0.0
        %5649 = vmatpush.msra.mxu0 0.0
        %5650 = vmatpush.msra.mxu0 0.0
        %5651 = vmatpush.msra.mxu0 %v5420
        %5652 = vmatpush.msra.mxu0 %v5417
        %5653 = vmatpush.msra.mxu0 %v5414
        %5654 = vmatpush.msra.mxu0 %v5411
        %5655 = vmatpush.msra.mxu0 %v5408
        %5656 = vmatpush.msra.mxu0 %v5405
        %5657 = vmatpush.msra.mxu0 %v5402
        %5658 = vmatpush.msra.mxu0 %v5399
        %5659 = vmatmul.f32.gmra.mxu0 %v5421
        %v5660 = vpop.f32.mrf.mxu0
        %v5661 = vadd.f32 %v5620, %v5660
        %5662 = vmatmul.f32.gmra.mxu0 %v5423
        %v5663 = vpop.f32.mrf.mxu0
        %v5664 = vadd.f32 %v5623, %v5663
        %5665 = vmatmul.f32.gmra.mxu0 %v5425
        %v5666 = vpop.f32.mrf.mxu0
        %v5667 = vadd.f32 %v5626, %v5666
        %5668 = vmatmul.f32.gmra.mxu0 %v5427
        %v5669 = vpop.f32.mrf.mxu0
        %v5670 = vadd.f32 %v5629, %v5669
        %5671 = vmatmul.f32.gmra.mxu0 %v5429
        %v5672 = vpop.f32.mrf.mxu0
        %v5673 = vadd.f32 %v5632, %v5672
        %5674 = vmatmul.f32.gmra.mxu0 %v5431
        %v5675 = vpop.f32.mrf.mxu0
        %v5676 = vadd.f32 %v5635, %v5675
        %5677 = vmatmul.f32.gmra.mxu0 %v5433
        %v5678 = vpop.f32.mrf.mxu0
        %v5679 = vadd.f32 %v5638, %v5678
        %5680 = vmatmul.f32.gmra.mxu0 %v5436
        %v5681 = vpop.f32.mrf.mxu0
        %v5682 = vadd.f32 %v5641, %v5681
        %5683 = vdwg.mxu0
        %v5684 = vadd.f32 %v5161, %v5497
        %v5685 = vadd.f32 %v5243, %v5579
        %v5686 = vadd.f32 %v5325, %v5661
        %v5687 = vadd.f32 %v5164, %v5500
        %v5688 = vadd.f32 %v5246, %v5582
        %v5689 = vadd.f32 %v5328, %v5664
        %v5690 = vadd.f32 %v5167, %v5503
        %v5691 = vadd.f32 %v5249, %v5585
        %v5692 = vadd.f32 %v5331, %v5667
        %v5693 = vadd.f32 %v5170, %v5506
        %v5694 = vadd.f32 %v5252, %v5588
        %v5695 = vadd.f32 %v5334, %v5670
        %v5696 = vadd.f32 %v5173, %v5509
        %v5697 = vadd.f32 %v5255, %v5591
        %v5698 = vadd.f32 %v5337, %v5673
        %v5699 = vadd.f32 %v5176, %v5512
        %v5700 = vadd.f32 %v5258, %v5594
        %v5701 = vadd.f32 %v5340, %v5676
        %v5702 = vadd.f32 %v5179, %v5515
        %v5703 = vadd.f32 %v5261, %v5597
        %v5704 = vadd.f32 %v5343, %v5679
        %v5705 = vadd.f32 %v5182, %v5518
        %v5706 = vadd.f32 %v5264, %v5600
        %v5707 = vadd.f32 %v5346, %v5682
        %v5708 = vld [vmem:[%s6] sm:$0x7]
        %v5710 = vperm.slane %v5708, 0
        %v5711 = vperm.slane %v5708, 1
        %v5712 = vperm.slane %v5708, 2
        %v5716 = vadd.f32 %v5684, %v5710
        %v5717 = vadd.f32 %v5685, %v5711
        %v5718 = vadd.f32 %v5686, %v5712
        %v5719 = vadd.f32 %v5687, %v5710
        %v5720 = vadd.f32 %v5688, %v5711
        %v5721 = vadd.f32 %v5689, %v5712
        %v5722 = vadd.f32 %v5690, %v5710
        %v5723 = vadd.f32 %v5691, %v5711
        %v5724 = vadd.f32 %v5692, %v5712
        %v5725 = vadd.f32 %v5693, %v5710
        %v5726 = vadd.f32 %v5694, %v5711
        %v5727 = vadd.f32 %v5695, %v5712
        %v5728 = vadd.f32 %v5696, %v5710
        %v5729 = vadd.f32 %v5697, %v5711
        %v5730 = vadd.f32 %v5698, %v5712
        %v5731 = vadd.f32 %v5699, %v5710
        %v5732 = vadd.f32 %v5700, %v5711
        %v5733 = vadd.f32 %v5701, %v5712
        %v5734 = vadd.f32 %v5702, %v5710
        %v5735 = vadd.f32 %v5703, %v5711
        %v5736 = vadd.f32 %v5704, %v5712
        %v5737 = vadd.f32 %v5705, %v5710
        %v5738 = vadd.f32 %v5706, %v5711
        %v5739 = vadd.f32 %v5707, %v5712
        %v5740 = vmax.f32 %v5716, 0.0
        %v5741 = vmax.f32 %v5717, 0.0
        %v5742 = vmax.f32 %v5718, 0.0
        %v5743 = vmax.f32 %v5719, 0.0
        %v5744 = vmax.f32 %v5720, 0.0
        %v5745 = vmax.f32 %v5721, 0.0
        %v5746 = vmax.f32 %v5722, 0.0
        %v5747 = vmax.f32 %v5723, 0.0
        %v5748 = vmax.f32 %v5724, 0.0
        %v5749 = vmax.f32 %v5725, 0.0
        %v5750 = vmax.f32 %v5726, 0.0
        %v5751 = vmax.f32 %v5727, 0.0
        %v5752 = vmax.f32 %v5728, 0.0
        %v5753 = vmax.f32 %v5729, 0.0
        %v5754 = vmax.f32 %v5730, 0.0
        %v5755 = vmax.f32 %v5731, 0.0
        %v5756 = vmax.f32 %v5732, 0.0
        %v5757 = vmax.f32 %v5733, 0.0
        %v5758 = vmax.f32 %v5734, 0.0
        %v5759 = vmax.f32 %v5735, 0.0
        %v5760 = vmax.f32 %v5736, 0.0
        %v5761 = vmax.f32 %v5737, 0.0
        %v5762 = vmax.f32 %v5738, 0.0
        %v5763 = vmax.f32 %v5739, 0.0
        %5788 = vrot.lane.b32.xlu0 %v5740, 127
        %v5789 = vpop.permute.xlu0 %5788
        %5790 = vrot.lane.b32.xlu0 %v5741, 127
        %v5791 = vpop.permute.xlu0 %5790
        %5792 = vrot.lane.b32.xlu0 %v5742, 127
        %v5793 = vpop.permute.xlu0 %5792
        %5794 = vrot.lane.b32.xlu0 %v5743, 127
        %v5795 = vpop.permute.xlu0 %5794
        %5796 = vrot.lane.b32.xlu0 %v5744, 127
        %v5797 = vpop.permute.xlu0 %5796
        %5798 = vrot.lane.b32.xlu0 %v5745, 127
        %v5799 = vpop.permute.xlu0 %5798
        %5800 = vrot.lane.b32.xlu0 %v5746, 127
        %v5801 = vpop.permute.xlu0 %5800
        %5802 = vrot.lane.b32.xlu0 %v5747, 127
        %v5803 = vpop.permute.xlu0 %5802
        %5804 = vrot.lane.b32.xlu0 %v5748, 127
        %v5805 = vpop.permute.xlu0 %5804
        %5806 = vrot.lane.b32.xlu0 %v5749, 127
        %v5807 = vpop.permute.xlu0 %5806
        %5808 = vrot.lane.b32.xlu0 %v5750, 127
        %v5809 = vpop.permute.xlu0 %5808
        %5810 = vrot.lane.b32.xlu0 %v5751, 127
        %v5811 = vpop.permute.xlu0 %5810
        %5812 = vrot.lane.b32.xlu0 %v5752, 127
        %v5813 = vpop.permute.xlu0 %5812
        %5814 = vrot.lane.b32.xlu0 %v5753, 127
        %v5815 = vpop.permute.xlu0 %5814
        %5816 = vrot.lane.b32.xlu0 %v5754, 127
        %v5817 = vpop.permute.xlu0 %5816
        %5818 = vrot.lane.b32.xlu0 %v5755, 127
        %v5819 = vpop.permute.xlu0 %5818
        %5820 = vrot.lane.b32.xlu0 %v5756, 127
        %v5821 = vpop.permute.xlu0 %5820
        %5822 = vrot.lane.b32.xlu0 %v5757, 127
        %v5823 = vpop.permute.xlu0 %5822
        %5824 = vrot.lane.b32.xlu0 %v5758, 127
        %v5825 = vpop.permute.xlu0 %5824
        %5826 = vrot.lane.b32.xlu0 %v5759, 127
        %v5827 = vpop.permute.xlu0 %5826
        %5828 = vrot.lane.b32.xlu0 %v5760, 127
        %v5829 = vpop.permute.xlu0 %5828
        %5830 = vrot.lane.b32.xlu0 %v5761, 127
        %v5831 = vpop.permute.xlu0 %5830
        %5832 = vrot.lane.b32.xlu0 %v5762, 127
        %v5833 = vpop.permute.xlu0 %5832
        %5834 = vrot.lane.b32.xlu0 %v5763, 127
        %v5835 = vpop.permute.xlu0 %5834
        %v5836 = vsel %vm3721, %v5789, %v5791
        %v5837 = vsel %vm3721, %v5791, %v5793
        %v5838 = vsel %vm3721, %v5795, %v5797
        %v5839 = vsel %vm3721, %v5797, %v5799
        %v5840 = vsel %vm3721, %v5801, %v5803
        %v5841 = vsel %vm3721, %v5803, %v5805
        %v5842 = vsel %vm3721, %v5807, %v5809
        %v5843 = vsel %vm3721, %v5809, %v5811
        %v5844 = vsel %vm3721, %v5813, %v5815
        %v5845 = vsel %vm3721, %v5815, %v5817
        %v5846 = vsel %vm3721, %v5819, %v5821
        %v5847 = vsel %vm3721, %v5821, %v5823
        %v5848 = vsel %vm3721, %v5825, %v5827
        %v5849 = vsel %vm3721, %v5827, %v5829
        %v5850 = vsel %vm3721, %v5831, %v5833
        %v5851 = vsel %vm3721, %v5833, %v5835
        %v5876 = vsel %vm3721, %v5793, 0.0
        %v5877 = vsel %vm3721, %v5799, 0.0
        %v5878 = vsel %vm3721, %v5805, 0.0
        %v5879 = vsel %vm3721, %v5811, 0.0
        %v5880 = vsel %vm3721, %v5817, 0.0
        %v5881 = vsel %vm3721, %v5823, 0.0
        %v5882 = vsel %vm3721, %v5829, 0.0
        %v5883 = vsel %vm3721, %v5835, 0.0
        %v5884 = vmax.f32 %v5740, %v5836
        %v5885 = vmax.f32 %v5741, %v5837
        %v5886 = vmax.f32 %v5742, %v5876
        %v5887 = vmax.f32 %v5743, %v5838
        %v5888 = vmax.f32 %v5744, %v5839
        %v5889 = vmax.f32 %v5745, %v5877
        %v5890 = vmax.f32 %v5746, %v5840
        %v5891 = vmax.f32 %v5747, %v5841
        %v5892 = vmax.f32 %v5748, %v5878
        %v5893 = vmax.f32 %v5749, %v5842
        %v5894 = vmax.f32 %v5750, %v5843
        %v5895 = vmax.f32 %v5751, %v5879
        %v5896 = vmax.f32 %v5752, %v5844
        %v5897 = vmax.f32 %v5753, %v5845
        %v5898 = vmax.f32 %v5754, %v5880
        %v5899 = vmax.f32 %v5755, %v5846
        %v5900 = vmax.f32 %v5756, %v5847
        %v5901 = vmax.f32 %v5757, %v5881
        %v5902 = vmax.f32 %v5758, %v5848
        %v5903 = vmax.f32 %v5759, %v5849
        %v5904 = vmax.f32 %v5760, %v5882
        %v5905 = vmax.f32 %v5761, %v5850
        %v5906 = vmax.f32 %v5762, %v5851
        %v5907 = vmax.f32 %v5763, %v5883
        %v5932 = vrot.slane %v5884, 1
        %v5933 = vrot.slane %v5887, 1
        %v5934 = vsel %vm1091, %v5932, %v5933
        %v5935 = vrot.slane %v5885, 1
        %v5936 = vrot.slane %v5888, 1
        %v5937 = vsel %vm1091, %v5935, %v5936
        %v5938 = vrot.slane %v5886, 1
        %v5939 = vrot.slane %v5889, 1
        %v5940 = vsel %vm1091, %v5938, %v5939
        %v5941 = vrot.slane %v5890, 1
        %v5942 = vsel %vm1091, %v5933, %v5941
        %v5943 = vrot.slane %v5891, 1
        %v5944 = vsel %vm1091, %v5936, %v5943
        %v5945 = vrot.slane %v5892, 1
        %v5946 = vsel %vm1091, %v5939, %v5945
        %v5947 = vrot.slane %v5893, 1
        %v5948 = vsel %vm1091, %v5941, %v5947
        %v5949 = vrot.slane %v5894, 1
        %v5950 = vsel %vm1091, %v5943, %v5949
        %v5951 = vrot.slane %v5895, 1
        %v5952 = vsel %vm1091, %v5945, %v5951
        %v5953 = vrot.slane %v5896, 1
        %v5954 = vsel %vm1091, %v5947, %v5953
        %v5955 = vrot.slane %v5897, 1
        %v5956 = vsel %vm1091, %v5949, %v5955
        %v5957 = vrot.slane %v5898, 1
        %v5958 = vsel %vm1091, %v5951, %v5957
        %v5959 = vrot.slane %v5899, 1
        %v5960 = vsel %vm1091, %v5953, %v5959
        %v5961 = vrot.slane %v5900, 1
        %v5962 = vsel %vm1091, %v5955, %v5961
        %v5963 = vrot.slane %v5901, 1
        %v5964 = vsel %vm1091, %v5957, %v5963
        %v5965 = vrot.slane %v5902, 1
        %v5966 = vsel %vm1091, %v5959, %v5965
        %v5967 = vrot.slane %v5903, 1
        %v5968 = vsel %vm1091, %v5961, %v5967
        %v5969 = vrot.slane %v5904, 1
        %v5970 = vsel %vm1091, %v5963, %v5969
        %v5971 = vrot.slane %v5905, 1
        %v5972 = vsel %vm1091, %v5965, %v5971
        %v5973 = vrot.slane %v5906, 1
        %v5974 = vsel %vm1091, %v5967, %v5973
        %v5975 = vrot.slane %v5907, 1
        %v5976 = vsel %vm1091, %v5969, %v5975
        %v6001 = vsel %vm1091, %v5971, 0.0
        %v6002 = vsel %vm1091, %v5973, 0.0
        %v6003 = vsel %vm1091, %v5975, 0.0
        %v6004 = vmax.f32 %v5884, %v5934
        %v6005 = vmax.f32 %v5885, %v5937
        %v6006 = vmax.f32 %v5886, %v5940
        %v6007 = vmax.f32 %v5887, %v5942
        %v6008 = vmax.f32 %v5888, %v5944
        %v6009 = vmax.f32 %v5889, %v5946
        %v6010 = vmax.f32 %v5890, %v5948
        %v6011 = vmax.f32 %v5891, %v5950
        %v6012 = vmax.f32 %v5892, %v5952
        %v6013 = vmax.f32 %v5893, %v5954
        %v6014 = vmax.f32 %v5894, %v5956
        %v6015 = vmax.f32 %v5895, %v5958
        %v6016 = vmax.f32 %v5896, %v5960
        %v6017 = vmax.f32 %v5897, %v5962
        %v6018 = vmax.f32 %v5898, %v5964
        %v6019 = vmax.f32 %v5899, %v5966
        %v6020 = vmax.f32 %v5900, %v5968
        %v6021 = vmax.f32 %v5901, %v5970
        %v6022 = vmax.f32 %v5902, %v5972
        %v6023 = vmax.f32 %v5903, %v5974
        %v6024 = vmax.f32 %v5904, %v5976
        %v6025 = vmax.f32 %v5905, %v6001
        %v6026 = vmax.f32 %v5906, %v6002
        %v6027 = vmax.f32 %v5907, %v6003
        %v6028 = vld [vmem:[%s7] sm:$0xff]
        %v6029 = vld [vmem:[%s7 + $0x8] sm:$0xff]
        %v6030 = vld [vmem:[%s7 + $0x10] sm:$0xff]
        %v6031 = vld [vmem:[%s7 + $0x18] sm:$0xff]
        %v6033 = vsel %vm4822, %v6028, 0
        %v6036 = vsel %vm4822, %v6029, 0
        %v6039 = vsel %vm4822, %v6030, 0
        %v6042 = vsel %vm4822, %v6031, 0
        %6044 = vmatpush.msra.mxu0 0.0
        %6045 = vmatpush.msra.mxu0 0.0
        %6046 = vmatpush.msra.mxu0 0.0
        %6047 = vmatpush.msra.mxu0 0.0
        %6048 = vmatpush.msra.mxu0 0.0
        %6049 = vmatpush.msra.mxu0 0.0
        %6050 = vmatpush.msra.mxu0 0.0
        %6051 = vmatpush.msra.mxu0 0.0
        %6052 = vmatpush.msra.mxu0 %v6025
        %6053 = vmatpush.msra.mxu0 %v6022
        %6054 = vmatpush.msra.mxu0 %v6019
        %6055 = vmatpush.msra.mxu0 %v6016
        %6056 = vmatpush.msra.mxu0 %v6013
        %6057 = vmatpush.msra.mxu0 %v6010
        %6058 = vmatpush.msra.mxu0 %v6007
        %6059 = vmatpush.msra.mxu0 %v6004
        %6060 = vmatmul.f32.gmra.mxu0 %v6033
        %v6061 = vpop.f32.mrf.mxu0
        %v6062 = vadd.f32 0.0, %v6061
        %6063 = vmatmul.f32.gmra.mxu0 %v6036
        %v6064 = vpop.f32.mrf.mxu0
        %v6065 = vadd.f32 0.0, %v6064
        %6066 = vmatmul.f32.gmra.mxu0 %v6039
        %v6067 = vpop.f32.mrf.mxu0
        %v6068 = vadd.f32 0.0, %v6067
        %6069 = vmatmul.f32.gmra.mxu0 %v6042
        %v6070 = vpop.f32.mrf.mxu0
        %v6071 = vadd.f32 0.0, %v6070
        %6072 = vdwg.mxu0
        %6073 = vmatpush.msra.mxu0 0.0
        %6074 = vmatpush.msra.mxu0 0.0
        %6075 = vmatpush.msra.mxu0 0.0
        %6076 = vmatpush.msra.mxu0 0.0
        %6077 = vmatpush.msra.mxu0 0.0
        %6078 = vmatpush.msra.mxu0 0.0
        %6079 = vmatpush.msra.mxu0 0.0
        %6080 = vmatpush.msra.mxu0 0.0
        %6081 = vmatpush.msra.mxu0 %v6026
        %6082 = vmatpush.msra.mxu0 %v6023
        %6083 = vmatpush.msra.mxu0 %v6020
        %6084 = vmatpush.msra.mxu0 %v6017
        %6085 = vmatpush.msra.mxu0 %v6014
        %6086 = vmatpush.msra.mxu0 %v6011
        %6087 = vmatpush.msra.mxu0 %v6008
        %6088 = vmatpush.msra.mxu0 %v6005
        %6089 = vmatmul.f32.gmra.mxu0 %v6033
        %v6090 = vpop.f32.mrf.mxu0
        %v6091 = vadd.f32 0.0, %v6090
        %6092 = vmatmul.f32.gmra.mxu0 %v6036
        %v6093 = vpop.f32.mrf.mxu0
        %v6094 = vadd.f32 0.0, %v6093
        %6095 = vmatmul.f32.gmra.mxu0 %v6039
        %v6096 = vpop.f32.mrf.mxu0
        %v6097 = vadd.f32 0.0, %v6096
        %6098 = vmatmul.f32.gmra.mxu0 %v6042
        %v6099 = vpop.f32.mrf.mxu0
        %v6100 = vadd.f32 0.0, %v6099
        %6101 = vdwg.mxu0
        %6102 = vmatpush.msra.mxu0 0.0
        %6103 = vmatpush.msra.mxu0 0.0
        %6104 = vmatpush.msra.mxu0 0.0
        %6105 = vmatpush.msra.mxu0 0.0
        %6106 = vmatpush.msra.mxu0 0.0
        %6107 = vmatpush.msra.mxu0 0.0
        %6108 = vmatpush.msra.mxu0 0.0
        %6109 = vmatpush.msra.mxu0 0.0
        %6110 = vmatpush.msra.mxu0 %v6027
        %6111 = vmatpush.msra.mxu0 %v6024
        %6112 = vmatpush.msra.mxu0 %v6021
        %6113 = vmatpush.msra.mxu0 %v6018
        %6114 = vmatpush.msra.mxu0 %v6015
        %6115 = vmatpush.msra.mxu0 %v6012
        %6116 = vmatpush.msra.mxu0 %v6009
        %6117 = vmatpush.msra.mxu0 %v6006
        %6118 = vmatmul.f32.gmra.mxu0 %v6033
        %v6119 = vpop.f32.mrf.mxu0
        %v6120 = vadd.f32 0.0, %v6119
        %6121 = vmatmul.f32.gmra.mxu0 %v6036
        %v6122 = vpop.f32.mrf.mxu0
        %v6123 = vadd.f32 0.0, %v6122
        %6124 = vmatmul.f32.gmra.mxu0 %v6039
        %v6125 = vpop.f32.mrf.mxu0
        %v6126 = vadd.f32 0.0, %v6125
        %6127 = vmatmul.f32.gmra.mxu0 %v6042
        %v6128 = vpop.f32.mrf.mxu0
        %v6129 = vadd.f32 0.0, %v6128
        %6130 = vdwg.mxu0
        %v6131 = vld [vmem:[%s8] sm:$0xff]
        %v6132 = vld [vmem:[%s8 + $0x8] sm:$0xff]
        %v6133 = vld [vmem:[%s8 + $0x10] sm:$0xff]
        %v6134 = vld [vmem:[%s8 + $0x18] sm:$0xff]
        %v6135 = vld [vmem:[%s8 + $0x20] sm:$0xff]
        %v6136 = vld [vmem:[%s8 + $0x28] sm:$0xff]
        %v6137 = vld [vmem:[%s8 + $0x30] sm:$0xff]
        %v6138 = vld [vmem:[%s8 + $0x38] sm:$0xff]
        %v6139 = vld [vmem:[%s8 + $0x40] sm:$0xff]
        %v6140 = vld [vmem:[%s8 + $0x48] sm:$0xff]
        %v6141 = vld [vmem:[%s8 + $0x50] sm:$0xff]
        %v6142 = vld [vmem:[%s8 + $0x58] sm:$0xff]
        %v6143 = vld [vmem:[%s8 + $0x60] sm:$0xff]
        %v6144 = vld [vmem:[%s8 + $0x68] sm:$0xff]
        %v6145 = vld [vmem:[%s8 + $0x70] sm:$0xff]
        %v6146 = vld [vmem:[%s8 + $0x78] sm:$0xff]
        %v6147 = vld [vmem:[%s8 + $0x80] sm:$0xff]
        %v6148 = vld [vmem:[%s8 + $0x88] sm:$0xff]
        %v6149 = vld [vmem:[%s8 + $0x90] sm:$0xff]
        %v6150 = vld [vmem:[%s8 + $0x98] sm:$0xff]
        %v6151 = vld [vmem:[%s8 + $0xa0] sm:$0xff]
        %v6152 = vld [vmem:[%s8 + $0xa8] sm:$0xff]
        %v6153 = vld [vmem:[%s8 + $0xb0] sm:$0xff]
        %v6154 = vld [vmem:[%s8 + $0xb8] sm:$0xff]
        %v6155 = vld [vmem:[%s8 + $0xc0] sm:$0xff]
        %v6156 = vld [vmem:[%s8 + $0xc8] sm:$0xff]
        %v6157 = vld [vmem:[%s8 + $0xd0] sm:$0xff]
        %v6158 = vld [vmem:[%s8 + $0xd8] sm:$0xff]
        %v6159 = vld [vmem:[%s8 + $0xe0] sm:$0xff]
        %v6160 = vld [vmem:[%s8 + $0xe8] sm:$0xff]
        %v6161 = vld [vmem:[%s8 + $0xf0] sm:$0xff]
        %v6162 = vld [vmem:[%s8 + $0xf8] sm:$0xff]
        %v6163 = vld [vmem:[%s8 + $0x100] sm:$0xff]
        %v6164 = vld [vmem:[%s8 + $0x108] sm:$0xff]
        %v6165 = vld [vmem:[%s8 + $0x110] sm:$0xff]
        %v6166 = vld [vmem:[%s8 + $0x118] sm:$0xff]
        %v6167 = vld [vmem:[%s8 + $0x120] sm:$0xff]
        %v6168 = vld [vmem:[%s8 + $0x128] sm:$0xff]
        %v6169 = vld [vmem:[%s8 + $0x130] sm:$0xff]
        %v6170 = vld [vmem:[%s8 + $0x138] sm:$0xff]
        %v6171 = vld [vmem:[%s8 + $0x140] sm:$0xff]
        %v6172 = vld [vmem:[%s8 + $0x148] sm:$0xff]
        %v6173 = vld [vmem:[%s8 + $0x150] sm:$0xff]
        %v6174 = vld [vmem:[%s8 + $0x158] sm:$0xff]
        %v6175 = vld [vmem:[%s8 + $0x160] sm:$0xff]
        %v6176 = vld [vmem:[%s8 + $0x168] sm:$0xff]
        %v6177 = vld [vmem:[%s8 + $0x170] sm:$0xff]
        %v6178 = vld [vmem:[%s8 + $0x178] sm:$0xff]
        %v6179 = vld [vmem:[%s8 + $0x180] sm:$0xff]
        %v6180 = vld [vmem:[%s8 + $0x188] sm:$0xff]
        %v6181 = vld [vmem:[%s8 + $0x190] sm:$0xff]
        %v6182 = vld [vmem:[%s8 + $0x198] sm:$0xff]
        %v6183 = vld [vmem:[%s8 + $0x1a0] sm:$0xff]
        %v6184 = vld [vmem:[%s8 + $0x1a8] sm:$0xff]
        %v6185 = vld [vmem:[%s8 + $0x1b0] sm:$0xff]
        %v6186 = vld [vmem:[%s8 + $0x1b8] sm:$0xff]
        %v6187 = vld [vmem:[%s8 + $0x1c0] sm:$0xff]
        %v6188 = vld [vmem:[%s8 + $0x1c8] sm:$0xff]
        %v6189 = vld [vmem:[%s8 + $0x1d0] sm:$0xff]
        %v6190 = vld [vmem:[%s8 + $0x1d8] sm:$0xff]
        %v6191 = vld [vmem:[%s8 + $0x1e0] sm:$0xff]
        %v6192 = vld [vmem:[%s8 + $0x1e8] sm:$0xff]
        %v6193 = vld [vmem:[%s8 + $0x1f0] sm:$0xff]
        %v6194 = vld [vmem:[%s8 + $0x1f8] sm:$0xff]
        %v6195 = vld [vmem:[%s8 + $0x200] sm:$0xff]
        %v6196 = vld [vmem:[%s8 + $0x208] sm:$0xff]
        %v6197 = vld [vmem:[%s8 + $0x210] sm:$0xff]
        %v6198 = vld [vmem:[%s8 + $0x218] sm:$0xff]
        %v6199 = vld [vmem:[%s8 + $0x220] sm:$0xff]
        %v6200 = vld [vmem:[%s8 + $0x228] sm:$0xff]
        %v6201 = vld [vmem:[%s8 + $0x230] sm:$0xff]
        %v6202 = vld [vmem:[%s8 + $0x238] sm:$0xff]
        %v6203 = vld [vmem:[%s8 + $0x240] sm:$0xff]
        %v6204 = vld [vmem:[%s8 + $0x248] sm:$0xff]
        %v6205 = vld [vmem:[%s8 + $0x250] sm:$0xff]
        %v6206 = vld [vmem:[%s8 + $0x258] sm:$0xff]
        %v6207 = vld [vmem:[%s8 + $0x260] sm:$0xff]
        %v6208 = vld [vmem:[%s8 + $0x268] sm:$0xff]
        %v6209 = vld [vmem:[%s8 + $0x270] sm:$0xff]
        %v6210 = vld [vmem:[%s8 + $0x278] sm:$0xff]
        %v6211 = vld [vmem:[%s8 + $0x280] sm:$0xff]
        %v6212 = vld [vmem:[%s8 + $0x288] sm:$0xff]
        %v6213 = vld [vmem:[%s8 + $0x290] sm:$0xff]
        %v6214 = vld [vmem:[%s8 + $0x298] sm:$0xff]
        %v6215 = vld [vmem:[%s8 + $0x2a0] sm:$0xff]
        %v6216 = vld [vmem:[%s8 + $0x2a8] sm:$0xff]
        %v6217 = vld [vmem:[%s8 + $0x2b0] sm:$0xff]
        %v6218 = vld [vmem:[%s8 + $0x2b8] sm:$0xff]
        %v6219 = vld [vmem:[%s8 + $0x2c0] sm:$0xff]
        %v6220 = vld [vmem:[%s8 + $0x2c8] sm:$0xff]
        %v6221 = vld [vmem:[%s8 + $0x2d0] sm:$0xff]
        %v6222 = vld [vmem:[%s8 + $0x2d8] sm:$0xff]
        %v6223 = vld [vmem:[%s8 + $0x2e0] sm:$0xff]
        %v6224 = vld [vmem:[%s8 + $0x2e8] sm:$0xff]
        %v6225 = vld [vmem:[%s8 + $0x2f0] sm:$0xff]
        %v6226 = vld [vmem:[%s8 + $0x2f8] sm:$0xff]
        %6227 = vmatpush.msra.mxu0 %v6161
        %6228 = vmatpush.msra.mxu0 %v6159
        %6229 = vmatpush.msra.mxu0 %v6157
        %6230 = vmatpush.msra.mxu0 %v6155
        %6231 = vmatpush.msra.mxu0 %v6153
        %6232 = vmatpush.msra.mxu0 %v6151
        %6233 = vmatpush.msra.mxu0 %v6149
        %6234 = vmatpush.msra.mxu0 %v6147
        %6235 = vmatpush.msra.mxu0 %v6145
        %6236 = vmatpush.msra.mxu0 %v6143
        %6237 = vmatpush.msra.mxu0 %v6141
        %6238 = vmatpush.msra.mxu0 %v6139
        %6239 = vmatpush.msra.mxu0 %v6137
        %6240 = vmatpush.msra.mxu0 %v6135
        %6241 = vmatpush.msra.mxu0 %v6133
        %6242 = vmatpush.msra.mxu0 %v6131
        %6243 = vmatmul.f32.gmra.mxu0 %v6062
        %v6244 = vpop.f32.mrf.mxu0
        %v6245 = vadd.f32 0.0, %v6244
        %6246 = vmatmul.f32.gmra.mxu0 %v6065
        %v6247 = vpop.f32.mrf.mxu0
        %v6248 = vadd.f32 0.0, %v6247
        %6249 = vmatmul.f32.gmra.mxu0 %v6068
        %v6250 = vpop.f32.mrf.mxu0
        %v6251 = vadd.f32 0.0, %v6250
        %6252 = vmatmul.f32.gmra.mxu0 %v6071
        %v6253 = vpop.f32.mrf.mxu0
        %v6254 = vadd.f32 0.0, %v6253
        %6255 = vdwg.mxu0
        %6256 = vmatpush.msra.mxu0 %v6193
        %6257 = vmatpush.msra.mxu0 %v6191
        %6258 = vmatpush.msra.mxu0 %v6189
        %6259 = vmatpush.msra.mxu0 %v6187
        %6260 = vmatpush.msra.mxu0 %v6185
        %6261 = vmatpush.msra.mxu0 %v6183
        %6262 = vmatpush.msra.mxu0 %v6181
        %6263 = vmatpush.msra.mxu0 %v6179
        %6264 = vmatpush.msra.mxu0 %v6177
        %6265 = vmatpush.msra.mxu0 %v6175
        %6266 = vmatpush.msra.mxu0 %v6173
        %6267 = vmatpush.msra.mxu0 %v6171
        %6268 = vmatpush.msra.mxu0 %v6169
        %6269 = vmatpush.msra.mxu0 %v6167
        %6270 = vmatpush.msra.mxu0 %v6165
        %6271 = vmatpush.msra.mxu0 %v6163
        %6272 = vmatmul.f32.gmra.mxu0 %v6091
        %v6273 = vpop.f32.mrf.mxu0
        %v6274 = vadd.f32 %v6245, %v6273
        %6275 = vmatmul.f32.gmra.mxu0 %v6094
        %v6276 = vpop.f32.mrf.mxu0
        %v6277 = vadd.f32 %v6248, %v6276
        %6278 = vmatmul.f32.gmra.mxu0 %v6097
        %v6279 = vpop.f32.mrf.mxu0
        %v6280 = vadd.f32 %v6251, %v6279
        %6281 = vmatmul.f32.gmra.mxu0 %v6100
        %v6282 = vpop.f32.mrf.mxu0
        %v6283 = vadd.f32 %v6254, %v6282
        %6284 = vdwg.mxu0
        %6285 = vmatpush.msra.mxu0 %v6225
        %6286 = vmatpush.msra.mxu0 %v6223
        %6287 = vmatpush.msra.mxu0 %v6221
        %6288 = vmatpush.msra.mxu0 %v6219
        %6289 = vmatpush.msra.mxu0 %v6217
        %6290 = vmatpush.msra.mxu0 %v6215
        %6291 = vmatpush.msra.mxu0 %v6213
        %6292 = vmatpush.msra.mxu0 %v6211
        %6293 = vmatpush.msra.mxu0 %v6209
        %6294 = vmatpush.msra.mxu0 %v6207
        %6295 = vmatpush.msra.mxu0 %v6205
        %6296 = vmatpush.msra.mxu0 %v6203
        %6297 = vmatpush.msra.mxu0 %v6201
        %6298 = vmatpush.msra.mxu0 %v6199
        %6299 = vmatpush.msra.mxu0 %v6197
        %6300 = vmatpush.msra.mxu0 %v6195
        %6301 = vmatmul.f32.gmra.mxu0 %v6120
        %v6302 = vpop.f32.mrf.mxu0
        %v6303 = vadd.f32 %v6274, %v6302
        %6304 = vmatmul.f32.gmra.mxu0 %v6123
        %v6305 = vpop.f32.mrf.mxu0
        %v6306 = vadd.f32 %v6277, %v6305
        %6307 = vmatmul.f32.gmra.mxu0 %v6126
        %v6308 = vpop.f32.mrf.mxu0
        %v6309 = vadd.f32 %v6280, %v6308
        %6310 = vmatmul.f32.gmra.mxu0 %v6129
        %v6311 = vpop.f32.mrf.mxu0
        %v6312 = vadd.f32 %v6283, %v6311
        %6313 = vdwg.mxu0
        %6314 = vmatpush.msra.mxu0 %v6162
        %6315 = vmatpush.msra.mxu0 %v6160
        %6316 = vmatpush.msra.mxu0 %v6158
        %6317 = vmatpush.msra.mxu0 %v6156
        %6318 = vmatpush.msra.mxu0 %v6154
        %6319 = vmatpush.msra.mxu0 %v6152
        %6320 = vmatpush.msra.mxu0 %v6150
        %6321 = vmatpush.msra.mxu0 %v6148
        %6322 = vmatpush.msra.mxu0 %v6146
        %6323 = vmatpush.msra.mxu0 %v6144
        %6324 = vmatpush.msra.mxu0 %v6142
        %6325 = vmatpush.msra.mxu0 %v6140
        %6326 = vmatpush.msra.mxu0 %v6138
        %6327 = vmatpush.msra.mxu0 %v6136
        %6328 = vmatpush.msra.mxu0 %v6134
        %6329 = vmatpush.msra.mxu0 %v6132
        %6330 = vmatmul.f32.gmra.mxu0 %v6062
        %v6331 = vpop.f32.mrf.mxu0
        %v6332 = vadd.f32 0.0, %v6331
        %6333 = vmatmul.f32.gmra.mxu0 %v6065
        %v6334 = vpop.f32.mrf.mxu0
        %v6335 = vadd.f32 0.0, %v6334
        %6336 = vmatmul.f32.gmra.mxu0 %v6068
        %v6337 = vpop.f32.mrf.mxu0
        %v6338 = vadd.f32 0.0, %v6337
        %6339 = vmatmul.f32.gmra.mxu0 %v6071
        %v6340 = vpop.f32.mrf.mxu0
        %v6341 = vadd.f32 0.0, %v6340
        %6342 = vdwg.mxu0
        %6343 = vmatpush.msra.mxu0 %v6194
        %6344 = vmatpush.msra.mxu0 %v6192
        %6345 = vmatpush.msra.mxu0 %v6190
        %6346 = vmatpush.msra.mxu0 %v6188
        %6347 = vmatpush.msra.mxu0 %v6186
        %6348 = vmatpush.msra.mxu0 %v6184
        %6349 = vmatpush.msra.mxu0 %v6182
        %6350 = vmatpush.msra.mxu0 %v6180
        %6351 = vmatpush.msra.mxu0 %v6178
        %6352 = vmatpush.msra.mxu0 %v6176
        %6353 = vmatpush.msra.mxu0 %v6174
        %6354 = vmatpush.msra.mxu0 %v6172
        %6355 = vmatpush.msra.mxu0 %v6170
        %6356 = vmatpush.msra.mxu0 %v6168
        %6357 = vmatpush.msra.mxu0 %v6166
        %6358 = vmatpush.msra.mxu0 %v6164
        %6359 = vmatmul.f32.gmra.mxu0 %v6091
        %v6360 = vpop.f32.mrf.mxu0
        %v6361 = vadd.f32 %v6332, %v6360
        %6362 = vmatmul.f32.gmra.mxu0 %v6094
        %v6363 = vpop.f32.mrf.mxu0
        %v6364 = vadd.f32 %v6335, %v6363
        %6365 = vmatmul.f32.gmra.mxu0 %v6097
        %v6366 = vpop.f32.mrf.mxu0
        %v6367 = vadd.f32 %v6338, %v6366
        %6368 = vmatmul.f32.gmra.mxu0 %v6100
        %v6369 = vpop.f32.mrf.mxu0
        %v6370 = vadd.f32 %v6341, %v6369
        %6371 = vdwg.mxu0
        %6372 = vmatpush.msra.mxu0 %v6226
        %6373 = vmatpush.msra.mxu0 %v6224
        %6374 = vmatpush.msra.mxu0 %v6222
        %6375 = vmatpush.msra.mxu0 %v6220
        %6376 = vmatpush.msra.mxu0 %v6218
        %6377 = vmatpush.msra.mxu0 %v6216
        %6378 = vmatpush.msra.mxu0 %v6214
        %6379 = vmatpush.msra.mxu0 %v6212
        %6380 = vmatpush.msra.mxu0 %v6210
        %6381 = vmatpush.msra.mxu0 %v6208
        %6382 = vmatpush.msra.mxu0 %v6206
        %6383 = vmatpush.msra.mxu0 %v6204
        %6384 = vmatpush.msra.mxu0 %v6202
        %6385 = vmatpush.msra.mxu0 %v6200
        %6386 = vmatpush.msra.mxu0 %v6198
        %6387 = vmatpush.msra.mxu0 %v6196
        %6388 = vmatmul.f32.gmra.mxu0 %v6120
        %v6389 = vpop.f32.mrf.mxu0
        %v6390 = vadd.f32 %v6361, %v6389
        %6391 = vmatmul.f32.gmra.mxu0 %v6123
        %v6392 = vpop.f32.mrf.mxu0
        %v6393 = vadd.f32 %v6364, %v6392
        %6394 = vmatmul.f32.gmra.mxu0 %v6126
        %v6395 = vpop.f32.mrf.mxu0
        %v6396 = vadd.f32 %v6367, %v6395
        %6397 = vmatmul.f32.gmra.mxu0 %v6129
        %v6398 = vpop.f32.mrf.mxu0
        %v6399 = vadd.f32 %v6370, %v6398
        %6400 = vdwg.mxu0
        %v6409 = vrot.slane %v6303, 7
        %v6410 = vrot.slane %v6390, 7
        %v6411 = vrot.slane %v6306, 7
        %v6412 = vsel %vm946, %v6409, %v6411
        %v6413 = vrot.slane %v6393, 7
        %v6414 = vsel %vm946, %v6410, %v6413
        %v6415 = vrot.slane %v6309, 7
        %v6416 = vsel %vm946, %v6411, %v6415
        %v6417 = vrot.slane %v6396, 7
        %v6418 = vsel %vm946, %v6413, %v6417
        %v6419 = vrot.slane %v6312, 7
        %v6420 = vsel %vm946, %v6415, %v6419
        %v6421 = vrot.slane %v6399, 7
        %v6422 = vsel %vm946, %v6417, %v6421
        %v6428 = vsel %vm946, 0.0, %v6409
        %v6429 = vsel %vm946, 0.0, %v6410
        %v6430 = vrot.slane %v6303, 1
        %v6431 = vrot.slane %v6306, 1
        %v6432 = vsel %vm1091, %v6430, %v6431
        %v6433 = vrot.slane %v6390, 1
        %v6434 = vrot.slane %v6393, 1
        %v6435 = vsel %vm1091, %v6433, %v6434
        %v6436 = vrot.slane %v6309, 1
        %v6437 = vsel %vm1091, %v6431, %v6436
        %v6438 = vrot.slane %v6396, 1
        %v6439 = vsel %vm1091, %v6434, %v6438
        %v6440 = vrot.slane %v6312, 1
        %v6441 = vsel %vm1091, %v6436, %v6440
        %v6442 = vrot.slane %v6399, 1
        %v6443 = vsel %vm1091, %v6438, %v6442
        %v6449 = vsel %vm1091, %v6440, 0.0
        %v6450 = vsel %vm1091, %v6442, 0.0
        %v6451 = vld [vmem:[#allocation7] sm:$0xff]
        %v6452 = vld [vmem:[#allocation7 + $0x8] sm:$0xff]
        %v6453 = vld [vmem:[#allocation7 + $0x10] sm:$0xff]
        %v6454 = vld [vmem:[#allocation7 + $0x18] sm:$0xff]
        %v6455 = vld [vmem:[#allocation7 + $0x20] sm:$0xff]
        %v6456 = vld [vmem:[#allocation7 + $0x28] sm:$0xff]
        %v6457 = vld [vmem:[#allocation7 + $0x30] sm:$0xff]
        %v6458 = vld [vmem:[#allocation7 + $0x38] sm:$0xff]
        %v6459 = vld [vmem:[#allocation7 + $0x40] sm:$0xff]
        %v6460 = vld [vmem:[#allocation7 + $0x48] sm:$0xff]
        %v6461 = vld [vmem:[#allocation7 + $0x50] sm:$0xff]
        %v6462 = vld [vmem:[#allocation7 + $0x58] sm:$0xff]
        %v6463 = vld [vmem:[#allocation7 + $0x60] sm:$0xff]
        %v6464 = vld [vmem:[#allocation7 + $0x68] sm:$0xff]
        %v6465 = vld [vmem:[#allocation7 + $0x70] sm:$0xff]
        %v6466 = vld [vmem:[#allocation7 + $0x78] sm:$0xff]
        %v6467 = vld [vmem:[#allocation7 + $0x80] sm:$0xff]
        %v6468 = vld [vmem:[#allocation7 + $0x88] sm:$0xff]
        %v6469 = vld [vmem:[#allocation7 + $0x90] sm:$0xff]
        %v6470 = vld [vmem:[#allocation7 + $0x98] sm:$0xff]
        %v6471 = vld [vmem:[#allocation7 + $0xa0] sm:$0xff]
        %v6472 = vld [vmem:[#allocation7 + $0xa8] sm:$0xff]
        %v6473 = vld [vmem:[#allocation7 + $0xb0] sm:$0xff]
        %v6474 = vld [vmem:[#allocation7 + $0xb8] sm:$0xff]
        %v6475 = vld [vmem:[#allocation7 + $0xc0] sm:$0xff]
        %v6476 = vld [vmem:[#allocation7 + $0xc8] sm:$0xff]
        %v6477 = vld [vmem:[#allocation7 + $0xd0] sm:$0xff]
        %v6478 = vld [vmem:[#allocation7 + $0xd8] sm:$0xff]
        %v6479 = vld [vmem:[#allocation7 + $0xe0] sm:$0xff]
        %v6480 = vld [vmem:[#allocation7 + $0xe8] sm:$0xff]
        %v6481 = vld [vmem:[#allocation7 + $0xf0] sm:$0xff]
        %v6482 = vld [vmem:[#allocation7 + $0xf8] sm:$0xff]
        %v6483 = vld [vmem:[#allocation7 + $0x100] sm:$0xff]
        %v6484 = vld [vmem:[#allocation7 + $0x108] sm:$0xff]
        %v6485 = vld [vmem:[#allocation7 + $0x110] sm:$0xff]
        %v6486 = vld [vmem:[#allocation7 + $0x118] sm:$0xff]
        %v6487 = vld [vmem:[#allocation7 + $0x120] sm:$0xff]
        %v6488 = vld [vmem:[#allocation7 + $0x128] sm:$0xff]
        %v6489 = vld [vmem:[#allocation7 + $0x130] sm:$0xff]
        %v6490 = vld [vmem:[#allocation7 + $0x138] sm:$0xff]
        %v6491 = vld [vmem:[#allocation7 + $0x140] sm:$0xff]
        %v6492 = vld [vmem:[#allocation7 + $0x148] sm:$0xff]
        %v6493 = vld [vmem:[#allocation7 + $0x150] sm:$0xff]
        %v6494 = vld [vmem:[#allocation7 + $0x158] sm:$0xff]
        %v6495 = vld [vmem:[#allocation7 + $0x160] sm:$0xff]
        %v6496 = vld [vmem:[#allocation7 + $0x168] sm:$0xff]
        %v6497 = vld [vmem:[#allocation7 + $0x170] sm:$0xff]
        %v6498 = vld [vmem:[#allocation7 + $0x178] sm:$0xff]
        %v6499 = vld [vmem:[#allocation7 + $0x180] sm:$0xff]
        %v6500 = vld [vmem:[#allocation7 + $0x188] sm:$0xff]
        %v6501 = vld [vmem:[#allocation7 + $0x190] sm:$0xff]
        %v6502 = vld [vmem:[#allocation7 + $0x198] sm:$0xff]
        %v6503 = vld [vmem:[#allocation7 + $0x1a0] sm:$0xff]
        %v6504 = vld [vmem:[#allocation7 + $0x1a8] sm:$0xff]
        %v6505 = vld [vmem:[#allocation7 + $0x1b0] sm:$0xff]
        %v6506 = vld [vmem:[#allocation7 + $0x1b8] sm:$0xff]
        %v6507 = vld [vmem:[#allocation7 + $0x1c0] sm:$0xff]
        %v6508 = vld [vmem:[#allocation7 + $0x1c8] sm:$0xff]
        %v6509 = vld [vmem:[#allocation7 + $0x1d0] sm:$0xff]
        %v6510 = vld [vmem:[#allocation7 + $0x1d8] sm:$0xff]
        %v6511 = vld [vmem:[#allocation7 + $0x1e0] sm:$0xff]
        %v6512 = vld [vmem:[#allocation7 + $0x1e8] sm:$0xff]
        %v6513 = vld [vmem:[#allocation7 + $0x1f0] sm:$0xff]
        %v6514 = vld [vmem:[#allocation7 + $0x1f8] sm:$0xff]
        %v6515 = vld [vmem:[#allocation7 + $0x200] sm:$0xff]
        %v6516 = vld [vmem:[#allocation7 + $0x208] sm:$0xff]
        %v6517 = vld [vmem:[#allocation7 + $0x210] sm:$0xff]
        %v6518 = vld [vmem:[#allocation7 + $0x218] sm:$0xff]
        %v6519 = vld [vmem:[#allocation7 + $0x220] sm:$0xff]
        %v6520 = vld [vmem:[#allocation7 + $0x228] sm:$0xff]
        %v6521 = vld [vmem:[#allocation7 + $0x230] sm:$0xff]
        %v6522 = vld [vmem:[#allocation7 + $0x238] sm:$0xff]
        %s6523 = scalar_lea.vmem [#allocation7], 576
        %v6524 = vld [vmem:[%s6523] sm:$0xff]
        %v6525 = vld [vmem:[%s6523 + $0x8] sm:$0xff]
        %v6526 = vld [vmem:[%s6523 + $0x10] sm:$0xff]
        %v6527 = vld [vmem:[%s6523 + $0x18] sm:$0xff]
        %v6528 = vld [vmem:[%s6523 + $0x20] sm:$0xff]
        %v6529 = vld [vmem:[%s6523 + $0x28] sm:$0xff]
        %v6530 = vld [vmem:[%s6523 + $0x30] sm:$0xff]
        %v6531 = vld [vmem:[%s6523 + $0x38] sm:$0xff]
        %v6532 = vld [vmem:[%s6523 + $0x40] sm:$0xff]
        %v6533 = vld [vmem:[%s6523 + $0x48] sm:$0xff]
        %v6534 = vld [vmem:[%s6523 + $0x50] sm:$0xff]
        %v6535 = vld [vmem:[%s6523 + $0x58] sm:$0xff]
        %v6536 = vld [vmem:[%s6523 + $0x60] sm:$0xff]
        %v6537 = vld [vmem:[%s6523 + $0x68] sm:$0xff]
        %v6538 = vld [vmem:[%s6523 + $0x70] sm:$0xff]
        %v6539 = vld [vmem:[%s6523 + $0x78] sm:$0xff]
        %v6540 = vld [vmem:[%s6523 + $0x80] sm:$0xff]
        %v6541 = vld [vmem:[%s6523 + $0x88] sm:$0xff]
        %v6542 = vld [vmem:[%s6523 + $0x90] sm:$0xff]
        %v6543 = vld [vmem:[%s6523 + $0x98] sm:$0xff]
        %v6544 = vld [vmem:[%s6523 + $0xa0] sm:$0xff]
        %v6545 = vld [vmem:[%s6523 + $0xa8] sm:$0xff]
        %v6546 = vld [vmem:[%s6523 + $0xb0] sm:$0xff]
        %v6547 = vld [vmem:[%s6523 + $0xb8] sm:$0xff]
        %v6548 = vld [vmem:[%s6523 + $0xc0] sm:$0xff]
        %v6549 = vld [vmem:[%s6523 + $0xc8] sm:$0xff]
        %v6550 = vld [vmem:[%s6523 + $0xd0] sm:$0xff]
        %v6551 = vld [vmem:[%s6523 + $0xd8] sm:$0xff]
        %v6552 = vld [vmem:[%s6523 + $0xe0] sm:$0xff]
        %v6553 = vld [vmem:[%s6523 + $0xe8] sm:$0xff]
        %v6554 = vld [vmem:[%s6523 + $0xf0] sm:$0xff]
        %v6555 = vld [vmem:[%s6523 + $0xf8] sm:$0xff]
        %v6556 = vld [vmem:[%s6523 + $0x100] sm:$0xff]
        %v6557 = vld [vmem:[%s6523 + $0x108] sm:$0xff]
        %v6558 = vld [vmem:[%s6523 + $0x110] sm:$0xff]
        %v6559 = vld [vmem:[%s6523 + $0x118] sm:$0xff]
        %v6560 = vld [vmem:[%s6523 + $0x120] sm:$0xff]
        %v6561 = vld [vmem:[%s6523 + $0x128] sm:$0xff]
        %v6562 = vld [vmem:[%s6523 + $0x130] sm:$0xff]
        %v6563 = vld [vmem:[%s6523 + $0x138] sm:$0xff]
        %v6564 = vld [vmem:[%s6523 + $0x140] sm:$0xff]
        %v6565 = vld [vmem:[%s6523 + $0x148] sm:$0xff]
        %v6566 = vld [vmem:[%s6523 + $0x150] sm:$0xff]
        %v6567 = vld [vmem:[%s6523 + $0x158] sm:$0xff]
        %v6568 = vld [vmem:[%s6523 + $0x160] sm:$0xff]
        %v6569 = vld [vmem:[%s6523 + $0x168] sm:$0xff]
        %v6570 = vld [vmem:[%s6523 + $0x170] sm:$0xff]
        %v6571 = vld [vmem:[%s6523 + $0x178] sm:$0xff]
        %v6572 = vld [vmem:[%s6523 + $0x180] sm:$0xff]
        %v6573 = vld [vmem:[%s6523 + $0x188] sm:$0xff]
        %v6574 = vld [vmem:[%s6523 + $0x190] sm:$0xff]
        %v6575 = vld [vmem:[%s6523 + $0x198] sm:$0xff]
        %v6576 = vld [vmem:[%s6523 + $0x1a0] sm:$0xff]
        %v6577 = vld [vmem:[%s6523 + $0x1a8] sm:$0xff]
        %v6578 = vld [vmem:[%s6523 + $0x1b0] sm:$0xff]
        %v6579 = vld [vmem:[%s6523 + $0x1b8] sm:$0xff]
        %v6580 = vld [vmem:[%s6523 + $0x1c0] sm:$0xff]
        %v6581 = vld [vmem:[%s6523 + $0x1c8] sm:$0xff]
        %v6582 = vld [vmem:[%s6523 + $0x1d0] sm:$0xff]
        %v6583 = vld [vmem:[%s6523 + $0x1d8] sm:$0xff]
        %v6584 = vld [vmem:[%s6523 + $0x1e0] sm:$0xff]
        %v6585 = vld [vmem:[%s6523 + $0x1e8] sm:$0xff]
        %v6586 = vld [vmem:[%s6523 + $0x1f0] sm:$0xff]
        %v6587 = vld [vmem:[%s6523 + $0x1f8] sm:$0xff]
        %v6588 = vld [vmem:[%s6523 + $0x200] sm:$0xff]
        %v6589 = vld [vmem:[%s6523 + $0x208] sm:$0xff]
        %v6590 = vld [vmem:[%s6523 + $0x210] sm:$0xff]
        %v6591 = vld [vmem:[%s6523 + $0x218] sm:$0xff]
        %v6592 = vld [vmem:[%s6523 + $0x220] sm:$0xff]
        %v6593 = vld [vmem:[%s6523 + $0x228] sm:$0xff]
        %v6594 = vld [vmem:[%s6523 + $0x230] sm:$0xff]
        %v6595 = vld [vmem:[%s6523 + $0x238] sm:$0xff]
        %v6596 = vsel %vm4822, %v6390, 0
        %v6598 = vsel %vm4822, %v6393, 0
        %v6600 = vsel %vm4822, %v6396, 0
        %v6602 = vsel %vm4822, %v6399, 0
        %6604 = vmatpush.msra.mxu0 %v6569
        %6605 = vmatpush.msra.mxu0 %v6566
        %6606 = vmatpush.msra.mxu0 %v6563
        %6607 = vmatpush.msra.mxu0 %v6560
        %6608 = vmatpush.msra.mxu0 %v6557
        %6609 = vmatpush.msra.mxu0 %v6554
        %6610 = vmatpush.msra.mxu0 %v6551
        %6611 = vmatpush.msra.mxu0 %v6548
        %6612 = vmatpush.msra.mxu0 %v6545
        %6613 = vmatpush.msra.mxu0 %v6542
        %6614 = vmatpush.msra.mxu0 %v6539
        %6615 = vmatpush.msra.mxu0 %v6536
        %6616 = vmatpush.msra.mxu0 %v6533
        %6617 = vmatpush.msra.mxu0 %v6530
        %6618 = vmatpush.msra.mxu0 %v6527
        %6619 = vmatpush.msra.mxu0 %v6524
        %6620 = vmatmul.f32.gmra.mxu0 %v6303
        %v6621 = vpop.f32.mrf.mxu0
        %v6622 = vadd.f32 0.0, %v6621
        %6623 = vmatmul.f32.gmra.mxu0 %v6306
        %v6624 = vpop.f32.mrf.mxu0
        %v6625 = vadd.f32 0.0, %v6624
        %6626 = vmatmul.f32.gmra.mxu0 %v6309
        %v6627 = vpop.f32.mrf.mxu0
        %v6628 = vadd.f32 0.0, %v6627
        %6629 = vmatmul.f32.gmra.mxu0 %v6312
        %v6630 = vpop.f32.mrf.mxu0
        %v6631 = vadd.f32 0.0, %v6630
        %6632 = vdwg.mxu0
        %6633 = vmatpush.msra.mxu0 0.0
        %6634 = vmatpush.msra.mxu0 0.0
        %6635 = vmatpush.msra.mxu0 0.0
        %6636 = vmatpush.msra.mxu0 0.0
        %6637 = vmatpush.msra.mxu0 0.0
        %6638 = vmatpush.msra.mxu0 0.0
        %6639 = vmatpush.msra.mxu0 0.0
        %6640 = vmatpush.msra.mxu0 0.0
        %6641 = vmatpush.msra.mxu0 %v6593
        %6642 = vmatpush.msra.mxu0 %v6590
        %6643 = vmatpush.msra.mxu0 %v6587
        %6644 = vmatpush.msra.mxu0 %v6584
        %6645 = vmatpush.msra.mxu0 %v6581
        %6646 = vmatpush.msra.mxu0 %v6578
        %6647 = vmatpush.msra.mxu0 %v6575
        %6648 = vmatpush.msra.mxu0 %v6572
        %6649 = vmatmul.f32.gmra.mxu0 %v6596
        %v6650 = vpop.f32.mrf.mxu0
        %v6651 = vadd.f32 %v6622, %v6650
        %6652 = vmatmul.f32.gmra.mxu0 %v6598
        %v6653 = vpop.f32.mrf.mxu0
        %v6654 = vadd.f32 %v6625, %v6653
        %6655 = vmatmul.f32.gmra.mxu0 %v6600
        %v6656 = vpop.f32.mrf.mxu0
        %v6657 = vadd.f32 %v6628, %v6656
        %6658 = vmatmul.f32.gmra.mxu0 %v6602
        %v6659 = vpop.f32.mrf.mxu0
        %v6660 = vadd.f32 %v6631, %v6659
        %6661 = vdwg.mxu0
        %6662 = vmatpush.msra.mxu0 %v6570
        %6663 = vmatpush.msra.mxu0 %v6567
        %6664 = vmatpush.msra.mxu0 %v6564
        %6665 = vmatpush.msra.mxu0 %v6561
        %6666 = vmatpush.msra.mxu0 %v6558
        %6667 = vmatpush.msra.mxu0 %v6555
        %6668 = vmatpush.msra.mxu0 %v6552
        %6669 = vmatpush.msra.mxu0 %v6549
        %6670 = vmatpush.msra.mxu0 %v6546
        %6671 = vmatpush.msra.mxu0 %v6543
        %6672 = vmatpush.msra.mxu0 %v6540
        %6673 = vmatpush.msra.mxu0 %v6537
        %6674 = vmatpush.msra.mxu0 %v6534
        %6675 = vmatpush.msra.mxu0 %v6531
        %6676 = vmatpush.msra.mxu0 %v6528
        %6677 = vmatpush.msra.mxu0 %v6525
        %6678 = vmatmul.f32.gmra.mxu0 %v6303
        %v6679 = vpop.f32.mrf.mxu0
        %v6680 = vadd.f32 0.0, %v6679
        %6681 = vmatmul.f32.gmra.mxu0 %v6306
        %v6682 = vpop.f32.mrf.mxu0
        %v6683 = vadd.f32 0.0, %v6682
        %6684 = vmatmul.f32.gmra.mxu0 %v6309
        %v6685 = vpop.f32.mrf.mxu0
        %v6686 = vadd.f32 0.0, %v6685
        %6687 = vmatmul.f32.gmra.mxu0 %v6312
        %v6688 = vpop.f32.mrf.mxu0
        %v6689 = vadd.f32 0.0, %v6688
        %6690 = vdwg.mxu0
        %6691 = vmatpush.msra.mxu0 0.0
        %6692 = vmatpush.msra.mxu0 0.0
        %6693 = vmatpush.msra.mxu0 0.0
        %6694 = vmatpush.msra.mxu0 0.0
        %6695 = vmatpush.msra.mxu0 0.0
        %6696 = vmatpush.msra.mxu0 0.0
        %6697 = vmatpush.msra.mxu0 0.0
        %6698 = vmatpush.msra.mxu0 0.0
        %6699 = vmatpush.msra.mxu0 %v6594
        %6700 = vmatpush.msra.mxu0 %v6591
        %6701 = vmatpush.msra.mxu0 %v6588
        %6702 = vmatpush.msra.mxu0 %v6585
        %6703 = vmatpush.msra.mxu0 %v6582
        %6704 = vmatpush.msra.mxu0 %v6579
        %6705 = vmatpush.msra.mxu0 %v6576
        %6706 = vmatpush.msra.mxu0 %v6573
        %6707 = vmatmul.f32.gmra.mxu0 %v6596
        %v6708 = vpop.f32.mrf.mxu0
        %v6709 = vadd.f32 %v6680, %v6708
        %6710 = vmatmul.f32.gmra.mxu0 %v6598
        %v6711 = vpop.f32.mrf.mxu0
        %v6712 = vadd.f32 %v6683, %v6711
        %6713 = vmatmul.f32.gmra.mxu0 %v6600
        %v6714 = vpop.f32.mrf.mxu0
        %v6715 = vadd.f32 %v6686, %v6714
        %6716 = vmatmul.f32.gmra.mxu0 %v6602
        %v6717 = vpop.f32.mrf.mxu0
        %v6718 = vadd.f32 %v6689, %v6717
        %6719 = vdwg.mxu0
        %6720 = vmatpush.msra.mxu0 %v6571
        %6721 = vmatpush.msra.mxu0 %v6568
        %6722 = vmatpush.msra.mxu0 %v6565
        %6723 = vmatpush.msra.mxu0 %v6562
        %6724 = vmatpush.msra.mxu0 %v6559
        %6725 = vmatpush.msra.mxu0 %v6556
        %6726 = vmatpush.msra.mxu0 %v6553
        %6727 = vmatpush.msra.mxu0 %v6550
        %6728 = vmatpush.msra.mxu0 %v6547
        %6729 = vmatpush.msra.mxu0 %v6544
        %6730 = vmatpush.msra.mxu0 %v6541
        %6731 = vmatpush.msra.mxu0 %v6538
        %6732 = vmatpush.msra.mxu0 %v6535
        %6733 = vmatpush.msra.mxu0 %v6532
        %6734 = vmatpush.msra.mxu0 %v6529
        %6735 = vmatpush.msra.mxu0 %v6526
        %6736 = vmatmul.f32.gmra.mxu0 %v6303
        %v6737 = vpop.f32.mrf.mxu0
        %v6738 = vadd.f32 0.0, %v6737
        %6739 = vmatmul.f32.gmra.mxu0 %v6306
        %v6740 = vpop.f32.mrf.mxu0
        %v6741 = vadd.f32 0.0, %v6740
        %6742 = vmatmul.f32.gmra.mxu0 %v6309
        %v6743 = vpop.f32.mrf.mxu0
        %v6744 = vadd.f32 0.0, %v6743
        %6745 = vmatmul.f32.gmra.mxu0 %v6312
        %v6746 = vpop.f32.mrf.mxu0
        %v6747 = vadd.f32 0.0, %v6746
        %6748 = vdwg.mxu0
        %6749 = vmatpush.msra.mxu0 0.0
        %6750 = vmatpush.msra.mxu0 0.0
        %6751 = vmatpush.msra.mxu0 0.0
        %6752 = vmatpush.msra.mxu0 0.0
        %6753 = vmatpush.msra.mxu0 0.0
        %6754 = vmatpush.msra.mxu0 0.0
        %6755 = vmatpush.msra.mxu0 0.0
        %6756 = vmatpush.msra.mxu0 0.0
        %6757 = vmatpush.msra.mxu0 %v6595
        %6758 = vmatpush.msra.mxu0 %v6592
        %6759 = vmatpush.msra.mxu0 %v6589
        %6760 = vmatpush.msra.mxu0 %v6586
        %6761 = vmatpush.msra.mxu0 %v6583
        %6762 = vmatpush.msra.mxu0 %v6580
        %6763 = vmatpush.msra.mxu0 %v6577
        %6764 = vmatpush.msra.mxu0 %v6574
        %6765 = vmatmul.f32.gmra.mxu0 %v6596
        %v6766 = vpop.f32.mrf.mxu0
        %v6767 = vadd.f32 %v6738, %v6766
        %6768 = vmatmul.f32.gmra.mxu0 %v6598
        %v6769 = vpop.f32.mrf.mxu0
        %v6770 = vadd.f32 %v6741, %v6769
        %6771 = vmatmul.f32.gmra.mxu0 %v6600
        %v6772 = vpop.f32.mrf.mxu0
        %v6773 = vadd.f32 %v6744, %v6772
        %6774 = vmatmul.f32.gmra.mxu0 %v6602
        %v6775 = vpop.f32.mrf.mxu0
        %v6776 = vadd.f32 %v6747, %v6775
        %6777 = vdwg.mxu0
        %v6779 = vsel %vm4822, %v6429, 0
        %v6781 = vsel %vm4822, %v6414, 0
        %v6783 = vsel %vm4822, %v6418, 0
        %v6785 = vsel %vm4822, %v6422, 0
        %6787 = vmatpush.msra.mxu0 %v6496
        %6788 = vmatpush.msra.mxu0 %v6493
        %6789 = vmatpush.msra.mxu0 %v6490
        %6790 = vmatpush.msra.mxu0 %v6487
        %6791 = vmatpush.msra.mxu0 %v6484
        %6792 = vmatpush.msra.mxu0 %v6481
        %6793 = vmatpush.msra.mxu0 %v6478
        %6794 = vmatpush.msra.mxu0 %v6475
        %6795 = vmatpush.msra.mxu0 %v6472
        %6796 = vmatpush.msra.mxu0 %v6469
        %6797 = vmatpush.msra.mxu0 %v6466
        %6798 = vmatpush.msra.mxu0 %v6463
        %6799 = vmatpush.msra.mxu0 %v6460
        %6800 = vmatpush.msra.mxu0 %v6457
        %6801 = vmatpush.msra.mxu0 %v6454
        %6802 = vmatpush.msra.mxu0 %v6451
        %6803 = vmatmul.f32.gmra.mxu0 %v6428
        %v6804 = vpop.f32.mrf.mxu0
        %v6805 = vadd.f32 %v6651, %v6804
        %6806 = vmatmul.f32.gmra.mxu0 %v6412
        %v6807 = vpop.f32.mrf.mxu0
        %v6808 = vadd.f32 %v6654, %v6807
        %6809 = vmatmul.f32.gmra.mxu0 %v6416
        %v6810 = vpop.f32.mrf.mxu0
        %v6811 = vadd.f32 %v6657, %v6810
        %6812 = vmatmul.f32.gmra.mxu0 %v6420
        %v6813 = vpop.f32.mrf.mxu0
        %v6814 = vadd.f32 %v6660, %v6813
        %6815 = vdwg.mxu0
        %6816 = vmatpush.msra.mxu0 0.0
        %6817 = vmatpush.msra.mxu0 0.0
        %6818 = vmatpush.msra.mxu0 0.0
        %6819 = vmatpush.msra.mxu0 0.0
        %6820 = vmatpush.msra.mxu0 0.0
        %6821 = vmatpush.msra.mxu0 0.0
        %6822 = vmatpush.msra.mxu0 0.0
        %6823 = vmatpush.msra.mxu0 0.0
        %6824 = vmatpush.msra.mxu0 %v6520
        %6825 = vmatpush.msra.mxu0 %v6517
        %6826 = vmatpush.msra.mxu0 %v6514
        %6827 = vmatpush.msra.mxu0 %v6511
        %6828 = vmatpush.msra.mxu0 %v6508
        %6829 = vmatpush.msra.mxu0 %v6505
        %6830 = vmatpush.msra.mxu0 %v6502
        %6831 = vmatpush.msra.mxu0 %v6499
        %6832 = vmatmul.f32.gmra.mxu0 %v6779
        %v6833 = vpop.f32.mrf.mxu0
        %v6834 = vadd.f32 %v6805, %v6833
        %6835 = vmatmul.f32.gmra.mxu0 %v6781
        %v6836 = vpop.f32.mrf.mxu0
        %v6837 = vadd.f32 %v6808, %v6836
        %6838 = vmatmul.f32.gmra.mxu0 %v6783
        %v6839 = vpop.f32.mrf.mxu0
        %v6840 = vadd.f32 %v6811, %v6839
        %6841 = vmatmul.f32.gmra.mxu0 %v6785
        %v6842 = vpop.f32.mrf.mxu0
        %v6843 = vadd.f32 %v6814, %v6842
        %6844 = vdwg.mxu0
        %6845 = vmatpush.msra.mxu0 %v6497
        %6846 = vmatpush.msra.mxu0 %v6494
        %6847 = vmatpush.msra.mxu0 %v6491
        %6848 = vmatpush.msra.mxu0 %v6488
        %6849 = vmatpush.msra.mxu0 %v6485
        %6850 = vmatpush.msra.mxu0 %v6482
        %6851 = vmatpush.msra.mxu0 %v6479
        %6852 = vmatpush.msra.mxu0 %v6476
        %6853 = vmatpush.msra.mxu0 %v6473
        %6854 = vmatpush.msra.mxu0 %v6470
        %6855 = vmatpush.msra.mxu0 %v6467
        %6856 = vmatpush.msra.mxu0 %v6464
        %6857 = vmatpush.msra.mxu0 %v6461
        %6858 = vmatpush.msra.mxu0 %v6458
        %6859 = vmatpush.msra.mxu0 %v6455
        %6860 = vmatpush.msra.mxu0 %v6452
        %6861 = vmatmul.f32.gmra.mxu0 %v6428
        %v6862 = vpop.f32.mrf.mxu0
        %v6863 = vadd.f32 %v6709, %v6862
        %6864 = vmatmul.f32.gmra.mxu0 %v6412
        %v6865 = vpop.f32.mrf.mxu0
        %v6866 = vadd.f32 %v6712, %v6865
        %6867 = vmatmul.f32.gmra.mxu0 %v6416
        %v6868 = vpop.f32.mrf.mxu0
        %v6869 = vadd.f32 %v6715, %v6868
        %6870 = vmatmul.f32.gmra.mxu0 %v6420
        %v6871 = vpop.f32.mrf.mxu0
        %v6872 = vadd.f32 %v6718, %v6871
        %6873 = vdwg.mxu0
        %6874 = vmatpush.msra.mxu0 0.0
        %6875 = vmatpush.msra.mxu0 0.0
        %6876 = vmatpush.msra.mxu0 0.0
        %6877 = vmatpush.msra.mxu0 0.0
        %6878 = vmatpush.msra.mxu0 0.0
        %6879 = vmatpush.msra.mxu0 0.0
        %6880 = vmatpush.msra.mxu0 0.0
        %6881 = vmatpush.msra.mxu0 0.0
        %6882 = vmatpush.msra.mxu0 %v6521
        %6883 = vmatpush.msra.mxu0 %v6518
        %6884 = vmatpush.msra.mxu0 %v6515
        %6885 = vmatpush.msra.mxu0 %v6512
        %6886 = vmatpush.msra.mxu0 %v6509
        %6887 = vmatpush.msra.mxu0 %v6506
        %6888 = vmatpush.msra.mxu0 %v6503
        %6889 = vmatpush.msra.mxu0 %v6500
        %6890 = vmatmul.f32.gmra.mxu0 %v6779
        %v6891 = vpop.f32.mrf.mxu0
        %v6892 = vadd.f32 %v6863, %v6891
        %6893 = vmatmul.f32.gmra.mxu0 %v6781
        %v6894 = vpop.f32.mrf.mxu0
        %v6895 = vadd.f32 %v6866, %v6894
        %6896 = vmatmul.f32.gmra.mxu0 %v6783
        %v6897 = vpop.f32.mrf.mxu0
        %v6898 = vadd.f32 %v6869, %v6897
        %6899 = vmatmul.f32.gmra.mxu0 %v6785
        %v6900 = vpop.f32.mrf.mxu0
        %v6901 = vadd.f32 %v6872, %v6900
        %6902 = vdwg.mxu0
        %6903 = vmatpush.msra.mxu0 %v6498
        %6904 = vmatpush.msra.mxu0 %v6495
        %6905 = vmatpush.msra.mxu0 %v6492
        %6906 = vmatpush.msra.mxu0 %v6489
        %6907 = vmatpush.msra.mxu0 %v6486
        %6908 = vmatpush.msra.mxu0 %v6483
        %6909 = vmatpush.msra.mxu0 %v6480
        %6910 = vmatpush.msra.mxu0 %v6477
        %6911 = vmatpush.msra.mxu0 %v6474
        %6912 = vmatpush.msra.mxu0 %v6471
        %6913 = vmatpush.msra.mxu0 %v6468
        %6914 = vmatpush.msra.mxu0 %v6465
        %6915 = vmatpush.msra.mxu0 %v6462
        %6916 = vmatpush.msra.mxu0 %v6459
        %6917 = vmatpush.msra.mxu0 %v6456
        %6918 = vmatpush.msra.mxu0 %v6453
        %6919 = vmatmul.f32.gmra.mxu0 %v6428
        %v6920 = vpop.f32.mrf.mxu0
        %v6921 = vadd.f32 %v6767, %v6920
        %6922 = vmatmul.f32.gmra.mxu0 %v6412
        %v6923 = vpop.f32.mrf.mxu0
        %v6924 = vadd.f32 %v6770, %v6923
        %6925 = vmatmul.f32.gmra.mxu0 %v6416
        %v6926 = vpop.f32.mrf.mxu0
        %v6927 = vadd.f32 %v6773, %v6926
        %6928 = vmatmul.f32.gmra.mxu0 %v6420
        %v6929 = vpop.f32.mrf.mxu0
        %v6930 = vadd.f32 %v6776, %v6929
        %6931 = vdwg.mxu0
        %6932 = vmatpush.msra.mxu0 0.0
        %6933 = vmatpush.msra.mxu0 0.0
        %6934 = vmatpush.msra.mxu0 0.0
        %6935 = vmatpush.msra.mxu0 0.0
        %6936 = vmatpush.msra.mxu0 0.0
        %6937 = vmatpush.msra.mxu0 0.0
        %6938 = vmatpush.msra.mxu0 0.0
        %6939 = vmatpush.msra.mxu0 0.0
        %6940 = vmatpush.msra.mxu0 %v6522
        %6941 = vmatpush.msra.mxu0 %v6519
        %6942 = vmatpush.msra.mxu0 %v6516
        %6943 = vmatpush.msra.mxu0 %v6513
        %6944 = vmatpush.msra.mxu0 %v6510
        %6945 = vmatpush.msra.mxu0 %v6507
        %6946 = vmatpush.msra.mxu0 %v6504
        %6947 = vmatpush.msra.mxu0 %v6501
        %6948 = vmatmul.f32.gmra.mxu0 %v6779
        %v6949 = vpop.f32.mrf.mxu0
        %v6950 = vadd.f32 %v6921, %v6949
        %6951 = vmatmul.f32.gmra.mxu0 %v6781
        %v6952 = vpop.f32.mrf.mxu0
        %v6953 = vadd.f32 %v6924, %v6952
        %6954 = vmatmul.f32.gmra.mxu0 %v6783
        %v6955 = vpop.f32.mrf.mxu0
        %v6956 = vadd.f32 %v6927, %v6955
        %6957 = vmatmul.f32.gmra.mxu0 %v6785
        %v6958 = vpop.f32.mrf.mxu0
        %v6959 = vadd.f32 %v6930, %v6958
        %6960 = vdwg.mxu0
        %s6961 = scalar_lea.vmem [#allocation7], 1152
        %v6962 = vld [vmem:[%s6961] sm:$0xff]
        %v6963 = vld [vmem:[%s6961 + $0x8] sm:$0xff]
        %v6964 = vld [vmem:[%s6961 + $0x10] sm:$0xff]
        %v6965 = vld [vmem:[%s6961 + $0x18] sm:$0xff]
        %v6966 = vld [vmem:[%s6961 + $0x20] sm:$0xff]
        %v6967 = vld [vmem:[%s6961 + $0x28] sm:$0xff]
        %v6968 = vld [vmem:[%s6961 + $0x30] sm:$0xff]
        %v6969 = vld [vmem:[%s6961 + $0x38] sm:$0xff]
        %v6970 = vld [vmem:[%s6961 + $0x40] sm:$0xff]
        %v6971 = vld [vmem:[%s6961 + $0x48] sm:$0xff]
        %v6972 = vld [vmem:[%s6961 + $0x50] sm:$0xff]
        %v6973 = vld [vmem:[%s6961 + $0x58] sm:$0xff]
        %v6974 = vld [vmem:[%s6961 + $0x60] sm:$0xff]
        %v6975 = vld [vmem:[%s6961 + $0x68] sm:$0xff]
        %v6976 = vld [vmem:[%s6961 + $0x70] sm:$0xff]
        %v6977 = vld [vmem:[%s6961 + $0x78] sm:$0xff]
        %v6978 = vld [vmem:[%s6961 + $0x80] sm:$0xff]
        %v6979 = vld [vmem:[%s6961 + $0x88] sm:$0xff]
        %v6980 = vld [vmem:[%s6961 + $0x90] sm:$0xff]
        %v6981 = vld [vmem:[%s6961 + $0x98] sm:$0xff]
        %v6982 = vld [vmem:[%s6961 + $0xa0] sm:$0xff]
        %v6983 = vld [vmem:[%s6961 + $0xa8] sm:$0xff]
        %v6984 = vld [vmem:[%s6961 + $0xb0] sm:$0xff]
        %v6985 = vld [vmem:[%s6961 + $0xb8] sm:$0xff]
        %v6986 = vld [vmem:[%s6961 + $0xc0] sm:$0xff]
        %v6987 = vld [vmem:[%s6961 + $0xc8] sm:$0xff]
        %v6988 = vld [vmem:[%s6961 + $0xd0] sm:$0xff]
        %v6989 = vld [vmem:[%s6961 + $0xd8] sm:$0xff]
        %v6990 = vld [vmem:[%s6961 + $0xe0] sm:$0xff]
        %v6991 = vld [vmem:[%s6961 + $0xe8] sm:$0xff]
        %v6992 = vld [vmem:[%s6961 + $0xf0] sm:$0xff]
        %v6993 = vld [vmem:[%s6961 + $0xf8] sm:$0xff]
        %v6994 = vld [vmem:[%s6961 + $0x100] sm:$0xff]
        %v6995 = vld [vmem:[%s6961 + $0x108] sm:$0xff]
        %v6996 = vld [vmem:[%s6961 + $0x110] sm:$0xff]
        %v6997 = vld [vmem:[%s6961 + $0x118] sm:$0xff]
        %v6998 = vld [vmem:[%s6961 + $0x120] sm:$0xff]
        %v6999 = vld [vmem:[%s6961 + $0x128] sm:$0xff]
        %v7000 = vld [vmem:[%s6961 + $0x130] sm:$0xff]
        %v7001 = vld [vmem:[%s6961 + $0x138] sm:$0xff]
        %v7002 = vld [vmem:[%s6961 + $0x140] sm:$0xff]
        %v7003 = vld [vmem:[%s6961 + $0x148] sm:$0xff]
        %v7004 = vld [vmem:[%s6961 + $0x150] sm:$0xff]
        %v7005 = vld [vmem:[%s6961 + $0x158] sm:$0xff]
        %v7006 = vld [vmem:[%s6961 + $0x160] sm:$0xff]
        %v7007 = vld [vmem:[%s6961 + $0x168] sm:$0xff]
        %v7008 = vld [vmem:[%s6961 + $0x170] sm:$0xff]
        %v7009 = vld [vmem:[%s6961 + $0x178] sm:$0xff]
        %v7010 = vld [vmem:[%s6961 + $0x180] sm:$0xff]
        %v7011 = vld [vmem:[%s6961 + $0x188] sm:$0xff]
        %v7012 = vld [vmem:[%s6961 + $0x190] sm:$0xff]
        %v7013 = vld [vmem:[%s6961 + $0x198] sm:$0xff]
        %v7014 = vld [vmem:[%s6961 + $0x1a0] sm:$0xff]
        %v7015 = vld [vmem:[%s6961 + $0x1a8] sm:$0xff]
        %v7016 = vld [vmem:[%s6961 + $0x1b0] sm:$0xff]
        %v7017 = vld [vmem:[%s6961 + $0x1b8] sm:$0xff]
        %v7018 = vld [vmem:[%s6961 + $0x1c0] sm:$0xff]
        %v7019 = vld [vmem:[%s6961 + $0x1c8] sm:$0xff]
        %v7020 = vld [vmem:[%s6961 + $0x1d0] sm:$0xff]
        %v7021 = vld [vmem:[%s6961 + $0x1d8] sm:$0xff]
        %v7022 = vld [vmem:[%s6961 + $0x1e0] sm:$0xff]
        %v7023 = vld [vmem:[%s6961 + $0x1e8] sm:$0xff]
        %v7024 = vld [vmem:[%s6961 + $0x1f0] sm:$0xff]
        %v7025 = vld [vmem:[%s6961 + $0x1f8] sm:$0xff]
        %v7026 = vld [vmem:[%s6961 + $0x200] sm:$0xff]
        %v7027 = vld [vmem:[%s6961 + $0x208] sm:$0xff]
        %v7028 = vld [vmem:[%s6961 + $0x210] sm:$0xff]
        %v7029 = vld [vmem:[%s6961 + $0x218] sm:$0xff]
        %v7030 = vld [vmem:[%s6961 + $0x220] sm:$0xff]
        %v7031 = vld [vmem:[%s6961 + $0x228] sm:$0xff]
        %v7032 = vld [vmem:[%s6961 + $0x230] sm:$0xff]
        %v7033 = vld [vmem:[%s6961 + $0x238] sm:$0xff]
        %v7034 = vsel %vm4822, %v6435, 0
        %v7036 = vsel %vm4822, %v6439, 0
        %v7038 = vsel %vm4822, %v6443, 0
        %v7041 = vsel %vm4822, %v6450, 0
        %7043 = vmatpush.msra.mxu0 %v7007
        %7044 = vmatpush.msra.mxu0 %v7004
        %7045 = vmatpush.msra.mxu0 %v7001
        %7046 = vmatpush.msra.mxu0 %v6998
        %7047 = vmatpush.msra.mxu0 %v6995
        %7048 = vmatpush.msra.mxu0 %v6992
        %7049 = vmatpush.msra.mxu0 %v6989
        %7050 = vmatpush.msra.mxu0 %v6986
        %7051 = vmatpush.msra.mxu0 %v6983
        %7052 = vmatpush.msra.mxu0 %v6980
        %7053 = vmatpush.msra.mxu0 %v6977
        %7054 = vmatpush.msra.mxu0 %v6974
        %7055 = vmatpush.msra.mxu0 %v6971
        %7056 = vmatpush.msra.mxu0 %v6968
        %7057 = vmatpush.msra.mxu0 %v6965
        %7058 = vmatpush.msra.mxu0 %v6962
        %7059 = vmatmul.f32.gmra.mxu0 %v6432
        %v7060 = vpop.f32.mrf.mxu0
        %v7061 = vadd.f32 0.0, %v7060
        %7062 = vmatmul.f32.gmra.mxu0 %v6437
        %v7063 = vpop.f32.mrf.mxu0
        %v7064 = vadd.f32 0.0, %v7063
        %7065 = vmatmul.f32.gmra.mxu0 %v6441
        %v7066 = vpop.f32.mrf.mxu0
        %v7067 = vadd.f32 0.0, %v7066
        %7068 = vmatmul.f32.gmra.mxu0 %v6449
        %v7069 = vpop.f32.mrf.mxu0
        %v7070 = vadd.f32 0.0, %v7069
        %7071 = vdwg.mxu0
        %7072 = vmatpush.msra.mxu0 0.0
        %7073 = vmatpush.msra.mxu0 0.0
        %7074 = vmatpush.msra.mxu0 0.0
        %7075 = vmatpush.msra.mxu0 0.0
        %7076 = vmatpush.msra.mxu0 0.0
        %7077 = vmatpush.msra.mxu0 0.0
        %7078 = vmatpush.msra.mxu0 0.0
        %7079 = vmatpush.msra.mxu0 0.0
        %7080 = vmatpush.msra.mxu0 %v7031
        %7081 = vmatpush.msra.mxu0 %v7028
        %7082 = vmatpush.msra.mxu0 %v7025
        %7083 = vmatpush.msra.mxu0 %v7022
        %7084 = vmatpush.msra.mxu0 %v7019
        %7085 = vmatpush.msra.mxu0 %v7016
        %7086 = vmatpush.msra.mxu0 %v7013
        %7087 = vmatpush.msra.mxu0 %v7010
        %7088 = vmatmul.f32.gmra.mxu0 %v7034
        %v7089 = vpop.f32.mrf.mxu0
        %v7090 = vadd.f32 %v7061, %v7089
        %7091 = vmatmul.f32.gmra.mxu0 %v7036
        %v7092 = vpop.f32.mrf.mxu0
        %v7093 = vadd.f32 %v7064, %v7092
        %7094 = vmatmul.f32.gmra.mxu0 %v7038
        %v7095 = vpop.f32.mrf.mxu0
        %v7096 = vadd.f32 %v7067, %v7095
        %7097 = vmatmul.f32.gmra.mxu0 %v7041
        %v7098 = vpop.f32.mrf.mxu0
        %v7099 = vadd.f32 %v7070, %v7098
        %7100 = vdwg.mxu0
        %7101 = vmatpush.msra.mxu0 %v7008
        %7102 = vmatpush.msra.mxu0 %v7005
        %7103 = vmatpush.msra.mxu0 %v7002
        %7104 = vmatpush.msra.mxu0 %v6999
        %7105 = vmatpush.msra.mxu0 %v6996
        %7106 = vmatpush.msra.mxu0 %v6993
        %7107 = vmatpush.msra.mxu0 %v6990
        %7108 = vmatpush.msra.mxu0 %v6987
        %7109 = vmatpush.msra.mxu0 %v6984
        %7110 = vmatpush.msra.mxu0 %v6981
        %7111 = vmatpush.msra.mxu0 %v6978
        %7112 = vmatpush.msra.mxu0 %v6975
        %7113 = vmatpush.msra.mxu0 %v6972
        %7114 = vmatpush.msra.mxu0 %v6969
        %7115 = vmatpush.msra.mxu0 %v6966
        %7116 = vmatpush.msra.mxu0 %v6963
        %7117 = vmatmul.f32.gmra.mxu0 %v6432
        %v7118 = vpop.f32.mrf.mxu0
        %v7119 = vadd.f32 0.0, %v7118
        %7120 = vmatmul.f32.gmra.mxu0 %v6437
        %v7121 = vpop.f32.mrf.mxu0
        %v7122 = vadd.f32 0.0, %v7121
        %7123 = vmatmul.f32.gmra.mxu0 %v6441
        %v7124 = vpop.f32.mrf.mxu0
        %v7125 = vadd.f32 0.0, %v7124
        %7126 = vmatmul.f32.gmra.mxu0 %v6449
        %v7127 = vpop.f32.mrf.mxu0
        %v7128 = vadd.f32 0.0, %v7127
        %7129 = vdwg.mxu0
        %7130 = vmatpush.msra.mxu0 0.0
        %7131 = vmatpush.msra.mxu0 0.0
        %7132 = vmatpush.msra.mxu0 0.0
        %7133 = vmatpush.msra.mxu0 0.0
        %7134 = vmatpush.msra.mxu0 0.0
        %7135 = vmatpush.msra.mxu0 0.0
        %7136 = vmatpush.msra.mxu0 0.0
        %7137 = vmatpush.msra.mxu0 0.0
        %7138 = vmatpush.msra.mxu0 %v7032
        %7139 = vmatpush.msra.mxu0 %v7029
        %7140 = vmatpush.msra.mxu0 %v7026
        %7141 = vmatpush.msra.mxu0 %v7023
        %7142 = vmatpush.msra.mxu0 %v7020
        %7143 = vmatpush.msra.mxu0 %v7017
        %7144 = vmatpush.msra.mxu0 %v7014
        %7145 = vmatpush.msra.mxu0 %v7011
        %7146 = vmatmul.f32.gmra.mxu0 %v7034
        %v7147 = vpop.f32.mrf.mxu0
        %v7148 = vadd.f32 %v7119, %v7147
        %7149 = vmatmul.f32.gmra.mxu0 %v7036
        %v7150 = vpop.f32.mrf.mxu0
        %v7151 = vadd.f32 %v7122, %v7150
        %7152 = vmatmul.f32.gmra.mxu0 %v7038
        %v7153 = vpop.f32.mrf.mxu0
        %v7154 = vadd.f32 %v7125, %v7153
        %7155 = vmatmul.f32.gmra.mxu0 %v7041
        %v7156 = vpop.f32.mrf.mxu0
        %v7157 = vadd.f32 %v7128, %v7156
        %7158 = vdwg.mxu0
        %7159 = vmatpush.msra.mxu0 %v7009
        %7160 = vmatpush.msra.mxu0 %v7006
        %7161 = vmatpush.msra.mxu0 %v7003
        %7162 = vmatpush.msra.mxu0 %v7000
        %7163 = vmatpush.msra.mxu0 %v6997
        %7164 = vmatpush.msra.mxu0 %v6994
        %7165 = vmatpush.msra.mxu0 %v6991
        %7166 = vmatpush.msra.mxu0 %v6988
        %7167 = vmatpush.msra.mxu0 %v6985
        %7168 = vmatpush.msra.mxu0 %v6982
        %7169 = vmatpush.msra.mxu0 %v6979
        %7170 = vmatpush.msra.mxu0 %v6976
        %7171 = vmatpush.msra.mxu0 %v6973
        %7172 = vmatpush.msra.mxu0 %v6970
        %7173 = vmatpush.msra.mxu0 %v6967
        %7174 = vmatpush.msra.mxu0 %v6964
        %7175 = vmatmul.f32.gmra.mxu0 %v6432
        %v7176 = vpop.f32.mrf.mxu0
        %v7177 = vadd.f32 0.0, %v7176
        %7178 = vmatmul.f32.gmra.mxu0 %v6437
        %v7179 = vpop.f32.mrf.mxu0
        %v7180 = vadd.f32 0.0, %v7179
        %7181 = vmatmul.f32.gmra.mxu0 %v6441
        %v7182 = vpop.f32.mrf.mxu0
        %v7183 = vadd.f32 0.0, %v7182
        %7184 = vmatmul.f32.gmra.mxu0 %v6449
        %v7185 = vpop.f32.mrf.mxu0
        %v7186 = vadd.f32 0.0, %v7185
        %7187 = vdwg.mxu0
        %7188 = vmatpush.msra.mxu0 0.0
        %7189 = vmatpush.msra.mxu0 0.0
        %7190 = vmatpush.msra.mxu0 0.0
        %7191 = vmatpush.msra.mxu0 0.0
        %7192 = vmatpush.msra.mxu0 0.0
        %7193 = vmatpush.msra.mxu0 0.0
        %7194 = vmatpush.msra.mxu0 0.0
        %7195 = vmatpush.msra.mxu0 0.0
        %7196 = vmatpush.msra.mxu0 %v7033
        %7197 = vmatpush.msra.mxu0 %v7030
        %7198 = vmatpush.msra.mxu0 %v7027
        %7199 = vmatpush.msra.mxu0 %v7024
        %7200 = vmatpush.msra.mxu0 %v7021
        %7201 = vmatpush.msra.mxu0 %v7018
        %7202 = vmatpush.msra.mxu0 %v7015
        %7203 = vmatpush.msra.mxu0 %v7012
        %7204 = vmatmul.f32.gmra.mxu0 %v7034
        %v7205 = vpop.f32.mrf.mxu0
        %v7206 = vadd.f32 %v7177, %v7205
        %7207 = vmatmul.f32.gmra.mxu0 %v7036
        %v7208 = vpop.f32.mrf.mxu0
        %v7209 = vadd.f32 %v7180, %v7208
        %7210 = vmatmul.f32.gmra.mxu0 %v7038
        %v7211 = vpop.f32.mrf.mxu0
        %v7212 = vadd.f32 %v7183, %v7211
        %7213 = vmatmul.f32.gmra.mxu0 %v7041
        %v7214 = vpop.f32.mrf.mxu0
        %v7215 = vadd.f32 %v7186, %v7214
        %7216 = vdwg.mxu0
        %v7217 = vadd.f32 %v6834, %v7090
        %v7218 = vadd.f32 %v6892, %v7148
        %v7219 = vadd.f32 %v6950, %v7206
        %v7220 = vadd.f32 %v6837, %v7093
        %v7221 = vadd.f32 %v6895, %v7151
        %v7222 = vadd.f32 %v6953, %v7209
        %v7223 = vadd.f32 %v6840, %v7096
        %v7224 = vadd.f32 %v6898, %v7154
        %v7225 = vadd.f32 %v6956, %v7212
        %v7226 = vadd.f32 %v6843, %v7099
        %v7227 = vadd.f32 %v6901, %v7157
        %v7228 = vadd.f32 %v6959, %v7215
        %v7229 = vld [vmem:[%s10] sm:$0x7]
        %v7231 = vperm.slane %v7229, 0
        %v7232 = vperm.slane %v7229, 1
        %v7233 = vperm.slane %v7229, 2
        %v7237 = vadd.f32 %v7217, %v7231
        %v7238 = vadd.f32 %v7218, %v7232
        %v7239 = vadd.f32 %v7219, %v7233
        %v7240 = vadd.f32 %v7220, %v7231
        %v7241 = vadd.f32 %v7221, %v7232
        %v7242 = vadd.f32 %v7222, %v7233
        %v7243 = vadd.f32 %v7223, %v7231
        %v7244 = vadd.f32 %v7224, %v7232
        %v7245 = vadd.f32 %v7225, %v7233
        %v7246 = vadd.f32 %v7226, %v7231
        %v7247 = vadd.f32 %v7227, %v7232
        %v7248 = vadd.f32 %v7228, %v7233
        %v7249 = vmax.f32 %v7237, 0.0
        %v7250 = vmax.f32 %v7238, 0.0
        %v7251 = vmax.f32 %v7239, 0.0
        %v7252 = vmax.f32 %v7240, 0.0
        %v7253 = vmax.f32 %v7241, 0.0
        %v7254 = vmax.f32 %v7242, 0.0
        %v7255 = vmax.f32 %v7243, 0.0
        %v7256 = vmax.f32 %v7244, 0.0
        %v7257 = vmax.f32 %v7245, 0.0
        %v7258 = vmax.f32 %v7246, 0.0
        %v7259 = vmax.f32 %v7247, 0.0
        %v7260 = vmax.f32 %v7248, 0.0
        %7273 = vrot.lane.b32.xlu0 %v7249, 127
        %v7274 = vpop.permute.xlu0 %7273
        %7275 = vrot.lane.b32.xlu0 %v7250, 127
        %v7276 = vpop.permute.xlu0 %7275
        %7277 = vrot.lane.b32.xlu0 %v7251, 127
        %v7278 = vpop.permute.xlu0 %7277
        %7279 = vrot.lane.b32.xlu0 %v7252, 127
        %v7280 = vpop.permute.xlu0 %7279
        %7281 = vrot.lane.b32.xlu0 %v7253, 127
        %v7282 = vpop.permute.xlu0 %7281
        %7283 = vrot.lane.b32.xlu0 %v7254, 127
        %v7284 = vpop.permute.xlu0 %7283
        %7285 = vrot.lane.b32.xlu0 %v7255, 127
        %v7286 = vpop.permute.xlu0 %7285
        %7287 = vrot.lane.b32.xlu0 %v7256, 127
        %v7288 = vpop.permute.xlu0 %7287
        %7289 = vrot.lane.b32.xlu0 %v7257, 127
        %v7290 = vpop.permute.xlu0 %7289
        %7291 = vrot.lane.b32.xlu0 %v7258, 127
        %v7292 = vpop.permute.xlu0 %7291
        %7293 = vrot.lane.b32.xlu0 %v7259, 127
        %v7294 = vpop.permute.xlu0 %7293
        %7295 = vrot.lane.b32.xlu0 %v7260, 127
        %v7296 = vpop.permute.xlu0 %7295
        %v7297 = vsel %vm3721, %v7274, %v7276
        %v7298 = vsel %vm3721, %v7276, %v7278
        %v7299 = vsel %vm3721, %v7280, %v7282
        %v7300 = vsel %vm3721, %v7282, %v7284
        %v7301 = vsel %vm3721, %v7286, %v7288
        %v7302 = vsel %vm3721, %v7288, %v7290
        %v7303 = vsel %vm3721, %v7292, %v7294
        %v7304 = vsel %vm3721, %v7294, %v7296
        %v7317 = vsel %vm3721, %v7278, 0.0
        %v7318 = vsel %vm3721, %v7284, 0.0
        %v7319 = vsel %vm3721, %v7290, 0.0
        %v7320 = vsel %vm3721, %v7296, 0.0
        %v7321 = vmax.f32 %v7249, %v7297
        %v7322 = vmax.f32 %v7250, %v7298
        %v7323 = vmax.f32 %v7251, %v7317
        %v7324 = vmax.f32 %v7252, %v7299
        %v7325 = vmax.f32 %v7253, %v7300
        %v7326 = vmax.f32 %v7254, %v7318
        %v7327 = vmax.f32 %v7255, %v7301
        %v7328 = vmax.f32 %v7256, %v7302
        %v7329 = vmax.f32 %v7257, %v7319
        %v7330 = vmax.f32 %v7258, %v7303
        %v7331 = vmax.f32 %v7259, %v7304
        %v7332 = vmax.f32 %v7260, %v7320
        %v7345 = vrot.slane %v7321, 1
        %v7346 = vrot.slane %v7324, 1
        %v7347 = vsel %vm1091, %v7345, %v7346
        %v7348 = vrot.slane %v7322, 1
        %v7349 = vrot.slane %v7325, 1
        %v7350 = vsel %vm1091, %v7348, %v7349
        %v7351 = vrot.slane %v7323, 1
        %v7352 = vrot.slane %v7326, 1
        %v7353 = vsel %vm1091, %v7351, %v7352
        %v7354 = vrot.slane %v7327, 1
        %v7355 = vsel %vm1091, %v7346, %v7354
        %v7356 = vrot.slane %v7328, 1
        %v7357 = vsel %vm1091, %v7349, %v7356
        %v7358 = vrot.slane %v7329, 1
        %v7359 = vsel %vm1091, %v7352, %v7358
        %v7360 = vrot.slane %v7330, 1
        %v7361 = vsel %vm1091, %v7354, %v7360
        %v7362 = vrot.slane %v7331, 1
        %v7363 = vsel %vm1091, %v7356, %v7362
        %v7364 = vrot.slane %v7332, 1
        %v7365 = vsel %vm1091, %v7358, %v7364
        %v7378 = vsel %vm1091, %v7360, 0.0
        %v7379 = vsel %vm1091, %v7362, 0.0
        %v7380 = vsel %vm1091, %v7364, 0.0
        %v7381 = vmax.f32 %v7321, %v7347
        %v7382 = vmax.f32 %v7322, %v7350
        %v7383 = vmax.f32 %v7323, %v7353
        %v7384 = vmax.f32 %v7324, %v7355
        %v7385 = vmax.f32 %v7325, %v7357
        %v7386 = vmax.f32 %v7326, %v7359
        %v7387 = vmax.f32 %v7327, %v7361
        %v7388 = vmax.f32 %v7328, %v7363
        %v7389 = vmax.f32 %v7329, %v7365
        %v7390 = vmax.f32 %v7330, %v7378
        %v7391 = vmax.f32 %v7331, %v7379
        %v7392 = vmax.f32 %v7332, %v7380
        %v7393 = vld [vmem:[%s11] sm:$0xff]
        %v7394 = vld [vmem:[%s11 + $0x8] sm:$0xff]
        %vm7395 = vcmask 261120
        %v7397 = vsel %vm7395, %v7393, 0
        %v7400 = vsel %vm7395, %v7394, 0
        %7402 = vmatpush.msra.mxu0 0.0
        %7403 = vmatpush.msra.mxu0 0.0
        %7404 = vmatpush.msra.mxu0 0.0
        %7405 = vmatpush.msra.mxu0 0.0
        %7406 = vmatpush.msra.mxu0 0.0
        %7407 = vmatpush.msra.mxu0 0.0
        %7408 = vmatpush.msra.mxu0 0.0
        %7409 = vmatpush.msra.mxu0 0.0
        %7410 = vmatpush.msra.mxu0 0.0
        %7411 = vmatpush.msra.mxu0 0.0
        %7412 = vmatpush.msra.mxu0 0.0
        %7413 = vmatpush.msra.mxu0 0.0
        %7414 = vmatpush.msra.mxu0 %v7390
        %7415 = vmatpush.msra.mxu0 %v7387
        %7416 = vmatpush.msra.mxu0 %v7384
        %7417 = vmatpush.msra.mxu0 %v7381
        %7418 = vmatmul.f32.gmra.mxu0 %v7397
        %v7419 = vpop.f32.mrf.mxu0
        %v7420 = vadd.f32 0.0, %v7419
        %7421 = vmatmul.f32.gmra.mxu0 %v7400
        %v7422 = vpop.f32.mrf.mxu0
        %v7423 = vadd.f32 0.0, %v7422
        %7424 = vdwg.mxu0
        %7425 = vmatpush.msra.mxu0 0.0
        %7426 = vmatpush.msra.mxu0 0.0
        %7427 = vmatpush.msra.mxu0 0.0
        %7428 = vmatpush.msra.mxu0 0.0
        %7429 = vmatpush.msra.mxu0 0.0
        %7430 = vmatpush.msra.mxu0 0.0
        %7431 = vmatpush.msra.mxu0 0.0
        %7432 = vmatpush.msra.mxu0 0.0
        %7433 = vmatpush.msra.mxu0 0.0
        %7434 = vmatpush.msra.mxu0 0.0
        %7435 = vmatpush.msra.mxu0 0.0
        %7436 = vmatpush.msra.mxu0 0.0
        %7437 = vmatpush.msra.mxu0 %v7391
        %7438 = vmatpush.msra.mxu0 %v7388
        %7439 = vmatpush.msra.mxu0 %v7385
        %7440 = vmatpush.msra.mxu0 %v7382
        %7441 = vmatmul.f32.gmra.mxu0 %v7397
        %v7442 = vpop.f32.mrf.mxu0
        %v7443 = vadd.f32 0.0, %v7442
        %7444 = vmatmul.f32.gmra.mxu0 %v7400
        %v7445 = vpop.f32.mrf.mxu0
        %v7446 = vadd.f32 0.0, %v7445
        %7447 = vdwg.mxu0
        %7448 = vmatpush.msra.mxu0 0.0
        %7449 = vmatpush.msra.mxu0 0.0
        %7450 = vmatpush.msra.mxu0 0.0
        %7451 = vmatpush.msra.mxu0 0.0
        %7452 = vmatpush.msra.mxu0 0.0
        %7453 = vmatpush.msra.mxu0 0.0
        %7454 = vmatpush.msra.mxu0 0.0
        %7455 = vmatpush.msra.mxu0 0.0
        %7456 = vmatpush.msra.mxu0 0.0
        %7457 = vmatpush.msra.mxu0 0.0
        %7458 = vmatpush.msra.mxu0 0.0
        %7459 = vmatpush.msra.mxu0 0.0
        %7460 = vmatpush.msra.mxu0 %v7392
        %7461 = vmatpush.msra.mxu0 %v7389
        %7462 = vmatpush.msra.mxu0 %v7386
        %7463 = vmatpush.msra.mxu0 %v7383
        %7464 = vmatmul.f32.gmra.mxu0 %v7397
        %v7465 = vpop.f32.mrf.mxu0
        %v7466 = vadd.f32 0.0, %v7465
        %7467 = vmatmul.f32.gmra.mxu0 %v7400
        %v7468 = vpop.f32.mrf.mxu0
        %v7469 = vadd.f32 0.0, %v7468
        %7470 = vdwg.mxu0
        %v7471 = vld [vmem:[%s12] sm:$0xff]
        %v7472 = vld [vmem:[%s12 + $0x8] sm:$0xff]
        %v7473 = vld [vmem:[%s12 + $0x10] sm:$0xff]
        %v7474 = vld [vmem:[%s12 + $0x18] sm:$0xff]
        %v7475 = vld [vmem:[%s12 + $0x20] sm:$0xff]
        %v7476 = vld [vmem:[%s12 + $0x28] sm:$0xff]
        %v7477 = vld [vmem:[%s12 + $0x30] sm:$0xff]
        %v7478 = vld [vmem:[%s12 + $0x38] sm:$0xff]
        %v7479 = vld [vmem:[%s12 + $0x40] sm:$0xff]
        %v7480 = vld [vmem:[%s12 + $0x48] sm:$0xff]
        %v7481 = vld [vmem:[%s12 + $0x50] sm:$0xff]
        %v7482 = vld [vmem:[%s12 + $0x58] sm:$0xff]
        %v7483 = vld [vmem:[%s12 + $0x60] sm:$0xff]
        %v7484 = vld [vmem:[%s12 + $0x68] sm:$0xff]
        %v7485 = vld [vmem:[%s12 + $0x70] sm:$0xff]
        %v7486 = vld [vmem:[%s12 + $0x78] sm:$0xff]
        %v7487 = vld [vmem:[%s12 + $0x80] sm:$0xff]
        %v7488 = vld [vmem:[%s12 + $0x88] sm:$0xff]
        %v7489 = vld [vmem:[%s12 + $0x90] sm:$0xff]
        %v7490 = vld [vmem:[%s12 + $0x98] sm:$0xff]
        %v7491 = vld [vmem:[%s12 + $0xa0] sm:$0xff]
        %v7492 = vld [vmem:[%s12 + $0xa8] sm:$0xff]
        %v7493 = vld [vmem:[%s12 + $0xb0] sm:$0xff]
        %v7494 = vld [vmem:[%s12 + $0xb8] sm:$0xff]
        %v7495 = vld [vmem:[%s12 + $0xc0] sm:$0xff]
        %v7496 = vld [vmem:[%s12 + $0xc8] sm:$0xff]
        %v7497 = vld [vmem:[%s12 + $0xd0] sm:$0xff]
        %v7498 = vld [vmem:[%s12 + $0xd8] sm:$0xff]
        %v7499 = vld [vmem:[%s12 + $0xe0] sm:$0xff]
        %v7500 = vld [vmem:[%s12 + $0xe8] sm:$0xff]
        %v7501 = vld [vmem:[%s12 + $0xf0] sm:$0xff]
        %v7502 = vld [vmem:[%s12 + $0xf8] sm:$0xff]
        %v7503 = vld [vmem:[%s12 + $0x100] sm:$0xff]
        %v7504 = vld [vmem:[%s12 + $0x108] sm:$0xff]
        %v7505 = vld [vmem:[%s12 + $0x110] sm:$0xff]
        %v7506 = vld [vmem:[%s12 + $0x118] sm:$0xff]
        %v7507 = vld [vmem:[%s12 + $0x120] sm:$0xff]
        %v7508 = vld [vmem:[%s12 + $0x128] sm:$0xff]
        %v7509 = vld [vmem:[%s12 + $0x130] sm:$0xff]
        %v7510 = vld [vmem:[%s12 + $0x138] sm:$0xff]
        %v7511 = vld [vmem:[%s12 + $0x140] sm:$0xff]
        %v7512 = vld [vmem:[%s12 + $0x148] sm:$0xff]
        %v7513 = vld [vmem:[%s12 + $0x150] sm:$0xff]
        %v7514 = vld [vmem:[%s12 + $0x158] sm:$0xff]
        %v7515 = vld [vmem:[%s12 + $0x160] sm:$0xff]
        %v7516 = vld [vmem:[%s12 + $0x168] sm:$0xff]
        %v7517 = vld [vmem:[%s12 + $0x170] sm:$0xff]
        %v7518 = vld [vmem:[%s12 + $0x178] sm:$0xff]
        %v7519 = vld [vmem:[%s12 + $0x180] sm:$0xff]
        %v7520 = vld [vmem:[%s12 + $0x188] sm:$0xff]
        %v7521 = vld [vmem:[%s12 + $0x190] sm:$0xff]
        %v7522 = vld [vmem:[%s12 + $0x198] sm:$0xff]
        %v7523 = vld [vmem:[%s12 + $0x1a0] sm:$0xff]
        %v7524 = vld [vmem:[%s12 + $0x1a8] sm:$0xff]
        %v7525 = vld [vmem:[%s12 + $0x1b0] sm:$0xff]
        %v7526 = vld [vmem:[%s12 + $0x1b8] sm:$0xff]
        %v7527 = vld [vmem:[%s12 + $0x1c0] sm:$0xff]
        %v7528 = vld [vmem:[%s12 + $0x1c8] sm:$0xff]
        %v7529 = vld [vmem:[%s12 + $0x1d0] sm:$0xff]
        %v7530 = vld [vmem:[%s12 + $0x1d8] sm:$0xff]
        %v7531 = vld [vmem:[%s12 + $0x1e0] sm:$0xff]
        %v7532 = vld [vmem:[%s12 + $0x1e8] sm:$0xff]
        %v7533 = vld [vmem:[%s12 + $0x1f0] sm:$0xff]
        %v7534 = vld [vmem:[%s12 + $0x1f8] sm:$0xff]
        %v7535 = vld [vmem:[%s12 + $0x200] sm:$0xff]
        %v7536 = vld [vmem:[%s12 + $0x208] sm:$0xff]
        %v7537 = vld [vmem:[%s12 + $0x210] sm:$0xff]
        %v7538 = vld [vmem:[%s12 + $0x218] sm:$0xff]
        %v7539 = vld [vmem:[%s12 + $0x220] sm:$0xff]
        %v7540 = vld [vmem:[%s12 + $0x228] sm:$0xff]
        %v7541 = vld [vmem:[%s12 + $0x230] sm:$0xff]
        %v7542 = vld [vmem:[%s12 + $0x238] sm:$0xff]
        %v7543 = vld [vmem:[%s12 + $0x240] sm:$0xff]
        %v7544 = vld [vmem:[%s12 + $0x248] sm:$0xff]
        %v7545 = vld [vmem:[%s12 + $0x250] sm:$0xff]
        %v7546 = vld [vmem:[%s12 + $0x258] sm:$0xff]
        %v7547 = vld [vmem:[%s12 + $0x260] sm:$0xff]
        %v7548 = vld [vmem:[%s12 + $0x268] sm:$0xff]
        %v7549 = vld [vmem:[%s12 + $0x270] sm:$0xff]
        %v7550 = vld [vmem:[%s12 + $0x278] sm:$0xff]
        %v7551 = vld [vmem:[%s12 + $0x280] sm:$0xff]
        %v7552 = vld [vmem:[%s12 + $0x288] sm:$0xff]
        %v7553 = vld [vmem:[%s12 + $0x290] sm:$0xff]
        %v7554 = vld [vmem:[%s12 + $0x298] sm:$0xff]
        %v7555 = vld [vmem:[%s12 + $0x2a0] sm:$0xff]
        %v7556 = vld [vmem:[%s12 + $0x2a8] sm:$0xff]
        %v7557 = vld [vmem:[%s12 + $0x2b0] sm:$0xff]
        %v7558 = vld [vmem:[%s12 + $0x2b8] sm:$0xff]
        %v7559 = vld [vmem:[%s12 + $0x2c0] sm:$0xff]
        %v7560 = vld [vmem:[%s12 + $0x2c8] sm:$0xff]
        %v7561 = vld [vmem:[%s12 + $0x2d0] sm:$0xff]
        %v7562 = vld [vmem:[%s12 + $0x2d8] sm:$0xff]
        %v7563 = vld [vmem:[%s12 + $0x2e0] sm:$0xff]
        %v7564 = vld [vmem:[%s12 + $0x2e8] sm:$0xff]
        %v7565 = vld [vmem:[%s12 + $0x2f0] sm:$0xff]
        %v7566 = vld [vmem:[%s12 + $0x2f8] sm:$0xff]
        %7567 = vmatpush.msra.mxu0 %v7501
        %7568 = vmatpush.msra.mxu0 %v7499
        %7569 = vmatpush.msra.mxu0 %v7497
        %7570 = vmatpush.msra.mxu0 %v7495
        %7571 = vmatpush.msra.mxu0 %v7493
        %7572 = vmatpush.msra.mxu0 %v7491
        %7573 = vmatpush.msra.mxu0 %v7489
        %7574 = vmatpush.msra.mxu0 %v7487
        %7575 = vmatpush.msra.mxu0 %v7485
        %7576 = vmatpush.msra.mxu0 %v7483
        %7577 = vmatpush.msra.mxu0 %v7481
        %7578 = vmatpush.msra.mxu0 %v7479
        %7579 = vmatpush.msra.mxu0 %v7477
        %7580 = vmatpush.msra.mxu0 %v7475
        %7581 = vmatpush.msra.mxu0 %v7473
        %7582 = vmatpush.msra.mxu0 %v7471
        %7583 = vmatmul.f32.gmra.mxu0 %v7420
        %v7584 = vpop.f32.mrf.mxu0
        %v7585 = vadd.f32 0.0, %v7584
        %7586 = vmatmul.f32.gmra.mxu0 %v7423
        %v7587 = vpop.f32.mrf.mxu0
        %v7588 = vadd.f32 0.0, %v7587
        %7589 = vdwg.mxu0
        %7590 = vmatpush.msra.mxu0 %v7533
        %7591 = vmatpush.msra.mxu0 %v7531
        %7592 = vmatpush.msra.mxu0 %v7529
        %7593 = vmatpush.msra.mxu0 %v7527
        %7594 = vmatpush.msra.mxu0 %v7525
        %7595 = vmatpush.msra.mxu0 %v7523
        %7596 = vmatpush.msra.mxu0 %v7521
        %7597 = vmatpush.msra.mxu0 %v7519
        %7598 = vmatpush.msra.mxu0 %v7517
        %7599 = vmatpush.msra.mxu0 %v7515
        %7600 = vmatpush.msra.mxu0 %v7513
        %7601 = vmatpush.msra.mxu0 %v7511
        %7602 = vmatpush.msra.mxu0 %v7509
        %7603 = vmatpush.msra.mxu0 %v7507
        %7604 = vmatpush.msra.mxu0 %v7505
        %7605 = vmatpush.msra.mxu0 %v7503
        %7606 = vmatmul.f32.gmra.mxu0 %v7443
        %v7607 = vpop.f32.mrf.mxu0
        %v7608 = vadd.f32 %v7585, %v7607
        %7609 = vmatmul.f32.gmra.mxu0 %v7446
        %v7610 = vpop.f32.mrf.mxu0
        %v7611 = vadd.f32 %v7588, %v7610
        %7612 = vdwg.mxu0
        %7613 = vmatpush.msra.mxu0 %v7565
        %7614 = vmatpush.msra.mxu0 %v7563
        %7615 = vmatpush.msra.mxu0 %v7561
        %7616 = vmatpush.msra.mxu0 %v7559
        %7617 = vmatpush.msra.mxu0 %v7557
        %7618 = vmatpush.msra.mxu0 %v7555
        %7619 = vmatpush.msra.mxu0 %v7553
        %7620 = vmatpush.msra.mxu0 %v7551
        %7621 = vmatpush.msra.mxu0 %v7549
        %7622 = vmatpush.msra.mxu0 %v7547
        %7623 = vmatpush.msra.mxu0 %v7545
        %7624 = vmatpush.msra.mxu0 %v7543
        %7625 = vmatpush.msra.mxu0 %v7541
        %7626 = vmatpush.msra.mxu0 %v7539
        %7627 = vmatpush.msra.mxu0 %v7537
        %7628 = vmatpush.msra.mxu0 %v7535
        %7629 = vmatmul.f32.gmra.mxu0 %v7466
        %v7630 = vpop.f32.mrf.mxu0
        %v7631 = vadd.f32 %v7608, %v7630
        %7632 = vmatmul.f32.gmra.mxu0 %v7469
        %v7633 = vpop.f32.mrf.mxu0
        %v7634 = vadd.f32 %v7611, %v7633
        %7635 = vdwg.mxu0
        %7636 = vmatpush.msra.mxu0 %v7502
        %7637 = vmatpush.msra.mxu0 %v7500
        %7638 = vmatpush.msra.mxu0 %v7498
        %7639 = vmatpush.msra.mxu0 %v7496
        %7640 = vmatpush.msra.mxu0 %v7494
        %7641 = vmatpush.msra.mxu0 %v7492
        %7642 = vmatpush.msra.mxu0 %v7490
        %7643 = vmatpush.msra.mxu0 %v7488
        %7644 = vmatpush.msra.mxu0 %v7486
        %7645 = vmatpush.msra.mxu0 %v7484
        %7646 = vmatpush.msra.mxu0 %v7482
        %7647 = vmatpush.msra.mxu0 %v7480
        %7648 = vmatpush.msra.mxu0 %v7478
        %7649 = vmatpush.msra.mxu0 %v7476
        %7650 = vmatpush.msra.mxu0 %v7474
        %7651 = vmatpush.msra.mxu0 %v7472
        %7652 = vmatmul.f32.gmra.mxu0 %v7420
        %v7653 = vpop.f32.mrf.mxu0
        %v7654 = vadd.f32 0.0, %v7653
        %7655 = vmatmul.f32.gmra.mxu0 %v7423
        %v7656 = vpop.f32.mrf.mxu0
        %v7657 = vadd.f32 0.0, %v7656
        %7658 = vdwg.mxu0
        %7659 = vmatpush.msra.mxu0 %v7534
        %7660 = vmatpush.msra.mxu0 %v7532
        %7661 = vmatpush.msra.mxu0 %v7530
        %7662 = vmatpush.msra.mxu0 %v7528
        %7663 = vmatpush.msra.mxu0 %v7526
        %7664 = vmatpush.msra.mxu0 %v7524
        %7665 = vmatpush.msra.mxu0 %v7522
        %7666 = vmatpush.msra.mxu0 %v7520
        %7667 = vmatpush.msra.mxu0 %v7518
        %7668 = vmatpush.msra.mxu0 %v7516
        %7669 = vmatpush.msra.mxu0 %v7514
        %7670 = vmatpush.msra.mxu0 %v7512
        %7671 = vmatpush.msra.mxu0 %v7510
        %7672 = vmatpush.msra.mxu0 %v7508
        %7673 = vmatpush.msra.mxu0 %v7506
        %7674 = vmatpush.msra.mxu0 %v7504
        %7675 = vmatmul.f32.gmra.mxu0 %v7443
        %v7676 = vpop.f32.mrf.mxu0
        %v7677 = vadd.f32 %v7654, %v7676
        %7678 = vmatmul.f32.gmra.mxu0 %v7446
        %v7679 = vpop.f32.mrf.mxu0
        %v7680 = vadd.f32 %v7657, %v7679
        %7681 = vdwg.mxu0
        %7682 = vmatpush.msra.mxu0 %v7566
        %7683 = vmatpush.msra.mxu0 %v7564
        %7684 = vmatpush.msra.mxu0 %v7562
        %7685 = vmatpush.msra.mxu0 %v7560
        %7686 = vmatpush.msra.mxu0 %v7558
        %7687 = vmatpush.msra.mxu0 %v7556
        %7688 = vmatpush.msra.mxu0 %v7554
        %7689 = vmatpush.msra.mxu0 %v7552
        %7690 = vmatpush.msra.mxu0 %v7550
        %7691 = vmatpush.msra.mxu0 %v7548
        %7692 = vmatpush.msra.mxu0 %v7546
        %7693 = vmatpush.msra.mxu0 %v7544
        %7694 = vmatpush.msra.mxu0 %v7542
        %7695 = vmatpush.msra.mxu0 %v7540
        %7696 = vmatpush.msra.mxu0 %v7538
        %7697 = vmatpush.msra.mxu0 %v7536
        %7698 = vmatmul.f32.gmra.mxu0 %v7466
        %v7699 = vpop.f32.mrf.mxu0
        %v7700 = vadd.f32 %v7677, %v7699
        %7701 = vmatmul.f32.gmra.mxu0 %v7469
        %v7702 = vpop.f32.mrf.mxu0
        %v7703 = vadd.f32 %v7680, %v7702
        %7704 = vdwg.mxu0
        %v7709 = vrot.slane %v7631, 7
        %v7710 = vrot.slane %v7700, 7
        %v7711 = vrot.slane %v7634, 7
        %v7712 = vsel %vm946, %v7709, %v7711
        %v7713 = vrot.slane %v7703, 7
        %v7714 = vsel %vm946, %v7710, %v7713
        %v7718 = vsel %vm946, 0.0, %v7709
        %v7719 = vsel %vm946, 0.0, %v7710
        %v7720 = vrot.slane %v7631, 1
        %v7721 = vrot.slane %v7634, 1
        %v7722 = vsel %vm1091, %v7720, %v7721
        %v7723 = vrot.slane %v7700, 1
        %v7724 = vrot.slane %v7703, 1
        %v7725 = vsel %vm1091, %v7723, %v7724
        %v7729 = vsel %vm1091, %v7721, 0.0
        %v7730 = vsel %vm1091, %v7724, 0.0
        %v7731 = vld [vmem:[#allocation8] sm:$0xff]
        %v7732 = vld [vmem:[#allocation8 + $0x8] sm:$0xff]
        %v7733 = vld [vmem:[#allocation8 + $0x10] sm:$0xff]
        %v7734 = vld [vmem:[#allocation8 + $0x18] sm:$0xff]
        %v7735 = vld [vmem:[#allocation8 + $0x20] sm:$0xff]
        %v7736 = vld [vmem:[#allocation8 + $0x28] sm:$0xff]
        %v7737 = vld [vmem:[#allocation8 + $0x30] sm:$0xff]
        %v7738 = vld [vmem:[#allocation8 + $0x38] sm:$0xff]
        %v7739 = vld [vmem:[#allocation8 + $0x40] sm:$0xff]
        %v7740 = vld [vmem:[#allocation8 + $0x48] sm:$0xff]
        %v7741 = vld [vmem:[#allocation8 + $0x50] sm:$0xff]
        %v7742 = vld [vmem:[#allocation8 + $0x58] sm:$0xff]
        %v7743 = vld [vmem:[#allocation8 + $0x60] sm:$0xff]
        %v7744 = vld [vmem:[#allocation8 + $0x68] sm:$0xff]
        %v7745 = vld [vmem:[#allocation8 + $0x70] sm:$0xff]
        %v7746 = vld [vmem:[#allocation8 + $0x78] sm:$0xff]
        %v7747 = vld [vmem:[#allocation8 + $0x80] sm:$0xff]
        %v7748 = vld [vmem:[#allocation8 + $0x88] sm:$0xff]
        %v7749 = vld [vmem:[#allocation8 + $0x90] sm:$0xff]
        %v7750 = vld [vmem:[#allocation8 + $0x98] sm:$0xff]
        %v7751 = vld [vmem:[#allocation8 + $0xa0] sm:$0xff]
        %v7752 = vld [vmem:[#allocation8 + $0xa8] sm:$0xff]
        %v7753 = vld [vmem:[#allocation8 + $0xb0] sm:$0xff]
        %v7754 = vld [vmem:[#allocation8 + $0xb8] sm:$0xff]
        %v7755 = vld [vmem:[#allocation8 + $0xc0] sm:$0xff]
        %v7756 = vld [vmem:[#allocation8 + $0xc8] sm:$0xff]
        %v7757 = vld [vmem:[#allocation8 + $0xd0] sm:$0xff]
        %v7758 = vld [vmem:[#allocation8 + $0xd8] sm:$0xff]
        %v7759 = vld [vmem:[#allocation8 + $0xe0] sm:$0xff]
        %v7760 = vld [vmem:[#allocation8 + $0xe8] sm:$0xff]
        %v7761 = vld [vmem:[#allocation8 + $0xf0] sm:$0xff]
        %v7762 = vld [vmem:[#allocation8 + $0xf8] sm:$0xff]
        %v7763 = vld [vmem:[#allocation8 + $0x100] sm:$0xff]
        %v7764 = vld [vmem:[#allocation8 + $0x108] sm:$0xff]
        %v7765 = vld [vmem:[#allocation8 + $0x110] sm:$0xff]
        %v7766 = vld [vmem:[#allocation8 + $0x118] sm:$0xff]
        %v7767 = vld [vmem:[#allocation8 + $0x120] sm:$0xff]
        %v7768 = vld [vmem:[#allocation8 + $0x128] sm:$0xff]
        %v7769 = vld [vmem:[#allocation8 + $0x130] sm:$0xff]
        %v7770 = vld [vmem:[#allocation8 + $0x138] sm:$0xff]
        %v7771 = vld [vmem:[#allocation8 + $0x140] sm:$0xff]
        %v7772 = vld [vmem:[#allocation8 + $0x148] sm:$0xff]
        %v7773 = vld [vmem:[#allocation8 + $0x150] sm:$0xff]
        %v7774 = vld [vmem:[#allocation8 + $0x158] sm:$0xff]
        %v7775 = vld [vmem:[#allocation8 + $0x160] sm:$0xff]
        %v7776 = vld [vmem:[#allocation8 + $0x168] sm:$0xff]
        %v7777 = vld [vmem:[#allocation8 + $0x170] sm:$0xff]
        %v7778 = vld [vmem:[#allocation8 + $0x178] sm:$0xff]
        %s7779 = scalar_lea.vmem [#allocation8], 384
        %v7780 = vld [vmem:[%s7779] sm:$0xff]
        %v7781 = vld [vmem:[%s7779 + $0x8] sm:$0xff]
        %v7782 = vld [vmem:[%s7779 + $0x10] sm:$0xff]
        %v7783 = vld [vmem:[%s7779 + $0x18] sm:$0xff]
        %v7784 = vld [vmem:[%s7779 + $0x20] sm:$0xff]
        %v7785 = vld [vmem:[%s7779 + $0x28] sm:$0xff]
        %v7786 = vld [vmem:[%s7779 + $0x30] sm:$0xff]
        %v7787 = vld [vmem:[%s7779 + $0x38] sm:$0xff]
        %v7788 = vld [vmem:[%s7779 + $0x40] sm:$0xff]
        %v7789 = vld [vmem:[%s7779 + $0x48] sm:$0xff]
        %v7790 = vld [vmem:[%s7779 + $0x50] sm:$0xff]
        %v7791 = vld [vmem:[%s7779 + $0x58] sm:$0xff]
        %v7792 = vld [vmem:[%s7779 + $0x60] sm:$0xff]
        %v7793 = vld [vmem:[%s7779 + $0x68] sm:$0xff]
        %v7794 = vld [vmem:[%s7779 + $0x70] sm:$0xff]
        %v7795 = vld [vmem:[%s7779 + $0x78] sm:$0xff]
        %v7796 = vld [vmem:[%s7779 + $0x80] sm:$0xff]
        %v7797 = vld [vmem:[%s7779 + $0x88] sm:$0xff]
        %v7798 = vld [vmem:[%s7779 + $0x90] sm:$0xff]
        %v7799 = vld [vmem:[%s7779 + $0x98] sm:$0xff]
        %v7800 = vld [vmem:[%s7779 + $0xa0] sm:$0xff]
        %v7801 = vld [vmem:[%s7779 + $0xa8] sm:$0xff]
        %v7802 = vld [vmem:[%s7779 + $0xb0] sm:$0xff]
        %v7803 = vld [vmem:[%s7779 + $0xb8] sm:$0xff]
        %v7804 = vld [vmem:[%s7779 + $0xc0] sm:$0xff]
        %v7805 = vld [vmem:[%s7779 + $0xc8] sm:$0xff]
        %v7806 = vld [vmem:[%s7779 + $0xd0] sm:$0xff]
        %v7807 = vld [vmem:[%s7779 + $0xd8] sm:$0xff]
        %v7808 = vld [vmem:[%s7779 + $0xe0] sm:$0xff]
        %v7809 = vld [vmem:[%s7779 + $0xe8] sm:$0xff]
        %v7810 = vld [vmem:[%s7779 + $0xf0] sm:$0xff]
        %v7811 = vld [vmem:[%s7779 + $0xf8] sm:$0xff]
        %v7812 = vld [vmem:[%s7779 + $0x100] sm:$0xff]
        %v7813 = vld [vmem:[%s7779 + $0x108] sm:$0xff]
        %v7814 = vld [vmem:[%s7779 + $0x110] sm:$0xff]
        %v7815 = vld [vmem:[%s7779 + $0x118] sm:$0xff]
        %v7816 = vld [vmem:[%s7779 + $0x120] sm:$0xff]
        %v7817 = vld [vmem:[%s7779 + $0x128] sm:$0xff]
        %v7818 = vld [vmem:[%s7779 + $0x130] sm:$0xff]
        %v7819 = vld [vmem:[%s7779 + $0x138] sm:$0xff]
        %v7820 = vld [vmem:[%s7779 + $0x140] sm:$0xff]
        %v7821 = vld [vmem:[%s7779 + $0x148] sm:$0xff]
        %v7822 = vld [vmem:[%s7779 + $0x150] sm:$0xff]
        %v7823 = vld [vmem:[%s7779 + $0x158] sm:$0xff]
        %v7824 = vld [vmem:[%s7779 + $0x160] sm:$0xff]
        %v7825 = vld [vmem:[%s7779 + $0x168] sm:$0xff]
        %v7826 = vld [vmem:[%s7779 + $0x170] sm:$0xff]
        %v7827 = vld [vmem:[%s7779 + $0x178] sm:$0xff]
        %v7828 = vsel %vm4822, %v7700, 0
        %v7830 = vsel %vm4822, %v7703, 0
        %7832 = vmatpush.msra.mxu0 %v7810
        %7833 = vmatpush.msra.mxu0 %v7808
        %7834 = vmatpush.msra.mxu0 %v7806
        %7835 = vmatpush.msra.mxu0 %v7804
        %7836 = vmatpush.msra.mxu0 %v7802
        %7837 = vmatpush.msra.mxu0 %v7800
        %7838 = vmatpush.msra.mxu0 %v7798
        %7839 = vmatpush.msra.mxu0 %v7796
        %7840 = vmatpush.msra.mxu0 %v7794
        %7841 = vmatpush.msra.mxu0 %v7792
        %7842 = vmatpush.msra.mxu0 %v7790
        %7843 = vmatpush.msra.mxu0 %v7788
        %7844 = vmatpush.msra.mxu0 %v7786
        %7845 = vmatpush.msra.mxu0 %v7784
        %7846 = vmatpush.msra.mxu0 %v7782
        %7847 = vmatpush.msra.mxu0 %v7780
        %7848 = vmatmul.f32.gmra.mxu0 %v7631
        %v7849 = vpop.f32.mrf.mxu0
        %v7850 = vadd.f32 0.0, %v7849
        %7851 = vmatmul.f32.gmra.mxu0 %v7634
        %v7852 = vpop.f32.mrf.mxu0
        %v7853 = vadd.f32 0.0, %v7852
        %7854 = vdwg.mxu0
        %7855 = vmatpush.msra.mxu0 0.0
        %7856 = vmatpush.msra.mxu0 0.0
        %7857 = vmatpush.msra.mxu0 0.0
        %7858 = vmatpush.msra.mxu0 0.0
        %7859 = vmatpush.msra.mxu0 0.0
        %7860 = vmatpush.msra.mxu0 0.0
        %7861 = vmatpush.msra.mxu0 0.0
        %7862 = vmatpush.msra.mxu0 0.0
        %7863 = vmatpush.msra.mxu0 %v7826
        %7864 = vmatpush.msra.mxu0 %v7824
        %7865 = vmatpush.msra.mxu0 %v7822
        %7866 = vmatpush.msra.mxu0 %v7820
        %7867 = vmatpush.msra.mxu0 %v7818
        %7868 = vmatpush.msra.mxu0 %v7816
        %7869 = vmatpush.msra.mxu0 %v7814
        %7870 = vmatpush.msra.mxu0 %v7812
        %7871 = vmatmul.f32.gmra.mxu0 %v7828
        %v7872 = vpop.f32.mrf.mxu0
        %v7873 = vadd.f32 %v7850, %v7872
        %7874 = vmatmul.f32.gmra.mxu0 %v7830
        %v7875 = vpop.f32.mrf.mxu0
        %v7876 = vadd.f32 %v7853, %v7875
        %7877 = vdwg.mxu0
        %7878 = vmatpush.msra.mxu0 %v7811
        %7879 = vmatpush.msra.mxu0 %v7809
        %7880 = vmatpush.msra.mxu0 %v7807
        %7881 = vmatpush.msra.mxu0 %v7805
        %7882 = vmatpush.msra.mxu0 %v7803
        %7883 = vmatpush.msra.mxu0 %v7801
        %7884 = vmatpush.msra.mxu0 %v7799
        %7885 = vmatpush.msra.mxu0 %v7797
        %7886 = vmatpush.msra.mxu0 %v7795
        %7887 = vmatpush.msra.mxu0 %v7793
        %7888 = vmatpush.msra.mxu0 %v7791
        %7889 = vmatpush.msra.mxu0 %v7789
        %7890 = vmatpush.msra.mxu0 %v7787
        %7891 = vmatpush.msra.mxu0 %v7785
        %7892 = vmatpush.msra.mxu0 %v7783
        %7893 = vmatpush.msra.mxu0 %v7781
        %7894 = vmatmul.f32.gmra.mxu0 %v7631
        %v7895 = vpop.f32.mrf.mxu0
        %v7896 = vadd.f32 0.0, %v7895
        %7897 = vmatmul.f32.gmra.mxu0 %v7634
        %v7898 = vpop.f32.mrf.mxu0
        %v7899 = vadd.f32 0.0, %v7898
        %7900 = vdwg.mxu0
        %7901 = vmatpush.msra.mxu0 0.0
        %7902 = vmatpush.msra.mxu0 0.0
        %7903 = vmatpush.msra.mxu0 0.0
        %7904 = vmatpush.msra.mxu0 0.0
        %7905 = vmatpush.msra.mxu0 0.0
        %7906 = vmatpush.msra.mxu0 0.0
        %7907 = vmatpush.msra.mxu0 0.0
        %7908 = vmatpush.msra.mxu0 0.0
        %7909 = vmatpush.msra.mxu0 %v7827
        %7910 = vmatpush.msra.mxu0 %v7825
        %7911 = vmatpush.msra.mxu0 %v7823
        %7912 = vmatpush.msra.mxu0 %v7821
        %7913 = vmatpush.msra.mxu0 %v7819
        %7914 = vmatpush.msra.mxu0 %v7817
        %7915 = vmatpush.msra.mxu0 %v7815
        %7916 = vmatpush.msra.mxu0 %v7813
        %7917 = vmatmul.f32.gmra.mxu0 %v7828
        %v7918 = vpop.f32.mrf.mxu0
        %v7919 = vadd.f32 %v7896, %v7918
        %7920 = vmatmul.f32.gmra.mxu0 %v7830
        %v7921 = vpop.f32.mrf.mxu0
        %v7922 = vadd.f32 %v7899, %v7921
        %7923 = vdwg.mxu0
        %v7925 = vsel %vm4822, %v7719, 0
        %v7927 = vsel %vm4822, %v7714, 0
        %7929 = vmatpush.msra.mxu0 %v7761
        %7930 = vmatpush.msra.mxu0 %v7759
        %7931 = vmatpush.msra.mxu0 %v7757
        %7932 = vmatpush.msra.mxu0 %v7755
        %7933 = vmatpush.msra.mxu0 %v7753
        %7934 = vmatpush.msra.mxu0 %v7751
        %7935 = vmatpush.msra.mxu0 %v7749
        %7936 = vmatpush.msra.mxu0 %v7747
        %7937 = vmatpush.msra.mxu0 %v7745
        %7938 = vmatpush.msra.mxu0 %v7743
        %7939 = vmatpush.msra.mxu0 %v7741
        %7940 = vmatpush.msra.mxu0 %v7739
        %7941 = vmatpush.msra.mxu0 %v7737
        %7942 = vmatpush.msra.mxu0 %v7735
        %7943 = vmatpush.msra.mxu0 %v7733
        %7944 = vmatpush.msra.mxu0 %v7731
        %7945 = vmatmul.f32.gmra.mxu0 %v7718
        %v7946 = vpop.f32.mrf.mxu0
        %v7947 = vadd.f32 %v7873, %v7946
        %7948 = vmatmul.f32.gmra.mxu0 %v7712
        %v7949 = vpop.f32.mrf.mxu0
        %v7950 = vadd.f32 %v7876, %v7949
        %7951 = vdwg.mxu0
        %7952 = vmatpush.msra.mxu0 0.0
        %7953 = vmatpush.msra.mxu0 0.0
        %7954 = vmatpush.msra.mxu0 0.0
        %7955 = vmatpush.msra.mxu0 0.0
        %7956 = vmatpush.msra.mxu0 0.0
        %7957 = vmatpush.msra.mxu0 0.0
        %7958 = vmatpush.msra.mxu0 0.0
        %7959 = vmatpush.msra.mxu0 0.0
        %7960 = vmatpush.msra.mxu0 %v7777
        %7961 = vmatpush.msra.mxu0 %v7775
        %7962 = vmatpush.msra.mxu0 %v7773
        %7963 = vmatpush.msra.mxu0 %v7771
        %7964 = vmatpush.msra.mxu0 %v7769
        %7965 = vmatpush.msra.mxu0 %v7767
        %7966 = vmatpush.msra.mxu0 %v7765
        %7967 = vmatpush.msra.mxu0 %v7763
        %7968 = vmatmul.f32.gmra.mxu0 %v7925
        %v7969 = vpop.f32.mrf.mxu0
        %v7970 = vadd.f32 %v7947, %v7969
        %7971 = vmatmul.f32.gmra.mxu0 %v7927
        %v7972 = vpop.f32.mrf.mxu0
        %v7973 = vadd.f32 %v7950, %v7972
        %7974 = vdwg.mxu0
        %7975 = vmatpush.msra.mxu0 %v7762
        %7976 = vmatpush.msra.mxu0 %v7760
        %7977 = vmatpush.msra.mxu0 %v7758
        %7978 = vmatpush.msra.mxu0 %v7756
        %7979 = vmatpush.msra.mxu0 %v7754
        %7980 = vmatpush.msra.mxu0 %v7752
        %7981 = vmatpush.msra.mxu0 %v7750
        %7982 = vmatpush.msra.mxu0 %v7748
        %7983 = vmatpush.msra.mxu0 %v7746
        %7984 = vmatpush.msra.mxu0 %v7744
        %7985 = vmatpush.msra.mxu0 %v7742
        %7986 = vmatpush.msra.mxu0 %v7740
        %7987 = vmatpush.msra.mxu0 %v7738
        %7988 = vmatpush.msra.mxu0 %v7736
        %7989 = vmatpush.msra.mxu0 %v7734
        %7990 = vmatpush.msra.mxu0 %v7732
        %7991 = vmatmul.f32.gmra.mxu0 %v7718
        %v7992 = vpop.f32.mrf.mxu0
        %v7993 = vadd.f32 %v7919, %v7992
        %7994 = vmatmul.f32.gmra.mxu0 %v7712
        %v7995 = vpop.f32.mrf.mxu0
        %v7996 = vadd.f32 %v7922, %v7995
        %7997 = vdwg.mxu0
        %7998 = vmatpush.msra.mxu0 0.0
        %7999 = vmatpush.msra.mxu0 0.0
        %8000 = vmatpush.msra.mxu0 0.0
        %8001 = vmatpush.msra.mxu0 0.0
        %8002 = vmatpush.msra.mxu0 0.0
        %8003 = vmatpush.msra.mxu0 0.0
        %8004 = vmatpush.msra.mxu0 0.0
        %8005 = vmatpush.msra.mxu0 0.0
        %8006 = vmatpush.msra.mxu0 %v7778
        %8007 = vmatpush.msra.mxu0 %v7776
        %8008 = vmatpush.msra.mxu0 %v7774
        %8009 = vmatpush.msra.mxu0 %v7772
        %8010 = vmatpush.msra.mxu0 %v7770
        %8011 = vmatpush.msra.mxu0 %v7768
        %8012 = vmatpush.msra.mxu0 %v7766
        %8013 = vmatpush.msra.mxu0 %v7764
        %8014 = vmatmul.f32.gmra.mxu0 %v7925
        %v8015 = vpop.f32.mrf.mxu0
        %v8016 = vadd.f32 %v7993, %v8015
        %8017 = vmatmul.f32.gmra.mxu0 %v7927
        %v8018 = vpop.f32.mrf.mxu0
        %v8019 = vadd.f32 %v7996, %v8018
        %8020 = vdwg.mxu0
        %s8021 = scalar_lea.vmem [#allocation8], 768
        %v8022 = vld [vmem:[%s8021] sm:$0xff]
        %v8023 = vld [vmem:[%s8021 + $0x8] sm:$0xff]
        %v8024 = vld [vmem:[%s8021 + $0x10] sm:$0xff]
        %v8025 = vld [vmem:[%s8021 + $0x18] sm:$0xff]
        %v8026 = vld [vmem:[%s8021 + $0x20] sm:$0xff]
        %v8027 = vld [vmem:[%s8021 + $0x28] sm:$0xff]
        %v8028 = vld [vmem:[%s8021 + $0x30] sm:$0xff]
        %v8029 = vld [vmem:[%s8021 + $0x38] sm:$0xff]
        %v8030 = vld [vmem:[%s8021 + $0x40] sm:$0xff]
        %v8031 = vld [vmem:[%s8021 + $0x48] sm:$0xff]
        %v8032 = vld [vmem:[%s8021 + $0x50] sm:$0xff]
        %v8033 = vld [vmem:[%s8021 + $0x58] sm:$0xff]
        %v8034 = vld [vmem:[%s8021 + $0x60] sm:$0xff]
        %v8035 = vld [vmem:[%s8021 + $0x68] sm:$0xff]
        %v8036 = vld [vmem:[%s8021 + $0x70] sm:$0xff]
        %v8037 = vld [vmem:[%s8021 + $0x78] sm:$0xff]
        %v8038 = vld [vmem:[%s8021 + $0x80] sm:$0xff]
        %v8039 = vld [vmem:[%s8021 + $0x88] sm:$0xff]
        %v8040 = vld [vmem:[%s8021 + $0x90] sm:$0xff]
        %v8041 = vld [vmem:[%s8021 + $0x98] sm:$0xff]
        %v8042 = vld [vmem:[%s8021 + $0xa0] sm:$0xff]
        %v8043 = vld [vmem:[%s8021 + $0xa8] sm:$0xff]
        %v8044 = vld [vmem:[%s8021 + $0xb0] sm:$0xff]
        %v8045 = vld [vmem:[%s8021 + $0xb8] sm:$0xff]
        %v8046 = vld [vmem:[%s8021 + $0xc0] sm:$0xff]
        %v8047 = vld [vmem:[%s8021 + $0xc8] sm:$0xff]
        %v8048 = vld [vmem:[%s8021 + $0xd0] sm:$0xff]
        %v8049 = vld [vmem:[%s8021 + $0xd8] sm:$0xff]
        %v8050 = vld [vmem:[%s8021 + $0xe0] sm:$0xff]
        %v8051 = vld [vmem:[%s8021 + $0xe8] sm:$0xff]
        %v8052 = vld [vmem:[%s8021 + $0xf0] sm:$0xff]
        %v8053 = vld [vmem:[%s8021 + $0xf8] sm:$0xff]
        %v8054 = vld [vmem:[%s8021 + $0x100] sm:$0xff]
        %v8055 = vld [vmem:[%s8021 + $0x108] sm:$0xff]
        %v8056 = vld [vmem:[%s8021 + $0x110] sm:$0xff]
        %v8057 = vld [vmem:[%s8021 + $0x118] sm:$0xff]
        %v8058 = vld [vmem:[%s8021 + $0x120] sm:$0xff]
        %v8059 = vld [vmem:[%s8021 + $0x128] sm:$0xff]
        %v8060 = vld [vmem:[%s8021 + $0x130] sm:$0xff]
        %v8061 = vld [vmem:[%s8021 + $0x138] sm:$0xff]
        %v8062 = vld [vmem:[%s8021 + $0x140] sm:$0xff]
        %v8063 = vld [vmem:[%s8021 + $0x148] sm:$0xff]
        %v8064 = vld [vmem:[%s8021 + $0x150] sm:$0xff]
        %v8065 = vld [vmem:[%s8021 + $0x158] sm:$0xff]
        %v8066 = vld [vmem:[%s8021 + $0x160] sm:$0xff]
        %v8067 = vld [vmem:[%s8021 + $0x168] sm:$0xff]
        %v8068 = vld [vmem:[%s8021 + $0x170] sm:$0xff]
        %v8069 = vld [vmem:[%s8021 + $0x178] sm:$0xff]
        %v8070 = vsel %vm4822, %v7725, 0
        %v8073 = vsel %vm4822, %v7730, 0
        %8075 = vmatpush.msra.mxu0 %v8052
        %8076 = vmatpush.msra.mxu0 %v8050
        %8077 = vmatpush.msra.mxu0 %v8048
        %8078 = vmatpush.msra.mxu0 %v8046
        %8079 = vmatpush.msra.mxu0 %v8044
        %8080 = vmatpush.msra.mxu0 %v8042
        %8081 = vmatpush.msra.mxu0 %v8040
        %8082 = vmatpush.msra.mxu0 %v8038
        %8083 = vmatpush.msra.mxu0 %v8036
        %8084 = vmatpush.msra.mxu0 %v8034
        %8085 = vmatpush.msra.mxu0 %v8032
        %8086 = vmatpush.msra.mxu0 %v8030
        %8087 = vmatpush.msra.mxu0 %v8028
        %8088 = vmatpush.msra.mxu0 %v8026
        %8089 = vmatpush.msra.mxu0 %v8024
        %8090 = vmatpush.msra.mxu0 %v8022
        %8091 = vmatmul.f32.gmra.mxu0 %v7722
        %v8092 = vpop.f32.mrf.mxu0
        %v8093 = vadd.f32 0.0, %v8092
        %8094 = vmatmul.f32.gmra.mxu0 %v7729
        %v8095 = vpop.f32.mrf.mxu0
        %v8096 = vadd.f32 0.0, %v8095
        %8097 = vdwg.mxu0
        %8098 = vmatpush.msra.mxu0 0.0
        %8099 = vmatpush.msra.mxu0 0.0
        %8100 = vmatpush.msra.mxu0 0.0
        %8101 = vmatpush.msra.mxu0 0.0
        %8102 = vmatpush.msra.mxu0 0.0
        %8103 = vmatpush.msra.mxu0 0.0
        %8104 = vmatpush.msra.mxu0 0.0
        %8105 = vmatpush.msra.mxu0 0.0
        %8106 = vmatpush.msra.mxu0 %v8068
        %8107 = vmatpush.msra.mxu0 %v8066
        %8108 = vmatpush.msra.mxu0 %v8064
        %8109 = vmatpush.msra.mxu0 %v8062
        %8110 = vmatpush.msra.mxu0 %v8060
        %8111 = vmatpush.msra.mxu0 %v8058
        %8112 = vmatpush.msra.mxu0 %v8056
        %8113 = vmatpush.msra.mxu0 %v8054
        %8114 = vmatmul.f32.gmra.mxu0 %v8070
        %v8115 = vpop.f32.mrf.mxu0
        %v8116 = vadd.f32 %v8093, %v8115
        %8117 = vmatmul.f32.gmra.mxu0 %v8073
        %v8118 = vpop.f32.mrf.mxu0
        %v8119 = vadd.f32 %v8096, %v8118
        %8120 = vdwg.mxu0
        %8121 = vmatpush.msra.mxu0 %v8053
        %8122 = vmatpush.msra.mxu0 %v8051
        %8123 = vmatpush.msra.mxu0 %v8049
        %8124 = vmatpush.msra.mxu0 %v8047
        %8125 = vmatpush.msra.mxu0 %v8045
        %8126 = vmatpush.msra.mxu0 %v8043
        %8127 = vmatpush.msra.mxu0 %v8041
        %8128 = vmatpush.msra.mxu0 %v8039
        %8129 = vmatpush.msra.mxu0 %v8037
        %8130 = vmatpush.msra.mxu0 %v8035
        %8131 = vmatpush.msra.mxu0 %v8033
        %8132 = vmatpush.msra.mxu0 %v8031
        %8133 = vmatpush.msra.mxu0 %v8029
        %8134 = vmatpush.msra.mxu0 %v8027
        %8135 = vmatpush.msra.mxu0 %v8025
        %8136 = vmatpush.msra.mxu0 %v8023
        %8137 = vmatmul.f32.gmra.mxu0 %v7722
        %v8138 = vpop.f32.mrf.mxu0
        %v8139 = vadd.f32 0.0, %v8138
        %8140 = vmatmul.f32.gmra.mxu0 %v7729
        %v8141 = vpop.f32.mrf.mxu0
        %v8142 = vadd.f32 0.0, %v8141
        %8143 = vdwg.mxu0
        %8144 = vmatpush.msra.mxu0 0.0
        %8145 = vmatpush.msra.mxu0 0.0
        %8146 = vmatpush.msra.mxu0 0.0
        %8147 = vmatpush.msra.mxu0 0.0
        %8148 = vmatpush.msra.mxu0 0.0
        %8149 = vmatpush.msra.mxu0 0.0
        %8150 = vmatpush.msra.mxu0 0.0
        %8151 = vmatpush.msra.mxu0 0.0
        %8152 = vmatpush.msra.mxu0 %v8069
        %8153 = vmatpush.msra.mxu0 %v8067
        %8154 = vmatpush.msra.mxu0 %v8065
        %8155 = vmatpush.msra.mxu0 %v8063
        %8156 = vmatpush.msra.mxu0 %v8061
        %8157 = vmatpush.msra.mxu0 %v8059
        %8158 = vmatpush.msra.mxu0 %v8057
        %8159 = vmatpush.msra.mxu0 %v8055
        %8160 = vmatmul.f32.gmra.mxu0 %v8070
        %v8161 = vpop.f32.mrf.mxu0
        %v8162 = vadd.f32 %v8139, %v8161
        %8163 = vmatmul.f32.gmra.mxu0 %v8073
        %v8164 = vpop.f32.mrf.mxu0
        %v8165 = vadd.f32 %v8142, %v8164
        %8166 = vdwg.mxu0
        %v8167 = vadd.f32 %v7970, %v8116
        %v8168 = vadd.f32 %v8016, %v8162
        %v8169 = vadd.f32 %v7973, %v8119
        %v8170 = vadd.f32 %v8019, %v8165
        %v8171 = vld [vmem:[%s14] sm:$0x3]
        %v8173 = vperm.slane %v8171, 0
        %v8174 = vperm.slane %v8171, 1
        %v8177 = vadd.f32 %v8167, %v8173
        %v8178 = vadd.f32 %v8168, %v8174
        %v8179 = vadd.f32 %v8169, %v8173
        %v8180 = vadd.f32 %v8170, %v8174
        %v8181 = vmax.f32 %v8177, 0.0
        %v8182 = vmax.f32 %v8178, 0.0
        %v8183 = vmax.f32 %v8179, 0.0
        %v8184 = vmax.f32 %v8180, 0.0
        %8189 = vrot.lane.b32.xlu0 %v8181, 127
        %v8190 = vpop.permute.xlu0 %8189
        %8191 = vrot.lane.b32.xlu0 %v8182, 127
        %v8192 = vpop.permute.xlu0 %8191
        %8193 = vrot.lane.b32.xlu0 %v8183, 127
        %v8194 = vpop.permute.xlu0 %8193
        %8195 = vrot.lane.b32.xlu0 %v8184, 127
        %v8196 = vpop.permute.xlu0 %8195
        %v8197 = vsel %vm3721, %v8190, %v8192
        %v8198 = vsel %vm3721, %v8194, %v8196
        %vm8203 = vcmask 515072
        %v8204 = vsel %vm8203, %v8192, 0.0
        %v8205 = vsel %vm8203, %v8196, 0.0
        %v8206 = vmax.f32 %v8181, %v8197
        %v8207 = vmax.f32 %v8182, %v8204
        %v8208 = vmax.f32 %v8183, %v8198
        %v8209 = vmax.f32 %v8184, %v8205
        %v8214 = vrot.slane %v8206, 1
        %v8215 = vrot.slane %v8208, 1
        %v8216 = vsel %vm1091, %v8214, %v8215
        %v8217 = vrot.slane %v8207, 1
        %v8218 = vrot.slane %v8209, 1
        %v8219 = vsel %vm1091, %v8217, %v8218
        %v8224 = vsel %vm1091, %v8215, 0.0
        %v8225 = vsel %vm1091, %v8218, 0.0
        %v8226 = vmax.f32 %v8206, %v8216
        %v8227 = vmax.f32 %v8207, %v8219
        %v8228 = vmax.f32 %v8208, %v8224
        %v8229 = vmax.f32 %v8209, %v8225
        %v8230 = vld [vmem:[%s15] sm:$0xff]
        %vm8231 = vcmask 130048
        %v8233 = vsel %vm8231, %v8230, 0
        %8235 = vmatpush.msra.mxu0 0.0
        %8236 = vmatpush.msra.mxu0 0.0
        %8237 = vmatpush.msra.mxu0 0.0
        %8238 = vmatpush.msra.mxu0 0.0
        %8239 = vmatpush.msra.mxu0 0.0
        %8240 = vmatpush.msra.mxu0 0.0
        %8241 = vmatpush.msra.mxu0 0.0
        %8242 = vmatpush.msra.mxu0 0.0
        %8243 = vmatpush.msra.mxu0 0.0
        %8244 = vmatpush.msra.mxu0 0.0
        %8245 = vmatpush.msra.mxu0 0.0
        %8246 = vmatpush.msra.mxu0 0.0
        %8247 = vmatpush.msra.mxu0 0.0
        %8248 = vmatpush.msra.mxu0 0.0
        %8249 = vmatpush.msra.mxu0 %v8228
        %8250 = vmatpush.msra.mxu0 %v8226
        %8251 = vmatmul.f32.gmra.mxu0 %v8233
        %v8252 = vpop.f32.mrf.mxu0
        %v8253 = vadd.f32 0.0, %v8252
        %8254 = vdwg.mxu0
        %8255 = vmatpush.msra.mxu0 0.0
        %8256 = vmatpush.msra.mxu0 0.0
        %8257 = vmatpush.msra.mxu0 0.0
        %8258 = vmatpush.msra.mxu0 0.0
        %8259 = vmatpush.msra.mxu0 0.0
        %8260 = vmatpush.msra.mxu0 0.0
        %8261 = vmatpush.msra.mxu0 0.0
        %8262 = vmatpush.msra.mxu0 0.0
        %8263 = vmatpush.msra.mxu0 0.0
        %8264 = vmatpush.msra.mxu0 0.0
        %8265 = vmatpush.msra.mxu0 0.0
        %8266 = vmatpush.msra.mxu0 0.0
        %8267 = vmatpush.msra.mxu0 0.0
        %8268 = vmatpush.msra.mxu0 0.0
        %8269 = vmatpush.msra.mxu0 %v8229
        %8270 = vmatpush.msra.mxu0 %v8227
        %8271 = vmatmul.f32.gmra.mxu0 %v8233
        %v8272 = vpop.f32.mrf.mxu0
        %v8273 = vadd.f32 0.0, %v8272
        %8274 = vdwg.mxu0
        %v8275 = vld [vmem:[#allocation10] sm:$0xff]
        %v8276 = vld [vmem:[#allocation10 + $0x8] sm:$0xff]
        %v8277 = vld [vmem:[#allocation10 + $0x10] sm:$0xff]
        %v8278 = vld [vmem:[#allocation10 + $0x18] sm:$0xff]
        %v8279 = vld [vmem:[#allocation10 + $0x20] sm:$0xff]
        %v8280 = vld [vmem:[#allocation10 + $0x28] sm:$0xff]
        %v8281 = vld [vmem:[#allocation10 + $0x30] sm:$0xff]
        %v8282 = vld [vmem:[#allocation10 + $0x38] sm:$0xff]
        %v8283 = vld [vmem:[#allocation10 + $0x40] sm:$0xff]
        %v8284 = vld [vmem:[#allocation10 + $0x48] sm:$0xff]
        %v8285 = vld [vmem:[#allocation10 + $0x50] sm:$0xff]
        %v8286 = vld [vmem:[#allocation10 + $0x58] sm:$0xff]
        %v8287 = vld [vmem:[#allocation10 + $0x60] sm:$0xff]
        %v8288 = vld [vmem:[#allocation10 + $0x68] sm:$0xff]
        %v8289 = vld [vmem:[#allocation10 + $0x70] sm:$0xff]
        %v8290 = vld [vmem:[#allocation10 + $0x78] sm:$0xff]
        %v8291 = vld [vmem:[#allocation10 + $0x80] sm:$0xff]
        %v8292 = vld [vmem:[#allocation10 + $0x88] sm:$0xff]
        %v8293 = vld [vmem:[#allocation10 + $0x90] sm:$0xff]
        %v8294 = vld [vmem:[#allocation10 + $0x98] sm:$0xff]
        %v8295 = vld [vmem:[#allocation10 + $0xa0] sm:$0xff]
        %v8296 = vld [vmem:[#allocation10 + $0xa8] sm:$0xff]
        %v8297 = vld [vmem:[#allocation10 + $0xb0] sm:$0xff]
        %v8298 = vld [vmem:[#allocation10 + $0xb8] sm:$0xff]
        %v8300 = vsel %vm4822, %v8273, 0
        %8302 = vmatpush.msra.mxu0 %v8290
        %8303 = vmatpush.msra.mxu0 %v8289
        %8304 = vmatpush.msra.mxu0 %v8288
        %8305 = vmatpush.msra.mxu0 %v8287
        %8306 = vmatpush.msra.mxu0 %v8286
        %8307 = vmatpush.msra.mxu0 %v8285
        %8308 = vmatpush.msra.mxu0 %v8284
        %8309 = vmatpush.msra.mxu0 %v8283
        %8310 = vmatpush.msra.mxu0 %v8282
        %8311 = vmatpush.msra.mxu0 %v8281
        %8312 = vmatpush.msra.mxu0 %v8280
        %8313 = vmatpush.msra.mxu0 %v8279
        %8314 = vmatpush.msra.mxu0 %v8278
        %8315 = vmatpush.msra.mxu0 %v8277
        %8316 = vmatpush.msra.mxu0 %v8276
        %8317 = vmatpush.msra.mxu0 %v8275
        %8318 = vmatmul.f32.gmra.mxu0 %v8253
        %v8319 = vpop.f32.mrf.mxu0
        %v8320 = vadd.f32 0.0, %v8319
        %8321 = vdwg.mxu0
        %8322 = vmatpush.msra.mxu0 0.0
        %8323 = vmatpush.msra.mxu0 0.0
        %8324 = vmatpush.msra.mxu0 0.0
        %8325 = vmatpush.msra.mxu0 0.0
        %8326 = vmatpush.msra.mxu0 0.0
        %8327 = vmatpush.msra.mxu0 0.0
        %8328 = vmatpush.msra.mxu0 0.0
        %8329 = vmatpush.msra.mxu0 0.0
        %8330 = vmatpush.msra.mxu0 %v8298
        %8331 = vmatpush.msra.mxu0 %v8297
        %8332 = vmatpush.msra.mxu0 %v8296
        %8333 = vmatpush.msra.mxu0 %v8295
        %8334 = vmatpush.msra.mxu0 %v8294
        %8335 = vmatpush.msra.mxu0 %v8293
        %8336 = vmatpush.msra.mxu0 %v8292
        %8337 = vmatpush.msra.mxu0 %v8291
        %8338 = vmatmul.f32.gmra.mxu0 %v8300
        %v8339 = vpop.f32.mrf.mxu0
        %v8340 = vadd.f32 %v8320, %v8339
        %8341 = vdwg.mxu0
        %v8343 = vrot.slane %v8340, 7
        %v8345 = vsel %vm946, 0.0, %v8343
        %v8346 = vrot.slane %v8340, 1
        %v8348 = vsel %vm1091, %v8346, 0.0
        %v8349 = vld [vmem:[%s17] sm:$0xff]
        %v8350 = vld [vmem:[%s17 + $0x8] sm:$0xff]
        %v8351 = vld [vmem:[%s17 + $0x10] sm:$0xff]
        %v8352 = vld [vmem:[%s17 + $0x18] sm:$0xff]
        %v8353 = vld [vmem:[%s17 + $0x20] sm:$0xff]
        %v8354 = vld [vmem:[%s17 + $0x28] sm:$0xff]
        %v8355 = vld [vmem:[%s17 + $0x30] sm:$0xff]
        %v8356 = vld [vmem:[%s17 + $0x38] sm:$0xff]
        %v8357 = vld [vmem:[%s17 + $0x40] sm:$0xff]
        %v8358 = vld [vmem:[%s17 + $0x48] sm:$0xff]
        %v8359 = vld [vmem:[%s17 + $0x50] sm:$0xff]
        %v8360 = vld [vmem:[%s17 + $0x58] sm:$0xff]
        %s8361 = scalar_lea.vmem %s17, 96
        %v8362 = vld [vmem:[%s8361] sm:$0xff]
        %v8363 = vld [vmem:[%s8361 + $0x8] sm:$0xff]
        %v8364 = vld [vmem:[%s8361 + $0x10] sm:$0xff]
        %v8365 = vld [vmem:[%s8361 + $0x18] sm:$0xff]
        %v8366 = vld [vmem:[%s8361 + $0x20] sm:$0xff]
        %v8367 = vld [vmem:[%s8361 + $0x28] sm:$0xff]
        %v8368 = vld [vmem:[%s8361 + $0x30] sm:$0xff]
        %v8369 = vld [vmem:[%s8361 + $0x38] sm:$0xff]
        %v8370 = vld [vmem:[%s8361 + $0x40] sm:$0xff]
        %v8371 = vld [vmem:[%s8361 + $0x48] sm:$0xff]
        %v8372 = vld [vmem:[%s8361 + $0x50] sm:$0xff]
        %v8373 = vld [vmem:[%s8361 + $0x58] sm:$0xff]
        %vm8374 = vcmask 785408
        %v8375 = vsel %vm8374, %v8340, 0
        %8377 = vmatpush.msra.mxu0 0.0
        %8378 = vmatpush.msra.mxu0 0.0
        %8379 = vmatpush.msra.mxu0 0.0
        %8380 = vmatpush.msra.mxu0 0.0
        %8381 = vmatpush.msra.mxu0 %v8373
        %8382 = vmatpush.msra.mxu0 %v8372
        %8383 = vmatpush.msra.mxu0 %v8371
        %8384 = vmatpush.msra.mxu0 %v8370
        %8385 = vmatpush.msra.mxu0 %v8369
        %8386 = vmatpush.msra.mxu0 %v8368
        %8387 = vmatpush.msra.mxu0 %v8367
        %8388 = vmatpush.msra.mxu0 %v8366
        %8389 = vmatpush.msra.mxu0 %v8365
        %8390 = vmatpush.msra.mxu0 %v8364
        %8391 = vmatpush.msra.mxu0 %v8363
        %8392 = vmatpush.msra.mxu0 %v8362
        %8393 = vmatmul.f32.gmra.mxu0 %v8375
        %v8394 = vpop.f32.mrf.mxu0
        %v8395 = vadd.f32 0.0, %v8394
        %8396 = vdwg.mxu0
        %v8398 = vsel %vm8374, %v8345, 0
        %8400 = vmatpush.msra.mxu0 0.0
        %8401 = vmatpush.msra.mxu0 0.0
        %8402 = vmatpush.msra.mxu0 0.0
        %8403 = vmatpush.msra.mxu0 0.0
        %8404 = vmatpush.msra.mxu0 %v8360
        %8405 = vmatpush.msra.mxu0 %v8359
        %8406 = vmatpush.msra.mxu0 %v8358
        %8407 = vmatpush.msra.mxu0 %v8357
        %8408 = vmatpush.msra.mxu0 %v8356
        %8409 = vmatpush.msra.mxu0 %v8355
        %8410 = vmatpush.msra.mxu0 %v8354
        %8411 = vmatpush.msra.mxu0 %v8353
        %8412 = vmatpush.msra.mxu0 %v8352
        %8413 = vmatpush.msra.mxu0 %v8351
        %8414 = vmatpush.msra.mxu0 %v8350
        %8415 = vmatpush.msra.mxu0 %v8349
        %8416 = vmatmul.f32.gmra.mxu0 %v8398
        %v8417 = vpop.f32.mrf.mxu0
        %v8418 = vadd.f32 %v8395, %v8417
        %8419 = vdwg.mxu0
        %s8420 = scalar_lea.vmem %s17, 192
        %v8421 = vld [vmem:[%s8420] sm:$0xff]
        %v8422 = vld [vmem:[%s8420 + $0x8] sm:$0xff]
        %v8423 = vld [vmem:[%s8420 + $0x10] sm:$0xff]
        %v8424 = vld [vmem:[%s8420 + $0x18] sm:$0xff]
        %v8425 = vld [vmem:[%s8420 + $0x20] sm:$0xff]
        %v8426 = vld [vmem:[%s8420 + $0x28] sm:$0xff]
        %v8427 = vld [vmem:[%s8420 + $0x30] sm:$0xff]
        %v8428 = vld [vmem:[%s8420 + $0x38] sm:$0xff]
        %v8429 = vld [vmem:[%s8420 + $0x40] sm:$0xff]
        %v8430 = vld [vmem:[%s8420 + $0x48] sm:$0xff]
        %v8431 = vld [vmem:[%s8420 + $0x50] sm:$0xff]
        %v8432 = vld [vmem:[%s8420 + $0x58] sm:$0xff]
        %v8434 = vsel %vm8374, %v8348, 0
        %8436 = vmatpush.msra.mxu0 0.0
        %8437 = vmatpush.msra.mxu0 0.0
        %8438 = vmatpush.msra.mxu0 0.0
        %8439 = vmatpush.msra.mxu0 0.0
        %8440 = vmatpush.msra.mxu0 %v8432
        %8441 = vmatpush.msra.mxu0 %v8431
        %8442 = vmatpush.msra.mxu0 %v8430
        %8443 = vmatpush.msra.mxu0 %v8429
        %8444 = vmatpush.msra.mxu0 %v8428
        %8445 = vmatpush.msra.mxu0 %v8427
        %8446 = vmatpush.msra.mxu0 %v8426
        %8447 = vmatpush.msra.mxu0 %v8425
        %8448 = vmatpush.msra.mxu0 %v8424
        %8449 = vmatpush.msra.mxu0 %v8423
        %8450 = vmatpush.msra.mxu0 %v8422
        %8451 = vmatpush.msra.mxu0 %v8421
        %8452 = vmatmul.f32.gmra.mxu0 %v8434
        %v8453 = vpop.f32.mrf.mxu0
        %v8454 = vadd.f32 0.0, %v8453
        %8455 = vdwg.mxu0
        %v8456 = vadd.f32 %v8418, %v8454
        %v8457 = vld [vmem:[%s18] sm:$0x1]
        %v8459 = vperm.slane %v8457, 0
        %v8461 = vadd.f32 %v8456, %v8459
        %v8462 = vmax.f32 %v8461, 0.0
        %8464 = vrot.lane.b32.xlu0 %v8462, 127
        %v8465 = vpop.permute.xlu0 %8464
        %vm8467 = vcmask 777216
        %v8468 = vsel %vm8467, %v8465, 0.0
        %v8469 = vmax.f32 %v8462, %v8468
        %v8471 = vrot.slane %v8469, 1
        %v8473 = vsel %vm1091, %v8471, 0.0
        %v8474 = vmax.f32 %v8469, %v8473
        %v8475 = vld [vmem:[%s19] sm:$0xf]
        %vm8476 = vcmask 64512
        %v8478 = vsel %vm8476, %v8475, 0
        %8480 = vmatpush.msra.mxu0 0.0
        %8481 = vmatpush.msra.mxu0 0.0
        %8482 = vmatpush.msra.mxu0 0.0
        %8483 = vmatpush.msra.mxu0 0.0
        %8484 = vmatpush.msra.mxu0 0.0
        %8485 = vmatpush.msra.mxu0 0.0
        %8486 = vmatpush.msra.mxu0 0.0
        %8487 = vmatpush.msra.mxu0 0.0
        %8488 = vmatpush.msra.mxu0 0.0
        %8489 = vmatpush.msra.mxu0 0.0
        %8490 = vmatpush.msra.mxu0 0.0
        %8491 = vmatpush.msra.mxu0 0.0
        %8492 = vmatpush.msra.mxu0 0.0
        %8493 = vmatpush.msra.mxu0 0.0
        %8494 = vmatpush.msra.mxu0 0.0
        %8495 = vmatpush.msra.mxu0 %v8474
        %8496 = vmatmul.f32.gmra.mxu0 %v8478
        %v8497 = vpop.f32.mrf.mxu0
        %v8498 = vadd.f32 0.0, %v8497
        %8499 = vdwg.mxu0
        %v8500 = vld [vmem:[%s20] sm:$0xff]
        %v8501 = vld [vmem:[%s20 + $0x8] sm:$0xff]
        %v8502 = vld [vmem:[%s20 + $0x10] sm:$0xff]
        %v8503 = vld [vmem:[%s20 + $0x18] sm:$0xff]
        %v8504 = vld [vmem:[%s20 + $0x20] sm:$0xff]
        %v8505 = vld [vmem:[%s20 + $0x28] sm:$0xff]
        %v8506 = vld [vmem:[%s20 + $0x30] sm:$0xff]
        %v8507 = vld [vmem:[%s20 + $0x38] sm:$0xff]
        %v8508 = vld [vmem:[%s20 + $0x40] sm:$0xff]
        %v8509 = vld [vmem:[%s20 + $0x48] sm:$0xff]
        %v8510 = vld [vmem:[%s20 + $0x50] sm:$0xff]
        %v8511 = vld [vmem:[%s20 + $0x58] sm:$0xff]
        %v8513 = vsel %vm8374, %v8498, 0
        %8515 = vmatpush.msra.mxu0 0.0
        %8516 = vmatpush.msra.mxu0 0.0
        %8517 = vmatpush.msra.mxu0 0.0
        %8518 = vmatpush.msra.mxu0 0.0
        %8519 = vmatpush.msra.mxu0 %v8511
        %8520 = vmatpush.msra.mxu0 %v8510
        %8521 = vmatpush.msra.mxu0 %v8509
        %8522 = vmatpush.msra.mxu0 %v8508
        %8523 = vmatpush.msra.mxu0 %v8507
        %8524 = vmatpush.msra.mxu0 %v8506
        %8525 = vmatpush.msra.mxu0 %v8505
        %8526 = vmatpush.msra.mxu0 %v8504
        %8527 = vmatpush.msra.mxu0 %v8503
        %8528 = vmatpush.msra.mxu0 %v8502
        %8529 = vmatpush.msra.mxu0 %v8501
        %8530 = vmatpush.msra.mxu0 %v8500
        %8531 = vmatmul.f32.gmra.mxu0 %v8513
        %v8532 = vpop.f32.mrf.mxu0
        %v8533 = vadd.f32 0.0, %v8532
        %8534 = vdwg.mxu0
        %v8535 = vld [vmem:[%s22] sm:$0x1]
        %v8536 = vld [vmem:[%s21] sm:$0xff]
        %v8537 = vld [vmem:[%s21 + $0x8] sm:$0xff]
        %v8538 = vld [vmem:[%s21 + $0x10] sm:$0xff]
        %v8539 = vld [vmem:[%s21 + $0x18] sm:$0xff]
        %v8540 = vld [vmem:[%s21 + $0x20] sm:$0xff]
        %v8541 = vld [vmem:[%s21 + $0x28] sm:$0xff]
        %vm8542 = vcmask 392192
        %v8544 = vsel %vm8542, %v8533, 0
        %8546 = vmatpush.msra.mxu0 0.0
        %8547 = vmatpush.msra.mxu0 0.0
        %8548 = vmatpush.msra.mxu0 0.0
        %8549 = vmatpush.msra.mxu0 0.0
        %8550 = vmatpush.msra.mxu0 0.0
        %8551 = vmatpush.msra.mxu0 0.0
        %8552 = vmatpush.msra.mxu0 0.0
        %8553 = vmatpush.msra.mxu0 0.0
        %8554 = vmatpush.msra.mxu0 0.0
        %8555 = vmatpush.msra.mxu0 0.0
        %8556 = vmatpush.msra.mxu0 %v8541
        %8557 = vmatpush.msra.mxu0 %v8540
        %8558 = vmatpush.msra.mxu0 %v8539
        %8559 = vmatpush.msra.mxu0 %v8538
        %8560 = vmatpush.msra.mxu0 %v8537
        %8561 = vmatpush.msra.mxu0 %v8536
        %8562 = vmatmul.f32.gmra.mxu0 %v8544
        %v8563 = vpop.f32.mrf.mxu0
        %v8564 = vadd.f32 0.0, %v8563
        %8565 = vdwg.mxu0
        %v8566 = vadd.f32 %v8535, %v8564
        %s8567 = scalar_lea.vmem %s21, 48
        %v8568 = vld [vmem:[%s8567] sm:$0xff]
        %v8569 = vld [vmem:[%s8567 + $0x8] sm:$0xff]
        %v8570 = vld [vmem:[%s8567 + $0x10] sm:$0xff]
        %v8571 = vld [vmem:[%s8567 + $0x18] sm:$0xff]
        %v8572 = vld [vmem:[%s8567 + $0x20] sm:$0xff]
        %v8573 = vld [vmem:[%s8567 + $0x28] sm:$0xff]
        %v8574 = vrot.slane %v8533, 1
        %v8575 = vsel %vm8542, %v8574, 0
        %8577 = vmatpush.msra.mxu0 0.0
        %8578 = vmatpush.msra.mxu0 0.0
        %8579 = vmatpush.msra.mxu0 0.0
        %8580 = vmatpush.msra.mxu0 0.0
        %8581 = vmatpush.msra.mxu0 0.0
        %8582 = vmatpush.msra.mxu0 0.0
        %8583 = vmatpush.msra.mxu0 0.0
        %8584 = vmatpush.msra.mxu0 0.0
        %8585 = vmatpush.msra.mxu0 0.0
        %8586 = vmatpush.msra.mxu0 0.0
        %8587 = vmatpush.msra.mxu0 %v8573
        %8588 = vmatpush.msra.mxu0 %v8572
        %8589 = vmatpush.msra.mxu0 %v8571
        %8590 = vmatpush.msra.mxu0 %v8570
        %8591 = vmatpush.msra.mxu0 %v8569
        %8592 = vmatpush.msra.mxu0 %v8568
        %8593 = vmatmul.f32.gmra.mxu0 %v8575
        %v8594 = vpop.f32.mrf.mxu0
        %v8595 = vadd.f32 0.0, %v8594
        %8596 = vdwg.mxu0
        %v8597 = vadd.f32 %v8566, %v8595
        %s8598 = scalar_lea.vmem %s21, 96
        %v8599 = vld [vmem:[%s8598] sm:$0xff]
        %v8600 = vld [vmem:[%s8598 + $0x8] sm:$0xff]
        %v8601 = vld [vmem:[%s8598 + $0x10] sm:$0xff]
        %v8602 = vld [vmem:[%s8598 + $0x18] sm:$0xff]
        %v8603 = vld [vmem:[%s8598 + $0x20] sm:$0xff]
        %v8604 = vld [vmem:[%s8598 + $0x28] sm:$0xff]
        %v8605 = vrot.slane %v8533, 2
        %v8606 = vsel %vm8542, %v8605, 0
        %8608 = vmatpush.msra.mxu0 0.0
        %8609 = vmatpush.msra.mxu0 0.0
        %8610 = vmatpush.msra.mxu0 0.0
        %8611 = vmatpush.msra.mxu0 0.0
        %8612 = vmatpush.msra.mxu0 0.0
        %8613 = vmatpush.msra.mxu0 0.0
        %8614 = vmatpush.msra.mxu0 0.0
        %8615 = vmatpush.msra.mxu0 0.0
        %8616 = vmatpush.msra.mxu0 0.0
        %8617 = vmatpush.msra.mxu0 0.0
        %8618 = vmatpush.msra.mxu0 %v8604
        %8619 = vmatpush.msra.mxu0 %v8603
        %8620 = vmatpush.msra.mxu0 %v8602
        %8621 = vmatpush.msra.mxu0 %v8601
        %8622 = vmatpush.msra.mxu0 %v8600
        %8623 = vmatpush.msra.mxu0 %v8599
        %8624 = vmatmul.f32.gmra.mxu0 %v8606
        %v8625 = vpop.f32.mrf.mxu0
        %v8626 = vadd.f32 0.0, %v8625
        %8627 = vdwg.mxu0
        %v8628 = vadd.f32 %v8597, %v8626
        %s8629 = scalar_lea.vmem %s21, 144
        %v8630 = vld [vmem:[%s8629] sm:$0xff]
        %v8631 = vld [vmem:[%s8629 + $0x8] sm:$0xff]
        %v8632 = vld [vmem:[%s8629 + $0x10] sm:$0xff]
        %v8633 = vld [vmem:[%s8629 + $0x18] sm:$0xff]
        %v8634 = vld [vmem:[%s8629 + $0x20] sm:$0xff]
        %v8635 = vld [vmem:[%s8629 + $0x28] sm:$0xff]
        %v8636 = vrot.slane %v8533, 3
        %v8637 = vsel %vm8542, %v8636, 0
        %8639 = vmatpush.msra.mxu0 0.0
        %8640 = vmatpush.msra.mxu0 0.0
        %8641 = vmatpush.msra.mxu0 0.0
        %8642 = vmatpush.msra.mxu0 0.0
        %8643 = vmatpush.msra.mxu0 0.0
        %8644 = vmatpush.msra.mxu0 0.0
        %8645 = vmatpush.msra.mxu0 0.0
        %8646 = vmatpush.msra.mxu0 0.0
        %8647 = vmatpush.msra.mxu0 0.0
        %8648 = vmatpush.msra.mxu0 0.0
        %8649 = vmatpush.msra.mxu0 %v8635
        %8650 = vmatpush.msra.mxu0 %v8634
        %8651 = vmatpush.msra.mxu0 %v8633
        %8652 = vmatpush.msra.mxu0 %v8632
        %8653 = vmatpush.msra.mxu0 %v8631
        %8654 = vmatpush.msra.mxu0 %v8630
        %8655 = vmatmul.f32.gmra.mxu0 %v8637
        %v8656 = vpop.f32.mrf.mxu0
        %v8657 = vadd.f32 0.0, %v8656
        %8658 = vdwg.mxu0
        %v8659 = vadd.f32 %v8628, %v8657
        %v8660 = vmax.f32 %v8659, 0.0
        %v8661 = vld [vmem:[%s23] sm:$0xff]
        %v8662 = vld [vmem:[%s23 + $0x8] sm:$0xff]
        %v8663 = vld [vmem:[%s23 + $0x10] sm:$0xf]
        %v8664 = vld [vmem:[%s24] sm:$0x1]
        %vm8665 = vcmask 162816
        %v8667 = vsel %vm8665, %v8660, 0
        %vm8669 = vcmask 1043456
        %v8671 = vsel %vm8669, %v8663, 0
        %8673 = vmatpush.msra.mxu0 0.0
        %8674 = vmatpush.msra.mxu0 0.0
        %8675 = vmatpush.msra.mxu0 0.0
        %8676 = vmatpush.msra.mxu0 0.0
        %8677 = vmatpush.msra.mxu0 0.0
        %8678 = vmatpush.msra.mxu0 0.0
        %8679 = vmatpush.msra.mxu0 0.0
        %8680 = vmatpush.msra.mxu0 0.0
        %8681 = vmatpush.msra.mxu0 0.0
        %8682 = vmatpush.msra.mxu0 0.0
        %8683 = vmatpush.msra.mxu0 0.0
        %8684 = vmatpush.msra.mxu0 0.0
        %8685 = vmatpush.msra.mxu0 0.0
        %8686 = vmatpush.msra.mxu0 %v8671
        %8687 = vmatpush.msra.mxu0 %v8662
        %8688 = vmatpush.msra.mxu0 %v8661
        %8689 = vmatmul.f32.gmra.mxu0 %v8667
        %v8690 = vpop.f32.mrf.mxu0
        %v8691 = vadd.f32 %v8664, %v8690
        %8692 = vdwg.mxu0
        %vm8693 = vcmask 40960
        %8694 = vst.msk [vmem:[%s849] sm:$0x1] %vm8693, %v8691
        %s8695 = sand.u32 %s582, 1
        %s8696 = scalar_lea.sflag [#allocation4], %s8695
        %s8697 = sand.u32 %s582, 1
        %s8698 = scalar_lea.vmem [#allocation11], %s8697
        // Predicated region
        $region141: #{tpu_custom_call.1} parent=119 // pred_check
          %p8699 = pneg %p592
        $region142: #{tpu_custom_call.1} parent=119 // pred_check_branch
          %8701 = sbr.rel (%p8699) target = $region144
        $region143: #{tpu_custom_call.1} parent=119 // pred_region
          %8703 = vsyncadd %s8696, 0
          %s8704 = scalar_lea.hbm %s25, %s44
          %s8706 = sshll.u32 %s8698, 4
          %s8707 = int_to_ptr.vmem [resolvable:$true] %s8706
          %s8708 = sshll.u32 %s8704, 4
          %s8709 = int_to_ptr.hbm [resolvable:$true] %s8708
          %8711 = dma.vmem_to_hbm [thread:$0]  %s8707, 16, %s8709, %s8696
        $region144: #{tpu_custom_call.1} parent=119 // pred_fallthru
          _
      $region120: #{tpu_custom_call.1} parent=5 // pred_fallthru
        _
      %p8712 = scmp.le.s32.totalorder 2, %s39
      // Predicated region
      $region145: #{tpu_custom_call.1} parent=5 // pred_check
        %p8713 = pneg %p8712
      $region146: #{tpu_custom_call.1} parent=5 // pred_check_branch
        %8715 = sbr.rel (%p8713) target = $region148
      $region147: #{tpu_custom_call.1} parent=5 // pred_region
        %s8716 = ssub.s32 %s39, 2
        // Predicated region
        $region149: #{tpu_custom_call.1} parent=147 // pred_check
          %p8717 = pneg %p598
        $region150: #{tpu_custom_call.1} parent=147 // pred_check_branch
          %8719 = sbr.rel (%p8717) target = $region152
        $region151: #{tpu_custom_call.1} parent=147 // pred_region
          %s8720 = sand.u32 %s583, 1
          %s8721 = scalar_lea.sflag [#allocation4], %s8720
          %s8722 = sand.u32 %s583, 1
          %s8723 = scalar_lea.vmem [#allocation11], %s8722
          %8725 = dma.done %s8721, 16
        $region152: #{tpu_custom_call.1} parent=147 // pred_fallthru
          _
      $region148: #{tpu_custom_call.1} parent=5 // pred_fallthru
        _
    $region6: #{tpu_custom_call.1} parent=1 // loop_footer
      %s43 = sadd.s32 1, %s39
    $region7: #{tpu_custom_call.1} parent=1 // loop_footer_branch
      %38 = sbr.rel target = $region3
    $region8: #{tpu_custom_call.1} parent=1 // loop_exit
      _
    %8726 = vsyncpa [#allocation3], 1
    %s8727 = scalar_lea.sflag [#allocation3], 1
    %8728 = vsyncpa %s8727, 1
    %8729 = vsyncpa [#allocation6], 1
    %8730 = vsyncpa [#allocation9], 1
    %8731 = vsyncpa [#allocation4], 1
    %s8732 = scalar_lea.sflag [#allocation4], 1
    %8733 = vsyncpa %s8732, 1

</llo_original>
